<compile_context>
chip_gen: v6e
topology: v6e:2x2x1
jax: 0.10.0
libtpu: 0.0.40
codegen_flags: <defaults>
</compile_context>

<pallas_src>
import functools

import jax
import jax.numpy as jnp
import numpy as np
from jax import lax
from jax.experimental import pallas as pl
from jax.experimental.pallas import tpu as pltpu


def _round_up(x, m):
    return (x + m - 1) // m * m


def _gat_kernel(m_ref, ptop_ref, pbot_ref, src_ref, tgt_ref, tgtr_ref,
                out_ref, acc_ref, *,
                alpha, n_pad, f_out, f_pad, edge_tile, compute_dtype):
    step = pl.program_id(0)

    @pl.when(step == 0)
    def _init():
        acc_ref[...] = jnp.zeros_like(acc_ref)

    # ---- gather: edge-major one-hots x node payload (plain [M,K]x[K,N]) ------
    src_col = src_ref[...]                                   # [tE, 1] int32
    tgt_col = tgt_ref[...]                                   # [tE, 1] int32
    lane_n = lax.broadcasted_iota(jnp.int32, (edge_tile, n_pad), 1)
    g_src = jnp.where(lane_n == src_col, 1.0, 0.0).astype(compute_dtype)  # [tE, Np]
    g_tgt = jnp.where(lane_n == tgt_col, 1.0, 0.0).astype(compute_dtype)  # [tE, Np]

    # ptop lanes: [:Fo] = Wh, Fo = 1 (denominator indicator), Fo+1 = s1.
    # pbot lanes: Fo+2 = s2.  Padded edges use sentinel index n_pad -> all-zero
    # one-hot rows -> gathered row is exactly zero.
    gathered = (
        jnp.dot(g_src, ptop_ref[...], preferred_element_type=jnp.float32)
        + jnp.dot(g_tgt, pbot_ref[...], preferred_element_type=jnp.float32)
    )                                                        # [tE, Fp] f32

    # ---- edge scores -> softmax numerators ------------------------------------
    e = gathered[:, f_out + 1:f_out + 2] + gathered[:, f_out + 2:f_out + 3]
    e = jnp.where(e > 0, e, alpha * e)                       # LeakyReLU(alpha)
    # m is the exact max over real edges, so e - m <= 0 for them; the clamp only
    # protects padded edges (all-zero gather -> e = 0) and bf16 score rounding
    # from exp overflow.
    w = jnp.exp(jnp.minimum(e - m_ref[0, 0], 0.0))           # [tE, 1]
    weighted = gathered * w                                  # lane Fo carries w

    # ---- scatter-add onto target nodes (numerator cols + denominator lane) ----
    tgt_row = tgtr_ref[...]                                  # [1, tE] int32
    sub_n = lax.broadcasted_iota(jnp.int32, (n_pad, edge_tile), 0)
    t1h = jnp.where(sub_n == tgt_row, 1.0, 0.0).astype(compute_dtype)    # [Np, tE]
    acc_ref[...] += jnp.dot(t1h, weighted.astype(compute_dtype),
                            preferred_element_type=jnp.float32)

    # ---- last step: normalize + ELU, lane-dense store --------------------------
    @pl.when(step == pl.num_programs(0) - 1)
    def _finalize():
        acc = acc_ref[...]                                   # [Np, Fp]
        denom = acc[:, f_out:f_out + 1]                      # per-node sum of exp
        hp = acc * pl.reciprocal(denom + 1e-16, approx=True)
        lane = lax.broadcasted_iota(jnp.int32, (n_pad, f_pad), 1)
        hp = jnp.where(lane < f_out, hp, 0.0)                # zero the helper lanes
        out_ref[...] = jnp.where(hp > 0, hp, jnp.exp(hp) - 1.0)   # ELU (concat=True)


def gat_forward(h, W, a, src, tgt, *, alpha, edge_tile=512,
                compute_dtype=jnp.bfloat16, single_buffer_constants=True):
    """Forward pass of one GAT layer (concat=True, dropout=0 / eval mode)."""
    n = h.shape[0]
    f_out = W.shape[1]
    n_edges = src.shape[0]

    h = h.astype(jnp.float32)
    W = W.astype(jnp.float32)
    a = a.astype(jnp.float32)
    src = src.astype(jnp.int32)
    tgt = tgt.astype(jnp.int32)

    # ---- dense / per-node precompute in XLA (review: hoist the step-0 GEMM) ----
    wh = h @ W                                               # [n, Fo]
    s1 = wh @ a[:f_out, 0]                                   # [n]
    s2 = wh @ a[f_out:, 0]                                   # [n]
    e_all = s1[src] + s2[tgt]
    e_all = jnp.where(e_all > 0, e_all, alpha * e_all)
    m = jnp.max(e_all).reshape(1, 1).astype(jnp.float32)     # exact reference shift

    # ---- padding / layout --------------------------------------------------------
    sub_align = 16 if jnp.dtype(compute_dtype).itemsize < 4 else 8
    n_pad = _round_up(max(n, sub_align), sub_align)
    # +3 helper lanes (denominator indicator, s1, s2).  NOTE: when f_out is already
    # a multiple of 128 this costs a whole extra 128-lane slab (review item 11).
    f_pad = _round_up(f_out + 3, 128)
    e_pad = _round_up(max(n_edges, edge_tile), edge_tile)
    num_tiles = e_pad // edge_tile

    ptop = jnp.zeros((n_pad, f_pad), jnp.float32)
    ptop = ptop.at[:n, :f_out].set(wh)
    ptop = ptop.at[:n, f_out].set(1.0)                       # denominator indicator
    ptop = ptop.at[:n, f_out + 1].set(s1)
    pbot = jnp.zeros((n_pad, f_pad), jnp.float32)
    pbot = pbot.at[:n, f_out + 2].set(s2)
    ptop = ptop.astype(compute_dtype)
    pbot = pbot.astype(compute_dtype)

    sentinel = n_pad                                         # matches no node row
    src_col = jnp.full((e_pad, 1), sentinel, jnp.int32).at[:n_edges, 0].set(src)
    tgt_col = jnp.full((e_pad, 1), sentinel, jnp.int32).at[:n_edges, 0].set(tgt)
    tgt_row = jnp.full((1, e_pad), sentinel, jnp.int32).at[0, :n_edges].set(tgt)

    kernel = functools.partial(
        _gat_kernel, alpha=float(alpha), n_pad=n_pad, f_out=f_out, f_pad=f_pad,
        edge_tile=edge_tile, compute_dtype=compute_dtype)

    def _call(const_buffering):
        # Constant-index payload inputs optionally single-buffered (v7x VMEM).
        const_kw = {} if const_buffering is None else dict(pipeline_mode=const_buffering)
        grid_spec = pltpu.PrefetchScalarGridSpec(
            num_scalar_prefetch=0,
            grid=(num_tiles,),
            in_specs=[
                pl.BlockSpec(memory_space=pltpu.MemorySpace.SMEM),           # m shift
                pl.BlockSpec((n_pad, f_pad), lambda i: (0, 0), **const_kw),  # ptop
                pl.BlockSpec((n_pad, f_pad), lambda i: (0, 0), **const_kw),  # pbot
                pl.BlockSpec((edge_tile, 1), lambda i: (i, 0)),              # src col
                pl.BlockSpec((edge_tile, 1), lambda i: (i, 0)),              # tgt col
                pl.BlockSpec((1, edge_tile), lambda i: (0, i)),              # tgt row
            ],
            out_specs=pl.BlockSpec((n_pad, f_pad), lambda i: (0, 0)),
            scratch_shapes=[pltpu.VMEM((n_pad, f_pad), jnp.float32)],        # acc
        )
        return pl.pallas_call(
            kernel,
            out_shape=jax.ShapeDtypeStruct((n_pad, f_pad), jnp.float32),
            grid_spec=grid_spec,
            compiler_params=pltpu.CompilerParams(
                dimension_semantics=("arbitrary",),
                vmem_limit_bytes=32 * 1024 * 1024),
        )(m, ptop, pbot, src_col, tgt_col, tgt_row)

    if single_buffer_constants and hasattr(pl, "Buffered"):
        try:
            out_p = _call(pl.Buffered(1))
        except Exception:   # pipeline_mode not supported -> default double buffering
            out_p = _call(None)
    else:
        out_p = _call(None)

    return out_p[:n, :f_out]


def gat_reference(h, W, a, src, tgt, *, alpha):
    """Pure-JAX reference matching the PyTorch forward (eval / dropout=0)."""
    n = h.shape[0]
    f_out = W.shape[1]
    wh = h @ W
    wh_src = wh[src]
    wh_tgt = wh[tgt]
    e = (jnp.concatenate([wh_src, wh_tgt], axis=1) @ a)[:, 0]
    e = jnp.where(e > 0, e, alpha * e)
    e = e - jnp.max(e)
    exp_e = jnp.exp(e)
    exp_sum = jnp.zeros((n,), jnp.float32).at[tgt].add(exp_e)
    att = exp_e / (exp_sum[tgt] + 1e-16)
    weighted = wh_src * att[:, None]
    h_prime = jnp.zeros((n, f_out), jnp.float32).at[tgt].add(weighted)
    return jnp.where(h_prime > 0, h_prime, jnp.exp(h_prime) - 1.0)


def xavier_uniform(key, shape, gain):
    fan_in, fan_out = shape[0], shape[1]
    bound = gain * np.sqrt(6.0 / (fan_in + fan_out))
    return jax.random.uniform(key, shape, jnp.float32, -bound, bound)


if __name__ == "__main__":
    # Small, deterministic problem (multiple 512-edge tiles + padding exercised).
    N = 64            # num nodes
    F_IN = 16         # in_features
    F_OUT = 32        # out_features
    E = 1200          # num directed edges  (-> 3 edge tiles of 512, with padding)
    ALPHA = 0.2       # LeakyReLU negative slope
    # dropout = 0.0 (identity), concat = True

    key = jax.random.PRNGKey(0)
    k_h, k_w, k_a, k_e = jax.random.split(key, 4)

    h = jax.random.normal(k_h, (N, F_IN), jnp.float32)
    W = xavier_uniform(k_w, (F_IN, F_OUT), gain=1.414)
    a = xavier_uniform(k_a, (2 * F_OUT, 1), gain=1.414)
    edge_index = jax.random.randint(k_e, (2, E), 0, N, jnp.int32)
    src, tgt = edge_index[0], edge_index[1]

    ref = np.asarray(gat_reference(h, W, a, src, tgt, alpha=ALPHA))

    # Default path: bf16 one-hot matmuls (MXU-native on v5e/v6e/v7x), f32 accum.
    # bf16 rounding of Wh / attention logits -> loose tolerance.
    out = jax.block_until_ready(gat_forward(h, W, a, src, tgt, alpha=ALPHA))
    np.testing.assert_allclose(np.asarray(out), ref, rtol=1e-1, atol=1e-1)

    # Bit-faithful f32 matmul path (tight tolerance).
    out_f32 = jax.block_until_ready(
        gat_forward(h, W, a, src, tgt, alpha=ALPHA, compute_dtype=jnp.float32))
    np.testing.assert_allclose(np.asarray(out_f32), ref, rtol=5e-3, atol=5e-3)

    print("KERNEL_OK")
</pallas_src>

<mosaic_0001>
module attributes {stable_mosaic.version = 11 : i64} {
  func.func @_gat_kernel(%arg0: i32, %arg1: memref<1x1xf32, #tpu.memory_space<smem>>, %arg2: memref<64x128xbf16, #tpu.memory_space<vmem>>, %arg3: memref<64x128xbf16, #tpu.memory_space<vmem>>, %arg4: memref<512x1xi32, #tpu.memory_space<vmem>>, %arg5: memref<512x1xi32, #tpu.memory_space<vmem>>, %arg6: memref<1x512xi32, #tpu.memory_space<vmem>>, %arg7: memref<64x128xf32, #tpu.memory_space<vmem>>, %arg8: memref<64x128xf32, #tpu.memory_space<vmem>>) attributes {dimension_semantics = [#tpu.dimension_semantics<arbitrary>], iteration_bounds = array<i64: 3>, scalar_prefetch = 0 : i64, scratch_operands = 1 : i64, tpu.core_type = #tpu.core_type<tc>, window_params = [{transform_indices = @transform_0, window_bounds = array<i64: 1, 1>}, {pipeline_mode = #tpu.pipeline_mode<synchronous>, transform_indices = @transform_1, window_bounds = array<i64: 64, 128>}, {pipeline_mode = #tpu.pipeline_mode<synchronous>, transform_indices = @transform_2, window_bounds = array<i64: 64, 128>}, {transform_indices = @transform_3, window_bounds = array<i64: 512, 1>}, {transform_indices = @transform_4, window_bounds = array<i64: 512, 1>}, {transform_indices = @transform_5, window_bounds = array<i64: 1, 512>}, {pipeline_mode = #tpu.pipeline_mode<synchronous>, transform_indices = @transform_6, window_bounds = array<i64: 64, 128>}]} {
    %c0_i32 = arith.constant 0 : i32
    %0 = arith.cmpi eq, %arg0, %c0_i32 : i32
    %1 = arith.extui %0 : i1 to i32
    %c0_i32_0 = arith.constant 0 : i32
    %2 = arith.cmpi ne, %1, %c0_i32_0 : i32
    scf.if %2 {
      %cst_28 = arith.constant 0.000000e+00 : f32
      %55 = vector.broadcast %cst_28 : f32 to vector<64x128xf32>
      %c0_29 = arith.constant 0 : index
      %c0_30 = arith.constant 0 : index
      %56 = vector.load %arg8[%c0_29, %c0_30] : memref<64x128xf32, #tpu.memory_space<vmem>>, vector<64x128xf32>
      tpu.vector_store %arg8[%c0_29, %c0_30], %55 {strides = array<i32>} : memref<64x128xf32, #tpu.memory_space<vmem>>, vector<64x128xf32>,
    } else {
    }
    %c0 = arith.constant 0 : index
    %c0_1 = arith.constant 0 : index
    %3 = vector.load %arg4[%c0, %c0_1] : memref<512x1xi32, #tpu.memory_space<vmem>>, vector<512x1xi32>
    %c0_2 = arith.constant 0 : index
    %c0_3 = arith.constant 0 : index
    %4 = vector.load %arg5[%c0_2, %c0_3] : memref<512x1xi32, #tpu.memory_space<vmem>>, vector<512x1xi32>
    %5 = tpu.iota {dimensions = array<i32: 1>} : vector<512x64xi32>
    %6 = vector.broadcast %3 : vector<512x1xi32> to vector<512x64xi32>
    %7 = arith.cmpi eq, %5, %6 : vector<512x64xi32>
    %cst = arith.constant 1.000000e+00 : f32
    %cst_4 = arith.constant 0.000000e+00 : f32
    %8 = vector.broadcast %cst : f32 to vector<512x64xf32>
    %9 = vector.broadcast %cst_4 : f32 to vector<512x64xf32>
    %10 = arith.select %7, %8, %9 : vector<512x64xi1>, vector<512x64xf32>
    %11 = arith.truncf %10 : vector<512x64xf32> to vector<512x64xbf16>
    %12 = vector.broadcast %4 : vector<512x1xi32> to vector<512x64xi32>
    %13 = arith.cmpi eq, %5, %12 : vector<512x64xi32>
    %cst_5 = arith.constant 1.000000e+00 : f32
    %cst_6 = arith.constant 0.000000e+00 : f32
    %14 = vector.broadcast %cst_5 : f32 to vector<512x64xf32>
    %15 = vector.broadcast %cst_6 : f32 to vector<512x64xf32>
    %16 = arith.select %13, %14, %15 : vector<512x64xi1>, vector<512x64xf32>
    %17 = arith.truncf %16 : vector<512x64xf32> to vector<512x64xbf16>
    %c0_7 = arith.constant 0 : index
    %c0_8 = arith.constant 0 : index
    %18 = vector.load %arg2[%c0_7, %c0_8] : memref<64x128xbf16, #tpu.memory_space<vmem>>, vector<64x128xbf16>
    %cst_9 = arith.constant dense<0.000000e+00> : vector<512x128xf32>
    %19 = tpu.matmul %11, %18, %cst_9 {dimension_numbers = #tpu.dot_dimension_numbers<[1], [0], [0], [1], [0, 0, 1, 1], [], []>} : vector<512x64xbf16>, vector<64x128xbf16>, vector<512x128xf32> -> vector<512x128xf32>
    %c0_10 = arith.constant 0 : index
    %c0_11 = arith.constant 0 : index
    %20 = vector.load %arg3[%c0_10, %c0_11] : memref<64x128xbf16, #tpu.memory_space<vmem>>, vector<64x128xbf16>
    %cst_12 = arith.constant dense<0.000000e+00> : vector<512x128xf32>
    %21 = tpu.matmul %17, %20, %cst_12 {dimension_numbers = #tpu.dot_dimension_numbers<[1], [0], [0], [1], [0, 0, 1, 1], [], []>} : vector<512x64xbf16>, vector<64x128xbf16>, vector<512x128xf32> -> vector<512x128xf32>
    %22 = arith.addf %19, %21 : vector<512x128xf32>
    %23 = vector.extract_strided_slice %22 {offsets = [0, 33], sizes = [512, 1], strides = [1, 1]} : vector<512x128xf32> to vector<512x1xf32>
    %24 = vector.extract_strided_slice %22 {offsets = [0, 34], sizes = [512, 1], strides = [1, 1]} : vector<512x128xf32> to vector<512x1xf32>
    %25 = arith.addf %23, %24 : vector<512x1xf32>
    %cst_13 = arith.constant 0.000000e+00 : f32
    %26 = vector.broadcast %cst_13 : f32 to vector<512x1xf32>
    %27 = arith.cmpf ogt, %25, %26 : vector<512x1xf32>
    %cst_14 = arith.constant 2.000000e-01 : f32
    %28 = vector.broadcast %cst_14 : f32 to vector<512x1xf32>
    %29 = arith.mulf %28, %25 : vector<512x1xf32>
    %30 = arith.select %27, %25, %29 : vector<512x1xi1>, vector<512x1xf32>
    %c0_15 = arith.constant 0 : index
    %c0_16 = arith.constant 0 : index
    %31 = memref.load %arg1[%c0_15, %c0_16] : memref<1x1xf32, #tpu.memory_space<smem>>
    %32 = vector.broadcast %31 : f32 to vector<512x1xf32>
    %33 = arith.subf %30, %32 : vector<512x1xf32>
    %cst_17 = arith.constant 0.000000e+00 : f32
    %34 = vector.broadcast %cst_17 : f32 to vector<512x1xf32>
    %35 = arith.minimumf %33, %34 : vector<512x1xf32>
    %36 = math.exp %35 : vector<512x1xf32>
    %37 = vector.broadcast %36 : vector<512x1xf32> to vector<512x128xf32>
    %38 = arith.mulf %22, %37 : vector<512x128xf32>
    %c0_18 = arith.constant 0 : index
    %c0_19 = arith.constant 0 : index
    %39 = vector.load %arg6[%c0_18, %c0_19] : memref<1x512xi32, #tpu.memory_space<vmem>>, vector<1x512xi32>
    %40 = tpu.iota {dimensions = array<i32: 0>} : vector<64x512xi32>
    %41 = vector.broadcast %39 : vector<1x512xi32> to vector<64x512xi32>
    %42 = arith.cmpi eq, %40, %41 : vector<64x512xi32>
    %cst_20 = arith.constant 1.000000e+00 : f32
    %cst_21 = arith.constant 0.000000e+00 : f32
    %43 = vector.broadcast %cst_20 : f32 to vector<64x512xf32>
    %44 = vector.broadcast %cst_21 : f32 to vector<64x512xf32>
    %45 = arith.select %42, %43, %44 : vector<64x512xi1>, vector<64x512xf32>
    %46 = arith.truncf %45 : vector<64x512xf32> to vector<64x512xbf16>
    %c0_22 = arith.constant 0 : index
    %c0_23 = arith.constant 0 : index
    %47 = vector.load %arg8[%c0_22, %c0_23] : memref<64x128xf32, #tpu.memory_space<vmem>>, vector<64x128xf32>
    %48 = arith.truncf %38 : vector<512x128xf32> to vector<512x128xbf16>
    %cst_24 = arith.constant dense<0.000000e+00> : vector<64x128xf32>
    %49 = tpu.matmul %46, %48, %cst_24 {dimension_numbers = #tpu.dot_dimension_numbers<[1], [0], [0], [1], [0, 0, 1, 1], [], []>} : vector<64x512xbf16>, vector<512x128xbf16>, vector<64x128xf32> -> vector<64x128xf32>
    %50 = arith.addf %47, %49 : vector<64x128xf32>
    %c0_25 = arith.constant 0 : index
    %c0_26 = arith.constant 0 : index
    %51 = vector.load %arg8[%c0_25, %c0_26] : memref<64x128xf32, #tpu.memory_space<vmem>>, vector<64x128xf32>
    tpu.vector_store %arg8[%c0_25, %c0_26], %50 {strides = array<i32>} : memref<64x128xf32, #tpu.memory_space<vmem>>, vector<64x128xf32>,
    %c2_i32 = arith.constant 2 : i32
    %52 = arith.cmpi eq, %arg0, %c2_i32 : i32
    %53 = arith.extui %52 : i1 to i32
    %c0_i32_27 = arith.constant 0 : i32
    %54 = arith.cmpi ne, %53, %c0_i32_27 : i32
    scf.if %54 {
      %c0_28 = arith.constant 0 : index
      %c0_29 = arith.constant 0 : index
      %55 = vector.load %arg8[%c0_28, %c0_29] : memref<64x128xf32, #tpu.memory_space<vmem>>, vector<64x128xf32>
      %56 = vector.extract_strided_slice %55 {offsets = [0, 32], sizes = [64, 1], strides = [1, 1]} : vector<64x128xf32> to vector<64x1xf32>
      %cst_30 = arith.constant 1.000000e-16 : f32
      %57 = vector.broadcast %cst_30 : f32 to vector<64x1xf32>
      %58 = arith.addf %56, %57 : vector<64x1xf32>
      %59 = tpu.reciprocal %58 {approx = true} : vector<64x1xf32> -> vector<64x1xf32>
      %60 = vector.broadcast %59 : vector<64x1xf32> to vector<64x128xf32>
      %61 = arith.mulf %55, %60 : vector<64x128xf32>
      %62 = tpu.iota {dimensions = array<i32: 1>} : vector<64x128xi32>
      %c32_i32 = arith.constant 32 : i32
      %63 = vector.broadcast %c32_i32 : i32 to vector<64x128xi32>
      %64 = arith.cmpi slt, %62, %63 : vector<64x128xi32>
      %cst_31 = arith.constant 0.000000e+00 : f32
      %65 = vector.broadcast %cst_31 : f32 to vector<64x128xf32>
      %66 = arith.select %64, %61, %65 : vector<64x128xi1>, vector<64x128xf32>
      %cst_32 = arith.constant 0.000000e+00 : f32
      %67 = vector.broadcast %cst_32 : f32 to vector<64x128xf32>
      %68 = arith.cmpf ogt, %66, %67 : vector<64x128xf32>
      %69 = math.exp %66 : vector<64x128xf32>
      %cst_33 = arith.constant 1.000000e+00 : f32
      %70 = vector.broadcast %cst_33 : f32 to vector<64x128xf32>
      %71 = arith.subf %69, %70 : vector<64x128xf32>
      %72 = arith.select %68, %66, %71 : vector<64x128xi1>, vector<64x128xf32>
      %c0_34 = arith.constant 0 : index
      %c0_35 = arith.constant 0 : index
      %73 = vector.load %arg7[%c0_34, %c0_35] : memref<64x128xf32, #tpu.memory_space<vmem>>, vector<64x128xf32>
      tpu.vector_store %arg7[%c0_34, %c0_35], %72 {strides = array<i32>} : memref<64x128xf32, #tpu.memory_space<vmem>>, vector<64x128xf32>,
    } else {
    }
    return
  }
  func.func @transform_0(%arg0: i32) -> (i32, i32) {
    %c0_i32 = arith.constant 0 : i32
    %c0_i32_0 = arith.constant 0 : i32
    %c0_i32_1 = arith.constant 0 : i32
    return %c0_i32, %c0_i32_0 : i32, i32
  }
  func.func @transform_1(%arg0: i32) -> (i32, i32) {
    %c0_i32 = arith.constant 0 : i32
    %c0_i32_0 = arith.constant 0 : i32
    %c0_i32_1 = arith.constant 0 : i32
    return %c0_i32, %c0_i32_0 : i32, i32
  }
  func.func @transform_2(%arg0: i32) -> (i32, i32) {
    %c0_i32 = arith.constant 0 : i32
    %c0_i32_0 = arith.constant 0 : i32
    %c0_i32_1 = arith.constant 0 : i32
    return %c0_i32, %c0_i32_0 : i32, i32
  }
  func.func @transform_3(%arg0: i32) -> (i32, i32) {
    %c0_i32 = arith.constant 0 : i32
    %c0_i32_0 = arith.constant 0 : i32
    return %arg0, %c0_i32 : i32, i32
  }
  func.func @transform_4(%arg0: i32) -> (i32, i32) {
    %c0_i32 = arith.constant 0 : i32
    %c0_i32_0 = arith.constant 0 : i32
    return %arg0, %c0_i32 : i32, i32
  }
  func.func @transform_5(%arg0: i32) -> (i32, i32) {
    %c0_i32 = arith.constant 0 : i32
    %c0_i32_0 = arith.constant 0 : i32
    return %c0_i32, %arg0 : i32, i32
  }
  func.func @transform_6(%arg0: i32) -> (i32, i32) {
    %c0_i32 = arith.constant 0 : i32
    %c0_i32_0 = arith.constant 0 : i32
    %c0_i32_1 = arith.constant 0 : i32
    return %c0_i32, %c0_i32_0 : i32, i32
  }
}

module attributes {stable_mosaic.version = 11 : i64} {
  func.func @_gat_kernel(%arg0: i32, %arg1: memref<1x1xf32, #tpu.memory_space<smem>>, %arg2: memref<64x128xbf16, #tpu.memory_space<vmem>>, %arg3: memref<64x128xbf16, #tpu.memory_space<vmem>>, %arg4: memref<512x1xi32, #tpu.memory_space<vmem>>, %arg5: memref<512x1xi32, #tpu.memory_space<vmem>>, %arg6: memref<1x512xi32, #tpu.memory_space<vmem>>, %arg7: memref<64x128xf32, #tpu.memory_space<vmem>>, %arg8: memref<64x128xf32, #tpu.memory_space<vmem>>) attributes {dimension_semantics = [#tpu.dimension_semantics<arbitrary>], iteration_bounds = array<i64: 3>, scalar_prefetch = 0 : i64, scratch_operands = 1 : i64, tpu.core_type = #tpu.core_type<tc>, window_params = [{transform_indices = @transform_0, window_bounds = array<i64: 1, 1>}, {pipeline_mode = #tpu.pipeline_mode<synchronous>, transform_indices = @transform_1, window_bounds = array<i64: 64, 128>}, {pipeline_mode = #tpu.pipeline_mode<synchronous>, transform_indices = @transform_2, window_bounds = array<i64: 64, 128>}, {transform_indices = @transform_3, window_bounds = array<i64: 512, 1>}, {transform_indices = @transform_4, window_bounds = array<i64: 512, 1>}, {transform_indices = @transform_5, window_bounds = array<i64: 1, 512>}, {pipeline_mode = #tpu.pipeline_mode<synchronous>, transform_indices = @transform_6, window_bounds = array<i64: 64, 128>}]} {
    %c0_i32 = arith.constant 0 : i32
    %0 = arith.cmpi eq, %arg0, %c0_i32 : i32
    %1 = arith.extui %0 : i1 to i32
    %c0_i32_0 = arith.constant 0 : i32
    %2 = arith.cmpi ne, %1, %c0_i32_0 : i32
    scf.if %2 {
      %cst_28 = arith.constant 0.000000e+00 : f32
      %55 = vector.broadcast %cst_28 : f32 to vector<64x128xf32>
      %c0_29 = arith.constant 0 : index
      %c0_30 = arith.constant 0 : index
      %56 = vector.load %arg8[%c0_29, %c0_30] : memref<64x128xf32, #tpu.memory_space<vmem>>, vector<64x128xf32>
      tpu.vector_store %arg8[%c0_29, %c0_30], %55 {strides = array<i32>} : memref<64x128xf32, #tpu.memory_space<vmem>>, vector<64x128xf32>,
    } else {
    }
    %c0 = arith.constant 0 : index
    %c0_1 = arith.constant 0 : index
    %3 = vector.load %arg4[%c0, %c0_1] : memref<512x1xi32, #tpu.memory_space<vmem>>, vector<512x1xi32>
    %c0_2 = arith.constant 0 : index
    %c0_3 = arith.constant 0 : index
    %4 = vector.load %arg5[%c0_2, %c0_3] : memref<512x1xi32, #tpu.memory_space<vmem>>, vector<512x1xi32>
    %5 = tpu.iota {dimensions = array<i32: 1>} : vector<512x64xi32>
    %6 = vector.broadcast %3 : vector<512x1xi32> to vector<512x64xi32>
    %7 = arith.cmpi eq, %5, %6 : vector<512x64xi32>
    %cst = arith.constant 1.000000e+00 : f32
    %cst_4 = arith.constant 0.000000e+00 : f32
    %8 = vector.broadcast %cst : f32 to vector<512x64xf32>
    %9 = vector.broadcast %cst_4 : f32 to vector<512x64xf32>
    %10 = arith.select %7, %8, %9 : vector<512x64xi1>, vector<512x64xf32>
    %11 = arith.truncf %10 : vector<512x64xf32> to vector<512x64xbf16>
    %12 = vector.broadcast %4 : vector<512x1xi32> to vector<512x64xi32>
    %13 = arith.cmpi eq, %5, %12 : vector<512x64xi32>
    %cst_5 = arith.constant 1.000000e+00 : f32
    %cst_6 = arith.constant 0.000000e+00 : f32
    %14 = vector.broadcast %cst_5 : f32 to vector<512x64xf32>
    %15 = vector.broadcast %cst_6 : f32 to vector<512x64xf32>
    %16 = arith.select %13, %14, %15 : vector<512x64xi1>, vector<512x64xf32>
    %17 = arith.truncf %16 : vector<512x64xf32> to vector<512x64xbf16>
    %c0_7 = arith.constant 0 : index
    %c0_8 = arith.constant 0 : index
    %18 = vector.load %arg2[%c0_7, %c0_8] : memref<64x128xbf16, #tpu.memory_space<vmem>>, vector<64x128xbf16>
    %cst_9 = arith.constant dense<0.000000e+00> : vector<512x128xf32>
    %19 = tpu.matmul %11, %18, %cst_9 {dimension_numbers = #tpu.dot_dimension_numbers<[1], [0], [0], [1], [0, 0, 1, 1], [], []>} : vector<512x64xbf16>, vector<64x128xbf16>, vector<512x128xf32> -> vector<512x128xf32>
    %c0_10 = arith.constant 0 : index
    %c0_11 = arith.constant 0 : index
    %20 = vector.load %arg3[%c0_10, %c0_11] : memref<64x128xbf16, #tpu.memory_space<vmem>>, vector<64x128xbf16>
    %cst_12 = arith.constant dense<0.000000e+00> : vector<512x128xf32>
    %21 = tpu.matmul %17, %20, %cst_12 {dimension_numbers = #tpu.dot_dimension_numbers<[1], [0], [0], [1], [0, 0, 1, 1], [], []>} : vector<512x64xbf16>, vector<64x128xbf16>, vector<512x128xf32> -> vector<512x128xf32>
    %22 = arith.addf %19, %21 : vector<512x128xf32>
    %23 = vector.extract_strided_slice %22 {offsets = [0, 33], sizes = [512, 1], strides = [1, 1]} : vector<512x128xf32> to vector<512x1xf32>
    %24 = vector.extract_strided_slice %22 {offsets = [0, 34], sizes = [512, 1], strides = [1, 1]} : vector<512x128xf32> to vector<512x1xf32>
    %25 = arith.addf %23, %24 : vector<512x1xf32>
    %cst_13 = arith.constant 0.000000e+00 : f32
    %26 = vector.broadcast %cst_13 : f32 to vector<512x1xf32>
    %27 = arith.cmpf ogt, %25, %26 : vector<512x1xf32>
    %cst_14 = arith.constant 2.000000e-01 : f32
    %28 = vector.broadcast %cst_14 : f32 to vector<512x1xf32>
    %29 = arith.mulf %28, %25 : vector<512x1xf32>
    %30 = arith.select %27, %25, %29 : vector<512x1xi1>, vector<512x1xf32>
    %c0_15 = arith.constant 0 : index
    %c0_16 = arith.constant 0 : index
    %31 = memref.load %arg1[%c0_15, %c0_16] : memref<1x1xf32, #tpu.memory_space<smem>>
    %32 = vector.broadcast %31 : f32 to vector<512x1xf32>
    %33 = arith.subf %30, %32 : vector<512x1xf32>
    %cst_17 = arith.constant 0.000000e+00 : f32
    %34 = vector.broadcast %cst_17 : f32 to vector<512x1xf32>
    %35 = arith.minimumf %33, %34 : vector<512x1xf32>
    %36 = math.exp %35 : vector<512x1xf32>
    %37 = vector.broadcast %36 : vector<512x1xf32> to vector<512x128xf32>
    %38 = arith.mulf %22, %37 : vector<512x128xf32>
    %c0_18 = arith.constant 0 : index
    %c0_19 = arith.constant 0 : index
    %39 = vector.load %arg6[%c0_18, %c0_19] : memref<1x512xi32, #tpu.memory_space<vmem>>, vector<1x512xi32>
    %40 = tpu.iota {dimensions = array<i32: 0>} : vector<64x512xi32>
    %41 = vector.broadcast %39 : vector<1x512xi32> to vector<64x512xi32>
    %42 = arith.cmpi eq, %40, %41 : vector<64x512xi32>
    %cst_20 = arith.constant 1.000000e+00 : f32
    %cst_21 = arith.constant 0.000000e+00 : f32
    %43 = vector.broadcast %cst_20 : f32 to vector<64x512xf32>
    %44 = vector.broadcast %cst_21 : f32 to vector<64x512xf32>
    %45 = arith.select %42, %43, %44 : vector<64x512xi1>, vector<64x512xf32>
    %46 = arith.truncf %45 : vector<64x512xf32> to vector<64x512xbf16>
    %c0_22 = arith.constant 0 : index
    %c0_23 = arith.constant 0 : index
    %47 = vector.load %arg8[%c0_22, %c0_23] : memref<64x128xf32, #tpu.memory_space<vmem>>, vector<64x128xf32>
    %48 = arith.truncf %38 : vector<512x128xf32> to vector<512x128xbf16>
    %cst_24 = arith.constant dense<0.000000e+00> : vector<64x128xf32>
    %49 = tpu.matmul %46, %48, %cst_24 {dimension_numbers = #tpu.dot_dimension_numbers<[1], [0], [0], [1], [0, 0, 1, 1], [], []>} : vector<64x512xbf16>, vector<512x128xbf16>, vector<64x128xf32> -> vector<64x128xf32>
    %50 = arith.addf %47, %49 : vector<64x128xf32>
    %c0_25 = arith.constant 0 : index
    %c0_26 = arith.constant 0 : index
    %51 = vector.load %arg8[%c0_25, %c0_26] : memref<64x128xf32, #tpu.memory_space<vmem>>, vector<64x128xf32>
    tpu.vector_store %arg8[%c0_25, %c0_26], %50 {strides = array<i32>} : memref<64x128xf32, #tpu.memory_space<vmem>>, vector<64x128xf32>,
    %c2_i32 = arith.constant 2 : i32
    %52 = arith.cmpi eq, %arg0, %c2_i32 : i32
    %53 = arith.extui %52 : i1 to i32
    %c0_i32_27 = arith.constant 0 : i32
    %54 = arith.cmpi ne, %53, %c0_i32_27 : i32
    scf.if %54 {
      %c0_28 = arith.constant 0 : index
      %c0_29 = arith.constant 0 : index
      %55 = vector.load %arg8[%c0_28, %c0_29] : memref<64x128xf32, #tpu.memory_space<vmem>>, vector<64x128xf32>
      %56 = vector.extract_strided_slice %55 {offsets = [0, 32], sizes = [64, 1], strides = [1, 1]} : vector<64x128xf32> to vector<64x1xf32>
      %cst_30 = arith.constant 1.000000e-16 : f32
      %57 = vector.broadcast %cst_30 : f32 to vector<64x1xf32>
      %58 = arith.addf %56, %57 : vector<64x1xf32>
      %59 = tpu.reciprocal %58 {approx = true} : vector<64x1xf32> -> vector<64x1xf32>
      %60 = vector.broadcast %59 : vector<64x1xf32> to vector<64x128xf32>
      %61 = arith.mulf %55, %60 : vector<64x128xf32>
      %62 = tpu.iota {dimensions = array<i32: 1>} : vector<64x128xi32>
      %c32_i32 = arith.constant 32 : i32
      %63 = vector.broadcast %c32_i32 : i32 to vector<64x128xi32>
      %64 = arith.cmpi slt, %62, %63 : vector<64x128xi32>
      %cst_31 = arith.constant 0.000000e+00 : f32
      %65 = vector.broadcast %cst_31 : f32 to vector<64x128xf32>
      %66 = arith.select %64, %61, %65 : vector<64x128xi1>, vector<64x128xf32>
      %cst_32 = arith.constant 0.000000e+00 : f32
      %67 = vector.broadcast %cst_32 : f32 to vector<64x128xf32>
      %68 = arith.cmpf ogt, %66, %67 : vector<64x128xf32>
      %69 = math.exp %66 : vector<64x128xf32>
      %cst_33 = arith.constant 1.000000e+00 : f32
      %70 = vector.broadcast %cst_33 : f32 to vector<64x128xf32>
      %71 = arith.subf %69, %70 : vector<64x128xf32>
      %72 = arith.select %68, %66, %71 : vector<64x128xi1>, vector<64x128xf32>
      %c0_34 = arith.constant 0 : index
      %c0_35 = arith.constant 0 : index
      %73 = vector.load %arg7[%c0_34, %c0_35] : memref<64x128xf32, #tpu.memory_space<vmem>>, vector<64x128xf32>
      tpu.vector_store %arg7[%c0_34, %c0_35], %72 {strides = array<i32>} : memref<64x128xf32, #tpu.memory_space<vmem>>, vector<64x128xf32>,
    } else {
    }
    return
  }
  func.func @transform_0(%arg0: i32) -> (i32, i32) {
    %c0_i32 = arith.constant 0 : i32
    %c0_i32_0 = arith.constant 0 : i32
    %c0_i32_1 = arith.constant 0 : i32
    return %c0_i32, %c0_i32_0 : i32, i32
  }
  func.func @transform_1(%arg0: i32) -> (i32, i32) {
    %c0_i32 = arith.constant 0 : i32
    %c0_i32_0 = arith.constant 0 : i32
    %c0_i32_1 = arith.constant 0 : i32
    return %c0_i32, %c0_i32_0 : i32, i32
  }
  func.func @transform_2(%arg0: i32) -> (i32, i32) {
    %c0_i32 = arith.constant 0 : i32
    %c0_i32_0 = arith.constant 0 : i32
    %c0_i32_1 = arith.constant 0 : i32
    return %c0_i32, %c0_i32_0 : i32, i32
  }
  func.func @transform_3(%arg0: i32) -> (i32, i32) {
    %c0_i32 = arith.constant 0 : i32
    %c0_i32_0 = arith.constant 0 : i32
    return %arg0, %c0_i32 : i32, i32
  }
  func.func @transform_4(%arg0: i32) -> (i32, i32) {
    %c0_i32 = arith.constant 0 : i32
    %c0_i32_0 = arith.constant 0 : i32
    return %arg0, %c0_i32 : i32, i32
  }
  func.func @transform_5(%arg0: i32) -> (i32, i32) {
    %c0_i32 = arith.constant 0 : i32
    %c0_i32_0 = arith.constant 0 : i32
    return %c0_i32, %arg0 : i32, i32
  }
  func.func @transform_6(%arg0: i32) -> (i32, i32) {
    %c0_i32 = arith.constant 0 : i32
    %c0_i32_0 = arith.constant 0 : i32
    %c0_i32_1 = arith.constant 0 : i32
    return %c0_i32, %c0_i32_0 : i32, i32
  }
}

</mosaic_0001>

<llo_original>
// kernel: tpu_custom_call.1
$region0: #{tpu_custom_call.1}
  #allocation0 [shape = 'u32[]', space=smem, size = 0x4, offset = 0x4, fixed_abs, tag = 'smem constant byte address 0x4 - core index']
  #allocation1 [shape = 'u32[144,128]{1,0:T(1,128)}', space=vmem, size = 0x12000, scoped, tag = 'internal scratch']
  #allocation2 [shape = 'f32[64,128]{1,0:T(8,128)}', space=vmem, size = 0x8000, scoped, tag = 'scratch operand']
  #allocation3 [shape = 'f32[1,1]{1,0:T(1,128)S(6)}', space=smem, size = 0x200, scoped, tag = 'scoped memory for tpu_custom_call.1']
  %s0 = inlined_call_operand.<no memory space> [shape: f32[1,1], index: 0, kind: input, shape index: {}]
  %s1 = inlined_call_operand.vmem [shape: bf16[64,128], index: 1, kind: input, shape index: {}]
  %s2 = inlined_call_operand.vmem [shape: bf16[64,128], index: 2, kind: input, shape index: {}]
  %s3 = inlined_call_operand.vmem [shape: s32[1536,1], index: 3, kind: input, shape index: {}]
  %s4 = inlined_call_operand.vmem [shape: s32[1536,1], index: 4, kind: input, shape index: {}]
  %s5 = inlined_call_operand.vmem [shape: s32[1,1536], index: 5, kind: input, shape index: {}]
  %s6 = inlined_call_operand.hbm [shape: f32[64,128], index: 6, kind: output, shape index: {}]
  %s7 = sld [smem:[#allocation0]]
  $region65: #{tpu_custom_call.1} parent=0
    _
  %s9 = ssub.s32 1, %s7
  %s10 = scalar_select 0, %s9, %s7
  %11 = sst [smem:[#allocation3]] %s0
  $region1: #{tpu_custom_call.1} parent=0
    #allocation4 [shape = 'u8[32768]{0}', space=vmem, size = 0x8000, scoped, tag = 'output window, operand 0, single buffered']
    #allocation5 [shape = 's32[2]{0}', space=sflag, size = 0x8, scoped, tag = 'scoped memory for tpu_custom_call.1']
    %12 = vsyncpa [#allocation5], 0
    loop: start=0, step=1, limit=5
    $region2: #{tpu_custom_call.1} parent=1 // loop_pre_header
      _
    $region3: #{tpu_custom_call.1} parent=1 // loop_header
      %s14 = sphi 0, %s18
      %p15 = scmp.ge.s32.totalorder %s14, 5
      %s22 = sphi 0, %s22
      %s24 = sphi 0, %s22
      %s25 = sphi 0, %s24
      %s39 = sphi 0, %s25
      %s43 = sphi 0, %s43
      %s45 = sphi 0, %s43
      %s46 = sphi 0, %s45
      %s60 = sphi 0, %s46
      %s64 = sphi 0, %s64
      %s66 = sphi 0, %s64
      %s67 = sphi 0, %s66
      %s81 = sphi 0, %s67
      %s87 = sphi 0, %s89
      %s90 = sphi 0, %s87
      %s91 = sphi 0, %s90
      %s107 = sphi 0, %s91
      %s113 = sphi 0, %s115
      %s116 = sphi 0, %s113
      %s117 = sphi 0, %s116
      %s133 = sphi 0, %s117
      %s139 = sphi 0, %s141
      %s142 = sphi 0, %s139
      %s143 = sphi 0, %s142
      %s159 = sphi 0, %s143
      %s163 = sphi 0, %s163
      %s165 = sphi 0, %s163
      %s166 = sphi 0, %s165
      %s180 = sphi 0, %s166
    $region4: #{tpu_custom_call.1} parent=1 // loop_header_branch
      %17 = sbr.rel (%p15) target = $region8
    $region5: #{tpu_custom_call.1} parent=1 // loop_body
      %s19 = ssub.s32 %s14, 1
      %s20 = ssub.s32 %s14, 2
      %s21 = sadd.s32 %s14, 1
      %s23 = sadd.s32 %s22, 1
      %p26 = scmp.eq.s32.totalorder %s14, 2
      %p27 = scmp.ne.s32.totalorder %s22, %s24
      %p28 = scmp.eq.s32.totalorder %s14, 0
      %p29 = por %p27, %p28
      %p30 = scmp.ne.s32.totalorder %s22, %s24
      %p31 = scmp.eq.s32.totalorder %s19, 2
      %p32 = por %p30, %p31
      %p33 = scmp.ne.s32.totalorder %s24, %s25
      %p34 = scmp.eq.s32.totalorder %s19, 0
      %p35 = por %p33, %p34
      %p36 = scmp.ne.s32.totalorder %s24, %s25
      %p37 = scmp.eq.s32.totalorder %s20, 2
      %p38 = por %p36, %p37
      %p40 = scmp.ne.s32.totalorder %s25, %s39
      %p41 = scmp.eq.s32.totalorder %s20, 0
      %p42 = por %p40, %p41
      %s44 = sadd.s32 %s43, 1
      %p47 = scmp.eq.s32.totalorder %s14, 2
      %p48 = scmp.ne.s32.totalorder %s43, %s45
      %p49 = scmp.eq.s32.totalorder %s14, 0
      %p50 = por %p48, %p49
      %p51 = scmp.ne.s32.totalorder %s43, %s45
      %p52 = scmp.eq.s32.totalorder %s19, 2
      %p53 = por %p51, %p52
      %p54 = scmp.ne.s32.totalorder %s45, %s46
      %p55 = scmp.eq.s32.totalorder %s19, 0
      %p56 = por %p54, %p55
      %p57 = scmp.ne.s32.totalorder %s45, %s46
      %p58 = scmp.eq.s32.totalorder %s20, 2
      %p59 = por %p57, %p58
      %p61 = scmp.ne.s32.totalorder %s46, %s60
      %p62 = scmp.eq.s32.totalorder %s20, 0
      %p63 = por %p61, %p62
      %s65 = sadd.s32 %s64, 1
      %p68 = scmp.eq.s32.totalorder %s14, 2
      %p69 = scmp.ne.s32.totalorder %s64, %s66
      %p70 = scmp.eq.s32.totalorder %s14, 0
      %p71 = por %p69, %p70
      %p72 = scmp.ne.s32.totalorder %s64, %s66
      %p73 = scmp.eq.s32.totalorder %s19, 2
      %p74 = por %p72, %p73
      %p75 = scmp.ne.s32.totalorder %s66, %s67
      %p76 = scmp.eq.s32.totalorder %s19, 0
      %p77 = por %p75, %p76
      %p78 = scmp.ne.s32.totalorder %s66, %s67
      %p79 = scmp.eq.s32.totalorder %s20, 2
      %p80 = por %p78, %p79
      %p82 = scmp.ne.s32.totalorder %s67, %s81
      %p83 = scmp.eq.s32.totalorder %s20, 0
      %p84 = por %p82, %p83
      %s85 = ssub.s32 %s14, %s21
      %p86 = scmp.eq.s32.totalorder %s85, 0
      %s88 = sadd.s32 %s87, 1
      %s89 = scalar_select %p86, %s87, %s88
      %p92 = pneg %p86
      %p93 = scmp.eq.s32.totalorder %s14, 2
      %p94 = por %p92, %p93
      %p95 = scmp.ne.s32.totalorder %s87, %s90
      %p96 = scmp.eq.s32.totalorder %s14, 0
      %p97 = por %p95, %p96
      %p98 = scmp.ne.s32.totalorder %s87, %s90
      %p99 = scmp.eq.s32.totalorder %s19, 2
      %p100 = por %p98, %p99
      %p101 = scmp.ne.s32.totalorder %s90, %s91
      %p102 = scmp.eq.s32.totalorder %s19, 0
      %p103 = por %p101, %p102
      %p104 = scmp.ne.s32.totalorder %s90, %s91
      %p105 = scmp.eq.s32.totalorder %s20, 2
      %p106 = por %p104, %p105
      %p108 = scmp.ne.s32.totalorder %s91, %s107
      %p109 = scmp.eq.s32.totalorder %s20, 0
      %p110 = por %p108, %p109
      %s111 = ssub.s32 %s14, %s21
      %p112 = scmp.eq.s32.totalorder %s111, 0
      %s114 = sadd.s32 %s113, 1
      %s115 = scalar_select %p112, %s113, %s114
      %p118 = pneg %p112
      %p119 = scmp.eq.s32.totalorder %s14, 2
      %p120 = por %p118, %p119
      %p121 = scmp.ne.s32.totalorder %s113, %s116
      %p122 = scmp.eq.s32.totalorder %s14, 0
      %p123 = por %p121, %p122
      %p124 = scmp.ne.s32.totalorder %s113, %s116
      %p125 = scmp.eq.s32.totalorder %s19, 2
      %p126 = por %p124, %p125
      %p127 = scmp.ne.s32.totalorder %s116, %s117
      %p128 = scmp.eq.s32.totalorder %s19, 0
      %p129 = por %p127, %p128
      %p130 = scmp.ne.s32.totalorder %s116, %s117
      %p131 = scmp.eq.s32.totalorder %s20, 2
      %p132 = por %p130, %p131
      %p134 = scmp.ne.s32.totalorder %s117, %s133
      %p135 = scmp.eq.s32.totalorder %s20, 0
      %p136 = por %p134, %p135
      %s137 = ssub.s32 %s14, %s21
      %p138 = scmp.eq.s32.totalorder %s137, 0
      %s140 = sadd.s32 %s139, 1
      %s141 = scalar_select %p138, %s139, %s140
      %p144 = pneg %p138
      %p145 = scmp.eq.s32.totalorder %s14, 2
      %p146 = por %p144, %p145
      %p147 = scmp.ne.s32.totalorder %s139, %s142
      %p148 = scmp.eq.s32.totalorder %s14, 0
      %p149 = por %p147, %p148
      %p150 = scmp.ne.s32.totalorder %s139, %s142
      %p151 = scmp.eq.s32.totalorder %s19, 2
      %p152 = por %p150, %p151
      %p153 = scmp.ne.s32.totalorder %s142, %s143
      %p154 = scmp.eq.s32.totalorder %s19, 0
      %p155 = por %p153, %p154
      %p156 = scmp.ne.s32.totalorder %s142, %s143
      %p157 = scmp.eq.s32.totalorder %s20, 2
      %p158 = por %p156, %p157
      %p160 = scmp.ne.s32.totalorder %s143, %s159
      %p161 = scmp.eq.s32.totalorder %s20, 0
      %p162 = por %p160, %p161
      %s164 = sadd.s32 %s163, 1
      %p167 = scmp.eq.s32.totalorder %s14, 2
      %p168 = scmp.ne.s32.totalorder %s163, %s165
      %p169 = scmp.eq.s32.totalorder %s14, 0
      %p170 = por %p168, %p169
      %p171 = scmp.ne.s32.totalorder %s163, %s165
      %p172 = scmp.eq.s32.totalorder %s19, 2
      %p173 = por %p171, %p172
      %p174 = scmp.ne.s32.totalorder %s165, %s166
      %p175 = scmp.eq.s32.totalorder %s19, 0
      %p176 = por %p174, %p175
      %p177 = scmp.ne.s32.totalorder %s165, %s166
      %p178 = scmp.eq.s32.totalorder %s20, 2
      %p179 = por %p177, %p178
      %p181 = scmp.ne.s32.totalorder %s166, %s180
      %p182 = scmp.eq.s32.totalorder %s20, 0
      %p183 = por %p181, %p182
      %p184 = scmp.le.s32.totalorder 1, %s14
      %p185 = scmp.lt.s32.totalorder %s14, 4
      %p186 = pnand %p184, %p185
      %p187 = pneg %p186
      // Predicated region
      $region9: #{tpu_custom_call.1} parent=5 // pred_check
        _
      $region10: #{tpu_custom_call.1} parent=5 // pred_check_branch
        %189 = sbr.rel (%p186) target = $region12
      $region11: #{tpu_custom_call.1} parent=5 // pred_region
        %s190 = ssub.s32 %s14, 1
        // Predicated region
        $region13: #{tpu_custom_call.1} parent=11 // pred_check
          %p191 = pneg %p35
        $region14: #{tpu_custom_call.1} parent=11 // pred_check_branch
          %193 = sbr.rel (%p191) target = $region16
        $region15: #{tpu_custom_call.1} parent=11 // pred_region
          _
        $region16: #{tpu_custom_call.1} parent=11 // pred_fallthru
          _
        // Predicated region
        $region17: #{tpu_custom_call.1} parent=11 // pred_check
          %p194 = pneg %p56
        $region18: #{tpu_custom_call.1} parent=11 // pred_check_branch
          %196 = sbr.rel (%p194) target = $region20
        $region19: #{tpu_custom_call.1} parent=11 // pred_region
          _
        $region20: #{tpu_custom_call.1} parent=11 // pred_fallthru
          _
        // Predicated region
        $region21: #{tpu_custom_call.1} parent=11 // pred_check
          %p197 = pneg %p77
        $region22: #{tpu_custom_call.1} parent=11 // pred_check_branch
          %199 = sbr.rel (%p197) target = $region24
        $region23: #{tpu_custom_call.1} parent=11 // pred_region
          _
        $region24: #{tpu_custom_call.1} parent=11 // pred_fallthru
          _
      $region12: #{tpu_custom_call.1} parent=5 // pred_fallthru
        _
      %p200 = scmp.lt.s32.totalorder %s14, 3
      // Predicated region
      $region25: #{tpu_custom_call.1} parent=5 // pred_check
        %p201 = pneg %p200
      $region26: #{tpu_custom_call.1} parent=5 // pred_check_branch
        %203 = sbr.rel (%p201) target = $region28
      $region27: #{tpu_custom_call.1} parent=5 // pred_region
        // Predicated region
        $region29: #{tpu_custom_call.1} parent=27 // pred_check
          %p204 = pneg %p97
        $region30: #{tpu_custom_call.1} parent=27 // pred_check_branch
          %206 = sbr.rel (%p204) target = $region32
        $region31: #{tpu_custom_call.1} parent=27 // pred_region
          %s207 = smul.u32 64, %s14
          %p208 = scmp.lt.s32.totalorder %s207, 191
          %s209 = scalar_select %p208, %s207, 191
          %s210 = smul.addr %s209, 8
          %s211 = scalar_lea.vmem %s3, %s210
          %s212 = smul.u32 64, %s14
        $region32: #{tpu_custom_call.1} parent=27 // pred_fallthru
          _
        // Predicated region
        $region33: #{tpu_custom_call.1} parent=27 // pred_check
          %p213 = pneg %p123
        $region34: #{tpu_custom_call.1} parent=27 // pred_check_branch
          %215 = sbr.rel (%p213) target = $region36
        $region35: #{tpu_custom_call.1} parent=27 // pred_region
          %s216 = smul.u32 64, %s14
          %p217 = scmp.lt.s32.totalorder %s216, 191
          %s218 = scalar_select %p217, %s216, 191
          %s219 = smul.addr %s218, 8
          %s220 = scalar_lea.vmem %s4, %s219
          %s221 = smul.u32 64, %s14
        $region36: #{tpu_custom_call.1} parent=27 // pred_fallthru
          _
        // Predicated region
        $region37: #{tpu_custom_call.1} parent=27 // pred_check
          %p222 = pneg %p149
        $region38: #{tpu_custom_call.1} parent=27 // pred_check_branch
          %224 = sbr.rel (%p222) target = $region40
        $region39: #{tpu_custom_call.1} parent=27 // pred_region
          %s225 = smul.u32 4, %s14
          %p226 = scmp.lt.s32.totalorder %s225, 11
          %s227 = scalar_select %p226, %s225, 11
          %s228 = scalar_lea.vmem %s5, %s227
          %s229 = smul.u32 4, %s14
        $region40: #{tpu_custom_call.1} parent=27 // pred_fallthru
          _
      $region28: #{tpu_custom_call.1} parent=5 // pred_fallthru
        _
      %p230 = scmp.le.s32.totalorder 1, %s14
      %p231 = scmp.lt.s32.totalorder %s14, 4
      %p232 = pnand %p230, %p231
      %p233 = pneg %p232
      // Predicated region
      $region41: #{tpu_custom_call.1} parent=5 // pred_check
        _
      $region42: #{tpu_custom_call.1} parent=5 // pred_check_branch
        %235 = sbr.rel (%p232) target = $region44
      $region43: #{tpu_custom_call.1} parent=5 // pred_region
        %s236 = ssub.s32 %s14, 1
        %p237 = pneg %p35
        %p238 = pneg %p32
        %p239 = pneg %p56
        %p240 = pneg %p53
        %p241 = pneg %p77
        %p242 = pneg %p74
        %s243 = smul.u32 64, %s19
        %p244 = scmp.lt.s32.totalorder %s243, 191
        %s245 = scalar_select %p244, %s243, 191
        %s246 = smul.addr %s245, 8
        %s247 = scalar_lea.vmem %s3, %s246
        %p248 = pneg %p103
        %p249 = pneg %p100
        %s250 = smul.u32 64, %s19
        %p251 = scmp.lt.s32.totalorder %s250, 191
        %s252 = scalar_select %p251, %s250, 191
        %s253 = smul.addr %s252, 8
        %s254 = scalar_lea.vmem %s4, %s253
        %p255 = pneg %p129
        %p256 = pneg %p126
        %s257 = smul.u32 4, %s19
        %p258 = scmp.lt.s32.totalorder %s257, 11
        %s259 = scalar_select %p258, %s257, 11
        %s260 = scalar_lea.vmem %s5, %s259
        %p261 = pneg %p155
        %p262 = pneg %p152
        %p263 = pneg %p176
        %p264 = pneg %p173
        %s265 = smul.u32 64, %s19
        %p266 = scmp.lt.s32.totalorder %s265, 191
        %s267 = scalar_select %p266, %s265, 191
        %s268 = smul.addr %s267, 8
        %s269 = scalar_lea.vmem %s3, %s268
        %s270 = smul.u32 64, %s19
        %s271 = smul.u32 64, %s19
        %p272 = scmp.lt.s32.totalorder %s271, 191
        %s273 = scalar_select %p272, %s271, 191
        %s274 = smul.addr %s273, 8
        %s275 = scalar_lea.vmem %s4, %s274
        %s276 = smul.u32 64, %s19
        %s277 = smul.u32 4, %s19
        %p278 = scmp.lt.s32.totalorder %s277, 11
        %s279 = scalar_select %p278, %s277, 11
        %s280 = scalar_lea.vmem %s5, %s279
        %s281 = smul.u32 4, %s19
        %p283 = scmp.eq.s32.totalorder %s19, 0
        // Predicated region
        $region45: #{tpu_custom_call.1} parent=43 // pred_check
          %p284 = pneg %p283
        $region46: #{tpu_custom_call.1} parent=43 // pred_check_branch
          %286 = sbr.rel (%p284) target = $region48
        $region47: #{tpu_custom_call.1} parent=43 // pred_region
          %287 = vst [vmem:[#allocation2] sm:$0xff] 0.0
          %288 = vst [vmem:[#allocation2 + $0x8] sm:$0xff] 0.0
          %289 = vst [vmem:[#allocation2 + $0x10] sm:$0xff] 0.0
          %290 = vst [vmem:[#allocation2 + $0x18] sm:$0xff] 0.0
          %291 = vst [vmem:[#allocation2 + $0x20] sm:$0xff] 0.0
          %292 = vst [vmem:[#allocation2 + $0x28] sm:$0xff] 0.0
          %293 = vst [vmem:[#allocation2 + $0x30] sm:$0xff] 0.0
          %294 = vst [vmem:[#allocation2 + $0x38] sm:$0xff] 0.0
        $region48: #{tpu_custom_call.1} parent=43 // pred_fallthru
          _
        %v295 = vld [vmem:[%s269] sm:$0xff]
        %v296 = vld [vmem:[%s269 + $0x8] sm:$0xff]
        %v297 = vld [vmem:[%s269 + $0x10] sm:$0xff]
        %v298 = vld [vmem:[%s269 + $0x18] sm:$0xff]
        %v299 = vld [vmem:[%s269 + $0x20] sm:$0xff]
        %v300 = vld [vmem:[%s269 + $0x28] sm:$0xff]
        %v301 = vld [vmem:[%s269 + $0x30] sm:$0xff]
        %v302 = vld [vmem:[%s269 + $0x38] sm:$0xff]
        %v303 = vld [vmem:[%s269 + $0x40] sm:$0xff]
        %v304 = vld [vmem:[%s269 + $0x48] sm:$0xff]
        %v305 = vld [vmem:[%s269 + $0x50] sm:$0xff]
        %v306 = vld [vmem:[%s269 + $0x58] sm:$0xff]
        %v307 = vld [vmem:[%s269 + $0x60] sm:$0xff]
        %v308 = vld [vmem:[%s269 + $0x68] sm:$0xff]
        %v309 = vld [vmem:[%s269 + $0x70] sm:$0xff]
        %v310 = vld [vmem:[%s269 + $0x78] sm:$0xff]
        %v311 = vld [vmem:[%s269 + $0x80] sm:$0xff]
        %v312 = vld [vmem:[%s269 + $0x88] sm:$0xff]
        %v313 = vld [vmem:[%s269 + $0x90] sm:$0xff]
        %v314 = vld [vmem:[%s269 + $0x98] sm:$0xff]
        %v315 = vld [vmem:[%s269 + $0xa0] sm:$0xff]
        %v316 = vld [vmem:[%s269 + $0xa8] sm:$0xff]
        %v317 = vld [vmem:[%s269 + $0xb0] sm:$0xff]
        %v318 = vld [vmem:[%s269 + $0xb8] sm:$0xff]
        %v319 = vld [vmem:[%s269 + $0xc0] sm:$0xff]
        %v320 = vld [vmem:[%s269 + $0xc8] sm:$0xff]
        %v321 = vld [vmem:[%s269 + $0xd0] sm:$0xff]
        %v322 = vld [vmem:[%s269 + $0xd8] sm:$0xff]
        %v323 = vld [vmem:[%s269 + $0xe0] sm:$0xff]
        %v324 = vld [vmem:[%s269 + $0xe8] sm:$0xff]
        %v325 = vld [vmem:[%s269 + $0xf0] sm:$0xff]
        %v326 = vld [vmem:[%s269 + $0xf8] sm:$0xff]
        %v327 = vld [vmem:[%s269 + $0x100] sm:$0xff]
        %v328 = vld [vmem:[%s269 + $0x108] sm:$0xff]
        %v329 = vld [vmem:[%s269 + $0x110] sm:$0xff]
        %v330 = vld [vmem:[%s269 + $0x118] sm:$0xff]
        %v331 = vld [vmem:[%s269 + $0x120] sm:$0xff]
        %v332 = vld [vmem:[%s269 + $0x128] sm:$0xff]
        %v333 = vld [vmem:[%s269 + $0x130] sm:$0xff]
        %v334 = vld [vmem:[%s269 + $0x138] sm:$0xff]
        %v335 = vld [vmem:[%s269 + $0x140] sm:$0xff]
        %v336 = vld [vmem:[%s269 + $0x148] sm:$0xff]
        %v337 = vld [vmem:[%s269 + $0x150] sm:$0xff]
        %v338 = vld [vmem:[%s269 + $0x158] sm:$0xff]
        %v339 = vld [vmem:[%s269 + $0x160] sm:$0xff]
        %v340 = vld [vmem:[%s269 + $0x168] sm:$0xff]
        %v341 = vld [vmem:[%s269 + $0x170] sm:$0xff]
        %v342 = vld [vmem:[%s269 + $0x178] sm:$0xff]
        %v343 = vld [vmem:[%s269 + $0x180] sm:$0xff]
        %v344 = vld [vmem:[%s269 + $0x188] sm:$0xff]
        %v345 = vld [vmem:[%s269 + $0x190] sm:$0xff]
        %v346 = vld [vmem:[%s269 + $0x198] sm:$0xff]
        %v347 = vld [vmem:[%s269 + $0x1a0] sm:$0xff]
        %v348 = vld [vmem:[%s269 + $0x1a8] sm:$0xff]
        %v349 = vld [vmem:[%s269 + $0x1b0] sm:$0xff]
        %v350 = vld [vmem:[%s269 + $0x1b8] sm:$0xff]
        %v351 = vld [vmem:[%s269 + $0x1c0] sm:$0xff]
        %v352 = vld [vmem:[%s269 + $0x1c8] sm:$0xff]
        %v353 = vld [vmem:[%s269 + $0x1d0] sm:$0xff]
        %v354 = vld [vmem:[%s269 + $0x1d8] sm:$0xff]
        %v355 = vld [vmem:[%s269 + $0x1e0] sm:$0xff]
        %v356 = vld [vmem:[%s269 + $0x1e8] sm:$0xff]
        %v357 = vld [vmem:[%s269 + $0x1f0] sm:$0xff]
        %v358 = vld [vmem:[%s269 + $0x1f8] sm:$0xff]
        %v359 = vld [vmem:[%s275] sm:$0xff]
        %v360 = vld [vmem:[%s275 + $0x8] sm:$0xff]
        %v361 = vld [vmem:[%s275 + $0x10] sm:$0xff]
        %v362 = vld [vmem:[%s275 + $0x18] sm:$0xff]
        %v363 = vld [vmem:[%s275 + $0x20] sm:$0xff]
        %v364 = vld [vmem:[%s275 + $0x28] sm:$0xff]
        %v365 = vld [vmem:[%s275 + $0x30] sm:$0xff]
        %v366 = vld [vmem:[%s275 + $0x38] sm:$0xff]
        %v367 = vld [vmem:[%s275 + $0x40] sm:$0xff]
        %v368 = vld [vmem:[%s275 + $0x48] sm:$0xff]
        %v369 = vld [vmem:[%s275 + $0x50] sm:$0xff]
        %v370 = vld [vmem:[%s275 + $0x58] sm:$0xff]
        %v371 = vld [vmem:[%s275 + $0x60] sm:$0xff]
        %v372 = vld [vmem:[%s275 + $0x68] sm:$0xff]
        %v373 = vld [vmem:[%s275 + $0x70] sm:$0xff]
        %v374 = vld [vmem:[%s275 + $0x78] sm:$0xff]
        %v375 = vld [vmem:[%s275 + $0x80] sm:$0xff]
        %v376 = vld [vmem:[%s275 + $0x88] sm:$0xff]
        %v377 = vld [vmem:[%s275 + $0x90] sm:$0xff]
        %v378 = vld [vmem:[%s275 + $0x98] sm:$0xff]
        %v379 = vld [vmem:[%s275 + $0xa0] sm:$0xff]
        %v380 = vld [vmem:[%s275 + $0xa8] sm:$0xff]
        %v381 = vld [vmem:[%s275 + $0xb0] sm:$0xff]
        %v382 = vld [vmem:[%s275 + $0xb8] sm:$0xff]
        %v383 = vld [vmem:[%s275 + $0xc0] sm:$0xff]
        %v384 = vld [vmem:[%s275 + $0xc8] sm:$0xff]
        %v385 = vld [vmem:[%s275 + $0xd0] sm:$0xff]
        %v386 = vld [vmem:[%s275 + $0xd8] sm:$0xff]
        %v387 = vld [vmem:[%s275 + $0xe0] sm:$0xff]
        %v388 = vld [vmem:[%s275 + $0xe8] sm:$0xff]
        %v389 = vld [vmem:[%s275 + $0xf0] sm:$0xff]
        %v390 = vld [vmem:[%s275 + $0xf8] sm:$0xff]
        %v391 = vld [vmem:[%s275 + $0x100] sm:$0xff]
        %v392 = vld [vmem:[%s275 + $0x108] sm:$0xff]
        %v393 = vld [vmem:[%s275 + $0x110] sm:$0xff]
        %v394 = vld [vmem:[%s275 + $0x118] sm:$0xff]
        %v395 = vld [vmem:[%s275 + $0x120] sm:$0xff]
        %v396 = vld [vmem:[%s275 + $0x128] sm:$0xff]
        %v397 = vld [vmem:[%s275 + $0x130] sm:$0xff]
        %v398 = vld [vmem:[%s275 + $0x138] sm:$0xff]
        %v399 = vld [vmem:[%s275 + $0x140] sm:$0xff]
        %v400 = vld [vmem:[%s275 + $0x148] sm:$0xff]
        %v401 = vld [vmem:[%s275 + $0x150] sm:$0xff]
        %v402 = vld [vmem:[%s275 + $0x158] sm:$0xff]
        %v403 = vld [vmem:[%s275 + $0x160] sm:$0xff]
        %v404 = vld [vmem:[%s275 + $0x168] sm:$0xff]
        %v405 = vld [vmem:[%s275 + $0x170] sm:$0xff]
        %v406 = vld [vmem:[%s275 + $0x178] sm:$0xff]
        %v407 = vld [vmem:[%s275 + $0x180] sm:$0xff]
        %v408 = vld [vmem:[%s275 + $0x188] sm:$0xff]
        %v409 = vld [vmem:[%s275 + $0x190] sm:$0xff]
        %v410 = vld [vmem:[%s275 + $0x198] sm:$0xff]
        %v411 = vld [vmem:[%s275 + $0x1a0] sm:$0xff]
        %v412 = vld [vmem:[%s275 + $0x1a8] sm:$0xff]
        %v413 = vld [vmem:[%s275 + $0x1b0] sm:$0xff]
        %v414 = vld [vmem:[%s275 + $0x1b8] sm:$0xff]
        %v415 = vld [vmem:[%s275 + $0x1c0] sm:$0xff]
        %v416 = vld [vmem:[%s275 + $0x1c8] sm:$0xff]
        %v417 = vld [vmem:[%s275 + $0x1d0] sm:$0xff]
        %v418 = vld [vmem:[%s275 + $0x1d8] sm:$0xff]
        %v419 = vld [vmem:[%s275 + $0x1e0] sm:$0xff]
        %v420 = vld [vmem:[%s275 + $0x1e8] sm:$0xff]
        %v421 = vld [vmem:[%s275 + $0x1f0] sm:$0xff]
        %v422 = vld [vmem:[%s275 + $0x1f8] sm:$0xff]
        %v423 = vlaneseq
        %v424 = vand.u32 %v423, 127
        %425 = vset.pattern.permute.xlu0 0
        %426 = vperm.xlu0 %425, %v295
        %v427 = vpop.permute.xlu0 %426
        %428 = vset.pattern.permute.xlu0 0
        %429 = vperm.xlu0 %428, %v296
        %v430 = vpop.permute.xlu0 %429
        %431 = vset.pattern.permute.xlu0 0
        %432 = vperm.xlu0 %431, %v297
        %v433 = vpop.permute.xlu0 %432
        %434 = vset.pattern.permute.xlu0 0
        %435 = vperm.xlu0 %434, %v298
        %v436 = vpop.permute.xlu0 %435
        %437 = vset.pattern.permute.xlu0 0
        %438 = vperm.xlu0 %437, %v299
        %v439 = vpop.permute.xlu0 %438
        %440 = vset.pattern.permute.xlu0 0
        %441 = vperm.xlu0 %440, %v300
        %v442 = vpop.permute.xlu0 %441
        %443 = vset.pattern.permute.xlu0 0
        %444 = vperm.xlu0 %443, %v301
        %v445 = vpop.permute.xlu0 %444
        %446 = vset.pattern.permute.xlu0 0
        %447 = vperm.xlu0 %446, %v302
        %v448 = vpop.permute.xlu0 %447
        %449 = vset.pattern.permute.xlu0 0
        %450 = vperm.xlu0 %449, %v303
        %v451 = vpop.permute.xlu0 %450
        %452 = vset.pattern.permute.xlu0 0
        %453 = vperm.xlu0 %452, %v304
        %v454 = vpop.permute.xlu0 %453
        %455 = vset.pattern.permute.xlu0 0
        %456 = vperm.xlu0 %455, %v305
        %v457 = vpop.permute.xlu0 %456
        %458 = vset.pattern.permute.xlu0 0
        %459 = vperm.xlu0 %458, %v306
        %v460 = vpop.permute.xlu0 %459
        %461 = vset.pattern.permute.xlu0 0
        %462 = vperm.xlu0 %461, %v307
        %v463 = vpop.permute.xlu0 %462
        %464 = vset.pattern.permute.xlu0 0
        %465 = vperm.xlu0 %464, %v308
        %v466 = vpop.permute.xlu0 %465
        %467 = vset.pattern.permute.xlu0 0
        %468 = vperm.xlu0 %467, %v309
        %v469 = vpop.permute.xlu0 %468
        %470 = vset.pattern.permute.xlu0 0
        %471 = vperm.xlu0 %470, %v310
        %v472 = vpop.permute.xlu0 %471
        %473 = vset.pattern.permute.xlu0 0
        %474 = vperm.xlu0 %473, %v311
        %v475 = vpop.permute.xlu0 %474
        %476 = vset.pattern.permute.xlu0 0
        %477 = vperm.xlu0 %476, %v312
        %v478 = vpop.permute.xlu0 %477
        %479 = vset.pattern.permute.xlu0 0
        %480 = vperm.xlu0 %479, %v313
        %v481 = vpop.permute.xlu0 %480
        %482 = vset.pattern.permute.xlu0 0
        %483 = vperm.xlu0 %482, %v314
        %v484 = vpop.permute.xlu0 %483
        %485 = vset.pattern.permute.xlu0 0
        %486 = vperm.xlu0 %485, %v315
        %v487 = vpop.permute.xlu0 %486
        %488 = vset.pattern.permute.xlu0 0
        %489 = vperm.xlu0 %488, %v316
        %v490 = vpop.permute.xlu0 %489
        %491 = vset.pattern.permute.xlu0 0
        %492 = vperm.xlu0 %491, %v317
        %v493 = vpop.permute.xlu0 %492
        %494 = vset.pattern.permute.xlu0 0
        %495 = vperm.xlu0 %494, %v318
        %v496 = vpop.permute.xlu0 %495
        %497 = vset.pattern.permute.xlu0 0
        %498 = vperm.xlu0 %497, %v319
        %v499 = vpop.permute.xlu0 %498
        %500 = vset.pattern.permute.xlu0 0
        %501 = vperm.xlu0 %500, %v320
        %v502 = vpop.permute.xlu0 %501
        %503 = vset.pattern.permute.xlu0 0
        %504 = vperm.xlu0 %503, %v321
        %v505 = vpop.permute.xlu0 %504
        %506 = vset.pattern.permute.xlu0 0
        %507 = vperm.xlu0 %506, %v322
        %v508 = vpop.permute.xlu0 %507
        %509 = vset.pattern.permute.xlu0 0
        %510 = vperm.xlu0 %509, %v323
        %v511 = vpop.permute.xlu0 %510
        %512 = vset.pattern.permute.xlu0 0
        %513 = vperm.xlu0 %512, %v324
        %v514 = vpop.permute.xlu0 %513
        %515 = vset.pattern.permute.xlu0 0
        %516 = vperm.xlu0 %515, %v325
        %v517 = vpop.permute.xlu0 %516
        %518 = vset.pattern.permute.xlu0 0
        %519 = vperm.xlu0 %518, %v326
        %v520 = vpop.permute.xlu0 %519
        %521 = vset.pattern.permute.xlu0 0
        %522 = vperm.xlu0 %521, %v327
        %v523 = vpop.permute.xlu0 %522
        %524 = vset.pattern.permute.xlu0 0
        %525 = vperm.xlu0 %524, %v328
        %v526 = vpop.permute.xlu0 %525
        %527 = vset.pattern.permute.xlu0 0
        %528 = vperm.xlu0 %527, %v329
        %v529 = vpop.permute.xlu0 %528
        %530 = vset.pattern.permute.xlu0 0
        %531 = vperm.xlu0 %530, %v330
        %v532 = vpop.permute.xlu0 %531
        %533 = vset.pattern.permute.xlu0 0
        %534 = vperm.xlu0 %533, %v331
        %v535 = vpop.permute.xlu0 %534
        %536 = vset.pattern.permute.xlu0 0
        %537 = vperm.xlu0 %536, %v332
        %v538 = vpop.permute.xlu0 %537
        %539 = vset.pattern.permute.xlu0 0
        %540 = vperm.xlu0 %539, %v333
        %v541 = vpop.permute.xlu0 %540
        %542 = vset.pattern.permute.xlu0 0
        %543 = vperm.xlu0 %542, %v334
        %v544 = vpop.permute.xlu0 %543
        %545 = vset.pattern.permute.xlu0 0
        %546 = vperm.xlu0 %545, %v335
        %v547 = vpop.permute.xlu0 %546
        %548 = vset.pattern.permute.xlu0 0
        %549 = vperm.xlu0 %548, %v336
        %v550 = vpop.permute.xlu0 %549
        %551 = vset.pattern.permute.xlu0 0
        %552 = vperm.xlu0 %551, %v337
        %v553 = vpop.permute.xlu0 %552
        %554 = vset.pattern.permute.xlu0 0
        %555 = vperm.xlu0 %554, %v338
        %v556 = vpop.permute.xlu0 %555
        %557 = vset.pattern.permute.xlu0 0
        %558 = vperm.xlu0 %557, %v339
        %v559 = vpop.permute.xlu0 %558
        %560 = vset.pattern.permute.xlu0 0
        %561 = vperm.xlu0 %560, %v340
        %v562 = vpop.permute.xlu0 %561
        %563 = vset.pattern.permute.xlu0 0
        %564 = vperm.xlu0 %563, %v341
        %v565 = vpop.permute.xlu0 %564
        %566 = vset.pattern.permute.xlu0 0
        %567 = vperm.xlu0 %566, %v342
        %v568 = vpop.permute.xlu0 %567
        %569 = vset.pattern.permute.xlu0 0
        %570 = vperm.xlu0 %569, %v343
        %v571 = vpop.permute.xlu0 %570
        %572 = vset.pattern.permute.xlu0 0
        %573 = vperm.xlu0 %572, %v344
        %v574 = vpop.permute.xlu0 %573
        %575 = vset.pattern.permute.xlu0 0
        %576 = vperm.xlu0 %575, %v345
        %v577 = vpop.permute.xlu0 %576
        %578 = vset.pattern.permute.xlu0 0
        %579 = vperm.xlu0 %578, %v346
        %v580 = vpop.permute.xlu0 %579
        %581 = vset.pattern.permute.xlu0 0
        %582 = vperm.xlu0 %581, %v347
        %v583 = vpop.permute.xlu0 %582
        %584 = vset.pattern.permute.xlu0 0
        %585 = vperm.xlu0 %584, %v348
        %v586 = vpop.permute.xlu0 %585
        %587 = vset.pattern.permute.xlu0 0
        %588 = vperm.xlu0 %587, %v349
        %v589 = vpop.permute.xlu0 %588
        %590 = vset.pattern.permute.xlu0 0
        %591 = vperm.xlu0 %590, %v350
        %v592 = vpop.permute.xlu0 %591
        %593 = vset.pattern.permute.xlu0 0
        %594 = vperm.xlu0 %593, %v351
        %v595 = vpop.permute.xlu0 %594
        %596 = vset.pattern.permute.xlu0 0
        %597 = vperm.xlu0 %596, %v352
        %v598 = vpop.permute.xlu0 %597
        %599 = vset.pattern.permute.xlu0 0
        %600 = vperm.xlu0 %599, %v353
        %v601 = vpop.permute.xlu0 %600
        %602 = vset.pattern.permute.xlu0 0
        %603 = vperm.xlu0 %602, %v354
        %v604 = vpop.permute.xlu0 %603
        %605 = vset.pattern.permute.xlu0 0
        %606 = vperm.xlu0 %605, %v355
        %v607 = vpop.permute.xlu0 %606
        %608 = vset.pattern.permute.xlu0 0
        %609 = vperm.xlu0 %608, %v356
        %v610 = vpop.permute.xlu0 %609
        %611 = vset.pattern.permute.xlu0 0
        %612 = vperm.xlu0 %611, %v357
        %v613 = vpop.permute.xlu0 %612
        %614 = vset.pattern.permute.xlu0 0
        %615 = vperm.xlu0 %614, %v358
        %v616 = vpop.permute.xlu0 %615
        %vm617 = vcmp.eq.s32.totalorder %v424, %v427
        %vm618 = vcmp.eq.s32.totalorder %v424, %v430
        %vm619 = vcmp.eq.s32.totalorder %v424, %v433
        %vm620 = vcmp.eq.s32.totalorder %v424, %v436
        %vm621 = vcmp.eq.s32.totalorder %v424, %v439
        %vm622 = vcmp.eq.s32.totalorder %v424, %v442
        %vm623 = vcmp.eq.s32.totalorder %v424, %v445
        %vm624 = vcmp.eq.s32.totalorder %v424, %v448
        %vm625 = vcmp.eq.s32.totalorder %v424, %v451
        %vm626 = vcmp.eq.s32.totalorder %v424, %v454
        %vm627 = vcmp.eq.s32.totalorder %v424, %v457
        %vm628 = vcmp.eq.s32.totalorder %v424, %v460
        %vm629 = vcmp.eq.s32.totalorder %v424, %v463
        %vm630 = vcmp.eq.s32.totalorder %v424, %v466
        %vm631 = vcmp.eq.s32.totalorder %v424, %v469
        %vm632 = vcmp.eq.s32.totalorder %v424, %v472
        %vm633 = vcmp.eq.s32.totalorder %v424, %v475
        %vm634 = vcmp.eq.s32.totalorder %v424, %v478
        %vm635 = vcmp.eq.s32.totalorder %v424, %v481
        %vm636 = vcmp.eq.s32.totalorder %v424, %v484
        %vm637 = vcmp.eq.s32.totalorder %v424, %v487
        %vm638 = vcmp.eq.s32.totalorder %v424, %v490
        %vm639 = vcmp.eq.s32.totalorder %v424, %v493
        %vm640 = vcmp.eq.s32.totalorder %v424, %v496
        %vm641 = vcmp.eq.s32.totalorder %v424, %v499
        %vm642 = vcmp.eq.s32.totalorder %v424, %v502
        %vm643 = vcmp.eq.s32.totalorder %v424, %v505
        %vm644 = vcmp.eq.s32.totalorder %v424, %v508
        %vm645 = vcmp.eq.s32.totalorder %v424, %v511
        %vm646 = vcmp.eq.s32.totalorder %v424, %v514
        %vm647 = vcmp.eq.s32.totalorder %v424, %v517
        %vm648 = vcmp.eq.s32.totalorder %v424, %v520
        %vm649 = vcmp.eq.s32.totalorder %v424, %v523
        %vm650 = vcmp.eq.s32.totalorder %v424, %v526
        %vm651 = vcmp.eq.s32.totalorder %v424, %v529
        %vm652 = vcmp.eq.s32.totalorder %v424, %v532
        %vm653 = vcmp.eq.s32.totalorder %v424, %v535
        %vm654 = vcmp.eq.s32.totalorder %v424, %v538
        %vm655 = vcmp.eq.s32.totalorder %v424, %v541
        %vm656 = vcmp.eq.s32.totalorder %v424, %v544
        %vm657 = vcmp.eq.s32.totalorder %v424, %v547
        %vm658 = vcmp.eq.s32.totalorder %v424, %v550
        %vm659 = vcmp.eq.s32.totalorder %v424, %v553
        %vm660 = vcmp.eq.s32.totalorder %v424, %v556
        %vm661 = vcmp.eq.s32.totalorder %v424, %v559
        %vm662 = vcmp.eq.s32.totalorder %v424, %v562
        %vm663 = vcmp.eq.s32.totalorder %v424, %v565
        %vm664 = vcmp.eq.s32.totalorder %v424, %v568
        %vm665 = vcmp.eq.s32.totalorder %v424, %v571
        %vm666 = vcmp.eq.s32.totalorder %v424, %v574
        %vm667 = vcmp.eq.s32.totalorder %v424, %v577
        %vm668 = vcmp.eq.s32.totalorder %v424, %v580
        %vm669 = vcmp.eq.s32.totalorder %v424, %v583
        %vm670 = vcmp.eq.s32.totalorder %v424, %v586
        %vm671 = vcmp.eq.s32.totalorder %v424, %v589
        %vm672 = vcmp.eq.s32.totalorder %v424, %v592
        %vm673 = vcmp.eq.s32.totalorder %v424, %v595
        %vm674 = vcmp.eq.s32.totalorder %v424, %v598
        %vm675 = vcmp.eq.s32.totalorder %v424, %v601
        %vm676 = vcmp.eq.s32.totalorder %v424, %v604
        %vm677 = vcmp.eq.s32.totalorder %v424, %v607
        %vm678 = vcmp.eq.s32.totalorder %v424, %v610
        %vm679 = vcmp.eq.s32.totalorder %v424, %v613
        %vm680 = vcmp.eq.s32.totalorder %v424, %v616
        %v681 = vsel %vm617, 1.0, 0.0
        %v682 = vsel %vm618, 1.0, 0.0
        %v683 = vsel %vm619, 1.0, 0.0
        %v684 = vsel %vm620, 1.0, 0.0
        %v685 = vsel %vm621, 1.0, 0.0
        %v686 = vsel %vm622, 1.0, 0.0
        %v687 = vsel %vm623, 1.0, 0.0
        %v688 = vsel %vm624, 1.0, 0.0
        %v689 = vsel %vm625, 1.0, 0.0
        %v690 = vsel %vm626, 1.0, 0.0
        %v691 = vsel %vm627, 1.0, 0.0
        %v692 = vsel %vm628, 1.0, 0.0
        %v693 = vsel %vm629, 1.0, 0.0
        %v694 = vsel %vm630, 1.0, 0.0
        %v695 = vsel %vm631, 1.0, 0.0
        %v696 = vsel %vm632, 1.0, 0.0
        %v697 = vsel %vm633, 1.0, 0.0
        %v698 = vsel %vm634, 1.0, 0.0
        %v699 = vsel %vm635, 1.0, 0.0
        %v700 = vsel %vm636, 1.0, 0.0
        %v701 = vsel %vm637, 1.0, 0.0
        %v702 = vsel %vm638, 1.0, 0.0
        %v703 = vsel %vm639, 1.0, 0.0
        %v704 = vsel %vm640, 1.0, 0.0
        %v705 = vsel %vm641, 1.0, 0.0
        %v706 = vsel %vm642, 1.0, 0.0
        %v707 = vsel %vm643, 1.0, 0.0
        %v708 = vsel %vm644, 1.0, 0.0
        %v709 = vsel %vm645, 1.0, 0.0
        %v710 = vsel %vm646, 1.0, 0.0
        %v711 = vsel %vm647, 1.0, 0.0
        %v712 = vsel %vm648, 1.0, 0.0
        %v713 = vsel %vm649, 1.0, 0.0
        %v714 = vsel %vm650, 1.0, 0.0
        %v715 = vsel %vm651, 1.0, 0.0
        %v716 = vsel %vm652, 1.0, 0.0
        %v717 = vsel %vm653, 1.0, 0.0
        %v718 = vsel %vm654, 1.0, 0.0
        %v719 = vsel %vm655, 1.0, 0.0
        %v720 = vsel %vm656, 1.0, 0.0
        %v721 = vsel %vm657, 1.0, 0.0
        %v722 = vsel %vm658, 1.0, 0.0
        %v723 = vsel %vm659, 1.0, 0.0
        %v724 = vsel %vm660, 1.0, 0.0
        %v725 = vsel %vm661, 1.0, 0.0
        %v726 = vsel %vm662, 1.0, 0.0
        %v727 = vsel %vm663, 1.0, 0.0
        %v728 = vsel %vm664, 1.0, 0.0
        %v729 = vsel %vm665, 1.0, 0.0
        %v730 = vsel %vm666, 1.0, 0.0
        %v731 = vsel %vm667, 1.0, 0.0
        %v732 = vsel %vm668, 1.0, 0.0
        %v733 = vsel %vm669, 1.0, 0.0
        %v734 = vsel %vm670, 1.0, 0.0
        %v735 = vsel %vm671, 1.0, 0.0
        %v736 = vsel %vm672, 1.0, 0.0
        %v737 = vsel %vm673, 1.0, 0.0
        %v738 = vsel %vm674, 1.0, 0.0
        %v739 = vsel %vm675, 1.0, 0.0
        %v740 = vsel %vm676, 1.0, 0.0
        %v741 = vsel %vm677, 1.0, 0.0
        %v742 = vsel %vm678, 1.0, 0.0
        %v743 = vsel %vm679, 1.0, 0.0
        %v744 = vsel %vm680, 1.0, 0.0
        %v745 = vpack.c.bf16 %v682, %v681
        %v746 = vpack.c.bf16 %v684, %v683
        %v747 = vpack.c.bf16 %v686, %v685
        %v748 = vpack.c.bf16 %v688, %v687
        %v749 = vpack.c.bf16 %v690, %v689
        %v750 = vpack.c.bf16 %v692, %v691
        %v751 = vpack.c.bf16 %v694, %v693
        %v752 = vpack.c.bf16 %v696, %v695
        %v753 = vpack.c.bf16 %v698, %v697
        %v754 = vpack.c.bf16 %v700, %v699
        %v755 = vpack.c.bf16 %v702, %v701
        %v756 = vpack.c.bf16 %v704, %v703
        %v757 = vpack.c.bf16 %v706, %v705
        %v758 = vpack.c.bf16 %v708, %v707
        %v759 = vpack.c.bf16 %v710, %v709
        %v760 = vpack.c.bf16 %v712, %v711
        %v761 = vpack.c.bf16 %v714, %v713
        %v762 = vpack.c.bf16 %v716, %v715
        %v763 = vpack.c.bf16 %v718, %v717
        %v764 = vpack.c.bf16 %v720, %v719
        %v765 = vpack.c.bf16 %v722, %v721
        %v766 = vpack.c.bf16 %v724, %v723
        %v767 = vpack.c.bf16 %v726, %v725
        %v768 = vpack.c.bf16 %v728, %v727
        %v769 = vpack.c.bf16 %v730, %v729
        %v770 = vpack.c.bf16 %v732, %v731
        %v771 = vpack.c.bf16 %v734, %v733
        %v772 = vpack.c.bf16 %v736, %v735
        %v773 = vpack.c.bf16 %v738, %v737
        %v774 = vpack.c.bf16 %v740, %v739
        %v775 = vpack.c.bf16 %v742, %v741
        %v776 = vpack.c.bf16 %v744, %v743
        %777 = vset.pattern.permute.xlu0 0
        %778 = vperm.xlu0 %777, %v359
        %v779 = vpop.permute.xlu0 %778
        %780 = vset.pattern.permute.xlu0 0
        %781 = vperm.xlu0 %780, %v360
        %v782 = vpop.permute.xlu0 %781
        %783 = vset.pattern.permute.xlu0 0
        %784 = vperm.xlu0 %783, %v361
        %v785 = vpop.permute.xlu0 %784
        %786 = vset.pattern.permute.xlu0 0
        %787 = vperm.xlu0 %786, %v362
        %v788 = vpop.permute.xlu0 %787
        %789 = vset.pattern.permute.xlu0 0
        %790 = vperm.xlu0 %789, %v363
        %v791 = vpop.permute.xlu0 %790
        %792 = vset.pattern.permute.xlu0 0
        %793 = vperm.xlu0 %792, %v364
        %v794 = vpop.permute.xlu0 %793
        %795 = vset.pattern.permute.xlu0 0
        %796 = vperm.xlu0 %795, %v365
        %v797 = vpop.permute.xlu0 %796
        %798 = vset.pattern.permute.xlu0 0
        %799 = vperm.xlu0 %798, %v366
        %v800 = vpop.permute.xlu0 %799
        %801 = vset.pattern.permute.xlu0 0
        %802 = vperm.xlu0 %801, %v367
        %v803 = vpop.permute.xlu0 %802
        %804 = vset.pattern.permute.xlu0 0
        %805 = vperm.xlu0 %804, %v368
        %v806 = vpop.permute.xlu0 %805
        %807 = vset.pattern.permute.xlu0 0
        %808 = vperm.xlu0 %807, %v369
        %v809 = vpop.permute.xlu0 %808
        %810 = vset.pattern.permute.xlu0 0
        %811 = vperm.xlu0 %810, %v370
        %v812 = vpop.permute.xlu0 %811
        %813 = vset.pattern.permute.xlu0 0
        %814 = vperm.xlu0 %813, %v371
        %v815 = vpop.permute.xlu0 %814
        %816 = vset.pattern.permute.xlu0 0
        %817 = vperm.xlu0 %816, %v372
        %v818 = vpop.permute.xlu0 %817
        %819 = vset.pattern.permute.xlu0 0
        %820 = vperm.xlu0 %819, %v373
        %v821 = vpop.permute.xlu0 %820
        %822 = vset.pattern.permute.xlu0 0
        %823 = vperm.xlu0 %822, %v374
        %v824 = vpop.permute.xlu0 %823
        %825 = vset.pattern.permute.xlu0 0
        %826 = vperm.xlu0 %825, %v375
        %v827 = vpop.permute.xlu0 %826
        %828 = vset.pattern.permute.xlu0 0
        %829 = vperm.xlu0 %828, %v376
        %v830 = vpop.permute.xlu0 %829
        %831 = vset.pattern.permute.xlu0 0
        %832 = vperm.xlu0 %831, %v377
        %v833 = vpop.permute.xlu0 %832
        %834 = vset.pattern.permute.xlu0 0
        %835 = vperm.xlu0 %834, %v378
        %v836 = vpop.permute.xlu0 %835
        %837 = vset.pattern.permute.xlu0 0
        %838 = vperm.xlu0 %837, %v379
        %v839 = vpop.permute.xlu0 %838
        %840 = vset.pattern.permute.xlu0 0
        %841 = vperm.xlu0 %840, %v380
        %v842 = vpop.permute.xlu0 %841
        %843 = vset.pattern.permute.xlu0 0
        %844 = vperm.xlu0 %843, %v381
        %v845 = vpop.permute.xlu0 %844
        %846 = vset.pattern.permute.xlu0 0
        %847 = vperm.xlu0 %846, %v382
        %v848 = vpop.permute.xlu0 %847
        %849 = vset.pattern.permute.xlu0 0
        %850 = vperm.xlu0 %849, %v383
        %v851 = vpop.permute.xlu0 %850
        %852 = vset.pattern.permute.xlu0 0
        %853 = vperm.xlu0 %852, %v384
        %v854 = vpop.permute.xlu0 %853
        %855 = vset.pattern.permute.xlu0 0
        %856 = vperm.xlu0 %855, %v385
        %v857 = vpop.permute.xlu0 %856
        %858 = vset.pattern.permute.xlu0 0
        %859 = vperm.xlu0 %858, %v386
        %v860 = vpop.permute.xlu0 %859
        %861 = vset.pattern.permute.xlu0 0
        %862 = vperm.xlu0 %861, %v387
        %v863 = vpop.permute.xlu0 %862
        %864 = vset.pattern.permute.xlu0 0
        %865 = vperm.xlu0 %864, %v388
        %v866 = vpop.permute.xlu0 %865
        %867 = vset.pattern.permute.xlu0 0
        %868 = vperm.xlu0 %867, %v389
        %v869 = vpop.permute.xlu0 %868
        %870 = vset.pattern.permute.xlu0 0
        %871 = vperm.xlu0 %870, %v390
        %v872 = vpop.permute.xlu0 %871
        %873 = vset.pattern.permute.xlu0 0
        %874 = vperm.xlu0 %873, %v391
        %v875 = vpop.permute.xlu0 %874
        %876 = vset.pattern.permute.xlu0 0
        %877 = vperm.xlu0 %876, %v392
        %v878 = vpop.permute.xlu0 %877
        %879 = vset.pattern.permute.xlu0 0
        %880 = vperm.xlu0 %879, %v393
        %v881 = vpop.permute.xlu0 %880
        %882 = vset.pattern.permute.xlu0 0
        %883 = vperm.xlu0 %882, %v394
        %v884 = vpop.permute.xlu0 %883
        %885 = vset.pattern.permute.xlu0 0
        %886 = vperm.xlu0 %885, %v395
        %v887 = vpop.permute.xlu0 %886
        %888 = vset.pattern.permute.xlu0 0
        %889 = vperm.xlu0 %888, %v396
        %v890 = vpop.permute.xlu0 %889
        %891 = vset.pattern.permute.xlu0 0
        %892 = vperm.xlu0 %891, %v397
        %v893 = vpop.permute.xlu0 %892
        %894 = vset.pattern.permute.xlu0 0
        %895 = vperm.xlu0 %894, %v398
        %v896 = vpop.permute.xlu0 %895
        %897 = vset.pattern.permute.xlu0 0
        %898 = vperm.xlu0 %897, %v399
        %v899 = vpop.permute.xlu0 %898
        %900 = vset.pattern.permute.xlu0 0
        %901 = vperm.xlu0 %900, %v400
        %v902 = vpop.permute.xlu0 %901
        %903 = vset.pattern.permute.xlu0 0
        %904 = vperm.xlu0 %903, %v401
        %v905 = vpop.permute.xlu0 %904
        %906 = vset.pattern.permute.xlu0 0
        %907 = vperm.xlu0 %906, %v402
        %v908 = vpop.permute.xlu0 %907
        %909 = vset.pattern.permute.xlu0 0
        %910 = vperm.xlu0 %909, %v403
        %v911 = vpop.permute.xlu0 %910
        %912 = vset.pattern.permute.xlu0 0
        %913 = vperm.xlu0 %912, %v404
        %v914 = vpop.permute.xlu0 %913
        %915 = vset.pattern.permute.xlu0 0
        %916 = vperm.xlu0 %915, %v405
        %v917 = vpop.permute.xlu0 %916
        %918 = vset.pattern.permute.xlu0 0
        %919 = vperm.xlu0 %918, %v406
        %v920 = vpop.permute.xlu0 %919
        %921 = vset.pattern.permute.xlu0 0
        %922 = vperm.xlu0 %921, %v407
        %v923 = vpop.permute.xlu0 %922
        %924 = vset.pattern.permute.xlu0 0
        %925 = vperm.xlu0 %924, %v408
        %v926 = vpop.permute.xlu0 %925
        %927 = vset.pattern.permute.xlu0 0
        %928 = vperm.xlu0 %927, %v409
        %v929 = vpop.permute.xlu0 %928
        %930 = vset.pattern.permute.xlu0 0
        %931 = vperm.xlu0 %930, %v410
        %v932 = vpop.permute.xlu0 %931
        %933 = vset.pattern.permute.xlu0 0
        %934 = vperm.xlu0 %933, %v411
        %v935 = vpop.permute.xlu0 %934
        %936 = vset.pattern.permute.xlu0 0
        %937 = vperm.xlu0 %936, %v412
        %v938 = vpop.permute.xlu0 %937
        %939 = vset.pattern.permute.xlu0 0
        %940 = vperm.xlu0 %939, %v413
        %v941 = vpop.permute.xlu0 %940
        %942 = vset.pattern.permute.xlu0 0
        %943 = vperm.xlu0 %942, %v414
        %v944 = vpop.permute.xlu0 %943
        %945 = vset.pattern.permute.xlu0 0
        %946 = vperm.xlu0 %945, %v415
        %v947 = vpop.permute.xlu0 %946
        %948 = vset.pattern.permute.xlu0 0
        %949 = vperm.xlu0 %948, %v416
        %v950 = vpop.permute.xlu0 %949
        %951 = vset.pattern.permute.xlu0 0
        %952 = vperm.xlu0 %951, %v417
        %v953 = vpop.permute.xlu0 %952
        %954 = vset.pattern.permute.xlu0 0
        %955 = vperm.xlu0 %954, %v418
        %v956 = vpop.permute.xlu0 %955
        %957 = vset.pattern.permute.xlu0 0
        %958 = vperm.xlu0 %957, %v419
        %v959 = vpop.permute.xlu0 %958
        %960 = vset.pattern.permute.xlu0 0
        %961 = vperm.xlu0 %960, %v420
        %v962 = vpop.permute.xlu0 %961
        %963 = vset.pattern.permute.xlu0 0
        %964 = vperm.xlu0 %963, %v421
        %v965 = vpop.permute.xlu0 %964
        %966 = vset.pattern.permute.xlu0 0
        %967 = vperm.xlu0 %966, %v422
        %v968 = vpop.permute.xlu0 %967
        %vm969 = vcmp.eq.s32.totalorder %v424, %v779
        %vm970 = vcmp.eq.s32.totalorder %v424, %v782
        %vm971 = vcmp.eq.s32.totalorder %v424, %v785
        %vm972 = vcmp.eq.s32.totalorder %v424, %v788
        %vm973 = vcmp.eq.s32.totalorder %v424, %v791
        %vm974 = vcmp.eq.s32.totalorder %v424, %v794
        %vm975 = vcmp.eq.s32.totalorder %v424, %v797
        %vm976 = vcmp.eq.s32.totalorder %v424, %v800
        %vm977 = vcmp.eq.s32.totalorder %v424, %v803
        %vm978 = vcmp.eq.s32.totalorder %v424, %v806
        %vm979 = vcmp.eq.s32.totalorder %v424, %v809
        %vm980 = vcmp.eq.s32.totalorder %v424, %v812
        %vm981 = vcmp.eq.s32.totalorder %v424, %v815
        %vm982 = vcmp.eq.s32.totalorder %v424, %v818
        %vm983 = vcmp.eq.s32.totalorder %v424, %v821
        %vm984 = vcmp.eq.s32.totalorder %v424, %v824
        %vm985 = vcmp.eq.s32.totalorder %v424, %v827
        %vm986 = vcmp.eq.s32.totalorder %v424, %v830
        %vm987 = vcmp.eq.s32.totalorder %v424, %v833
        %vm988 = vcmp.eq.s32.totalorder %v424, %v836
        %vm989 = vcmp.eq.s32.totalorder %v424, %v839
        %vm990 = vcmp.eq.s32.totalorder %v424, %v842
        %vm991 = vcmp.eq.s32.totalorder %v424, %v845
        %vm992 = vcmp.eq.s32.totalorder %v424, %v848
        %vm993 = vcmp.eq.s32.totalorder %v424, %v851
        %vm994 = vcmp.eq.s32.totalorder %v424, %v854
        %vm995 = vcmp.eq.s32.totalorder %v424, %v857
        %vm996 = vcmp.eq.s32.totalorder %v424, %v860
        %vm997 = vcmp.eq.s32.totalorder %v424, %v863
        %vm998 = vcmp.eq.s32.totalorder %v424, %v866
        %vm999 = vcmp.eq.s32.totalorder %v424, %v869
        %vm1000 = vcmp.eq.s32.totalorder %v424, %v872
        %vm1001 = vcmp.eq.s32.totalorder %v424, %v875
        %vm1002 = vcmp.eq.s32.totalorder %v424, %v878
        %vm1003 = vcmp.eq.s32.totalorder %v424, %v881
        %vm1004 = vcmp.eq.s32.totalorder %v424, %v884
        %vm1005 = vcmp.eq.s32.totalorder %v424, %v887
        %vm1006 = vcmp.eq.s32.totalorder %v424, %v890
        %vm1007 = vcmp.eq.s32.totalorder %v424, %v893
        %vm1008 = vcmp.eq.s32.totalorder %v424, %v896
        %vm1009 = vcmp.eq.s32.totalorder %v424, %v899
        %vm1010 = vcmp.eq.s32.totalorder %v424, %v902
        %vm1011 = vcmp.eq.s32.totalorder %v424, %v905
        %vm1012 = vcmp.eq.s32.totalorder %v424, %v908
        %vm1013 = vcmp.eq.s32.totalorder %v424, %v911
        %vm1014 = vcmp.eq.s32.totalorder %v424, %v914
        %vm1015 = vcmp.eq.s32.totalorder %v424, %v917
        %vm1016 = vcmp.eq.s32.totalorder %v424, %v920
        %vm1017 = vcmp.eq.s32.totalorder %v424, %v923
        %vm1018 = vcmp.eq.s32.totalorder %v424, %v926
        %vm1019 = vcmp.eq.s32.totalorder %v424, %v929
        %vm1020 = vcmp.eq.s32.totalorder %v424, %v932
        %vm1021 = vcmp.eq.s32.totalorder %v424, %v935
        %vm1022 = vcmp.eq.s32.totalorder %v424, %v938
        %vm1023 = vcmp.eq.s32.totalorder %v424, %v941
        %vm1024 = vcmp.eq.s32.totalorder %v424, %v944
        %vm1025 = vcmp.eq.s32.totalorder %v424, %v947
        %vm1026 = vcmp.eq.s32.totalorder %v424, %v950
        %vm1027 = vcmp.eq.s32.totalorder %v424, %v953
        %vm1028 = vcmp.eq.s32.totalorder %v424, %v956
        %vm1029 = vcmp.eq.s32.totalorder %v424, %v959
        %vm1030 = vcmp.eq.s32.totalorder %v424, %v962
        %vm1031 = vcmp.eq.s32.totalorder %v424, %v965
        %vm1032 = vcmp.eq.s32.totalorder %v424, %v968
        %v1033 = vsel %vm969, 1.0, 0.0
        %v1034 = vsel %vm970, 1.0, 0.0
        %v1035 = vsel %vm971, 1.0, 0.0
        %v1036 = vsel %vm972, 1.0, 0.0
        %v1037 = vsel %vm973, 1.0, 0.0
        %v1038 = vsel %vm974, 1.0, 0.0
        %v1039 = vsel %vm975, 1.0, 0.0
        %v1040 = vsel %vm976, 1.0, 0.0
        %v1041 = vsel %vm977, 1.0, 0.0
        %v1042 = vsel %vm978, 1.0, 0.0
        %v1043 = vsel %vm979, 1.0, 0.0
        %v1044 = vsel %vm980, 1.0, 0.0
        %v1045 = vsel %vm981, 1.0, 0.0
        %v1046 = vsel %vm982, 1.0, 0.0
        %v1047 = vsel %vm983, 1.0, 0.0
        %v1048 = vsel %vm984, 1.0, 0.0
        %v1049 = vsel %vm985, 1.0, 0.0
        %v1050 = vsel %vm986, 1.0, 0.0
        %v1051 = vsel %vm987, 1.0, 0.0
        %v1052 = vsel %vm988, 1.0, 0.0
        %v1053 = vsel %vm989, 1.0, 0.0
        %v1054 = vsel %vm990, 1.0, 0.0
        %v1055 = vsel %vm991, 1.0, 0.0
        %v1056 = vsel %vm992, 1.0, 0.0
        %v1057 = vsel %vm993, 1.0, 0.0
        %v1058 = vsel %vm994, 1.0, 0.0
        %v1059 = vsel %vm995, 1.0, 0.0
        %v1060 = vsel %vm996, 1.0, 0.0
        %v1061 = vsel %vm997, 1.0, 0.0
        %v1062 = vsel %vm998, 1.0, 0.0
        %v1063 = vsel %vm999, 1.0, 0.0
        %v1064 = vsel %vm1000, 1.0, 0.0
        %v1065 = vsel %vm1001, 1.0, 0.0
        %v1066 = vsel %vm1002, 1.0, 0.0
        %v1067 = vsel %vm1003, 1.0, 0.0
        %v1068 = vsel %vm1004, 1.0, 0.0
        %v1069 = vsel %vm1005, 1.0, 0.0
        %v1070 = vsel %vm1006, 1.0, 0.0
        %v1071 = vsel %vm1007, 1.0, 0.0
        %v1072 = vsel %vm1008, 1.0, 0.0
        %v1073 = vsel %vm1009, 1.0, 0.0
        %v1074 = vsel %vm1010, 1.0, 0.0
        %v1075 = vsel %vm1011, 1.0, 0.0
        %v1076 = vsel %vm1012, 1.0, 0.0
        %v1077 = vsel %vm1013, 1.0, 0.0
        %v1078 = vsel %vm1014, 1.0, 0.0
        %v1079 = vsel %vm1015, 1.0, 0.0
        %v1080 = vsel %vm1016, 1.0, 0.0
        %v1081 = vsel %vm1017, 1.0, 0.0
        %v1082 = vsel %vm1018, 1.0, 0.0
        %v1083 = vsel %vm1019, 1.0, 0.0
        %v1084 = vsel %vm1020, 1.0, 0.0
        %v1085 = vsel %vm1021, 1.0, 0.0
        %v1086 = vsel %vm1022, 1.0, 0.0
        %v1087 = vsel %vm1023, 1.0, 0.0
        %v1088 = vsel %vm1024, 1.0, 0.0
        %v1089 = vsel %vm1025, 1.0, 0.0
        %v1090 = vsel %vm1026, 1.0, 0.0
        %v1091 = vsel %vm1027, 1.0, 0.0
        %v1092 = vsel %vm1028, 1.0, 0.0
        %v1093 = vsel %vm1029, 1.0, 0.0
        %v1094 = vsel %vm1030, 1.0, 0.0
        %v1095 = vsel %vm1031, 1.0, 0.0
        %v1096 = vsel %vm1032, 1.0, 0.0
        %v1097 = vpack.c.bf16 %v1034, %v1033
        %v1098 = vpack.c.bf16 %v1036, %v1035
        %v1099 = vpack.c.bf16 %v1038, %v1037
        %v1100 = vpack.c.bf16 %v1040, %v1039
        %v1101 = vpack.c.bf16 %v1042, %v1041
        %v1102 = vpack.c.bf16 %v1044, %v1043
        %v1103 = vpack.c.bf16 %v1046, %v1045
        %v1104 = vpack.c.bf16 %v1048, %v1047
        %v1105 = vpack.c.bf16 %v1050, %v1049
        %v1106 = vpack.c.bf16 %v1052, %v1051
        %v1107 = vpack.c.bf16 %v1054, %v1053
        %v1108 = vpack.c.bf16 %v1056, %v1055
        %v1109 = vpack.c.bf16 %v1058, %v1057
        %v1110 = vpack.c.bf16 %v1060, %v1059
        %v1111 = vpack.c.bf16 %v1062, %v1061
        %v1112 = vpack.c.bf16 %v1064, %v1063
        %v1113 = vpack.c.bf16 %v1066, %v1065
        %v1114 = vpack.c.bf16 %v1068, %v1067
        %v1115 = vpack.c.bf16 %v1070, %v1069
        %v1116 = vpack.c.bf16 %v1072, %v1071
        %v1117 = vpack.c.bf16 %v1074, %v1073
        %v1118 = vpack.c.bf16 %v1076, %v1075
        %v1119 = vpack.c.bf16 %v1078, %v1077
        %v1120 = vpack.c.bf16 %v1080, %v1079
        %v1121 = vpack.c.bf16 %v1082, %v1081
        %v1122 = vpack.c.bf16 %v1084, %v1083
        %v1123 = vpack.c.bf16 %v1086, %v1085
        %v1124 = vpack.c.bf16 %v1088, %v1087
        %v1125 = vpack.c.bf16 %v1090, %v1089
        %v1126 = vpack.c.bf16 %v1092, %v1091
        %v1127 = vpack.c.bf16 %v1094, %v1093
        %v1128 = vpack.c.bf16 %v1096, %v1095
        %v1129 = vld [vmem:[%s1] sm:$0xf]
        %v1130 = vld [vmem:[%s1 + $0x4] sm:$0xf]
        %v1131 = vld [vmem:[%s1 + $0x8] sm:$0xf]
        %v1132 = vld [vmem:[%s1 + $0xc] sm:$0xf]
        %v1133 = vld [vmem:[%s1 + $0x10] sm:$0xf]
        %v1134 = vld [vmem:[%s1 + $0x14] sm:$0xf]
        %v1135 = vld [vmem:[%s1 + $0x18] sm:$0xf]
        %v1136 = vld [vmem:[%s1 + $0x1c] sm:$0xf]
        %v1137 = vld [vmem:[%s2] sm:$0xf]
        %v1138 = vld [vmem:[%s2 + $0x4] sm:$0xf]
        %v1139 = vld [vmem:[%s2 + $0x8] sm:$0xf]
        %v1140 = vld [vmem:[%s2 + $0xc] sm:$0xf]
        %v1141 = vld [vmem:[%s2 + $0x10] sm:$0xf]
        %v1142 = vld [vmem:[%s2 + $0x14] sm:$0xf]
        %v1143 = vld [vmem:[%s2 + $0x18] sm:$0xf]
        %v1144 = vld [vmem:[%s2 + $0x1c] sm:$0xf]
        %v1153 = vunpack.c.l.b16 %v1137
        %v1154 = vunpack.c.l.b16 %v1138
        %v1155 = vunpack.c.l.b16 %v1139
        %v1156 = vunpack.c.l.b16 %v1140
        %v1157 = vunpack.c.l.b16 %v1141
        %v1158 = vunpack.c.l.b16 %v1142
        %v1159 = vunpack.c.l.b16 %v1143
        %v1160 = vunpack.c.l.b16 %v1144
        %v1161 = vpack.c.b16 %v1154, %v1153
        %v1162 = vpack.c.b16 %v1156, %v1155
        %v1163 = vpack.c.b16 %v1158, %v1157
        %v1164 = vpack.c.b16 %v1160, %v1159
        %vm1169 = vcmask 523264
        %v1171 = vsel %vm1169, %v1097, 0
        %v1174 = vsel %vm1169, %v1098, 0
        %v1177 = vsel %vm1169, %v1099, 0
        %v1180 = vsel %vm1169, %v1100, 0
        %v1183 = vsel %vm1169, %v1101, 0
        %v1186 = vsel %vm1169, %v1102, 0
        %v1189 = vsel %vm1169, %v1103, 0
        %v1192 = vsel %vm1169, %v1104, 0
        %v1195 = vsel %vm1169, %v1105, 0
        %v1198 = vsel %vm1169, %v1106, 0
        %v1201 = vsel %vm1169, %v1107, 0
        %v1204 = vsel %vm1169, %v1108, 0
        %v1207 = vsel %vm1169, %v1109, 0
        %v1210 = vsel %vm1169, %v1110, 0
        %v1213 = vsel %vm1169, %v1111, 0
        %v1216 = vsel %vm1169, %v1112, 0
        %v1219 = vsel %vm1169, %v1113, 0
        %v1222 = vsel %vm1169, %v1114, 0
        %v1225 = vsel %vm1169, %v1115, 0
        %v1228 = vsel %vm1169, %v1116, 0
        %v1231 = vsel %vm1169, %v1117, 0
        %v1234 = vsel %vm1169, %v1118, 0
        %v1237 = vsel %vm1169, %v1119, 0
        %v1240 = vsel %vm1169, %v1120, 0
        %v1243 = vsel %vm1169, %v1121, 0
        %v1246 = vsel %vm1169, %v1122, 0
        %v1249 = vsel %vm1169, %v1123, 0
        %v1252 = vsel %vm1169, %v1124, 0
        %v1255 = vsel %vm1169, %v1125, 0
        %v1258 = vsel %vm1169, %v1126, 0
        %v1261 = vsel %vm1169, %v1127, 0
        %v1264 = vsel %vm1169, %v1128, 0
        %1266 = vmatprep.subr.bf16.mxu0 0
        %1267 = vmatpush1.bf16.msra.mxu0 0
        %1268 = vmatprep.subr.bf16.mxu0 0
        %1269 = vmatpush1.bf16.msra.mxu0 0
        %1270 = vmatprep.subr.bf16.mxu0 0
        %1271 = vmatpush1.bf16.msra.mxu0 0
        %1272 = vmatprep.subr.bf16.mxu0 0
        %1273 = vmatpush1.bf16.msra.mxu0 0
        %1274 = vmatprep.subr.bf16.mxu0 0
        %1275 = vmatpush1.bf16.msra.mxu0 %v1164
        %1276 = vmatprep.subr.bf16.mxu0 0
        %1277 = vmatpush1.bf16.msra.mxu0 %v1163
        %1278 = vmatprep.subr.bf16.mxu0 0
        %1279 = vmatpush1.bf16.msra.mxu0 %v1162
        %1280 = vmatprep.subr.bf16.mxu0 0
        %1281 = vmatpush1.bf16.msra.mxu0 %v1161
        %1282 = vmatprep.subr.bf16.mxu0 0
        %1283 = vmatpush2.bf16.msra.mxu0 0
        %1284 = vmatprep.subr.bf16.mxu0 0
        %1285 = vmatpush2.bf16.msra.mxu0 0
        %1286 = vmatprep.subr.bf16.mxu0 0
        %1287 = vmatpush2.bf16.msra.mxu0 0
        %1288 = vmatprep.subr.bf16.mxu0 0
        %1289 = vmatpush2.bf16.msra.mxu0 0
        %1290 = vmatprep.subr.bf16.mxu0 0
        %1291 = vmatpush2.bf16.msra.mxu0 0
        %1292 = vmatprep.subr.bf16.mxu0 0
        %1293 = vmatpush2.bf16.msra.mxu0 0
        %1294 = vmatprep.subr.bf16.mxu0 0
        %1295 = vmatpush2.bf16.msra.mxu0 0
        %1296 = vmatprep.subr.bf16.mxu0 0
        %1297 = vmatpush2.bf16.msra.mxu0 0
        %1298 = vmatprep.mubr.bf16.mxu0 0
        %1299 = vmatmul.mubr.bf16.gmra.mxu0 %v1171
        %v1300 = vpop.f32.mrf.mxu0
        %v1301 = vadd.f32 0.0, %v1300
        %v1302 = vpop.f32.mrf.mxu0
        %v1303 = vpop.f32.mrf.mxu0
        %v1304 = vadd.f32 0.0, %v1303
        %v1305 = vpop.f32.mrf.mxu0
        %1306 = vmatprep.mubr.bf16.mxu0 0
        %1307 = vmatmul.mubr.bf16.gmra.mxu0 %v1174
        %v1308 = vpop.f32.mrf.mxu0
        %v1309 = vadd.f32 0.0, %v1308
        %v1310 = vpop.f32.mrf.mxu0
        %v1311 = vpop.f32.mrf.mxu0
        %v1312 = vadd.f32 0.0, %v1311
        %v1313 = vpop.f32.mrf.mxu0
        %1314 = vmatprep.mubr.bf16.mxu0 0
        %1315 = vmatmul.mubr.bf16.gmra.mxu0 %v1177
        %v1316 = vpop.f32.mrf.mxu0
        %v1317 = vadd.f32 0.0, %v1316
        %v1318 = vpop.f32.mrf.mxu0
        %v1319 = vpop.f32.mrf.mxu0
        %v1320 = vadd.f32 0.0, %v1319
        %v1321 = vpop.f32.mrf.mxu0
        %1322 = vmatprep.mubr.bf16.mxu0 0
        %1323 = vmatmul.mubr.bf16.gmra.mxu0 %v1180
        %v1324 = vpop.f32.mrf.mxu0
        %v1325 = vadd.f32 0.0, %v1324
        %v1326 = vpop.f32.mrf.mxu0
        %v1327 = vpop.f32.mrf.mxu0
        %v1328 = vadd.f32 0.0, %v1327
        %v1329 = vpop.f32.mrf.mxu0
        %1330 = vmatprep.mubr.bf16.mxu0 0
        %1331 = vmatmul.mubr.bf16.gmra.mxu0 %v1183
        %v1332 = vpop.f32.mrf.mxu0
        %v1333 = vadd.f32 0.0, %v1332
        %v1334 = vpop.f32.mrf.mxu0
        %v1335 = vpop.f32.mrf.mxu0
        %v1336 = vadd.f32 0.0, %v1335
        %v1337 = vpop.f32.mrf.mxu0
        %1338 = vmatprep.mubr.bf16.mxu0 0
        %1339 = vmatmul.mubr.bf16.gmra.mxu0 %v1186
        %v1340 = vpop.f32.mrf.mxu0
        %v1341 = vadd.f32 0.0, %v1340
        %v1342 = vpop.f32.mrf.mxu0
        %v1343 = vpop.f32.mrf.mxu0
        %v1344 = vadd.f32 0.0, %v1343
        %v1345 = vpop.f32.mrf.mxu0
        %1346 = vmatprep.mubr.bf16.mxu0 0
        %1347 = vmatmul.mubr.bf16.gmra.mxu0 %v1189
        %v1348 = vpop.f32.mrf.mxu0
        %v1349 = vadd.f32 0.0, %v1348
        %v1350 = vpop.f32.mrf.mxu0
        %v1351 = vpop.f32.mrf.mxu0
        %v1352 = vadd.f32 0.0, %v1351
        %v1353 = vpop.f32.mrf.mxu0
        %1354 = vmatprep.mubr.bf16.mxu0 0
        %1355 = vmatmul.mubr.bf16.gmra.mxu0 %v1192
        %v1356 = vpop.f32.mrf.mxu0
        %v1357 = vadd.f32 0.0, %v1356
        %v1358 = vpop.f32.mrf.mxu0
        %v1359 = vpop.f32.mrf.mxu0
        %v1360 = vadd.f32 0.0, %v1359
        %v1361 = vpop.f32.mrf.mxu0
        %1362 = vmatprep.mubr.bf16.mxu0 0
        %1363 = vmatmul.mubr.bf16.gmra.mxu0 %v1195
        %v1364 = vpop.f32.mrf.mxu0
        %v1365 = vadd.f32 0.0, %v1364
        %v1366 = vpop.f32.mrf.mxu0
        %v1367 = vpop.f32.mrf.mxu0
        %v1368 = vadd.f32 0.0, %v1367
        %v1369 = vpop.f32.mrf.mxu0
        %1370 = vmatprep.mubr.bf16.mxu0 0
        %1371 = vmatmul.mubr.bf16.gmra.mxu0 %v1198
        %v1372 = vpop.f32.mrf.mxu0
        %v1373 = vadd.f32 0.0, %v1372
        %v1374 = vpop.f32.mrf.mxu0
        %v1375 = vpop.f32.mrf.mxu0
        %v1376 = vadd.f32 0.0, %v1375
        %v1377 = vpop.f32.mrf.mxu0
        %1378 = vmatprep.mubr.bf16.mxu0 0
        %1379 = vmatmul.mubr.bf16.gmra.mxu0 %v1201
        %v1380 = vpop.f32.mrf.mxu0
        %v1381 = vadd.f32 0.0, %v1380
        %v1382 = vpop.f32.mrf.mxu0
        %v1383 = vpop.f32.mrf.mxu0
        %v1384 = vadd.f32 0.0, %v1383
        %v1385 = vpop.f32.mrf.mxu0
        %1386 = vmatprep.mubr.bf16.mxu0 0
        %1387 = vmatmul.mubr.bf16.gmra.mxu0 %v1204
        %v1388 = vpop.f32.mrf.mxu0
        %v1389 = vadd.f32 0.0, %v1388
        %v1390 = vpop.f32.mrf.mxu0
        %v1391 = vpop.f32.mrf.mxu0
        %v1392 = vadd.f32 0.0, %v1391
        %v1393 = vpop.f32.mrf.mxu0
        %1394 = vmatprep.mubr.bf16.mxu0 0
        %1395 = vmatmul.mubr.bf16.gmra.mxu0 %v1207
        %v1396 = vpop.f32.mrf.mxu0
        %v1397 = vadd.f32 0.0, %v1396
        %v1398 = vpop.f32.mrf.mxu0
        %v1399 = vpop.f32.mrf.mxu0
        %v1400 = vadd.f32 0.0, %v1399
        %v1401 = vpop.f32.mrf.mxu0
        %1402 = vmatprep.mubr.bf16.mxu0 0
        %1403 = vmatmul.mubr.bf16.gmra.mxu0 %v1210
        %v1404 = vpop.f32.mrf.mxu0
        %v1405 = vadd.f32 0.0, %v1404
        %v1406 = vpop.f32.mrf.mxu0
        %v1407 = vpop.f32.mrf.mxu0
        %v1408 = vadd.f32 0.0, %v1407
        %v1409 = vpop.f32.mrf.mxu0
        %1410 = vmatprep.mubr.bf16.mxu0 0
        %1411 = vmatmul.mubr.bf16.gmra.mxu0 %v1213
        %v1412 = vpop.f32.mrf.mxu0
        %v1413 = vadd.f32 0.0, %v1412
        %v1414 = vpop.f32.mrf.mxu0
        %v1415 = vpop.f32.mrf.mxu0
        %v1416 = vadd.f32 0.0, %v1415
        %v1417 = vpop.f32.mrf.mxu0
        %1418 = vmatprep.mubr.bf16.mxu0 0
        %1419 = vmatmul.mubr.bf16.gmra.mxu0 %v1216
        %v1420 = vpop.f32.mrf.mxu0
        %v1421 = vadd.f32 0.0, %v1420
        %v1422 = vpop.f32.mrf.mxu0
        %v1423 = vpop.f32.mrf.mxu0
        %v1424 = vadd.f32 0.0, %v1423
        %v1425 = vpop.f32.mrf.mxu0
        %1426 = vmatprep.mubr.bf16.mxu0 0
        %1427 = vmatmul.mubr.bf16.gmra.mxu0 %v1219
        %v1428 = vpop.f32.mrf.mxu0
        %v1429 = vadd.f32 0.0, %v1428
        %v1430 = vpop.f32.mrf.mxu0
        %v1431 = vpop.f32.mrf.mxu0
        %v1432 = vadd.f32 0.0, %v1431
        %v1433 = vpop.f32.mrf.mxu0
        %1434 = vmatprep.mubr.bf16.mxu0 0
        %1435 = vmatmul.mubr.bf16.gmra.mxu0 %v1222
        %v1436 = vpop.f32.mrf.mxu0
        %v1437 = vadd.f32 0.0, %v1436
        %v1438 = vpop.f32.mrf.mxu0
        %v1439 = vpop.f32.mrf.mxu0
        %v1440 = vadd.f32 0.0, %v1439
        %v1441 = vpop.f32.mrf.mxu0
        %1442 = vmatprep.mubr.bf16.mxu0 0
        %1443 = vmatmul.mubr.bf16.gmra.mxu0 %v1225
        %v1444 = vpop.f32.mrf.mxu0
        %v1445 = vadd.f32 0.0, %v1444
        %v1446 = vpop.f32.mrf.mxu0
        %v1447 = vpop.f32.mrf.mxu0
        %v1448 = vadd.f32 0.0, %v1447
        %v1449 = vpop.f32.mrf.mxu0
        %1450 = vmatprep.mubr.bf16.mxu0 0
        %1451 = vmatmul.mubr.bf16.gmra.mxu0 %v1228
        %v1452 = vpop.f32.mrf.mxu0
        %v1453 = vadd.f32 0.0, %v1452
        %v1454 = vpop.f32.mrf.mxu0
        %v1455 = vpop.f32.mrf.mxu0
        %v1456 = vadd.f32 0.0, %v1455
        %v1457 = vpop.f32.mrf.mxu0
        %1458 = vmatprep.mubr.bf16.mxu0 0
        %1459 = vmatmul.mubr.bf16.gmra.mxu0 %v1231
        %v1460 = vpop.f32.mrf.mxu0
        %v1461 = vadd.f32 0.0, %v1460
        %v1462 = vpop.f32.mrf.mxu0
        %v1463 = vpop.f32.mrf.mxu0
        %v1464 = vadd.f32 0.0, %v1463
        %v1465 = vpop.f32.mrf.mxu0
        %1466 = vmatprep.mubr.bf16.mxu0 0
        %1467 = vmatmul.mubr.bf16.gmra.mxu0 %v1234
        %v1468 = vpop.f32.mrf.mxu0
        %v1469 = vadd.f32 0.0, %v1468
        %v1470 = vpop.f32.mrf.mxu0
        %v1471 = vpop.f32.mrf.mxu0
        %v1472 = vadd.f32 0.0, %v1471
        %v1473 = vpop.f32.mrf.mxu0
        %1474 = vmatprep.mubr.bf16.mxu0 0
        %1475 = vmatmul.mubr.bf16.gmra.mxu0 %v1237
        %v1476 = vpop.f32.mrf.mxu0
        %v1477 = vadd.f32 0.0, %v1476
        %v1478 = vpop.f32.mrf.mxu0
        %v1479 = vpop.f32.mrf.mxu0
        %v1480 = vadd.f32 0.0, %v1479
        %v1481 = vpop.f32.mrf.mxu0
        %1482 = vmatprep.mubr.bf16.mxu0 0
        %1483 = vmatmul.mubr.bf16.gmra.mxu0 %v1240
        %v1484 = vpop.f32.mrf.mxu0
        %v1485 = vadd.f32 0.0, %v1484
        %v1486 = vpop.f32.mrf.mxu0
        %v1487 = vpop.f32.mrf.mxu0
        %v1488 = vadd.f32 0.0, %v1487
        %v1489 = vpop.f32.mrf.mxu0
        %1490 = vmatprep.mubr.bf16.mxu0 0
        %1491 = vmatmul.mubr.bf16.gmra.mxu0 %v1243
        %v1492 = vpop.f32.mrf.mxu0
        %v1493 = vadd.f32 0.0, %v1492
        %v1494 = vpop.f32.mrf.mxu0
        %v1495 = vpop.f32.mrf.mxu0
        %v1496 = vadd.f32 0.0, %v1495
        %v1497 = vpop.f32.mrf.mxu0
        %1498 = vmatprep.mubr.bf16.mxu0 0
        %1499 = vmatmul.mubr.bf16.gmra.mxu0 %v1246
        %v1500 = vpop.f32.mrf.mxu0
        %v1501 = vadd.f32 0.0, %v1500
        %v1502 = vpop.f32.mrf.mxu0
        %v1503 = vpop.f32.mrf.mxu0
        %v1504 = vadd.f32 0.0, %v1503
        %v1505 = vpop.f32.mrf.mxu0
        %1506 = vmatprep.mubr.bf16.mxu0 0
        %1507 = vmatmul.mubr.bf16.gmra.mxu0 %v1249
        %v1508 = vpop.f32.mrf.mxu0
        %v1509 = vadd.f32 0.0, %v1508
        %v1510 = vpop.f32.mrf.mxu0
        %v1511 = vpop.f32.mrf.mxu0
        %v1512 = vadd.f32 0.0, %v1511
        %v1513 = vpop.f32.mrf.mxu0
        %1514 = vmatprep.mubr.bf16.mxu0 0
        %1515 = vmatmul.mubr.bf16.gmra.mxu0 %v1252
        %v1516 = vpop.f32.mrf.mxu0
        %v1517 = vadd.f32 0.0, %v1516
        %v1518 = vpop.f32.mrf.mxu0
        %v1519 = vpop.f32.mrf.mxu0
        %v1520 = vadd.f32 0.0, %v1519
        %v1521 = vpop.f32.mrf.mxu0
        %1522 = vmatprep.mubr.bf16.mxu0 0
        %1523 = vmatmul.mubr.bf16.gmra.mxu0 %v1255
        %v1524 = vpop.f32.mrf.mxu0
        %v1525 = vadd.f32 0.0, %v1524
        %v1526 = vpop.f32.mrf.mxu0
        %v1527 = vpop.f32.mrf.mxu0
        %v1528 = vadd.f32 0.0, %v1527
        %v1529 = vpop.f32.mrf.mxu0
        %1530 = vmatprep.mubr.bf16.mxu0 0
        %1531 = vmatmul.mubr.bf16.gmra.mxu0 %v1258
        %v1532 = vpop.f32.mrf.mxu0
        %v1533 = vadd.f32 0.0, %v1532
        %v1534 = vpop.f32.mrf.mxu0
        %v1535 = vpop.f32.mrf.mxu0
        %v1536 = vadd.f32 0.0, %v1535
        %v1537 = vpop.f32.mrf.mxu0
        %1538 = vmatprep.mubr.bf16.mxu0 0
        %1539 = vmatmul.mubr.bf16.gmra.mxu0 %v1261
        %v1540 = vpop.f32.mrf.mxu0
        %v1541 = vadd.f32 0.0, %v1540
        %v1542 = vpop.f32.mrf.mxu0
        %v1543 = vpop.f32.mrf.mxu0
        %v1544 = vadd.f32 0.0, %v1543
        %v1545 = vpop.f32.mrf.mxu0
        %1546 = vmatprep.mubr.bf16.mxu0 0
        %1547 = vmatmul.mubr.bf16.gmra.mxu0 %v1264
        %v1548 = vpop.f32.mrf.mxu0
        %v1549 = vadd.f32 0.0, %v1548
        %v1550 = vpop.f32.mrf.mxu0
        %v1551 = vpop.f32.mrf.mxu0
        %v1552 = vadd.f32 0.0, %v1551
        %v1553 = vpop.f32.mrf.mxu0
        %1554 = vdwg.mxu0
        %v1563 = vunpack.c.l.b16 %v1129
        %v1564 = vunpack.c.l.b16 %v1130
        %v1565 = vunpack.c.l.b16 %v1131
        %v1566 = vunpack.c.l.b16 %v1132
        %v1567 = vunpack.c.l.b16 %v1133
        %v1568 = vunpack.c.l.b16 %v1134
        %v1569 = vunpack.c.l.b16 %v1135
        %v1570 = vunpack.c.l.b16 %v1136
        %v1571 = vpack.c.b16 %v1564, %v1563
        %v1572 = vpack.c.b16 %v1566, %v1565
        %v1573 = vpack.c.b16 %v1568, %v1567
        %v1574 = vpack.c.b16 %v1570, %v1569
        %v1580 = vsel %vm1169, %v745, 0
        %v1583 = vsel %vm1169, %v746, 0
        %v1586 = vsel %vm1169, %v747, 0
        %v1589 = vsel %vm1169, %v748, 0
        %v1592 = vsel %vm1169, %v749, 0
        %v1595 = vsel %vm1169, %v750, 0
        %v1598 = vsel %vm1169, %v751, 0
        %v1601 = vsel %vm1169, %v752, 0
        %v1604 = vsel %vm1169, %v753, 0
        %v1607 = vsel %vm1169, %v754, 0
        %v1610 = vsel %vm1169, %v755, 0
        %v1613 = vsel %vm1169, %v756, 0
        %v1616 = vsel %vm1169, %v757, 0
        %v1619 = vsel %vm1169, %v758, 0
        %v1622 = vsel %vm1169, %v759, 0
        %v1625 = vsel %vm1169, %v760, 0
        %v1628 = vsel %vm1169, %v761, 0
        %v1631 = vsel %vm1169, %v762, 0
        %v1634 = vsel %vm1169, %v763, 0
        %v1637 = vsel %vm1169, %v764, 0
        %v1640 = vsel %vm1169, %v765, 0
        %v1643 = vsel %vm1169, %v766, 0
        %v1646 = vsel %vm1169, %v767, 0
        %v1649 = vsel %vm1169, %v768, 0
        %v1652 = vsel %vm1169, %v769, 0
        %v1655 = vsel %vm1169, %v770, 0
        %v1658 = vsel %vm1169, %v771, 0
        %v1661 = vsel %vm1169, %v772, 0
        %v1664 = vsel %vm1169, %v773, 0
        %v1667 = vsel %vm1169, %v774, 0
        %v1670 = vsel %vm1169, %v775, 0
        %v1673 = vsel %vm1169, %v776, 0
        %1675 = vmatprep.subr.bf16.mxu0 0
        %1676 = vmatpush1.bf16.msra.mxu0 0
        %1677 = vmatprep.subr.bf16.mxu0 0
        %1678 = vmatpush1.bf16.msra.mxu0 0
        %1679 = vmatprep.subr.bf16.mxu0 0
        %1680 = vmatpush1.bf16.msra.mxu0 0
        %1681 = vmatprep.subr.bf16.mxu0 0
        %1682 = vmatpush1.bf16.msra.mxu0 0
        %1683 = vmatprep.subr.bf16.mxu0 0
        %1684 = vmatpush1.bf16.msra.mxu0 %v1574
        %1685 = vmatprep.subr.bf16.mxu0 0
        %1686 = vmatpush1.bf16.msra.mxu0 %v1573
        %1687 = vmatprep.subr.bf16.mxu0 0
        %1688 = vmatpush1.bf16.msra.mxu0 %v1572
        %1689 = vmatprep.subr.bf16.mxu0 0
        %1690 = vmatpush1.bf16.msra.mxu0 %v1571
        %1691 = vmatprep.subr.bf16.mxu0 0
        %1692 = vmatpush2.bf16.msra.mxu0 0
        %1693 = vmatprep.subr.bf16.mxu0 0
        %1694 = vmatpush2.bf16.msra.mxu0 0
        %1695 = vmatprep.subr.bf16.mxu0 0
        %1696 = vmatpush2.bf16.msra.mxu0 0
        %1697 = vmatprep.subr.bf16.mxu0 0
        %1698 = vmatpush2.bf16.msra.mxu0 0
        %1699 = vmatprep.subr.bf16.mxu0 0
        %1700 = vmatpush2.bf16.msra.mxu0 0
        %1701 = vmatprep.subr.bf16.mxu0 0
        %1702 = vmatpush2.bf16.msra.mxu0 0
        %1703 = vmatprep.subr.bf16.mxu0 0
        %1704 = vmatpush2.bf16.msra.mxu0 0
        %1705 = vmatprep.subr.bf16.mxu0 0
        %1706 = vmatpush2.bf16.msra.mxu0 0
        %1707 = vmatprep.mubr.bf16.mxu0 0
        %1708 = vmatmul.mubr.bf16.gmra.mxu0 %v1580
        %v1709 = vpop.f32.mrf.mxu0
        %v1710 = vadd.f32 %v1301, %v1709
        %v1711 = vpop.f32.mrf.mxu0
        %v1712 = vpop.f32.mrf.mxu0
        %v1713 = vadd.f32 %v1304, %v1712
        %v1714 = vpop.f32.mrf.mxu0
        %1715 = vmatprep.mubr.bf16.mxu0 0
        %1716 = vmatmul.mubr.bf16.gmra.mxu0 %v1583
        %v1717 = vpop.f32.mrf.mxu0
        %v1718 = vadd.f32 %v1309, %v1717
        %v1719 = vpop.f32.mrf.mxu0
        %v1720 = vpop.f32.mrf.mxu0
        %v1721 = vadd.f32 %v1312, %v1720
        %v1722 = vpop.f32.mrf.mxu0
        %1723 = vmatprep.mubr.bf16.mxu0 0
        %1724 = vmatmul.mubr.bf16.gmra.mxu0 %v1586
        %v1725 = vpop.f32.mrf.mxu0
        %v1726 = vadd.f32 %v1317, %v1725
        %v1727 = vpop.f32.mrf.mxu0
        %v1728 = vpop.f32.mrf.mxu0
        %v1729 = vadd.f32 %v1320, %v1728
        %v1730 = vpop.f32.mrf.mxu0
        %1731 = vmatprep.mubr.bf16.mxu0 0
        %1732 = vmatmul.mubr.bf16.gmra.mxu0 %v1589
        %v1733 = vpop.f32.mrf.mxu0
        %v1734 = vadd.f32 %v1325, %v1733
        %v1735 = vpop.f32.mrf.mxu0
        %v1736 = vpop.f32.mrf.mxu0
        %v1737 = vadd.f32 %v1328, %v1736
        %v1738 = vpop.f32.mrf.mxu0
        %1739 = vmatprep.mubr.bf16.mxu0 0
        %1740 = vmatmul.mubr.bf16.gmra.mxu0 %v1592
        %v1741 = vpop.f32.mrf.mxu0
        %v1742 = vadd.f32 %v1333, %v1741
        %v1743 = vpop.f32.mrf.mxu0
        %v1744 = vpop.f32.mrf.mxu0
        %v1745 = vadd.f32 %v1336, %v1744
        %v1746 = vpop.f32.mrf.mxu0
        %1747 = vmatprep.mubr.bf16.mxu0 0
        %1748 = vmatmul.mubr.bf16.gmra.mxu0 %v1595
        %v1749 = vpop.f32.mrf.mxu0
        %v1750 = vadd.f32 %v1341, %v1749
        %v1751 = vpop.f32.mrf.mxu0
        %v1752 = vpop.f32.mrf.mxu0
        %v1753 = vadd.f32 %v1344, %v1752
        %v1754 = vpop.f32.mrf.mxu0
        %1755 = vmatprep.mubr.bf16.mxu0 0
        %1756 = vmatmul.mubr.bf16.gmra.mxu0 %v1598
        %v1757 = vpop.f32.mrf.mxu0
        %v1758 = vadd.f32 %v1349, %v1757
        %v1759 = vpop.f32.mrf.mxu0
        %v1760 = vpop.f32.mrf.mxu0
        %v1761 = vadd.f32 %v1352, %v1760
        %v1762 = vpop.f32.mrf.mxu0
        %1763 = vmatprep.mubr.bf16.mxu0 0
        %1764 = vmatmul.mubr.bf16.gmra.mxu0 %v1601
        %v1765 = vpop.f32.mrf.mxu0
        %v1766 = vadd.f32 %v1357, %v1765
        %v1767 = vpop.f32.mrf.mxu0
        %v1768 = vpop.f32.mrf.mxu0
        %v1769 = vadd.f32 %v1360, %v1768
        %v1770 = vpop.f32.mrf.mxu0
        %1771 = vmatprep.mubr.bf16.mxu0 0
        %1772 = vmatmul.mubr.bf16.gmra.mxu0 %v1604
        %v1773 = vpop.f32.mrf.mxu0
        %v1774 = vadd.f32 %v1365, %v1773
        %v1775 = vpop.f32.mrf.mxu0
        %v1776 = vpop.f32.mrf.mxu0
        %v1777 = vadd.f32 %v1368, %v1776
        %v1778 = vpop.f32.mrf.mxu0
        %1779 = vmatprep.mubr.bf16.mxu0 0
        %1780 = vmatmul.mubr.bf16.gmra.mxu0 %v1607
        %v1781 = vpop.f32.mrf.mxu0
        %v1782 = vadd.f32 %v1373, %v1781
        %v1783 = vpop.f32.mrf.mxu0
        %v1784 = vpop.f32.mrf.mxu0
        %v1785 = vadd.f32 %v1376, %v1784
        %v1786 = vpop.f32.mrf.mxu0
        %1787 = vmatprep.mubr.bf16.mxu0 0
        %1788 = vmatmul.mubr.bf16.gmra.mxu0 %v1610
        %v1789 = vpop.f32.mrf.mxu0
        %v1790 = vadd.f32 %v1381, %v1789
        %v1791 = vpop.f32.mrf.mxu0
        %v1792 = vpop.f32.mrf.mxu0
        %v1793 = vadd.f32 %v1384, %v1792
        %v1794 = vpop.f32.mrf.mxu0
        %1795 = vmatprep.mubr.bf16.mxu0 0
        %1796 = vmatmul.mubr.bf16.gmra.mxu0 %v1613
        %v1797 = vpop.f32.mrf.mxu0
        %v1798 = vadd.f32 %v1389, %v1797
        %v1799 = vpop.f32.mrf.mxu0
        %v1800 = vpop.f32.mrf.mxu0
        %v1801 = vadd.f32 %v1392, %v1800
        %v1802 = vpop.f32.mrf.mxu0
        %1803 = vmatprep.mubr.bf16.mxu0 0
        %1804 = vmatmul.mubr.bf16.gmra.mxu0 %v1616
        %v1805 = vpop.f32.mrf.mxu0
        %v1806 = vadd.f32 %v1397, %v1805
        %v1807 = vpop.f32.mrf.mxu0
        %v1808 = vpop.f32.mrf.mxu0
        %v1809 = vadd.f32 %v1400, %v1808
        %v1810 = vpop.f32.mrf.mxu0
        %1811 = vmatprep.mubr.bf16.mxu0 0
        %1812 = vmatmul.mubr.bf16.gmra.mxu0 %v1619
        %v1813 = vpop.f32.mrf.mxu0
        %v1814 = vadd.f32 %v1405, %v1813
        %v1815 = vpop.f32.mrf.mxu0
        %v1816 = vpop.f32.mrf.mxu0
        %v1817 = vadd.f32 %v1408, %v1816
        %v1818 = vpop.f32.mrf.mxu0
        %1819 = vmatprep.mubr.bf16.mxu0 0
        %1820 = vmatmul.mubr.bf16.gmra.mxu0 %v1622
        %v1821 = vpop.f32.mrf.mxu0
        %v1822 = vadd.f32 %v1413, %v1821
        %v1823 = vpop.f32.mrf.mxu0
        %v1824 = vpop.f32.mrf.mxu0
        %v1825 = vadd.f32 %v1416, %v1824
        %v1826 = vpop.f32.mrf.mxu0
        %1827 = vmatprep.mubr.bf16.mxu0 0
        %1828 = vmatmul.mubr.bf16.gmra.mxu0 %v1625
        %v1829 = vpop.f32.mrf.mxu0
        %v1830 = vadd.f32 %v1421, %v1829
        %v1831 = vpop.f32.mrf.mxu0
        %v1832 = vpop.f32.mrf.mxu0
        %v1833 = vadd.f32 %v1424, %v1832
        %v1834 = vpop.f32.mrf.mxu0
        %1835 = vmatprep.mubr.bf16.mxu0 0
        %1836 = vmatmul.mubr.bf16.gmra.mxu0 %v1628
        %v1837 = vpop.f32.mrf.mxu0
        %v1838 = vadd.f32 %v1429, %v1837
        %v1839 = vpop.f32.mrf.mxu0
        %v1840 = vpop.f32.mrf.mxu0
        %v1841 = vadd.f32 %v1432, %v1840
        %v1842 = vpop.f32.mrf.mxu0
        %1843 = vmatprep.mubr.bf16.mxu0 0
        %1844 = vmatmul.mubr.bf16.gmra.mxu0 %v1631
        %v1845 = vpop.f32.mrf.mxu0
        %v1846 = vadd.f32 %v1437, %v1845
        %v1847 = vpop.f32.mrf.mxu0
        %v1848 = vpop.f32.mrf.mxu0
        %v1849 = vadd.f32 %v1440, %v1848
        %v1850 = vpop.f32.mrf.mxu0
        %1851 = vmatprep.mubr.bf16.mxu0 0
        %1852 = vmatmul.mubr.bf16.gmra.mxu0 %v1634
        %v1853 = vpop.f32.mrf.mxu0
        %v1854 = vadd.f32 %v1445, %v1853
        %v1855 = vpop.f32.mrf.mxu0
        %v1856 = vpop.f32.mrf.mxu0
        %v1857 = vadd.f32 %v1448, %v1856
        %v1858 = vpop.f32.mrf.mxu0
        %1859 = vmatprep.mubr.bf16.mxu0 0
        %1860 = vmatmul.mubr.bf16.gmra.mxu0 %v1637
        %v1861 = vpop.f32.mrf.mxu0
        %v1862 = vadd.f32 %v1453, %v1861
        %v1863 = vpop.f32.mrf.mxu0
        %v1864 = vpop.f32.mrf.mxu0
        %v1865 = vadd.f32 %v1456, %v1864
        %v1866 = vpop.f32.mrf.mxu0
        %1867 = vmatprep.mubr.bf16.mxu0 0
        %1868 = vmatmul.mubr.bf16.gmra.mxu0 %v1640
        %v1869 = vpop.f32.mrf.mxu0
        %v1870 = vadd.f32 %v1461, %v1869
        %v1871 = vpop.f32.mrf.mxu0
        %v1872 = vpop.f32.mrf.mxu0
        %v1873 = vadd.f32 %v1464, %v1872
        %v1874 = vpop.f32.mrf.mxu0
        %1875 = vmatprep.mubr.bf16.mxu0 0
        %1876 = vmatmul.mubr.bf16.gmra.mxu0 %v1643
        %v1877 = vpop.f32.mrf.mxu0
        %v1878 = vadd.f32 %v1469, %v1877
        %v1879 = vpop.f32.mrf.mxu0
        %v1880 = vpop.f32.mrf.mxu0
        %v1881 = vadd.f32 %v1472, %v1880
        %v1882 = vpop.f32.mrf.mxu0
        %1883 = vmatprep.mubr.bf16.mxu0 0
        %1884 = vmatmul.mubr.bf16.gmra.mxu0 %v1646
        %v1885 = vpop.f32.mrf.mxu0
        %v1886 = vadd.f32 %v1477, %v1885
        %v1887 = vpop.f32.mrf.mxu0
        %v1888 = vpop.f32.mrf.mxu0
        %v1889 = vadd.f32 %v1480, %v1888
        %v1890 = vpop.f32.mrf.mxu0
        %1891 = vmatprep.mubr.bf16.mxu0 0
        %1892 = vmatmul.mubr.bf16.gmra.mxu0 %v1649
        %v1893 = vpop.f32.mrf.mxu0
        %v1894 = vadd.f32 %v1485, %v1893
        %v1895 = vpop.f32.mrf.mxu0
        %v1896 = vpop.f32.mrf.mxu0
        %v1897 = vadd.f32 %v1488, %v1896
        %v1898 = vpop.f32.mrf.mxu0
        %1899 = vmatprep.mubr.bf16.mxu0 0
        %1900 = vmatmul.mubr.bf16.gmra.mxu0 %v1652
        %v1901 = vpop.f32.mrf.mxu0
        %v1902 = vadd.f32 %v1493, %v1901
        %v1903 = vpop.f32.mrf.mxu0
        %v1904 = vpop.f32.mrf.mxu0
        %v1905 = vadd.f32 %v1496, %v1904
        %v1906 = vpop.f32.mrf.mxu0
        %1907 = vmatprep.mubr.bf16.mxu0 0
        %1908 = vmatmul.mubr.bf16.gmra.mxu0 %v1655
        %v1909 = vpop.f32.mrf.mxu0
        %v1910 = vadd.f32 %v1501, %v1909
        %v1911 = vpop.f32.mrf.mxu0
        %v1912 = vpop.f32.mrf.mxu0
        %v1913 = vadd.f32 %v1504, %v1912
        %v1914 = vpop.f32.mrf.mxu0
        %1915 = vmatprep.mubr.bf16.mxu0 0
        %1916 = vmatmul.mubr.bf16.gmra.mxu0 %v1658
        %v1917 = vpop.f32.mrf.mxu0
        %v1918 = vadd.f32 %v1509, %v1917
        %v1919 = vpop.f32.mrf.mxu0
        %v1920 = vpop.f32.mrf.mxu0
        %v1921 = vadd.f32 %v1512, %v1920
        %v1922 = vpop.f32.mrf.mxu0
        %1923 = vmatprep.mubr.bf16.mxu0 0
        %1924 = vmatmul.mubr.bf16.gmra.mxu0 %v1661
        %v1925 = vpop.f32.mrf.mxu0
        %v1926 = vadd.f32 %v1517, %v1925
        %v1927 = vpop.f32.mrf.mxu0
        %v1928 = vpop.f32.mrf.mxu0
        %v1929 = vadd.f32 %v1520, %v1928
        %v1930 = vpop.f32.mrf.mxu0
        %1931 = vmatprep.mubr.bf16.mxu0 0
        %1932 = vmatmul.mubr.bf16.gmra.mxu0 %v1664
        %v1933 = vpop.f32.mrf.mxu0
        %v1934 = vadd.f32 %v1525, %v1933
        %v1935 = vpop.f32.mrf.mxu0
        %v1936 = vpop.f32.mrf.mxu0
        %v1937 = vadd.f32 %v1528, %v1936
        %v1938 = vpop.f32.mrf.mxu0
        %1939 = vmatprep.mubr.bf16.mxu0 0
        %1940 = vmatmul.mubr.bf16.gmra.mxu0 %v1667
        %v1941 = vpop.f32.mrf.mxu0
        %v1942 = vadd.f32 %v1533, %v1941
        %v1943 = vpop.f32.mrf.mxu0
        %v1944 = vpop.f32.mrf.mxu0
        %v1945 = vadd.f32 %v1536, %v1944
        %v1946 = vpop.f32.mrf.mxu0
        %1947 = vmatprep.mubr.bf16.mxu0 0
        %1948 = vmatmul.mubr.bf16.gmra.mxu0 %v1670
        %v1949 = vpop.f32.mrf.mxu0
        %v1950 = vadd.f32 %v1541, %v1949
        %v1951 = vpop.f32.mrf.mxu0
        %v1952 = vpop.f32.mrf.mxu0
        %v1953 = vadd.f32 %v1544, %v1952
        %v1954 = vpop.f32.mrf.mxu0
        %1955 = vmatprep.mubr.bf16.mxu0 0
        %1956 = vmatmul.mubr.bf16.gmra.mxu0 %v1673
        %v1957 = vpop.f32.mrf.mxu0
        %v1958 = vadd.f32 %v1549, %v1957
        %v1959 = vpop.f32.mrf.mxu0
        %v1960 = vpop.f32.mrf.mxu0
        %v1961 = vadd.f32 %v1552, %v1960
        %v1962 = vpop.f32.mrf.mxu0
        %1963 = vdwg.mxu0
        %2028 = vrot.lane.b32.xlu0 %v1710, 127
        %v2029 = vpop.permute.xlu0 %2028
        %2030 = vrot.lane.b32.xlu0 %v1713, 127
        %v2031 = vpop.permute.xlu0 %2030
        %2032 = vrot.lane.b32.xlu0 %v1718, 127
        %v2033 = vpop.permute.xlu0 %2032
        %2034 = vrot.lane.b32.xlu0 %v1721, 127
        %v2035 = vpop.permute.xlu0 %2034
        %2036 = vrot.lane.b32.xlu0 %v1726, 127
        %v2037 = vpop.permute.xlu0 %2036
        %2038 = vrot.lane.b32.xlu0 %v1729, 127
        %v2039 = vpop.permute.xlu0 %2038
        %2040 = vrot.lane.b32.xlu0 %v1734, 127
        %v2041 = vpop.permute.xlu0 %2040
        %2042 = vrot.lane.b32.xlu0 %v1737, 127
        %v2043 = vpop.permute.xlu0 %2042
        %2044 = vrot.lane.b32.xlu0 %v1742, 127
        %v2045 = vpop.permute.xlu0 %2044
        %2046 = vrot.lane.b32.xlu0 %v1745, 127
        %v2047 = vpop.permute.xlu0 %2046
        %2048 = vrot.lane.b32.xlu0 %v1750, 127
        %v2049 = vpop.permute.xlu0 %2048
        %2050 = vrot.lane.b32.xlu0 %v1753, 127
        %v2051 = vpop.permute.xlu0 %2050
        %2052 = vrot.lane.b32.xlu0 %v1758, 127
        %v2053 = vpop.permute.xlu0 %2052
        %2054 = vrot.lane.b32.xlu0 %v1761, 127
        %v2055 = vpop.permute.xlu0 %2054
        %2056 = vrot.lane.b32.xlu0 %v1766, 127
        %v2057 = vpop.permute.xlu0 %2056
        %2058 = vrot.lane.b32.xlu0 %v1769, 127
        %v2059 = vpop.permute.xlu0 %2058
        %2060 = vrot.lane.b32.xlu0 %v1774, 127
        %v2061 = vpop.permute.xlu0 %2060
        %2062 = vrot.lane.b32.xlu0 %v1777, 127
        %v2063 = vpop.permute.xlu0 %2062
        %2064 = vrot.lane.b32.xlu0 %v1782, 127
        %v2065 = vpop.permute.xlu0 %2064
        %2066 = vrot.lane.b32.xlu0 %v1785, 127
        %v2067 = vpop.permute.xlu0 %2066
        %2068 = vrot.lane.b32.xlu0 %v1790, 127
        %v2069 = vpop.permute.xlu0 %2068
        %2070 = vrot.lane.b32.xlu0 %v1793, 127
        %v2071 = vpop.permute.xlu0 %2070
        %2072 = vrot.lane.b32.xlu0 %v1798, 127
        %v2073 = vpop.permute.xlu0 %2072
        %2074 = vrot.lane.b32.xlu0 %v1801, 127
        %v2075 = vpop.permute.xlu0 %2074
        %2076 = vrot.lane.b32.xlu0 %v1806, 127
        %v2077 = vpop.permute.xlu0 %2076
        %2078 = vrot.lane.b32.xlu0 %v1809, 127
        %v2079 = vpop.permute.xlu0 %2078
        %2080 = vrot.lane.b32.xlu0 %v1814, 127
        %v2081 = vpop.permute.xlu0 %2080
        %2082 = vrot.lane.b32.xlu0 %v1817, 127
        %v2083 = vpop.permute.xlu0 %2082
        %2084 = vrot.lane.b32.xlu0 %v1822, 127
        %v2085 = vpop.permute.xlu0 %2084
        %2086 = vrot.lane.b32.xlu0 %v1825, 127
        %v2087 = vpop.permute.xlu0 %2086
        %2088 = vrot.lane.b32.xlu0 %v1830, 127
        %v2089 = vpop.permute.xlu0 %2088
        %2090 = vrot.lane.b32.xlu0 %v1833, 127
        %v2091 = vpop.permute.xlu0 %2090
        %2092 = vrot.lane.b32.xlu0 %v1838, 127
        %v2093 = vpop.permute.xlu0 %2092
        %2094 = vrot.lane.b32.xlu0 %v1841, 127
        %v2095 = vpop.permute.xlu0 %2094
        %2096 = vrot.lane.b32.xlu0 %v1846, 127
        %v2097 = vpop.permute.xlu0 %2096
        %2098 = vrot.lane.b32.xlu0 %v1849, 127
        %v2099 = vpop.permute.xlu0 %2098
        %2100 = vrot.lane.b32.xlu0 %v1854, 127
        %v2101 = vpop.permute.xlu0 %2100
        %2102 = vrot.lane.b32.xlu0 %v1857, 127
        %v2103 = vpop.permute.xlu0 %2102
        %2104 = vrot.lane.b32.xlu0 %v1862, 127
        %v2105 = vpop.permute.xlu0 %2104
        %2106 = vrot.lane.b32.xlu0 %v1865, 127
        %v2107 = vpop.permute.xlu0 %2106
        %2108 = vrot.lane.b32.xlu0 %v1870, 127
        %v2109 = vpop.permute.xlu0 %2108
        %2110 = vrot.lane.b32.xlu0 %v1873, 127
        %v2111 = vpop.permute.xlu0 %2110
        %2112 = vrot.lane.b32.xlu0 %v1878, 127
        %v2113 = vpop.permute.xlu0 %2112
        %2114 = vrot.lane.b32.xlu0 %v1881, 127
        %v2115 = vpop.permute.xlu0 %2114
        %2116 = vrot.lane.b32.xlu0 %v1886, 127
        %v2117 = vpop.permute.xlu0 %2116
        %2118 = vrot.lane.b32.xlu0 %v1889, 127
        %v2119 = vpop.permute.xlu0 %2118
        %2120 = vrot.lane.b32.xlu0 %v1894, 127
        %v2121 = vpop.permute.xlu0 %2120
        %2122 = vrot.lane.b32.xlu0 %v1897, 127
        %v2123 = vpop.permute.xlu0 %2122
        %2124 = vrot.lane.b32.xlu0 %v1902, 127
        %v2125 = vpop.permute.xlu0 %2124
        %2126 = vrot.lane.b32.xlu0 %v1905, 127
        %v2127 = vpop.permute.xlu0 %2126
        %2128 = vrot.lane.b32.xlu0 %v1910, 127
        %v2129 = vpop.permute.xlu0 %2128
        %2130 = vrot.lane.b32.xlu0 %v1913, 127
        %v2131 = vpop.permute.xlu0 %2130
        %2132 = vrot.lane.b32.xlu0 %v1918, 127
        %v2133 = vpop.permute.xlu0 %2132
        %2134 = vrot.lane.b32.xlu0 %v1921, 127
        %v2135 = vpop.permute.xlu0 %2134
        %2136 = vrot.lane.b32.xlu0 %v1926, 127
        %v2137 = vpop.permute.xlu0 %2136
        %2138 = vrot.lane.b32.xlu0 %v1929, 127
        %v2139 = vpop.permute.xlu0 %2138
        %2140 = vrot.lane.b32.xlu0 %v1934, 127
        %v2141 = vpop.permute.xlu0 %2140
        %2142 = vrot.lane.b32.xlu0 %v1937, 127
        %v2143 = vpop.permute.xlu0 %2142
        %2144 = vrot.lane.b32.xlu0 %v1942, 127
        %v2145 = vpop.permute.xlu0 %2144
        %2146 = vrot.lane.b32.xlu0 %v1945, 127
        %v2147 = vpop.permute.xlu0 %2146
        %2148 = vrot.lane.b32.xlu0 %v1950, 127
        %v2149 = vpop.permute.xlu0 %2148
        %2150 = vrot.lane.b32.xlu0 %v1953, 127
        %v2151 = vpop.permute.xlu0 %2150
        %2152 = vrot.lane.b32.xlu0 %v1958, 127
        %v2153 = vpop.permute.xlu0 %2152
        %2154 = vrot.lane.b32.xlu0 %v1961, 127
        %v2155 = vpop.permute.xlu0 %2154
        %v2220 = vadd.f32 %v1710, %v2029
        %v2221 = vadd.f32 %v1713, %v2031
        %v2222 = vadd.f32 %v1718, %v2033
        %v2223 = vadd.f32 %v1721, %v2035
        %v2224 = vadd.f32 %v1726, %v2037
        %v2225 = vadd.f32 %v1729, %v2039
        %v2226 = vadd.f32 %v1734, %v2041
        %v2227 = vadd.f32 %v1737, %v2043
        %v2228 = vadd.f32 %v1742, %v2045
        %v2229 = vadd.f32 %v1745, %v2047
        %v2230 = vadd.f32 %v1750, %v2049
        %v2231 = vadd.f32 %v1753, %v2051
        %v2232 = vadd.f32 %v1758, %v2053
        %v2233 = vadd.f32 %v1761, %v2055
        %v2234 = vadd.f32 %v1766, %v2057
        %v2235 = vadd.f32 %v1769, %v2059
        %v2236 = vadd.f32 %v1774, %v2061
        %v2237 = vadd.f32 %v1777, %v2063
        %v2238 = vadd.f32 %v1782, %v2065
        %v2239 = vadd.f32 %v1785, %v2067
        %v2240 = vadd.f32 %v1790, %v2069
        %v2241 = vadd.f32 %v1793, %v2071
        %v2242 = vadd.f32 %v1798, %v2073
        %v2243 = vadd.f32 %v1801, %v2075
        %v2244 = vadd.f32 %v1806, %v2077
        %v2245 = vadd.f32 %v1809, %v2079
        %v2246 = vadd.f32 %v1814, %v2081
        %v2247 = vadd.f32 %v1817, %v2083
        %v2248 = vadd.f32 %v1822, %v2085
        %v2249 = vadd.f32 %v1825, %v2087
        %v2250 = vadd.f32 %v1830, %v2089
        %v2251 = vadd.f32 %v1833, %v2091
        %v2252 = vadd.f32 %v1838, %v2093
        %v2253 = vadd.f32 %v1841, %v2095
        %v2254 = vadd.f32 %v1846, %v2097
        %v2255 = vadd.f32 %v1849, %v2099
        %v2256 = vadd.f32 %v1854, %v2101
        %v2257 = vadd.f32 %v1857, %v2103
        %v2258 = vadd.f32 %v1862, %v2105
        %v2259 = vadd.f32 %v1865, %v2107
        %v2260 = vadd.f32 %v1870, %v2109
        %v2261 = vadd.f32 %v1873, %v2111
        %v2262 = vadd.f32 %v1878, %v2113
        %v2263 = vadd.f32 %v1881, %v2115
        %v2264 = vadd.f32 %v1886, %v2117
        %v2265 = vadd.f32 %v1889, %v2119
        %v2266 = vadd.f32 %v1894, %v2121
        %v2267 = vadd.f32 %v1897, %v2123
        %v2268 = vadd.f32 %v1902, %v2125
        %v2269 = vadd.f32 %v1905, %v2127
        %v2270 = vadd.f32 %v1910, %v2129
        %v2271 = vadd.f32 %v1913, %v2131
        %v2272 = vadd.f32 %v1918, %v2133
        %v2273 = vadd.f32 %v1921, %v2135
        %v2274 = vadd.f32 %v1926, %v2137
        %v2275 = vadd.f32 %v1929, %v2139
        %v2276 = vadd.f32 %v1934, %v2141
        %v2277 = vadd.f32 %v1937, %v2143
        %v2278 = vadd.f32 %v1942, %v2145
        %v2279 = vadd.f32 %v1945, %v2147
        %v2280 = vadd.f32 %v1950, %v2149
        %v2281 = vadd.f32 %v1953, %v2151
        %v2282 = vadd.f32 %v1958, %v2153
        %v2283 = vadd.f32 %v1961, %v2155
        %vm2284 = vcmp.gt.f32.partialorder %v2220, 0.0
        %vm2285 = vcmp.gt.f32.partialorder %v2221, 0.0
        %vm2286 = vcmp.gt.f32.partialorder %v2222, 0.0
        %vm2287 = vcmp.gt.f32.partialorder %v2223, 0.0
        %vm2288 = vcmp.gt.f32.partialorder %v2224, 0.0
        %vm2289 = vcmp.gt.f32.partialorder %v2225, 0.0
        %vm2290 = vcmp.gt.f32.partialorder %v2226, 0.0
        %vm2291 = vcmp.gt.f32.partialorder %v2227, 0.0
        %vm2292 = vcmp.gt.f32.partialorder %v2228, 0.0
        %vm2293 = vcmp.gt.f32.partialorder %v2229, 0.0
        %vm2294 = vcmp.gt.f32.partialorder %v2230, 0.0
        %vm2295 = vcmp.gt.f32.partialorder %v2231, 0.0
        %vm2296 = vcmp.gt.f32.partialorder %v2232, 0.0
        %vm2297 = vcmp.gt.f32.partialorder %v2233, 0.0
        %vm2298 = vcmp.gt.f32.partialorder %v2234, 0.0
        %vm2299 = vcmp.gt.f32.partialorder %v2235, 0.0
        %vm2300 = vcmp.gt.f32.partialorder %v2236, 0.0
        %vm2301 = vcmp.gt.f32.partialorder %v2237, 0.0
        %vm2302 = vcmp.gt.f32.partialorder %v2238, 0.0
        %vm2303 = vcmp.gt.f32.partialorder %v2239, 0.0
        %vm2304 = vcmp.gt.f32.partialorder %v2240, 0.0
        %vm2305 = vcmp.gt.f32.partialorder %v2241, 0.0
        %vm2306 = vcmp.gt.f32.partialorder %v2242, 0.0
        %vm2307 = vcmp.gt.f32.partialorder %v2243, 0.0
        %vm2308 = vcmp.gt.f32.partialorder %v2244, 0.0
        %vm2309 = vcmp.gt.f32.partialorder %v2245, 0.0
        %vm2310 = vcmp.gt.f32.partialorder %v2246, 0.0
        %vm2311 = vcmp.gt.f32.partialorder %v2247, 0.0
        %vm2312 = vcmp.gt.f32.partialorder %v2248, 0.0
        %vm2313 = vcmp.gt.f32.partialorder %v2249, 0.0
        %vm2314 = vcmp.gt.f32.partialorder %v2250, 0.0
        %vm2315 = vcmp.gt.f32.partialorder %v2251, 0.0
        %vm2316 = vcmp.gt.f32.partialorder %v2252, 0.0
        %vm2317 = vcmp.gt.f32.partialorder %v2253, 0.0
        %vm2318 = vcmp.gt.f32.partialorder %v2254, 0.0
        %vm2319 = vcmp.gt.f32.partialorder %v2255, 0.0
        %vm2320 = vcmp.gt.f32.partialorder %v2256, 0.0
        %vm2321 = vcmp.gt.f32.partialorder %v2257, 0.0
        %vm2322 = vcmp.gt.f32.partialorder %v2258, 0.0
        %vm2323 = vcmp.gt.f32.partialorder %v2259, 0.0
        %vm2324 = vcmp.gt.f32.partialorder %v2260, 0.0
        %vm2325 = vcmp.gt.f32.partialorder %v2261, 0.0
        %vm2326 = vcmp.gt.f32.partialorder %v2262, 0.0
        %vm2327 = vcmp.gt.f32.partialorder %v2263, 0.0
        %vm2328 = vcmp.gt.f32.partialorder %v2264, 0.0
        %vm2329 = vcmp.gt.f32.partialorder %v2265, 0.0
        %vm2330 = vcmp.gt.f32.partialorder %v2266, 0.0
        %vm2331 = vcmp.gt.f32.partialorder %v2267, 0.0
        %vm2332 = vcmp.gt.f32.partialorder %v2268, 0.0
        %vm2333 = vcmp.gt.f32.partialorder %v2269, 0.0
        %vm2334 = vcmp.gt.f32.partialorder %v2270, 0.0
        %vm2335 = vcmp.gt.f32.partialorder %v2271, 0.0
        %vm2336 = vcmp.gt.f32.partialorder %v2272, 0.0
        %vm2337 = vcmp.gt.f32.partialorder %v2273, 0.0
        %vm2338 = vcmp.gt.f32.partialorder %v2274, 0.0
        %vm2339 = vcmp.gt.f32.partialorder %v2275, 0.0
        %vm2340 = vcmp.gt.f32.partialorder %v2276, 0.0
        %vm2341 = vcmp.gt.f32.partialorder %v2277, 0.0
        %vm2342 = vcmp.gt.f32.partialorder %v2278, 0.0
        %vm2343 = vcmp.gt.f32.partialorder %v2279, 0.0
        %vm2344 = vcmp.gt.f32.partialorder %v2280, 0.0
        %vm2345 = vcmp.gt.f32.partialorder %v2281, 0.0
        %vm2346 = vcmp.gt.f32.partialorder %v2282, 0.0
        %vm2347 = vcmp.gt.f32.partialorder %v2283, 0.0
        %v2348 = vmul.f32 %v2220, 0.2
        %v2349 = vmul.f32 %v2221, 0.2
        %v2350 = vmul.f32 %v2222, 0.2
        %v2351 = vmul.f32 %v2223, 0.2
        %v2352 = vmul.f32 %v2224, 0.2
        %v2353 = vmul.f32 %v2225, 0.2
        %v2354 = vmul.f32 %v2226, 0.2
        %v2355 = vmul.f32 %v2227, 0.2
        %v2356 = vmul.f32 %v2228, 0.2
        %v2357 = vmul.f32 %v2229, 0.2
        %v2358 = vmul.f32 %v2230, 0.2
        %v2359 = vmul.f32 %v2231, 0.2
        %v2360 = vmul.f32 %v2232, 0.2
        %v2361 = vmul.f32 %v2233, 0.2
        %v2362 = vmul.f32 %v2234, 0.2
        %v2363 = vmul.f32 %v2235, 0.2
        %v2364 = vmul.f32 %v2236, 0.2
        %v2365 = vmul.f32 %v2237, 0.2
        %v2366 = vmul.f32 %v2238, 0.2
        %v2367 = vmul.f32 %v2239, 0.2
        %v2368 = vmul.f32 %v2240, 0.2
        %v2369 = vmul.f32 %v2241, 0.2
        %v2370 = vmul.f32 %v2242, 0.2
        %v2371 = vmul.f32 %v2243, 0.2
        %v2372 = vmul.f32 %v2244, 0.2
        %v2373 = vmul.f32 %v2245, 0.2
        %v2374 = vmul.f32 %v2246, 0.2
        %v2375 = vmul.f32 %v2247, 0.2
        %v2376 = vmul.f32 %v2248, 0.2
        %v2377 = vmul.f32 %v2249, 0.2
        %v2378 = vmul.f32 %v2250, 0.2
        %v2379 = vmul.f32 %v2251, 0.2
        %v2380 = vmul.f32 %v2252, 0.2
        %v2381 = vmul.f32 %v2253, 0.2
        %v2382 = vmul.f32 %v2254, 0.2
        %v2383 = vmul.f32 %v2255, 0.2
        %v2384 = vmul.f32 %v2256, 0.2
        %v2385 = vmul.f32 %v2257, 0.2
        %v2386 = vmul.f32 %v2258, 0.2
        %v2387 = vmul.f32 %v2259, 0.2
        %v2388 = vmul.f32 %v2260, 0.2
        %v2389 = vmul.f32 %v2261, 0.2
        %v2390 = vmul.f32 %v2262, 0.2
        %v2391 = vmul.f32 %v2263, 0.2
        %v2392 = vmul.f32 %v2264, 0.2
        %v2393 = vmul.f32 %v2265, 0.2
        %v2394 = vmul.f32 %v2266, 0.2
        %v2395 = vmul.f32 %v2267, 0.2
        %v2396 = vmul.f32 %v2268, 0.2
        %v2397 = vmul.f32 %v2269, 0.2
        %v2398 = vmul.f32 %v2270, 0.2
        %v2399 = vmul.f32 %v2271, 0.2
        %v2400 = vmul.f32 %v2272, 0.2
        %v2401 = vmul.f32 %v2273, 0.2
        %v2402 = vmul.f32 %v2274, 0.2
        %v2403 = vmul.f32 %v2275, 0.2
        %v2404 = vmul.f32 %v2276, 0.2
        %v2405 = vmul.f32 %v2277, 0.2
        %v2406 = vmul.f32 %v2278, 0.2
        %v2407 = vmul.f32 %v2279, 0.2
        %v2408 = vmul.f32 %v2280, 0.2
        %v2409 = vmul.f32 %v2281, 0.2
        %v2410 = vmul.f32 %v2282, 0.2
        %v2411 = vmul.f32 %v2283, 0.2
        %v2412 = vsel %vm2284, %v2220, %v2348
        %v2413 = vsel %vm2285, %v2221, %v2349
        %v2414 = vsel %vm2286, %v2222, %v2350
        %v2415 = vsel %vm2287, %v2223, %v2351
        %v2416 = vsel %vm2288, %v2224, %v2352
        %v2417 = vsel %vm2289, %v2225, %v2353
        %v2418 = vsel %vm2290, %v2226, %v2354
        %v2419 = vsel %vm2291, %v2227, %v2355
        %v2420 = vsel %vm2292, %v2228, %v2356
        %v2421 = vsel %vm2293, %v2229, %v2357
        %v2422 = vsel %vm2294, %v2230, %v2358
        %v2423 = vsel %vm2295, %v2231, %v2359
        %v2424 = vsel %vm2296, %v2232, %v2360
        %v2425 = vsel %vm2297, %v2233, %v2361
        %v2426 = vsel %vm2298, %v2234, %v2362
        %v2427 = vsel %vm2299, %v2235, %v2363
        %v2428 = vsel %vm2300, %v2236, %v2364
        %v2429 = vsel %vm2301, %v2237, %v2365
        %v2430 = vsel %vm2302, %v2238, %v2366
        %v2431 = vsel %vm2303, %v2239, %v2367
        %v2432 = vsel %vm2304, %v2240, %v2368
        %v2433 = vsel %vm2305, %v2241, %v2369
        %v2434 = vsel %vm2306, %v2242, %v2370
        %v2435 = vsel %vm2307, %v2243, %v2371
        %v2436 = vsel %vm2308, %v2244, %v2372
        %v2437 = vsel %vm2309, %v2245, %v2373
        %v2438 = vsel %vm2310, %v2246, %v2374
        %v2439 = vsel %vm2311, %v2247, %v2375
        %v2440 = vsel %vm2312, %v2248, %v2376
        %v2441 = vsel %vm2313, %v2249, %v2377
        %v2442 = vsel %vm2314, %v2250, %v2378
        %v2443 = vsel %vm2315, %v2251, %v2379
        %v2444 = vsel %vm2316, %v2252, %v2380
        %v2445 = vsel %vm2317, %v2253, %v2381
        %v2446 = vsel %vm2318, %v2254, %v2382
        %v2447 = vsel %vm2319, %v2255, %v2383
        %v2448 = vsel %vm2320, %v2256, %v2384
        %v2449 = vsel %vm2321, %v2257, %v2385
        %v2450 = vsel %vm2322, %v2258, %v2386
        %v2451 = vsel %vm2323, %v2259, %v2387
        %v2452 = vsel %vm2324, %v2260, %v2388
        %v2453 = vsel %vm2325, %v2261, %v2389
        %v2454 = vsel %vm2326, %v2262, %v2390
        %v2455 = vsel %vm2327, %v2263, %v2391
        %v2456 = vsel %vm2328, %v2264, %v2392
        %v2457 = vsel %vm2329, %v2265, %v2393
        %v2458 = vsel %vm2330, %v2266, %v2394
        %v2459 = vsel %vm2331, %v2267, %v2395
        %v2460 = vsel %vm2332, %v2268, %v2396
        %v2461 = vsel %vm2333, %v2269, %v2397
        %v2462 = vsel %vm2334, %v2270, %v2398
        %v2463 = vsel %vm2335, %v2271, %v2399
        %v2464 = vsel %vm2336, %v2272, %v2400
        %v2465 = vsel %vm2337, %v2273, %v2401
        %v2466 = vsel %vm2338, %v2274, %v2402
        %v2467 = vsel %vm2339, %v2275, %v2403
        %v2468 = vsel %vm2340, %v2276, %v2404
        %v2469 = vsel %vm2341, %v2277, %v2405
        %v2470 = vsel %vm2342, %v2278, %v2406
        %v2471 = vsel %vm2343, %v2279, %v2407
        %v2472 = vsel %vm2344, %v2280, %v2408
        %v2473 = vsel %vm2345, %v2281, %v2409
        %v2474 = vsel %vm2346, %v2282, %v2410
        %v2475 = vsel %vm2347, %v2283, %v2411
        %s2476 = sld [smem:[#allocation3]]
        %v2477 = vstv %s2476
        %v2478 = vsub.f32 %v2412, %v2477
        %v2479 = vsub.f32 %v2413, %v2477
        %v2480 = vsub.f32 %v2414, %v2477
        %v2481 = vsub.f32 %v2415, %v2477
        %v2482 = vsub.f32 %v2416, %v2477
        %v2483 = vsub.f32 %v2417, %v2477
        %v2484 = vsub.f32 %v2418, %v2477
        %v2485 = vsub.f32 %v2419, %v2477
        %v2486 = vsub.f32 %v2420, %v2477
        %v2487 = vsub.f32 %v2421, %v2477
        %v2488 = vsub.f32 %v2422, %v2477
        %v2489 = vsub.f32 %v2423, %v2477
        %v2490 = vsub.f32 %v2424, %v2477
        %v2491 = vsub.f32 %v2425, %v2477
        %v2492 = vsub.f32 %v2426, %v2477
        %v2493 = vsub.f32 %v2427, %v2477
        %v2494 = vsub.f32 %v2428, %v2477
        %v2495 = vsub.f32 %v2429, %v2477
        %v2496 = vsub.f32 %v2430, %v2477
        %v2497 = vsub.f32 %v2431, %v2477
        %v2498 = vsub.f32 %v2432, %v2477
        %v2499 = vsub.f32 %v2433, %v2477
        %v2500 = vsub.f32 %v2434, %v2477
        %v2501 = vsub.f32 %v2435, %v2477
        %v2502 = vsub.f32 %v2436, %v2477
        %v2503 = vsub.f32 %v2437, %v2477
        %v2504 = vsub.f32 %v2438, %v2477
        %v2505 = vsub.f32 %v2439, %v2477
        %v2506 = vsub.f32 %v2440, %v2477
        %v2507 = vsub.f32 %v2441, %v2477
        %v2508 = vsub.f32 %v2442, %v2477
        %v2509 = vsub.f32 %v2443, %v2477
        %v2510 = vsub.f32 %v2444, %v2477
        %v2511 = vsub.f32 %v2445, %v2477
        %v2512 = vsub.f32 %v2446, %v2477
        %v2513 = vsub.f32 %v2447, %v2477
        %v2514 = vsub.f32 %v2448, %v2477
        %v2515 = vsub.f32 %v2449, %v2477
        %v2516 = vsub.f32 %v2450, %v2477
        %v2517 = vsub.f32 %v2451, %v2477
        %v2518 = vsub.f32 %v2452, %v2477
        %v2519 = vsub.f32 %v2453, %v2477
        %v2520 = vsub.f32 %v2454, %v2477
        %v2521 = vsub.f32 %v2455, %v2477
        %v2522 = vsub.f32 %v2456, %v2477
        %v2523 = vsub.f32 %v2457, %v2477
        %v2524 = vsub.f32 %v2458, %v2477
        %v2525 = vsub.f32 %v2459, %v2477
        %v2526 = vsub.f32 %v2460, %v2477
        %v2527 = vsub.f32 %v2461, %v2477
        %v2528 = vsub.f32 %v2462, %v2477
        %v2529 = vsub.f32 %v2463, %v2477
        %v2530 = vsub.f32 %v2464, %v2477
        %v2531 = vsub.f32 %v2465, %v2477
        %v2532 = vsub.f32 %v2466, %v2477
        %v2533 = vsub.f32 %v2467, %v2477
        %v2534 = vsub.f32 %v2468, %v2477
        %v2535 = vsub.f32 %v2469, %v2477
        %v2536 = vsub.f32 %v2470, %v2477
        %v2537 = vsub.f32 %v2471, %v2477
        %v2538 = vsub.f32 %v2472, %v2477
        %v2539 = vsub.f32 %v2473, %v2477
        %v2540 = vsub.f32 %v2474, %v2477
        %v2541 = vsub.f32 %v2475, %v2477
        %v2542 = vmin.f32 %v2478, 0.0
        %v2543 = vmin.f32 %v2479, 0.0
        %v2544 = vmin.f32 %v2480, 0.0
        %v2545 = vmin.f32 %v2481, 0.0
        %v2546 = vmin.f32 %v2482, 0.0
        %v2547 = vmin.f32 %v2483, 0.0
        %v2548 = vmin.f32 %v2484, 0.0
        %v2549 = vmin.f32 %v2485, 0.0
        %v2550 = vmin.f32 %v2486, 0.0
        %v2551 = vmin.f32 %v2487, 0.0
        %v2552 = vmin.f32 %v2488, 0.0
        %v2553 = vmin.f32 %v2489, 0.0
        %v2554 = vmin.f32 %v2490, 0.0
        %v2555 = vmin.f32 %v2491, 0.0
        %v2556 = vmin.f32 %v2492, 0.0
        %v2557 = vmin.f32 %v2493, 0.0
        %v2558 = vmin.f32 %v2494, 0.0
        %v2559 = vmin.f32 %v2495, 0.0
        %v2560 = vmin.f32 %v2496, 0.0
        %v2561 = vmin.f32 %v2497, 0.0
        %v2562 = vmin.f32 %v2498, 0.0
        %v2563 = vmin.f32 %v2499, 0.0
        %v2564 = vmin.f32 %v2500, 0.0
        %v2565 = vmin.f32 %v2501, 0.0
        %v2566 = vmin.f32 %v2502, 0.0
        %v2567 = vmin.f32 %v2503, 0.0
        %v2568 = vmin.f32 %v2504, 0.0
        %v2569 = vmin.f32 %v2505, 0.0
        %v2570 = vmin.f32 %v2506, 0.0
        %v2571 = vmin.f32 %v2507, 0.0
        %v2572 = vmin.f32 %v2508, 0.0
        %v2573 = vmin.f32 %v2509, 0.0
        %v2574 = vmin.f32 %v2510, 0.0
        %v2575 = vmin.f32 %v2511, 0.0
        %v2576 = vmin.f32 %v2512, 0.0
        %v2577 = vmin.f32 %v2513, 0.0
        %v2578 = vmin.f32 %v2514, 0.0
        %v2579 = vmin.f32 %v2515, 0.0
        %v2580 = vmin.f32 %v2516, 0.0
        %v2581 = vmin.f32 %v2517, 0.0
        %v2582 = vmin.f32 %v2518, 0.0
        %v2583 = vmin.f32 %v2519, 0.0
        %v2584 = vmin.f32 %v2520, 0.0
        %v2585 = vmin.f32 %v2521, 0.0
        %v2586 = vmin.f32 %v2522, 0.0
        %v2587 = vmin.f32 %v2523, 0.0
        %v2588 = vmin.f32 %v2524, 0.0
        %v2589 = vmin.f32 %v2525, 0.0
        %v2590 = vmin.f32 %v2526, 0.0
        %v2591 = vmin.f32 %v2527, 0.0
        %v2592 = vmin.f32 %v2528, 0.0
        %v2593 = vmin.f32 %v2529, 0.0
        %v2594 = vmin.f32 %v2530, 0.0
        %v2595 = vmin.f32 %v2531, 0.0
        %v2596 = vmin.f32 %v2532, 0.0
        %v2597 = vmin.f32 %v2533, 0.0
        %v2598 = vmin.f32 %v2534, 0.0
        %v2599 = vmin.f32 %v2535, 0.0
        %v2600 = vmin.f32 %v2536, 0.0
        %v2601 = vmin.f32 %v2537, 0.0
        %v2602 = vmin.f32 %v2538, 0.0
        %v2603 = vmin.f32 %v2539, 0.0
        %v2604 = vmin.f32 %v2540, 0.0
        %v2605 = vmin.f32 %v2541, 0.0
        %v2606 = vmul.f32 %v2542, 1.442695
        %v2607 = vpow.pop %v2606
        %v2608 = vmul.f32 %v2543, 1.442695
        %v2609 = vpow.pop %v2608
        %v2610 = vmul.f32 %v2544, 1.442695
        %v2611 = vpow.pop %v2610
        %v2612 = vmul.f32 %v2545, 1.442695
        %v2613 = vpow.pop %v2612
        %v2614 = vmul.f32 %v2546, 1.442695
        %v2615 = vpow.pop %v2614
        %v2616 = vmul.f32 %v2547, 1.442695
        %v2617 = vpow.pop %v2616
        %v2618 = vmul.f32 %v2548, 1.442695
        %v2619 = vpow.pop %v2618
        %v2620 = vmul.f32 %v2549, 1.442695
        %v2621 = vpow.pop %v2620
        %v2622 = vmul.f32 %v2550, 1.442695
        %v2623 = vpow.pop %v2622
        %v2624 = vmul.f32 %v2551, 1.442695
        %v2625 = vpow.pop %v2624
        %v2626 = vmul.f32 %v2552, 1.442695
        %v2627 = vpow.pop %v2626
        %v2628 = vmul.f32 %v2553, 1.442695
        %v2629 = vpow.pop %v2628
        %v2630 = vmul.f32 %v2554, 1.442695
        %v2631 = vpow.pop %v2630
        %v2632 = vmul.f32 %v2555, 1.442695
        %v2633 = vpow.pop %v2632
        %v2634 = vmul.f32 %v2556, 1.442695
        %v2635 = vpow.pop %v2634
        %v2636 = vmul.f32 %v2557, 1.442695
        %v2637 = vpow.pop %v2636
        %v2638 = vmul.f32 %v2558, 1.442695
        %v2639 = vpow.pop %v2638
        %v2640 = vmul.f32 %v2559, 1.442695
        %v2641 = vpow.pop %v2640
        %v2642 = vmul.f32 %v2560, 1.442695
        %v2643 = vpow.pop %v2642
        %v2644 = vmul.f32 %v2561, 1.442695
        %v2645 = vpow.pop %v2644
        %v2646 = vmul.f32 %v2562, 1.442695
        %v2647 = vpow.pop %v2646
        %v2648 = vmul.f32 %v2563, 1.442695
        %v2649 = vpow.pop %v2648
        %v2650 = vmul.f32 %v2564, 1.442695
        %v2651 = vpow.pop %v2650
        %v2652 = vmul.f32 %v2565, 1.442695
        %v2653 = vpow.pop %v2652
        %v2654 = vmul.f32 %v2566, 1.442695
        %v2655 = vpow.pop %v2654
        %v2656 = vmul.f32 %v2567, 1.442695
        %v2657 = vpow.pop %v2656
        %v2658 = vmul.f32 %v2568, 1.442695
        %v2659 = vpow.pop %v2658
        %v2660 = vmul.f32 %v2569, 1.442695
        %v2661 = vpow.pop %v2660
        %v2662 = vmul.f32 %v2570, 1.442695
        %v2663 = vpow.pop %v2662
        %v2664 = vmul.f32 %v2571, 1.442695
        %v2665 = vpow.pop %v2664
        %v2666 = vmul.f32 %v2572, 1.442695
        %v2667 = vpow.pop %v2666
        %v2668 = vmul.f32 %v2573, 1.442695
        %v2669 = vpow.pop %v2668
        %v2670 = vmul.f32 %v2574, 1.442695
        %v2671 = vpow.pop %v2670
        %v2672 = vmul.f32 %v2575, 1.442695
        %v2673 = vpow.pop %v2672
        %v2674 = vmul.f32 %v2576, 1.442695
        %v2675 = vpow.pop %v2674
        %v2676 = vmul.f32 %v2577, 1.442695
        %v2677 = vpow.pop %v2676
        %v2678 = vmul.f32 %v2578, 1.442695
        %v2679 = vpow.pop %v2678
        %v2680 = vmul.f32 %v2579, 1.442695
        %v2681 = vpow.pop %v2680
        %v2682 = vmul.f32 %v2580, 1.442695
        %v2683 = vpow.pop %v2682
        %v2684 = vmul.f32 %v2581, 1.442695
        %v2685 = vpow.pop %v2684
        %v2686 = vmul.f32 %v2582, 1.442695
        %v2687 = vpow.pop %v2686
        %v2688 = vmul.f32 %v2583, 1.442695
        %v2689 = vpow.pop %v2688
        %v2690 = vmul.f32 %v2584, 1.442695
        %v2691 = vpow.pop %v2690
        %v2692 = vmul.f32 %v2585, 1.442695
        %v2693 = vpow.pop %v2692
        %v2694 = vmul.f32 %v2586, 1.442695
        %v2695 = vpow.pop %v2694
        %v2696 = vmul.f32 %v2587, 1.442695
        %v2697 = vpow.pop %v2696
        %v2698 = vmul.f32 %v2588, 1.442695
        %v2699 = vpow.pop %v2698
        %v2700 = vmul.f32 %v2589, 1.442695
        %v2701 = vpow.pop %v2700
        %v2702 = vmul.f32 %v2590, 1.442695
        %v2703 = vpow.pop %v2702
        %v2704 = vmul.f32 %v2591, 1.442695
        %v2705 = vpow.pop %v2704
        %v2706 = vmul.f32 %v2592, 1.442695
        %v2707 = vpow.pop %v2706
        %v2708 = vmul.f32 %v2593, 1.442695
        %v2709 = vpow.pop %v2708
        %v2710 = vmul.f32 %v2594, 1.442695
        %v2711 = vpow.pop %v2710
        %v2712 = vmul.f32 %v2595, 1.442695
        %v2713 = vpow.pop %v2712
        %v2714 = vmul.f32 %v2596, 1.442695
        %v2715 = vpow.pop %v2714
        %v2716 = vmul.f32 %v2597, 1.442695
        %v2717 = vpow.pop %v2716
        %v2718 = vmul.f32 %v2598, 1.442695
        %v2719 = vpow.pop %v2718
        %v2720 = vmul.f32 %v2599, 1.442695
        %v2721 = vpow.pop %v2720
        %v2722 = vmul.f32 %v2600, 1.442695
        %v2723 = vpow.pop %v2722
        %v2724 = vmul.f32 %v2601, 1.442695
        %v2725 = vpow.pop %v2724
        %v2726 = vmul.f32 %v2602, 1.442695
        %v2727 = vpow.pop %v2726
        %v2728 = vmul.f32 %v2603, 1.442695
        %v2729 = vpow.pop %v2728
        %v2730 = vmul.f32 %v2604, 1.442695
        %v2731 = vpow.pop %v2730
        %v2732 = vmul.f32 %v2605, 1.442695
        %v2733 = vpow.pop %v2732
        %2735 = vset.pattern.permute.xlu0 33
        %2736 = vperm.xlu0 %2735, %v2607
        %v2737 = vpop.permute.xlu0 %2736
        %2740 = vset.pattern.permute.xlu0 33
        %2741 = vperm.xlu0 %2740, %v2609
        %v2742 = vpop.permute.xlu0 %2741
        %2745 = vset.pattern.permute.xlu0 33
        %2746 = vperm.xlu0 %2745, %v2611
        %v2747 = vpop.permute.xlu0 %2746
        %2750 = vset.pattern.permute.xlu0 33
        %2751 = vperm.xlu0 %2750, %v2613
        %v2752 = vpop.permute.xlu0 %2751
        %2755 = vset.pattern.permute.xlu0 33
        %2756 = vperm.xlu0 %2755, %v2615
        %v2757 = vpop.permute.xlu0 %2756
        %2760 = vset.pattern.permute.xlu0 33
        %2761 = vperm.xlu0 %2760, %v2617
        %v2762 = vpop.permute.xlu0 %2761
        %2765 = vset.pattern.permute.xlu0 33
        %2766 = vperm.xlu0 %2765, %v2619
        %v2767 = vpop.permute.xlu0 %2766
        %2770 = vset.pattern.permute.xlu0 33
        %2771 = vperm.xlu0 %2770, %v2621
        %v2772 = vpop.permute.xlu0 %2771
        %2775 = vset.pattern.permute.xlu0 33
        %2776 = vperm.xlu0 %2775, %v2623
        %v2777 = vpop.permute.xlu0 %2776
        %2780 = vset.pattern.permute.xlu0 33
        %2781 = vperm.xlu0 %2780, %v2625
        %v2782 = vpop.permute.xlu0 %2781
        %2785 = vset.pattern.permute.xlu0 33
        %2786 = vperm.xlu0 %2785, %v2627
        %v2787 = vpop.permute.xlu0 %2786
        %2790 = vset.pattern.permute.xlu0 33
        %2791 = vperm.xlu0 %2790, %v2629
        %v2792 = vpop.permute.xlu0 %2791
        %2795 = vset.pattern.permute.xlu0 33
        %2796 = vperm.xlu0 %2795, %v2631
        %v2797 = vpop.permute.xlu0 %2796
        %2800 = vset.pattern.permute.xlu0 33
        %2801 = vperm.xlu0 %2800, %v2633
        %v2802 = vpop.permute.xlu0 %2801
        %2805 = vset.pattern.permute.xlu0 33
        %2806 = vperm.xlu0 %2805, %v2635
        %v2807 = vpop.permute.xlu0 %2806
        %2810 = vset.pattern.permute.xlu0 33
        %2811 = vperm.xlu0 %2810, %v2637
        %v2812 = vpop.permute.xlu0 %2811
        %2815 = vset.pattern.permute.xlu0 33
        %2816 = vperm.xlu0 %2815, %v2639
        %v2817 = vpop.permute.xlu0 %2816
        %2820 = vset.pattern.permute.xlu0 33
        %2821 = vperm.xlu0 %2820, %v2641
        %v2822 = vpop.permute.xlu0 %2821
        %2825 = vset.pattern.permute.xlu0 33
        %2826 = vperm.xlu0 %2825, %v2643
        %v2827 = vpop.permute.xlu0 %2826
        %2830 = vset.pattern.permute.xlu0 33
        %2831 = vperm.xlu0 %2830, %v2645
        %v2832 = vpop.permute.xlu0 %2831
        %2835 = vset.pattern.permute.xlu0 33
        %2836 = vperm.xlu0 %2835, %v2647
        %v2837 = vpop.permute.xlu0 %2836
        %2840 = vset.pattern.permute.xlu0 33
        %2841 = vperm.xlu0 %2840, %v2649
        %v2842 = vpop.permute.xlu0 %2841
        %2845 = vset.pattern.permute.xlu0 33
        %2846 = vperm.xlu0 %2845, %v2651
        %v2847 = vpop.permute.xlu0 %2846
        %2850 = vset.pattern.permute.xlu0 33
        %2851 = vperm.xlu0 %2850, %v2653
        %v2852 = vpop.permute.xlu0 %2851
        %2855 = vset.pattern.permute.xlu0 33
        %2856 = vperm.xlu0 %2855, %v2655
        %v2857 = vpop.permute.xlu0 %2856
        %2860 = vset.pattern.permute.xlu0 33
        %2861 = vperm.xlu0 %2860, %v2657
        %v2862 = vpop.permute.xlu0 %2861
        %2865 = vset.pattern.permute.xlu0 33
        %2866 = vperm.xlu0 %2865, %v2659
        %v2867 = vpop.permute.xlu0 %2866
        %2870 = vset.pattern.permute.xlu0 33
        %2871 = vperm.xlu0 %2870, %v2661
        %v2872 = vpop.permute.xlu0 %2871
        %2875 = vset.pattern.permute.xlu0 33
        %2876 = vperm.xlu0 %2875, %v2663
        %v2877 = vpop.permute.xlu0 %2876
        %2880 = vset.pattern.permute.xlu0 33
        %2881 = vperm.xlu0 %2880, %v2665
        %v2882 = vpop.permute.xlu0 %2881
        %2885 = vset.pattern.permute.xlu0 33
        %2886 = vperm.xlu0 %2885, %v2667
        %v2887 = vpop.permute.xlu0 %2886
        %2890 = vset.pattern.permute.xlu0 33
        %2891 = vperm.xlu0 %2890, %v2669
        %v2892 = vpop.permute.xlu0 %2891
        %2895 = vset.pattern.permute.xlu0 33
        %2896 = vperm.xlu0 %2895, %v2671
        %v2897 = vpop.permute.xlu0 %2896
        %2900 = vset.pattern.permute.xlu0 33
        %2901 = vperm.xlu0 %2900, %v2673
        %v2902 = vpop.permute.xlu0 %2901
        %2905 = vset.pattern.permute.xlu0 33
        %2906 = vperm.xlu0 %2905, %v2675
        %v2907 = vpop.permute.xlu0 %2906
        %2910 = vset.pattern.permute.xlu0 33
        %2911 = vperm.xlu0 %2910, %v2677
        %v2912 = vpop.permute.xlu0 %2911
        %2915 = vset.pattern.permute.xlu0 33
        %2916 = vperm.xlu0 %2915, %v2679
        %v2917 = vpop.permute.xlu0 %2916
        %2920 = vset.pattern.permute.xlu0 33
        %2921 = vperm.xlu0 %2920, %v2681
        %v2922 = vpop.permute.xlu0 %2921
        %2925 = vset.pattern.permute.xlu0 33
        %2926 = vperm.xlu0 %2925, %v2683
        %v2927 = vpop.permute.xlu0 %2926
        %2930 = vset.pattern.permute.xlu0 33
        %2931 = vperm.xlu0 %2930, %v2685
        %v2932 = vpop.permute.xlu0 %2931
        %2935 = vset.pattern.permute.xlu0 33
        %2936 = vperm.xlu0 %2935, %v2687
        %v2937 = vpop.permute.xlu0 %2936
        %2940 = vset.pattern.permute.xlu0 33
        %2941 = vperm.xlu0 %2940, %v2689
        %v2942 = vpop.permute.xlu0 %2941
        %2945 = vset.pattern.permute.xlu0 33
        %2946 = vperm.xlu0 %2945, %v2691
        %v2947 = vpop.permute.xlu0 %2946
        %2950 = vset.pattern.permute.xlu0 33
        %2951 = vperm.xlu0 %2950, %v2693
        %v2952 = vpop.permute.xlu0 %2951
        %2955 = vset.pattern.permute.xlu0 33
        %2956 = vperm.xlu0 %2955, %v2695
        %v2957 = vpop.permute.xlu0 %2956
        %2960 = vset.pattern.permute.xlu0 33
        %2961 = vperm.xlu0 %2960, %v2697
        %v2962 = vpop.permute.xlu0 %2961
        %2965 = vset.pattern.permute.xlu0 33
        %2966 = vperm.xlu0 %2965, %v2699
        %v2967 = vpop.permute.xlu0 %2966
        %2970 = vset.pattern.permute.xlu0 33
        %2971 = vperm.xlu0 %2970, %v2701
        %v2972 = vpop.permute.xlu0 %2971
        %2975 = vset.pattern.permute.xlu0 33
        %2976 = vperm.xlu0 %2975, %v2703
        %v2977 = vpop.permute.xlu0 %2976
        %2980 = vset.pattern.permute.xlu0 33
        %2981 = vperm.xlu0 %2980, %v2705
        %v2982 = vpop.permute.xlu0 %2981
        %2985 = vset.pattern.permute.xlu0 33
        %2986 = vperm.xlu0 %2985, %v2707
        %v2987 = vpop.permute.xlu0 %2986
        %2990 = vset.pattern.permute.xlu0 33
        %2991 = vperm.xlu0 %2990, %v2709
        %v2992 = vpop.permute.xlu0 %2991
        %2995 = vset.pattern.permute.xlu0 33
        %2996 = vperm.xlu0 %2995, %v2711
        %v2997 = vpop.permute.xlu0 %2996
        %3000 = vset.pattern.permute.xlu0 33
        %3001 = vperm.xlu0 %3000, %v2713
        %v3002 = vpop.permute.xlu0 %3001
        %3005 = vset.pattern.permute.xlu0 33
        %3006 = vperm.xlu0 %3005, %v2715
        %v3007 = vpop.permute.xlu0 %3006
        %3010 = vset.pattern.permute.xlu0 33
        %3011 = vperm.xlu0 %3010, %v2717
        %v3012 = vpop.permute.xlu0 %3011
        %3015 = vset.pattern.permute.xlu0 33
        %3016 = vperm.xlu0 %3015, %v2719
        %v3017 = vpop.permute.xlu0 %3016
        %3020 = vset.pattern.permute.xlu0 33
        %3021 = vperm.xlu0 %3020, %v2721
        %v3022 = vpop.permute.xlu0 %3021
        %3025 = vset.pattern.permute.xlu0 33
        %3026 = vperm.xlu0 %3025, %v2723
        %v3027 = vpop.permute.xlu0 %3026
        %3030 = vset.pattern.permute.xlu0 33
        %3031 = vperm.xlu0 %3030, %v2725
        %v3032 = vpop.permute.xlu0 %3031
        %3035 = vset.pattern.permute.xlu0 33
        %3036 = vperm.xlu0 %3035, %v2727
        %v3037 = vpop.permute.xlu0 %3036
        %3040 = vset.pattern.permute.xlu0 33
        %3041 = vperm.xlu0 %3040, %v2729
        %v3042 = vpop.permute.xlu0 %3041
        %3045 = vset.pattern.permute.xlu0 33
        %3046 = vperm.xlu0 %3045, %v2731
        %v3047 = vpop.permute.xlu0 %3046
        %3050 = vset.pattern.permute.xlu0 33
        %3051 = vperm.xlu0 %3050, %v2733
        %v3052 = vpop.permute.xlu0 %3051
        %v3054 = vmul.f32 %v1710, %v2737
        %v3055 = vmul.f32 %v1713, %v2742
        %v3056 = vmul.f32 %v1718, %v2747
        %v3057 = vmul.f32 %v1721, %v2752
        %v3058 = vmul.f32 %v1726, %v2757
        %v3059 = vmul.f32 %v1729, %v2762
        %v3060 = vmul.f32 %v1734, %v2767
        %v3061 = vmul.f32 %v1737, %v2772
        %v3062 = vmul.f32 %v1742, %v2777
        %v3063 = vmul.f32 %v1745, %v2782
        %v3064 = vmul.f32 %v1750, %v2787
        %v3065 = vmul.f32 %v1753, %v2792
        %v3066 = vmul.f32 %v1758, %v2797
        %v3067 = vmul.f32 %v1761, %v2802
        %v3068 = vmul.f32 %v1766, %v2807
        %v3069 = vmul.f32 %v1769, %v2812
        %v3070 = vmul.f32 %v1774, %v2817
        %v3071 = vmul.f32 %v1777, %v2822
        %v3072 = vmul.f32 %v1782, %v2827
        %v3073 = vmul.f32 %v1785, %v2832
        %v3074 = vmul.f32 %v1790, %v2837
        %v3075 = vmul.f32 %v1793, %v2842
        %v3076 = vmul.f32 %v1798, %v2847
        %v3077 = vmul.f32 %v1801, %v2852
        %v3078 = vmul.f32 %v1806, %v2857
        %v3079 = vmul.f32 %v1809, %v2862
        %v3080 = vmul.f32 %v1814, %v2867
        %v3081 = vmul.f32 %v1817, %v2872
        %v3082 = vmul.f32 %v1822, %v2877
        %v3083 = vmul.f32 %v1825, %v2882
        %v3084 = vmul.f32 %v1830, %v2887
        %v3085 = vmul.f32 %v1833, %v2892
        %v3086 = vmul.f32 %v1838, %v2897
        %v3087 = vmul.f32 %v1841, %v2902
        %v3088 = vmul.f32 %v1846, %v2907
        %v3089 = vmul.f32 %v1849, %v2912
        %v3090 = vmul.f32 %v1854, %v2917
        %v3091 = vmul.f32 %v1857, %v2922
        %v3092 = vmul.f32 %v1862, %v2927
        %v3093 = vmul.f32 %v1865, %v2932
        %v3094 = vmul.f32 %v1870, %v2937
        %v3095 = vmul.f32 %v1873, %v2942
        %v3096 = vmul.f32 %v1878, %v2947
        %v3097 = vmul.f32 %v1881, %v2952
        %v3098 = vmul.f32 %v1886, %v2957
        %v3099 = vmul.f32 %v1889, %v2962
        %v3100 = vmul.f32 %v1894, %v2967
        %v3101 = vmul.f32 %v1897, %v2972
        %v3102 = vmul.f32 %v1902, %v2977
        %v3103 = vmul.f32 %v1905, %v2982
        %v3104 = vmul.f32 %v1910, %v2987
        %v3105 = vmul.f32 %v1913, %v2992
        %v3106 = vmul.f32 %v1918, %v2997
        %v3107 = vmul.f32 %v1921, %v3002
        %v3108 = vmul.f32 %v1926, %v3007
        %v3109 = vmul.f32 %v1929, %v3012
        %v3110 = vmul.f32 %v1934, %v3017
        %v3111 = vmul.f32 %v1937, %v3022
        %v3112 = vmul.f32 %v1942, %v3027
        %v3113 = vmul.f32 %v1945, %v3032
        %v3114 = vmul.f32 %v1950, %v3037
        %v3115 = vmul.f32 %v1953, %v3042
        %v3116 = vmul.f32 %v1958, %v3047
        %v3117 = vmul.f32 %v1961, %v3052
        %v3118 = vld [vmem:[%s280] sm:$0xf]
        %v3119 = vlaneseq
        %v3120 = vshrl.u32 %v3119, 7
        %v3121 = vadd.s32 %v3120, 8
        %v3122 = vadd.s32 %v3120, 16
        %v3123 = vadd.s32 %v3120, 24
        %v3124 = vadd.s32 %v3120, 32
        %v3125 = vadd.s32 %v3120, 40
        %v3126 = vadd.s32 %v3120, 48
        %v3127 = vadd.s32 %v3120, 56
        %v3128 = vlaneseq
        %v3129 = vshrl.u32 %v3128, 7
        %v3130 = vsub.s32 0, %v3129
        %v3131 = vrot.slane %v3118, %v3130
        %v3132 = vlaneseq
        %v3133 = vshrl.u32 %v3132, 7
        %v3134 = vsub.s32 1, %v3133
        %v3135 = vrot.slane %v3118, %v3134
        %v3136 = vlaneseq
        %v3137 = vshrl.u32 %v3136, 7
        %v3138 = vsub.s32 2, %v3137
        %v3139 = vrot.slane %v3118, %v3138
        %v3140 = vlaneseq
        %v3141 = vshrl.u32 %v3140, 7
        %v3142 = vsub.s32 3, %v3141
        %v3143 = vrot.slane %v3118, %v3142
        %vm3144 = vcmp.eq.s32.totalorder %v3120, %v3131
        %vm3145 = vcmp.eq.s32.totalorder %v3120, %v3135
        %vm3146 = vcmp.eq.s32.totalorder %v3120, %v3139
        %vm3147 = vcmp.eq.s32.totalorder %v3120, %v3143
        %vm3148 = vcmp.eq.s32.totalorder %v3121, %v3131
        %vm3149 = vcmp.eq.s32.totalorder %v3121, %v3135
        %vm3150 = vcmp.eq.s32.totalorder %v3121, %v3139
        %vm3151 = vcmp.eq.s32.totalorder %v3121, %v3143
        %vm3152 = vcmp.eq.s32.totalorder %v3122, %v3131
        %vm3153 = vcmp.eq.s32.totalorder %v3122, %v3135
        %vm3154 = vcmp.eq.s32.totalorder %v3122, %v3139
        %vm3155 = vcmp.eq.s32.totalorder %v3122, %v3143
        %vm3156 = vcmp.eq.s32.totalorder %v3123, %v3131
        %vm3157 = vcmp.eq.s32.totalorder %v3123, %v3135
        %vm3158 = vcmp.eq.s32.totalorder %v3123, %v3139
        %vm3159 = vcmp.eq.s32.totalorder %v3123, %v3143
        %vm3160 = vcmp.eq.s32.totalorder %v3124, %v3131
        %vm3161 = vcmp.eq.s32.totalorder %v3124, %v3135
        %vm3162 = vcmp.eq.s32.totalorder %v3124, %v3139
        %vm3163 = vcmp.eq.s32.totalorder %v3124, %v3143
        %vm3164 = vcmp.eq.s32.totalorder %v3125, %v3131
        %vm3165 = vcmp.eq.s32.totalorder %v3125, %v3135
        %vm3166 = vcmp.eq.s32.totalorder %v3125, %v3139
        %vm3167 = vcmp.eq.s32.totalorder %v3125, %v3143
        %vm3168 = vcmp.eq.s32.totalorder %v3126, %v3131
        %vm3169 = vcmp.eq.s32.totalorder %v3126, %v3135
        %vm3170 = vcmp.eq.s32.totalorder %v3126, %v3139
        %vm3171 = vcmp.eq.s32.totalorder %v3126, %v3143
        %vm3172 = vcmp.eq.s32.totalorder %v3127, %v3131
        %vm3173 = vcmp.eq.s32.totalorder %v3127, %v3135
        %vm3174 = vcmp.eq.s32.totalorder %v3127, %v3139
        %vm3175 = vcmp.eq.s32.totalorder %v3127, %v3143
        %v3176 = vsel %vm3144, 1.0, 0.0
        %v3177 = vsel %vm3145, 1.0, 0.0
        %v3178 = vsel %vm3146, 1.0, 0.0
        %v3179 = vsel %vm3147, 1.0, 0.0
        %v3180 = vsel %vm3148, 1.0, 0.0
        %v3181 = vsel %vm3149, 1.0, 0.0
        %v3182 = vsel %vm3150, 1.0, 0.0
        %v3183 = vsel %vm3151, 1.0, 0.0
        %v3184 = vsel %vm3152, 1.0, 0.0
        %v3185 = vsel %vm3153, 1.0, 0.0
        %v3186 = vsel %vm3154, 1.0, 0.0
        %v3187 = vsel %vm3155, 1.0, 0.0
        %v3188 = vsel %vm3156, 1.0, 0.0
        %v3189 = vsel %vm3157, 1.0, 0.0
        %v3190 = vsel %vm3158, 1.0, 0.0
        %v3191 = vsel %vm3159, 1.0, 0.0
        %v3192 = vsel %vm3160, 1.0, 0.0
        %v3193 = vsel %vm3161, 1.0, 0.0
        %v3194 = vsel %vm3162, 1.0, 0.0
        %v3195 = vsel %vm3163, 1.0, 0.0
        %v3196 = vsel %vm3164, 1.0, 0.0
        %v3197 = vsel %vm3165, 1.0, 0.0
        %v3198 = vsel %vm3166, 1.0, 0.0
        %v3199 = vsel %vm3167, 1.0, 0.0
        %v3200 = vsel %vm3168, 1.0, 0.0
        %v3201 = vsel %vm3169, 1.0, 0.0
        %v3202 = vsel %vm3170, 1.0, 0.0
        %v3203 = vsel %vm3171, 1.0, 0.0
        %v3204 = vsel %vm3172, 1.0, 0.0
        %v3205 = vsel %vm3173, 1.0, 0.0
        %v3206 = vsel %vm3174, 1.0, 0.0
        %v3207 = vsel %vm3175, 1.0, 0.0
        %v3208 = vpack.c.bf16 %v3180, %v3176
        %v3209 = vpack.c.bf16 %v3181, %v3177
        %v3210 = vpack.c.bf16 %v3182, %v3178
        %v3211 = vpack.c.bf16 %v3183, %v3179
        %v3212 = vpack.c.bf16 %v3188, %v3184
        %v3213 = vpack.c.bf16 %v3189, %v3185
        %v3214 = vpack.c.bf16 %v3190, %v3186
        %v3215 = vpack.c.bf16 %v3191, %v3187
        %v3216 = vpack.c.bf16 %v3196, %v3192
        %v3217 = vpack.c.bf16 %v3197, %v3193
        %v3218 = vpack.c.bf16 %v3198, %v3194
        %v3219 = vpack.c.bf16 %v3199, %v3195
        %v3220 = vpack.c.bf16 %v3204, %v3200
        %v3221 = vpack.c.bf16 %v3205, %v3201
        %v3222 = vpack.c.bf16 %v3206, %v3202
        %v3223 = vpack.c.bf16 %v3207, %v3203
        %v3224 = vld [vmem:[#allocation2] sm:$0xff]
        %v3225 = vld [vmem:[#allocation2 + $0x8] sm:$0xff]
        %v3226 = vld [vmem:[#allocation2 + $0x10] sm:$0xff]
        %v3227 = vld [vmem:[#allocation2 + $0x18] sm:$0xff]
        %v3228 = vld [vmem:[#allocation2 + $0x20] sm:$0xff]
        %v3229 = vld [vmem:[#allocation2 + $0x28] sm:$0xff]
        %v3230 = vld [vmem:[#allocation2 + $0x30] sm:$0xff]
        %v3231 = vld [vmem:[#allocation2 + $0x38] sm:$0xff]
        %v3232 = vpack.c.bf16 %v3055, %v3054
        %v3233 = vpack.c.bf16 %v3057, %v3056
        %v3234 = vpack.c.bf16 %v3059, %v3058
        %v3235 = vpack.c.bf16 %v3061, %v3060
        %v3236 = vpack.c.bf16 %v3063, %v3062
        %v3237 = vpack.c.bf16 %v3065, %v3064
        %v3238 = vpack.c.bf16 %v3067, %v3066
        %v3239 = vpack.c.bf16 %v3069, %v3068
        %v3240 = vpack.c.bf16 %v3071, %v3070
        %v3241 = vpack.c.bf16 %v3073, %v3072
        %v3242 = vpack.c.bf16 %v3075, %v3074
        %v3243 = vpack.c.bf16 %v3077, %v3076
        %v3244 = vpack.c.bf16 %v3079, %v3078
        %v3245 = vpack.c.bf16 %v3081, %v3080
        %v3246 = vpack.c.bf16 %v3083, %v3082
        %v3247 = vpack.c.bf16 %v3085, %v3084
        %v3248 = vpack.c.bf16 %v3087, %v3086
        %v3249 = vpack.c.bf16 %v3089, %v3088
        %v3250 = vpack.c.bf16 %v3091, %v3090
        %v3251 = vpack.c.bf16 %v3093, %v3092
        %v3252 = vpack.c.bf16 %v3095, %v3094
        %v3253 = vpack.c.bf16 %v3097, %v3096
        %v3254 = vpack.c.bf16 %v3099, %v3098
        %v3255 = vpack.c.bf16 %v3101, %v3100
        %v3256 = vpack.c.bf16 %v3103, %v3102
        %v3257 = vpack.c.bf16 %v3105, %v3104
        %v3258 = vpack.c.bf16 %v3107, %v3106
        %v3259 = vpack.c.bf16 %v3109, %v3108
        %v3260 = vpack.c.bf16 %v3111, %v3110
        %v3261 = vpack.c.bf16 %v3113, %v3112
        %v3262 = vpack.c.bf16 %v3115, %v3114
        %v3263 = vpack.c.bf16 %v3117, %v3116
        %3264 = vmatprep.subr.bf16.mxu0 0
        %3265 = vmatpush1.bf16.msra.mxu0 %v3239
        %3266 = vmatprep.subr.bf16.mxu0 0
        %3267 = vmatpush1.bf16.msra.mxu0 %v3238
        %3268 = vmatprep.subr.bf16.mxu0 0
        %3269 = vmatpush1.bf16.msra.mxu0 %v3237
        %3270 = vmatprep.subr.bf16.mxu0 0
        %3271 = vmatpush1.bf16.msra.mxu0 %v3236
        %3272 = vmatprep.subr.bf16.mxu0 0
        %3273 = vmatpush1.bf16.msra.mxu0 %v3235
        %3274 = vmatprep.subr.bf16.mxu0 0
        %3275 = vmatpush1.bf16.msra.mxu0 %v3234
        %3276 = vmatprep.subr.bf16.mxu0 0
        %3277 = vmatpush1.bf16.msra.mxu0 %v3233
        %3278 = vmatprep.subr.bf16.mxu0 0
        %3279 = vmatpush1.bf16.msra.mxu0 %v3232
        %3280 = vmatprep.subr.bf16.mxu0 0
        %3281 = vmatpush2.bf16.msra.mxu0 %v3247
        %3282 = vmatprep.subr.bf16.mxu0 0
        %3283 = vmatpush2.bf16.msra.mxu0 %v3246
        %3284 = vmatprep.subr.bf16.mxu0 0
        %3285 = vmatpush2.bf16.msra.mxu0 %v3245
        %3286 = vmatprep.subr.bf16.mxu0 0
        %3287 = vmatpush2.bf16.msra.mxu0 %v3244
        %3288 = vmatprep.subr.bf16.mxu0 0
        %3289 = vmatpush2.bf16.msra.mxu0 %v3243
        %3290 = vmatprep.subr.bf16.mxu0 0
        %3291 = vmatpush2.bf16.msra.mxu0 %v3242
        %3292 = vmatprep.subr.bf16.mxu0 0
        %3293 = vmatpush2.bf16.msra.mxu0 %v3241
        %3294 = vmatprep.subr.bf16.mxu0 0
        %3295 = vmatpush2.bf16.msra.mxu0 %v3240
        %3296 = vmatprep.mubr.bf16.mxu0 %v3209
        %3297 = vmatmul.mubr.bf16.gmra.mxu0 %v3208
        %v3298 = vpop.f32.mrf.mxu0
        %v3299 = vadd.f32 0.0, %v3298
        %v3300 = vpop.f32.mrf.mxu0
        %v3301 = vpop.f32.mrf.mxu0
        %v3302 = vadd.f32 0.0, %v3301
        %v3303 = vpop.f32.mrf.mxu0
        %3304 = vmatprep.mubr.bf16.mxu0 %v3213
        %3305 = vmatmul.mubr.bf16.gmra.mxu0 %v3212
        %v3306 = vpop.f32.mrf.mxu0
        %v3307 = vadd.f32 0.0, %v3306
        %v3308 = vpop.f32.mrf.mxu0
        %v3309 = vpop.f32.mrf.mxu0
        %v3310 = vadd.f32 0.0, %v3309
        %v3311 = vpop.f32.mrf.mxu0
        %3312 = vmatprep.mubr.bf16.mxu0 %v3217
        %3313 = vmatmul.mubr.bf16.gmra.mxu0 %v3216
        %v3314 = vpop.f32.mrf.mxu0
        %v3315 = vadd.f32 0.0, %v3314
        %v3316 = vpop.f32.mrf.mxu0
        %v3317 = vpop.f32.mrf.mxu0
        %v3318 = vadd.f32 0.0, %v3317
        %v3319 = vpop.f32.mrf.mxu0
        %3320 = vmatprep.mubr.bf16.mxu0 %v3221
        %3321 = vmatmul.mubr.bf16.gmra.mxu0 %v3220
        %v3322 = vpop.f32.mrf.mxu0
        %v3323 = vadd.f32 0.0, %v3322
        %v3324 = vpop.f32.mrf.mxu0
        %v3325 = vpop.f32.mrf.mxu0
        %v3326 = vadd.f32 0.0, %v3325
        %v3327 = vpop.f32.mrf.mxu0
        %3328 = vdwg.mxu0
        %3329 = vmatprep.subr.bf16.mxu0 0
        %3330 = vmatpush1.bf16.msra.mxu0 %v3255
        %3331 = vmatprep.subr.bf16.mxu0 0
        %3332 = vmatpush1.bf16.msra.mxu0 %v3254
        %3333 = vmatprep.subr.bf16.mxu0 0
        %3334 = vmatpush1.bf16.msra.mxu0 %v3253
        %3335 = vmatprep.subr.bf16.mxu0 0
        %3336 = vmatpush1.bf16.msra.mxu0 %v3252
        %3337 = vmatprep.subr.bf16.mxu0 0
        %3338 = vmatpush1.bf16.msra.mxu0 %v3251
        %3339 = vmatprep.subr.bf16.mxu0 0
        %3340 = vmatpush1.bf16.msra.mxu0 %v3250
        %3341 = vmatprep.subr.bf16.mxu0 0
        %3342 = vmatpush1.bf16.msra.mxu0 %v3249
        %3343 = vmatprep.subr.bf16.mxu0 0
        %3344 = vmatpush1.bf16.msra.mxu0 %v3248
        %3345 = vmatprep.subr.bf16.mxu0 0
        %3346 = vmatpush2.bf16.msra.mxu0 %v3263
        %3347 = vmatprep.subr.bf16.mxu0 0
        %3348 = vmatpush2.bf16.msra.mxu0 %v3262
        %3349 = vmatprep.subr.bf16.mxu0 0
        %3350 = vmatpush2.bf16.msra.mxu0 %v3261
        %3351 = vmatprep.subr.bf16.mxu0 0
        %3352 = vmatpush2.bf16.msra.mxu0 %v3260
        %3353 = vmatprep.subr.bf16.mxu0 0
        %3354 = vmatpush2.bf16.msra.mxu0 %v3259
        %3355 = vmatprep.subr.bf16.mxu0 0
        %3356 = vmatpush2.bf16.msra.mxu0 %v3258
        %3357 = vmatprep.subr.bf16.mxu0 0
        %3358 = vmatpush2.bf16.msra.mxu0 %v3257
        %3359 = vmatprep.subr.bf16.mxu0 0
        %3360 = vmatpush2.bf16.msra.mxu0 %v3256
        %3361 = vmatprep.mubr.bf16.mxu0 %v3211
        %3362 = vmatmul.mubr.bf16.gmra.mxu0 %v3210
        %v3363 = vpop.f32.mrf.mxu0
        %v3364 = vadd.f32 %v3299, %v3363
        %v3365 = vpop.f32.mrf.mxu0
        %v3366 = vpop.f32.mrf.mxu0
        %v3367 = vadd.f32 %v3302, %v3366
        %v3368 = vpop.f32.mrf.mxu0
        %3369 = vmatprep.mubr.bf16.mxu0 %v3215
        %3370 = vmatmul.mubr.bf16.gmra.mxu0 %v3214
        %v3371 = vpop.f32.mrf.mxu0
        %v3372 = vadd.f32 %v3307, %v3371
        %v3373 = vpop.f32.mrf.mxu0
        %v3374 = vpop.f32.mrf.mxu0
        %v3375 = vadd.f32 %v3310, %v3374
        %v3376 = vpop.f32.mrf.mxu0
        %3377 = vmatprep.mubr.bf16.mxu0 %v3219
        %3378 = vmatmul.mubr.bf16.gmra.mxu0 %v3218
        %v3379 = vpop.f32.mrf.mxu0
        %v3380 = vadd.f32 %v3315, %v3379
        %v3381 = vpop.f32.mrf.mxu0
        %v3382 = vpop.f32.mrf.mxu0
        %v3383 = vadd.f32 %v3318, %v3382
        %v3384 = vpop.f32.mrf.mxu0
        %3385 = vmatprep.mubr.bf16.mxu0 %v3223
        %3386 = vmatmul.mubr.bf16.gmra.mxu0 %v3222
        %v3387 = vpop.f32.mrf.mxu0
        %v3388 = vadd.f32 %v3323, %v3387
        %v3389 = vpop.f32.mrf.mxu0
        %v3390 = vpop.f32.mrf.mxu0
        %v3391 = vadd.f32 %v3326, %v3390
        %v3392 = vpop.f32.mrf.mxu0
        %3393 = vdwg.mxu0
        %v3394 = vadd.f32 %v3224, %v3364
        %v3395 = vadd.f32 %v3225, %v3367
        %v3396 = vadd.f32 %v3226, %v3372
        %v3397 = vadd.f32 %v3227, %v3375
        %v3398 = vadd.f32 %v3228, %v3380
        %v3399 = vadd.f32 %v3229, %v3383
        %v3400 = vadd.f32 %v3230, %v3388
        %v3401 = vadd.f32 %v3231, %v3391
        %3402 = vst [vmem:[#allocation2] sm:$0xff] %v3394
        %3403 = vst [vmem:[#allocation2 + $0x8] sm:$0xff] %v3395
        %3404 = vst [vmem:[#allocation2 + $0x10] sm:$0xff] %v3396
        %3405 = vst [vmem:[#allocation2 + $0x18] sm:$0xff] %v3397
        %3406 = vst [vmem:[#allocation2 + $0x20] sm:$0xff] %v3398
        %3407 = vst [vmem:[#allocation2 + $0x28] sm:$0xff] %v3399
        %3408 = vst [vmem:[#allocation2 + $0x30] sm:$0xff] %v3400
        %3409 = vst [vmem:[#allocation2 + $0x38] sm:$0xff] %v3401
        %p3410 = scmp.eq.s32.totalorder %s19, 2
        // Predicated region
        $region49: #{tpu_custom_call.1} parent=43 // pred_check
          %p3411 = pneg %p3410
        $region50: #{tpu_custom_call.1} parent=43 // pred_check_branch
          %3413 = sbr.rel (%p3411) target = $region52
        $region51: #{tpu_custom_call.1} parent=43 // pred_region
          %v3414 = vld [vmem:[#allocation2] sm:$0xff]
          %v3415 = vld [vmem:[#allocation2 + $0x8] sm:$0xff]
          %v3416 = vld [vmem:[#allocation2 + $0x10] sm:$0xff]
          %v3417 = vld [vmem:[#allocation2 + $0x18] sm:$0xff]
          %v3418 = vld [vmem:[#allocation2 + $0x20] sm:$0xff]
          %v3419 = vld [vmem:[#allocation2 + $0x28] sm:$0xff]
          %v3420 = vld [vmem:[#allocation2 + $0x30] sm:$0xff]
          %v3421 = vld [vmem:[#allocation2 + $0x38] sm:$0xff]
          %v3422 = vadd.f32 %v3414, 1e-16
          %v3423 = vadd.f32 %v3415, 1e-16
          %v3424 = vadd.f32 %v3416, 1e-16
          %v3425 = vadd.f32 %v3417, 1e-16
          %v3426 = vadd.f32 %v3418, 1e-16
          %v3427 = vadd.f32 %v3419, 1e-16
          %v3428 = vadd.f32 %v3420, 1e-16
          %v3429 = vadd.f32 %v3421, 1e-16
          %v3430 = vrcp.pop %v3422
          %v3431 = vrcp.pop %v3423
          %v3432 = vrcp.pop %v3424
          %v3433 = vrcp.pop %v3425
          %v3434 = vrcp.pop %v3426
          %v3435 = vrcp.pop %v3427
          %v3436 = vrcp.pop %v3428
          %v3437 = vrcp.pop %v3429
          %3439 = vset.pattern.permute.xlu0 32
          %3440 = vperm.xlu0 %3439, %v3430
          %v3441 = vpop.permute.xlu0 %3440
          %3444 = vset.pattern.permute.xlu0 32
          %3445 = vperm.xlu0 %3444, %v3431
          %v3446 = vpop.permute.xlu0 %3445
          %3449 = vset.pattern.permute.xlu0 32
          %3450 = vperm.xlu0 %3449, %v3432
          %v3451 = vpop.permute.xlu0 %3450
          %3454 = vset.pattern.permute.xlu0 32
          %3455 = vperm.xlu0 %3454, %v3433
          %v3456 = vpop.permute.xlu0 %3455
          %3459 = vset.pattern.permute.xlu0 32
          %3460 = vperm.xlu0 %3459, %v3434
          %v3461 = vpop.permute.xlu0 %3460
          %3464 = vset.pattern.permute.xlu0 32
          %3465 = vperm.xlu0 %3464, %v3435
          %v3466 = vpop.permute.xlu0 %3465
          %3469 = vset.pattern.permute.xlu0 32
          %3470 = vperm.xlu0 %3469, %v3436
          %v3471 = vpop.permute.xlu0 %3470
          %3474 = vset.pattern.permute.xlu0 32
          %3475 = vperm.xlu0 %3474, %v3437
          %v3476 = vpop.permute.xlu0 %3475
          %v3478 = vmul.f32 %v3414, %v3441
          %v3479 = vmul.f32 %v3415, %v3446
          %v3480 = vmul.f32 %v3416, %v3451
          %v3481 = vmul.f32 %v3417, %v3456
          %v3482 = vmul.f32 %v3418, %v3461
          %v3483 = vmul.f32 %v3419, %v3466
          %v3484 = vmul.f32 %v3420, %v3471
          %v3485 = vmul.f32 %v3421, %v3476
          %vm3486 = vcmp.lt.s32.totalorder %v424, 32
          %v3487 = vsel %vm3486, %v3478, 0.0
          %v3488 = vsel %vm3486, %v3479, 0.0
          %v3489 = vsel %vm3486, %v3480, 0.0
          %v3490 = vsel %vm3486, %v3481, 0.0
          %v3491 = vsel %vm3486, %v3482, 0.0
          %v3492 = vsel %vm3486, %v3483, 0.0
          %v3493 = vsel %vm3486, %v3484, 0.0
          %v3494 = vsel %vm3486, %v3485, 0.0
          %vm3495 = vcmp.gt.f32.partialorder %v3487, 0.0
          %vm3496 = vcmp.gt.f32.partialorder %v3488, 0.0
          %vm3497 = vcmp.gt.f32.partialorder %v3489, 0.0
          %vm3498 = vcmp.gt.f32.partialorder %v3490, 0.0
          %vm3499 = vcmp.gt.f32.partialorder %v3491, 0.0
          %vm3500 = vcmp.gt.f32.partialorder %v3492, 0.0
          %vm3501 = vcmp.gt.f32.partialorder %v3493, 0.0
          %vm3502 = vcmp.gt.f32.partialorder %v3494, 0.0
          %v3503 = vmul.f32 %v3487, 1.442695
          %v3504 = vpow.pop %v3503
          %v3505 = vmul.f32 %v3488, 1.442695
          %v3506 = vpow.pop %v3505
          %v3507 = vmul.f32 %v3489, 1.442695
          %v3508 = vpow.pop %v3507
          %v3509 = vmul.f32 %v3490, 1.442695
          %v3510 = vpow.pop %v3509
          %v3511 = vmul.f32 %v3491, 1.442695
          %v3512 = vpow.pop %v3511
          %v3513 = vmul.f32 %v3492, 1.442695
          %v3514 = vpow.pop %v3513
          %v3515 = vmul.f32 %v3493, 1.442695
          %v3516 = vpow.pop %v3515
          %v3517 = vmul.f32 %v3494, 1.442695
          %v3518 = vpow.pop %v3517
          %v3519 = vsub.f32 %v3504, 1.0
          %v3520 = vsub.f32 %v3506, 1.0
          %v3521 = vsub.f32 %v3508, 1.0
          %v3522 = vsub.f32 %v3510, 1.0
          %v3523 = vsub.f32 %v3512, 1.0
          %v3524 = vsub.f32 %v3514, 1.0
          %v3525 = vsub.f32 %v3516, 1.0
          %v3526 = vsub.f32 %v3518, 1.0
          %v3527 = vsel %vm3495, %v3487, %v3519
          %v3528 = vsel %vm3496, %v3488, %v3520
          %v3529 = vsel %vm3497, %v3489, %v3521
          %v3530 = vsel %vm3498, %v3490, %v3522
          %v3531 = vsel %vm3499, %v3491, %v3523
          %v3532 = vsel %vm3500, %v3492, %v3524
          %v3533 = vsel %vm3501, %v3493, %v3525
          %v3534 = vsel %vm3502, %v3494, %v3526
          %3535 = vst [vmem:[#allocation4] sm:$0xff] %v3527
          %3536 = vst [vmem:[#allocation4 + $0x8] sm:$0xff] %v3528
          %3537 = vst [vmem:[#allocation4 + $0x10] sm:$0xff] %v3529
          %3538 = vst [vmem:[#allocation4 + $0x18] sm:$0xff] %v3530
          %3539 = vst [vmem:[#allocation4 + $0x20] sm:$0xff] %v3531
          %3540 = vst [vmem:[#allocation4 + $0x28] sm:$0xff] %v3532
          %3541 = vst [vmem:[#allocation4 + $0x30] sm:$0xff] %v3533
          %3542 = vst [vmem:[#allocation4 + $0x38] sm:$0xff] %v3534
        $region52: #{tpu_custom_call.1} parent=43 // pred_fallthru
          _
        // Predicated region
        $region53: #{tpu_custom_call.1} parent=43 // pred_check
          %p3543 = pneg %p173
        $region54: #{tpu_custom_call.1} parent=43 // pred_check_branch
          %3545 = sbr.rel (%p3543) target = $region56
        $region55: #{tpu_custom_call.1} parent=43 // pred_region
          %s3547 = ssub.s32 1024, 1024
          %3548 = vsyncadd [#allocation5], %s3547
          %s3549 = sshll.u32 [#allocation4], 4
          %s3550 = int_to_ptr.vmem [resolvable:$true] %s3549
          %3555 = dma.vmem_to_hbm [thread:$0]  %s3550, 1024, %s6, [#allocation5], 128, 128, 8
        $region56: #{tpu_custom_call.1} parent=43 // pred_fallthru
          _
        // Predicated region
        $region57: #{tpu_custom_call.1} parent=43 // pred_check
          %p3556 = pneg %p173
        $region58: #{tpu_custom_call.1} parent=43 // pred_check_branch
          %3558 = sbr.rel (%p3556) target = $region60
        $region59: #{tpu_custom_call.1} parent=43 // pred_region
          %3559 = dma.done [#allocation5], 1024
        $region60: #{tpu_custom_call.1} parent=43 // pred_fallthru
          _
      $region44: #{tpu_custom_call.1} parent=5 // pred_fallthru
        _
      %p3560 = scmp.le.s32.totalorder 2, %s14
      // Predicated region
      $region61: #{tpu_custom_call.1} parent=5 // pred_check
        %p3561 = pneg %p3560
      $region62: #{tpu_custom_call.1} parent=5 // pred_check_branch
        %3563 = sbr.rel (%p3561) target = $region64
      $region63: #{tpu_custom_call.1} parent=5 // pred_region
        %s3564 = ssub.s32 %s14, 2
      $region64: #{tpu_custom_call.1} parent=5 // pred_fallthru
        _
    $region6: #{tpu_custom_call.1} parent=1 // loop_footer
      %s18 = sadd.s32 1, %s14
    $region7: #{tpu_custom_call.1} parent=1 // loop_footer_branch
      %13 = sbr.rel target = $region3
    $region8: #{tpu_custom_call.1} parent=1 // loop_exit
      _
    %3565 = vsyncpa [#allocation5], 1
    %s3566 = scalar_lea.sflag [#allocation5], 1
    %3567 = vsyncpa %s3566, 1

// kernel: tpu_custom_call.1
$region0: #{tpu_custom_call.1}
  #allocation0 [shape = 'u32[]', space=smem, size = 0x4, offset = 0x4, fixed_abs, tag = 'smem constant byte address 0x4 - core index']
  #allocation1 [shape = 'u32[144,128]{1,0:T(1,128)}', space=vmem, size = 0x12000, scoped, tag = 'internal scratch']
  #allocation2 [shape = 'f32[64,128]{1,0:T(8,128)}', space=vmem, size = 0x8000, scoped, tag = 'scratch operand']
  #allocation3 [shape = 'f32[1,1]{1,0:T(1,128)S(6)}', space=smem, size = 0x200, scoped, tag = 'scoped memory for tpu_custom_call.1']
  %s0 = inlined_call_operand.<no memory space> [shape: f32[1,1], index: 0, kind: input, shape index: {}]
  %s1 = inlined_call_operand.vmem [shape: bf16[64,128], index: 1, kind: input, shape index: {}]
  %s2 = inlined_call_operand.vmem [shape: bf16[64,128], index: 2, kind: input, shape index: {}]
  %s3 = inlined_call_operand.vmem [shape: s32[1536,1], index: 3, kind: input, shape index: {}]
  %s4 = inlined_call_operand.vmem [shape: s32[1536,1], index: 4, kind: input, shape index: {}]
  %s5 = inlined_call_operand.vmem [shape: s32[1,1536], index: 5, kind: input, shape index: {}]
  %s6 = inlined_call_operand.hbm [shape: f32[64,128], index: 6, kind: output, shape index: {}]
  %s7 = sld [smem:[#allocation0]]
  $region65: #{tpu_custom_call.1} parent=0
    _
  %s9 = ssub.s32 1, %s7
  %s10 = scalar_select 0, %s9, %s7
  %11 = sst [smem:[#allocation3]] %s0
  $region1: #{tpu_custom_call.1} parent=0
    #allocation4 [shape = 'u8[32768]{0}', space=vmem, size = 0x8000, scoped, tag = 'output window, operand 0, single buffered']
    #allocation5 [shape = 's32[2]{0}', space=sflag, size = 0x8, scoped, tag = 'scoped memory for tpu_custom_call.1']
    %12 = vsyncpa [#allocation5], 0
    loop: start=0, step=1, limit=5
    $region2: #{tpu_custom_call.1} parent=1 // loop_pre_header
      _
    $region3: #{tpu_custom_call.1} parent=1 // loop_header
      %s14 = sphi 0, %s18
      %p15 = scmp.ge.s32.totalorder %s14, 5
      %s22 = sphi 0, %s22
      %s24 = sphi 0, %s22
      %s25 = sphi 0, %s24
      %s39 = sphi 0, %s25
      %s43 = sphi 0, %s43
      %s45 = sphi 0, %s43
      %s46 = sphi 0, %s45
      %s60 = sphi 0, %s46
      %s64 = sphi 0, %s64
      %s66 = sphi 0, %s64
      %s67 = sphi 0, %s66
      %s81 = sphi 0, %s67
      %s87 = sphi 0, %s89
      %s90 = sphi 0, %s87
      %s91 = sphi 0, %s90
      %s107 = sphi 0, %s91
      %s113 = sphi 0, %s115
      %s116 = sphi 0, %s113
      %s117 = sphi 0, %s116
      %s133 = sphi 0, %s117
      %s139 = sphi 0, %s141
      %s142 = sphi 0, %s139
      %s143 = sphi 0, %s142
      %s159 = sphi 0, %s143
      %s163 = sphi 0, %s163
      %s165 = sphi 0, %s163
      %s166 = sphi 0, %s165
      %s180 = sphi 0, %s166
    $region4: #{tpu_custom_call.1} parent=1 // loop_header_branch
      %17 = sbr.rel (%p15) target = $region8
    $region5: #{tpu_custom_call.1} parent=1 // loop_body
      %s19 = ssub.s32 %s14, 1
      %s20 = ssub.s32 %s14, 2
      %s21 = sadd.s32 %s14, 1
      %s23 = sadd.s32 %s22, 1
      %p26 = scmp.eq.s32.totalorder %s14, 2
      %p27 = scmp.ne.s32.totalorder %s22, %s24
      %p28 = scmp.eq.s32.totalorder %s14, 0
      %p29 = por %p27, %p28
      %p30 = scmp.ne.s32.totalorder %s22, %s24
      %p31 = scmp.eq.s32.totalorder %s19, 2
      %p32 = por %p30, %p31
      %p33 = scmp.ne.s32.totalorder %s24, %s25
      %p34 = scmp.eq.s32.totalorder %s19, 0
      %p35 = por %p33, %p34
      %p36 = scmp.ne.s32.totalorder %s24, %s25
      %p37 = scmp.eq.s32.totalorder %s20, 2
      %p38 = por %p36, %p37
      %p40 = scmp.ne.s32.totalorder %s25, %s39
      %p41 = scmp.eq.s32.totalorder %s20, 0
      %p42 = por %p40, %p41
      %s44 = sadd.s32 %s43, 1
      %p47 = scmp.eq.s32.totalorder %s14, 2
      %p48 = scmp.ne.s32.totalorder %s43, %s45
      %p49 = scmp.eq.s32.totalorder %s14, 0
      %p50 = por %p48, %p49
      %p51 = scmp.ne.s32.totalorder %s43, %s45
      %p52 = scmp.eq.s32.totalorder %s19, 2
      %p53 = por %p51, %p52
      %p54 = scmp.ne.s32.totalorder %s45, %s46
      %p55 = scmp.eq.s32.totalorder %s19, 0
      %p56 = por %p54, %p55
      %p57 = scmp.ne.s32.totalorder %s45, %s46
      %p58 = scmp.eq.s32.totalorder %s20, 2
      %p59 = por %p57, %p58
      %p61 = scmp.ne.s32.totalorder %s46, %s60
      %p62 = scmp.eq.s32.totalorder %s20, 0
      %p63 = por %p61, %p62
      %s65 = sadd.s32 %s64, 1
      %p68 = scmp.eq.s32.totalorder %s14, 2
      %p69 = scmp.ne.s32.totalorder %s64, %s66
      %p70 = scmp.eq.s32.totalorder %s14, 0
      %p71 = por %p69, %p70
      %p72 = scmp.ne.s32.totalorder %s64, %s66
      %p73 = scmp.eq.s32.totalorder %s19, 2
      %p74 = por %p72, %p73
      %p75 = scmp.ne.s32.totalorder %s66, %s67
      %p76 = scmp.eq.s32.totalorder %s19, 0
      %p77 = por %p75, %p76
      %p78 = scmp.ne.s32.totalorder %s66, %s67
      %p79 = scmp.eq.s32.totalorder %s20, 2
      %p80 = por %p78, %p79
      %p82 = scmp.ne.s32.totalorder %s67, %s81
      %p83 = scmp.eq.s32.totalorder %s20, 0
      %p84 = por %p82, %p83
      %s85 = ssub.s32 %s14, %s21
      %p86 = scmp.eq.s32.totalorder %s85, 0
      %s88 = sadd.s32 %s87, 1
      %s89 = scalar_select %p86, %s87, %s88
      %p92 = pneg %p86
      %p93 = scmp.eq.s32.totalorder %s14, 2
      %p94 = por %p92, %p93
      %p95 = scmp.ne.s32.totalorder %s87, %s90
      %p96 = scmp.eq.s32.totalorder %s14, 0
      %p97 = por %p95, %p96
      %p98 = scmp.ne.s32.totalorder %s87, %s90
      %p99 = scmp.eq.s32.totalorder %s19, 2
      %p100 = por %p98, %p99
      %p101 = scmp.ne.s32.totalorder %s90, %s91
      %p102 = scmp.eq.s32.totalorder %s19, 0
      %p103 = por %p101, %p102
      %p104 = scmp.ne.s32.totalorder %s90, %s91
      %p105 = scmp.eq.s32.totalorder %s20, 2
      %p106 = por %p104, %p105
      %p108 = scmp.ne.s32.totalorder %s91, %s107
      %p109 = scmp.eq.s32.totalorder %s20, 0
      %p110 = por %p108, %p109
      %s111 = ssub.s32 %s14, %s21
      %p112 = scmp.eq.s32.totalorder %s111, 0
      %s114 = sadd.s32 %s113, 1
      %s115 = scalar_select %p112, %s113, %s114
      %p118 = pneg %p112
      %p119 = scmp.eq.s32.totalorder %s14, 2
      %p120 = por %p118, %p119
      %p121 = scmp.ne.s32.totalorder %s113, %s116
      %p122 = scmp.eq.s32.totalorder %s14, 0
      %p123 = por %p121, %p122
      %p124 = scmp.ne.s32.totalorder %s113, %s116
      %p125 = scmp.eq.s32.totalorder %s19, 2
      %p126 = por %p124, %p125
      %p127 = scmp.ne.s32.totalorder %s116, %s117
      %p128 = scmp.eq.s32.totalorder %s19, 0
      %p129 = por %p127, %p128
      %p130 = scmp.ne.s32.totalorder %s116, %s117
      %p131 = scmp.eq.s32.totalorder %s20, 2
      %p132 = por %p130, %p131
      %p134 = scmp.ne.s32.totalorder %s117, %s133
      %p135 = scmp.eq.s32.totalorder %s20, 0
      %p136 = por %p134, %p135
      %s137 = ssub.s32 %s14, %s21
      %p138 = scmp.eq.s32.totalorder %s137, 0
      %s140 = sadd.s32 %s139, 1
      %s141 = scalar_select %p138, %s139, %s140
      %p144 = pneg %p138
      %p145 = scmp.eq.s32.totalorder %s14, 2
      %p146 = por %p144, %p145
      %p147 = scmp.ne.s32.totalorder %s139, %s142
      %p148 = scmp.eq.s32.totalorder %s14, 0
      %p149 = por %p147, %p148
      %p150 = scmp.ne.s32.totalorder %s139, %s142
      %p151 = scmp.eq.s32.totalorder %s19, 2
      %p152 = por %p150, %p151
      %p153 = scmp.ne.s32.totalorder %s142, %s143
      %p154 = scmp.eq.s32.totalorder %s19, 0
      %p155 = por %p153, %p154
      %p156 = scmp.ne.s32.totalorder %s142, %s143
      %p157 = scmp.eq.s32.totalorder %s20, 2
      %p158 = por %p156, %p157
      %p160 = scmp.ne.s32.totalorder %s143, %s159
      %p161 = scmp.eq.s32.totalorder %s20, 0
      %p162 = por %p160, %p161
      %s164 = sadd.s32 %s163, 1
      %p167 = scmp.eq.s32.totalorder %s14, 2
      %p168 = scmp.ne.s32.totalorder %s163, %s165
      %p169 = scmp.eq.s32.totalorder %s14, 0
      %p170 = por %p168, %p169
      %p171 = scmp.ne.s32.totalorder %s163, %s165
      %p172 = scmp.eq.s32.totalorder %s19, 2
      %p173 = por %p171, %p172
      %p174 = scmp.ne.s32.totalorder %s165, %s166
      %p175 = scmp.eq.s32.totalorder %s19, 0
      %p176 = por %p174, %p175
      %p177 = scmp.ne.s32.totalorder %s165, %s166
      %p178 = scmp.eq.s32.totalorder %s20, 2
      %p179 = por %p177, %p178
      %p181 = scmp.ne.s32.totalorder %s166, %s180
      %p182 = scmp.eq.s32.totalorder %s20, 0
      %p183 = por %p181, %p182
      %p184 = scmp.le.s32.totalorder 1, %s14
      %p185 = scmp.lt.s32.totalorder %s14, 4
      %p186 = pnand %p184, %p185
      %p187 = pneg %p186
      // Predicated region
      $region9: #{tpu_custom_call.1} parent=5 // pred_check
        _
      $region10: #{tpu_custom_call.1} parent=5 // pred_check_branch
        %189 = sbr.rel (%p186) target = $region12
      $region11: #{tpu_custom_call.1} parent=5 // pred_region
        %s190 = ssub.s32 %s14, 1
        // Predicated region
        $region13: #{tpu_custom_call.1} parent=11 // pred_check
          %p191 = pneg %p35
        $region14: #{tpu_custom_call.1} parent=11 // pred_check_branch
          %193 = sbr.rel (%p191) target = $region16
        $region15: #{tpu_custom_call.1} parent=11 // pred_region
          _
        $region16: #{tpu_custom_call.1} parent=11 // pred_fallthru
          _
        // Predicated region
        $region17: #{tpu_custom_call.1} parent=11 // pred_check
          %p194 = pneg %p56
        $region18: #{tpu_custom_call.1} parent=11 // pred_check_branch
          %196 = sbr.rel (%p194) target = $region20
        $region19: #{tpu_custom_call.1} parent=11 // pred_region
          _
        $region20: #{tpu_custom_call.1} parent=11 // pred_fallthru
          _
        // Predicated region
        $region21: #{tpu_custom_call.1} parent=11 // pred_check
          %p197 = pneg %p77
        $region22: #{tpu_custom_call.1} parent=11 // pred_check_branch
          %199 = sbr.rel (%p197) target = $region24
        $region23: #{tpu_custom_call.1} parent=11 // pred_region
          _
        $region24: #{tpu_custom_call.1} parent=11 // pred_fallthru
          _
      $region12: #{tpu_custom_call.1} parent=5 // pred_fallthru
        _
      %p200 = scmp.lt.s32.totalorder %s14, 3
      // Predicated region
      $region25: #{tpu_custom_call.1} parent=5 // pred_check
        %p201 = pneg %p200
      $region26: #{tpu_custom_call.1} parent=5 // pred_check_branch
        %203 = sbr.rel (%p201) target = $region28
      $region27: #{tpu_custom_call.1} parent=5 // pred_region
        // Predicated region
        $region29: #{tpu_custom_call.1} parent=27 // pred_check
          %p204 = pneg %p97
        $region30: #{tpu_custom_call.1} parent=27 // pred_check_branch
          %206 = sbr.rel (%p204) target = $region32
        $region31: #{tpu_custom_call.1} parent=27 // pred_region
          %s207 = smul.u32 64, %s14
          %p208 = scmp.lt.s32.totalorder %s207, 191
          %s209 = scalar_select %p208, %s207, 191
          %s210 = smul.addr %s209, 8
          %s211 = scalar_lea.vmem %s3, %s210
          %s212 = smul.u32 64, %s14
        $region32: #{tpu_custom_call.1} parent=27 // pred_fallthru
          _
        // Predicated region
        $region33: #{tpu_custom_call.1} parent=27 // pred_check
          %p213 = pneg %p123
        $region34: #{tpu_custom_call.1} parent=27 // pred_check_branch
          %215 = sbr.rel (%p213) target = $region36
        $region35: #{tpu_custom_call.1} parent=27 // pred_region
          %s216 = smul.u32 64, %s14
          %p217 = scmp.lt.s32.totalorder %s216, 191
          %s218 = scalar_select %p217, %s216, 191
          %s219 = smul.addr %s218, 8
          %s220 = scalar_lea.vmem %s4, %s219
          %s221 = smul.u32 64, %s14
        $region36: #{tpu_custom_call.1} parent=27 // pred_fallthru
          _
        // Predicated region
        $region37: #{tpu_custom_call.1} parent=27 // pred_check
          %p222 = pneg %p149
        $region38: #{tpu_custom_call.1} parent=27 // pred_check_branch
          %224 = sbr.rel (%p222) target = $region40
        $region39: #{tpu_custom_call.1} parent=27 // pred_region
          %s225 = smul.u32 4, %s14
          %p226 = scmp.lt.s32.totalorder %s225, 11
          %s227 = scalar_select %p226, %s225, 11
          %s228 = scalar_lea.vmem %s5, %s227
          %s229 = smul.u32 4, %s14
        $region40: #{tpu_custom_call.1} parent=27 // pred_fallthru
          _
      $region28: #{tpu_custom_call.1} parent=5 // pred_fallthru
        _
      %p230 = scmp.le.s32.totalorder 1, %s14
      %p231 = scmp.lt.s32.totalorder %s14, 4
      %p232 = pnand %p230, %p231
      %p233 = pneg %p232
      // Predicated region
      $region41: #{tpu_custom_call.1} parent=5 // pred_check
        _
      $region42: #{tpu_custom_call.1} parent=5 // pred_check_branch
        %235 = sbr.rel (%p232) target = $region44
      $region43: #{tpu_custom_call.1} parent=5 // pred_region
        %s236 = ssub.s32 %s14, 1
        %p237 = pneg %p35
        %p238 = pneg %p32
        %p239 = pneg %p56
        %p240 = pneg %p53
        %p241 = pneg %p77
        %p242 = pneg %p74
        %s243 = smul.u32 64, %s19
        %p244 = scmp.lt.s32.totalorder %s243, 191
        %s245 = scalar_select %p244, %s243, 191
        %s246 = smul.addr %s245, 8
        %s247 = scalar_lea.vmem %s3, %s246
        %p248 = pneg %p103
        %p249 = pneg %p100
        %s250 = smul.u32 64, %s19
        %p251 = scmp.lt.s32.totalorder %s250, 191
        %s252 = scalar_select %p251, %s250, 191
        %s253 = smul.addr %s252, 8
        %s254 = scalar_lea.vmem %s4, %s253
        %p255 = pneg %p129
        %p256 = pneg %p126
        %s257 = smul.u32 4, %s19
        %p258 = scmp.lt.s32.totalorder %s257, 11
        %s259 = scalar_select %p258, %s257, 11
        %s260 = scalar_lea.vmem %s5, %s259
        %p261 = pneg %p155
        %p262 = pneg %p152
        %p263 = pneg %p176
        %p264 = pneg %p173
        %s265 = smul.u32 64, %s19
        %p266 = scmp.lt.s32.totalorder %s265, 191
        %s267 = scalar_select %p266, %s265, 191
        %s268 = smul.addr %s267, 8
        %s269 = scalar_lea.vmem %s3, %s268
        %s270 = smul.u32 64, %s19
        %s271 = smul.u32 64, %s19
        %p272 = scmp.lt.s32.totalorder %s271, 191
        %s273 = scalar_select %p272, %s271, 191
        %s274 = smul.addr %s273, 8
        %s275 = scalar_lea.vmem %s4, %s274
        %s276 = smul.u32 64, %s19
        %s277 = smul.u32 4, %s19
        %p278 = scmp.lt.s32.totalorder %s277, 11
        %s279 = scalar_select %p278, %s277, 11
        %s280 = scalar_lea.vmem %s5, %s279
        %s281 = smul.u32 4, %s19
        %p283 = scmp.eq.s32.totalorder %s19, 0
        // Predicated region
        $region45: #{tpu_custom_call.1} parent=43 // pred_check
          %p284 = pneg %p283
        $region46: #{tpu_custom_call.1} parent=43 // pred_check_branch
          %286 = sbr.rel (%p284) target = $region48
        $region47: #{tpu_custom_call.1} parent=43 // pred_region
          %287 = vst [vmem:[#allocation2] sm:$0xff] 0.0
          %288 = vst [vmem:[#allocation2 + $0x8] sm:$0xff] 0.0
          %289 = vst [vmem:[#allocation2 + $0x10] sm:$0xff] 0.0
          %290 = vst [vmem:[#allocation2 + $0x18] sm:$0xff] 0.0
          %291 = vst [vmem:[#allocation2 + $0x20] sm:$0xff] 0.0
          %292 = vst [vmem:[#allocation2 + $0x28] sm:$0xff] 0.0
          %293 = vst [vmem:[#allocation2 + $0x30] sm:$0xff] 0.0
          %294 = vst [vmem:[#allocation2 + $0x38] sm:$0xff] 0.0
        $region48: #{tpu_custom_call.1} parent=43 // pred_fallthru
          _
        %v295 = vld [vmem:[%s269] sm:$0xff]
        %v296 = vld [vmem:[%s269 + $0x8] sm:$0xff]
        %v297 = vld [vmem:[%s269 + $0x10] sm:$0xff]
        %v298 = vld [vmem:[%s269 + $0x18] sm:$0xff]
        %v299 = vld [vmem:[%s269 + $0x20] sm:$0xff]
        %v300 = vld [vmem:[%s269 + $0x28] sm:$0xff]
        %v301 = vld [vmem:[%s269 + $0x30] sm:$0xff]
        %v302 = vld [vmem:[%s269 + $0x38] sm:$0xff]
        %v303 = vld [vmem:[%s269 + $0x40] sm:$0xff]
        %v304 = vld [vmem:[%s269 + $0x48] sm:$0xff]
        %v305 = vld [vmem:[%s269 + $0x50] sm:$0xff]
        %v306 = vld [vmem:[%s269 + $0x58] sm:$0xff]
        %v307 = vld [vmem:[%s269 + $0x60] sm:$0xff]
        %v308 = vld [vmem:[%s269 + $0x68] sm:$0xff]
        %v309 = vld [vmem:[%s269 + $0x70] sm:$0xff]
        %v310 = vld [vmem:[%s269 + $0x78] sm:$0xff]
        %v311 = vld [vmem:[%s269 + $0x80] sm:$0xff]
        %v312 = vld [vmem:[%s269 + $0x88] sm:$0xff]
        %v313 = vld [vmem:[%s269 + $0x90] sm:$0xff]
        %v314 = vld [vmem:[%s269 + $0x98] sm:$0xff]
        %v315 = vld [vmem:[%s269 + $0xa0] sm:$0xff]
        %v316 = vld [vmem:[%s269 + $0xa8] sm:$0xff]
        %v317 = vld [vmem:[%s269 + $0xb0] sm:$0xff]
        %v318 = vld [vmem:[%s269 + $0xb8] sm:$0xff]
        %v319 = vld [vmem:[%s269 + $0xc0] sm:$0xff]
        %v320 = vld [vmem:[%s269 + $0xc8] sm:$0xff]
        %v321 = vld [vmem:[%s269 + $0xd0] sm:$0xff]
        %v322 = vld [vmem:[%s269 + $0xd8] sm:$0xff]
        %v323 = vld [vmem:[%s269 + $0xe0] sm:$0xff]
        %v324 = vld [vmem:[%s269 + $0xe8] sm:$0xff]
        %v325 = vld [vmem:[%s269 + $0xf0] sm:$0xff]
        %v326 = vld [vmem:[%s269 + $0xf8] sm:$0xff]
        %v327 = vld [vmem:[%s269 + $0x100] sm:$0xff]
        %v328 = vld [vmem:[%s269 + $0x108] sm:$0xff]
        %v329 = vld [vmem:[%s269 + $0x110] sm:$0xff]
        %v330 = vld [vmem:[%s269 + $0x118] sm:$0xff]
        %v331 = vld [vmem:[%s269 + $0x120] sm:$0xff]
        %v332 = vld [vmem:[%s269 + $0x128] sm:$0xff]
        %v333 = vld [vmem:[%s269 + $0x130] sm:$0xff]
        %v334 = vld [vmem:[%s269 + $0x138] sm:$0xff]
        %v335 = vld [vmem:[%s269 + $0x140] sm:$0xff]
        %v336 = vld [vmem:[%s269 + $0x148] sm:$0xff]
        %v337 = vld [vmem:[%s269 + $0x150] sm:$0xff]
        %v338 = vld [vmem:[%s269 + $0x158] sm:$0xff]
        %v339 = vld [vmem:[%s269 + $0x160] sm:$0xff]
        %v340 = vld [vmem:[%s269 + $0x168] sm:$0xff]
        %v341 = vld [vmem:[%s269 + $0x170] sm:$0xff]
        %v342 = vld [vmem:[%s269 + $0x178] sm:$0xff]
        %v343 = vld [vmem:[%s269 + $0x180] sm:$0xff]
        %v344 = vld [vmem:[%s269 + $0x188] sm:$0xff]
        %v345 = vld [vmem:[%s269 + $0x190] sm:$0xff]
        %v346 = vld [vmem:[%s269 + $0x198] sm:$0xff]
        %v347 = vld [vmem:[%s269 + $0x1a0] sm:$0xff]
        %v348 = vld [vmem:[%s269 + $0x1a8] sm:$0xff]
        %v349 = vld [vmem:[%s269 + $0x1b0] sm:$0xff]
        %v350 = vld [vmem:[%s269 + $0x1b8] sm:$0xff]
        %v351 = vld [vmem:[%s269 + $0x1c0] sm:$0xff]
        %v352 = vld [vmem:[%s269 + $0x1c8] sm:$0xff]
        %v353 = vld [vmem:[%s269 + $0x1d0] sm:$0xff]
        %v354 = vld [vmem:[%s269 + $0x1d8] sm:$0xff]
        %v355 = vld [vmem:[%s269 + $0x1e0] sm:$0xff]
        %v356 = vld [vmem:[%s269 + $0x1e8] sm:$0xff]
        %v357 = vld [vmem:[%s269 + $0x1f0] sm:$0xff]
        %v358 = vld [vmem:[%s269 + $0x1f8] sm:$0xff]
        %v359 = vld [vmem:[%s275] sm:$0xff]
        %v360 = vld [vmem:[%s275 + $0x8] sm:$0xff]
        %v361 = vld [vmem:[%s275 + $0x10] sm:$0xff]
        %v362 = vld [vmem:[%s275 + $0x18] sm:$0xff]
        %v363 = vld [vmem:[%s275 + $0x20] sm:$0xff]
        %v364 = vld [vmem:[%s275 + $0x28] sm:$0xff]
        %v365 = vld [vmem:[%s275 + $0x30] sm:$0xff]
        %v366 = vld [vmem:[%s275 + $0x38] sm:$0xff]
        %v367 = vld [vmem:[%s275 + $0x40] sm:$0xff]
        %v368 = vld [vmem:[%s275 + $0x48] sm:$0xff]
        %v369 = vld [vmem:[%s275 + $0x50] sm:$0xff]
        %v370 = vld [vmem:[%s275 + $0x58] sm:$0xff]
        %v371 = vld [vmem:[%s275 + $0x60] sm:$0xff]
        %v372 = vld [vmem:[%s275 + $0x68] sm:$0xff]
        %v373 = vld [vmem:[%s275 + $0x70] sm:$0xff]
        %v374 = vld [vmem:[%s275 + $0x78] sm:$0xff]
        %v375 = vld [vmem:[%s275 + $0x80] sm:$0xff]
        %v376 = vld [vmem:[%s275 + $0x88] sm:$0xff]
        %v377 = vld [vmem:[%s275 + $0x90] sm:$0xff]
        %v378 = vld [vmem:[%s275 + $0x98] sm:$0xff]
        %v379 = vld [vmem:[%s275 + $0xa0] sm:$0xff]
        %v380 = vld [vmem:[%s275 + $0xa8] sm:$0xff]
        %v381 = vld [vmem:[%s275 + $0xb0] sm:$0xff]
        %v382 = vld [vmem:[%s275 + $0xb8] sm:$0xff]
        %v383 = vld [vmem:[%s275 + $0xc0] sm:$0xff]
        %v384 = vld [vmem:[%s275 + $0xc8] sm:$0xff]
        %v385 = vld [vmem:[%s275 + $0xd0] sm:$0xff]
        %v386 = vld [vmem:[%s275 + $0xd8] sm:$0xff]
        %v387 = vld [vmem:[%s275 + $0xe0] sm:$0xff]
        %v388 = vld [vmem:[%s275 + $0xe8] sm:$0xff]
        %v389 = vld [vmem:[%s275 + $0xf0] sm:$0xff]
        %v390 = vld [vmem:[%s275 + $0xf8] sm:$0xff]
        %v391 = vld [vmem:[%s275 + $0x100] sm:$0xff]
        %v392 = vld [vmem:[%s275 + $0x108] sm:$0xff]
        %v393 = vld [vmem:[%s275 + $0x110] sm:$0xff]
        %v394 = vld [vmem:[%s275 + $0x118] sm:$0xff]
        %v395 = vld [vmem:[%s275 + $0x120] sm:$0xff]
        %v396 = vld [vmem:[%s275 + $0x128] sm:$0xff]
        %v397 = vld [vmem:[%s275 + $0x130] sm:$0xff]
        %v398 = vld [vmem:[%s275 + $0x138] sm:$0xff]
        %v399 = vld [vmem:[%s275 + $0x140] sm:$0xff]
        %v400 = vld [vmem:[%s275 + $0x148] sm:$0xff]
        %v401 = vld [vmem:[%s275 + $0x150] sm:$0xff]
        %v402 = vld [vmem:[%s275 + $0x158] sm:$0xff]
        %v403 = vld [vmem:[%s275 + $0x160] sm:$0xff]
        %v404 = vld [vmem:[%s275 + $0x168] sm:$0xff]
        %v405 = vld [vmem:[%s275 + $0x170] sm:$0xff]
        %v406 = vld [vmem:[%s275 + $0x178] sm:$0xff]
        %v407 = vld [vmem:[%s275 + $0x180] sm:$0xff]
        %v408 = vld [vmem:[%s275 + $0x188] sm:$0xff]
        %v409 = vld [vmem:[%s275 + $0x190] sm:$0xff]
        %v410 = vld [vmem:[%s275 + $0x198] sm:$0xff]
        %v411 = vld [vmem:[%s275 + $0x1a0] sm:$0xff]
        %v412 = vld [vmem:[%s275 + $0x1a8] sm:$0xff]
        %v413 = vld [vmem:[%s275 + $0x1b0] sm:$0xff]
        %v414 = vld [vmem:[%s275 + $0x1b8] sm:$0xff]
        %v415 = vld [vmem:[%s275 + $0x1c0] sm:$0xff]
        %v416 = vld [vmem:[%s275 + $0x1c8] sm:$0xff]
        %v417 = vld [vmem:[%s275 + $0x1d0] sm:$0xff]
        %v418 = vld [vmem:[%s275 + $0x1d8] sm:$0xff]
        %v419 = vld [vmem:[%s275 + $0x1e0] sm:$0xff]
        %v420 = vld [vmem:[%s275 + $0x1e8] sm:$0xff]
        %v421 = vld [vmem:[%s275 + $0x1f0] sm:$0xff]
        %v422 = vld [vmem:[%s275 + $0x1f8] sm:$0xff]
        %v423 = vlaneseq
        %v424 = vand.u32 %v423, 127
        %425 = vset.pattern.permute.xlu0 0
        %426 = vperm.xlu0 %425, %v295
        %v427 = vpop.permute.xlu0 %426
        %428 = vset.pattern.permute.xlu0 0
        %429 = vperm.xlu0 %428, %v296
        %v430 = vpop.permute.xlu0 %429
        %431 = vset.pattern.permute.xlu0 0
        %432 = vperm.xlu0 %431, %v297
        %v433 = vpop.permute.xlu0 %432
        %434 = vset.pattern.permute.xlu0 0
        %435 = vperm.xlu0 %434, %v298
        %v436 = vpop.permute.xlu0 %435
        %437 = vset.pattern.permute.xlu0 0
        %438 = vperm.xlu0 %437, %v299
        %v439 = vpop.permute.xlu0 %438
        %440 = vset.pattern.permute.xlu0 0
        %441 = vperm.xlu0 %440, %v300
        %v442 = vpop.permute.xlu0 %441
        %443 = vset.pattern.permute.xlu0 0
        %444 = vperm.xlu0 %443, %v301
        %v445 = vpop.permute.xlu0 %444
        %446 = vset.pattern.permute.xlu0 0
        %447 = vperm.xlu0 %446, %v302
        %v448 = vpop.permute.xlu0 %447
        %449 = vset.pattern.permute.xlu0 0
        %450 = vperm.xlu0 %449, %v303
        %v451 = vpop.permute.xlu0 %450
        %452 = vset.pattern.permute.xlu0 0
        %453 = vperm.xlu0 %452, %v304
        %v454 = vpop.permute.xlu0 %453
        %455 = vset.pattern.permute.xlu0 0
        %456 = vperm.xlu0 %455, %v305
        %v457 = vpop.permute.xlu0 %456
        %458 = vset.pattern.permute.xlu0 0
        %459 = vperm.xlu0 %458, %v306
        %v460 = vpop.permute.xlu0 %459
        %461 = vset.pattern.permute.xlu0 0
        %462 = vperm.xlu0 %461, %v307
        %v463 = vpop.permute.xlu0 %462
        %464 = vset.pattern.permute.xlu0 0
        %465 = vperm.xlu0 %464, %v308
        %v466 = vpop.permute.xlu0 %465
        %467 = vset.pattern.permute.xlu0 0
        %468 = vperm.xlu0 %467, %v309
        %v469 = vpop.permute.xlu0 %468
        %470 = vset.pattern.permute.xlu0 0
        %471 = vperm.xlu0 %470, %v310
        %v472 = vpop.permute.xlu0 %471
        %473 = vset.pattern.permute.xlu0 0
        %474 = vperm.xlu0 %473, %v311
        %v475 = vpop.permute.xlu0 %474
        %476 = vset.pattern.permute.xlu0 0
        %477 = vperm.xlu0 %476, %v312
        %v478 = vpop.permute.xlu0 %477
        %479 = vset.pattern.permute.xlu0 0
        %480 = vperm.xlu0 %479, %v313
        %v481 = vpop.permute.xlu0 %480
        %482 = vset.pattern.permute.xlu0 0
        %483 = vperm.xlu0 %482, %v314
        %v484 = vpop.permute.xlu0 %483
        %485 = vset.pattern.permute.xlu0 0
        %486 = vperm.xlu0 %485, %v315
        %v487 = vpop.permute.xlu0 %486
        %488 = vset.pattern.permute.xlu0 0
        %489 = vperm.xlu0 %488, %v316
        %v490 = vpop.permute.xlu0 %489
        %491 = vset.pattern.permute.xlu0 0
        %492 = vperm.xlu0 %491, %v317
        %v493 = vpop.permute.xlu0 %492
        %494 = vset.pattern.permute.xlu0 0
        %495 = vperm.xlu0 %494, %v318
        %v496 = vpop.permute.xlu0 %495
        %497 = vset.pattern.permute.xlu0 0
        %498 = vperm.xlu0 %497, %v319
        %v499 = vpop.permute.xlu0 %498
        %500 = vset.pattern.permute.xlu0 0
        %501 = vperm.xlu0 %500, %v320
        %v502 = vpop.permute.xlu0 %501
        %503 = vset.pattern.permute.xlu0 0
        %504 = vperm.xlu0 %503, %v321
        %v505 = vpop.permute.xlu0 %504
        %506 = vset.pattern.permute.xlu0 0
        %507 = vperm.xlu0 %506, %v322
        %v508 = vpop.permute.xlu0 %507
        %509 = vset.pattern.permute.xlu0 0
        %510 = vperm.xlu0 %509, %v323
        %v511 = vpop.permute.xlu0 %510
        %512 = vset.pattern.permute.xlu0 0
        %513 = vperm.xlu0 %512, %v324
        %v514 = vpop.permute.xlu0 %513
        %515 = vset.pattern.permute.xlu0 0
        %516 = vperm.xlu0 %515, %v325
        %v517 = vpop.permute.xlu0 %516
        %518 = vset.pattern.permute.xlu0 0
        %519 = vperm.xlu0 %518, %v326
        %v520 = vpop.permute.xlu0 %519
        %521 = vset.pattern.permute.xlu0 0
        %522 = vperm.xlu0 %521, %v327
        %v523 = vpop.permute.xlu0 %522
        %524 = vset.pattern.permute.xlu0 0
        %525 = vperm.xlu0 %524, %v328
        %v526 = vpop.permute.xlu0 %525
        %527 = vset.pattern.permute.xlu0 0
        %528 = vperm.xlu0 %527, %v329
        %v529 = vpop.permute.xlu0 %528
        %530 = vset.pattern.permute.xlu0 0
        %531 = vperm.xlu0 %530, %v330
        %v532 = vpop.permute.xlu0 %531
        %533 = vset.pattern.permute.xlu0 0
        %534 = vperm.xlu0 %533, %v331
        %v535 = vpop.permute.xlu0 %534
        %536 = vset.pattern.permute.xlu0 0
        %537 = vperm.xlu0 %536, %v332
        %v538 = vpop.permute.xlu0 %537
        %539 = vset.pattern.permute.xlu0 0
        %540 = vperm.xlu0 %539, %v333
        %v541 = vpop.permute.xlu0 %540
        %542 = vset.pattern.permute.xlu0 0
        %543 = vperm.xlu0 %542, %v334
        %v544 = vpop.permute.xlu0 %543
        %545 = vset.pattern.permute.xlu0 0
        %546 = vperm.xlu0 %545, %v335
        %v547 = vpop.permute.xlu0 %546
        %548 = vset.pattern.permute.xlu0 0
        %549 = vperm.xlu0 %548, %v336
        %v550 = vpop.permute.xlu0 %549
        %551 = vset.pattern.permute.xlu0 0
        %552 = vperm.xlu0 %551, %v337
        %v553 = vpop.permute.xlu0 %552
        %554 = vset.pattern.permute.xlu0 0
        %555 = vperm.xlu0 %554, %v338
        %v556 = vpop.permute.xlu0 %555
        %557 = vset.pattern.permute.xlu0 0
        %558 = vperm.xlu0 %557, %v339
        %v559 = vpop.permute.xlu0 %558
        %560 = vset.pattern.permute.xlu0 0
        %561 = vperm.xlu0 %560, %v340
        %v562 = vpop.permute.xlu0 %561
        %563 = vset.pattern.permute.xlu0 0
        %564 = vperm.xlu0 %563, %v341
        %v565 = vpop.permute.xlu0 %564
        %566 = vset.pattern.permute.xlu0 0
        %567 = vperm.xlu0 %566, %v342
        %v568 = vpop.permute.xlu0 %567
        %569 = vset.pattern.permute.xlu0 0
        %570 = vperm.xlu0 %569, %v343
        %v571 = vpop.permute.xlu0 %570
        %572 = vset.pattern.permute.xlu0 0
        %573 = vperm.xlu0 %572, %v344
        %v574 = vpop.permute.xlu0 %573
        %575 = vset.pattern.permute.xlu0 0
        %576 = vperm.xlu0 %575, %v345
        %v577 = vpop.permute.xlu0 %576
        %578 = vset.pattern.permute.xlu0 0
        %579 = vperm.xlu0 %578, %v346
        %v580 = vpop.permute.xlu0 %579
        %581 = vset.pattern.permute.xlu0 0
        %582 = vperm.xlu0 %581, %v347
        %v583 = vpop.permute.xlu0 %582
        %584 = vset.pattern.permute.xlu0 0
        %585 = vperm.xlu0 %584, %v348
        %v586 = vpop.permute.xlu0 %585
        %587 = vset.pattern.permute.xlu0 0
        %588 = vperm.xlu0 %587, %v349
        %v589 = vpop.permute.xlu0 %588
        %590 = vset.pattern.permute.xlu0 0
        %591 = vperm.xlu0 %590, %v350
        %v592 = vpop.permute.xlu0 %591
        %593 = vset.pattern.permute.xlu0 0
        %594 = vperm.xlu0 %593, %v351
        %v595 = vpop.permute.xlu0 %594
        %596 = vset.pattern.permute.xlu0 0
        %597 = vperm.xlu0 %596, %v352
        %v598 = vpop.permute.xlu0 %597
        %599 = vset.pattern.permute.xlu0 0
        %600 = vperm.xlu0 %599, %v353
        %v601 = vpop.permute.xlu0 %600
        %602 = vset.pattern.permute.xlu0 0
        %603 = vperm.xlu0 %602, %v354
        %v604 = vpop.permute.xlu0 %603
        %605 = vset.pattern.permute.xlu0 0
        %606 = vperm.xlu0 %605, %v355
        %v607 = vpop.permute.xlu0 %606
        %608 = vset.pattern.permute.xlu0 0
        %609 = vperm.xlu0 %608, %v356
        %v610 = vpop.permute.xlu0 %609
        %611 = vset.pattern.permute.xlu0 0
        %612 = vperm.xlu0 %611, %v357
        %v613 = vpop.permute.xlu0 %612
        %614 = vset.pattern.permute.xlu0 0
        %615 = vperm.xlu0 %614, %v358
        %v616 = vpop.permute.xlu0 %615
        %vm617 = vcmp.eq.s32.totalorder %v424, %v427
        %vm618 = vcmp.eq.s32.totalorder %v424, %v430
        %vm619 = vcmp.eq.s32.totalorder %v424, %v433
        %vm620 = vcmp.eq.s32.totalorder %v424, %v436
        %vm621 = vcmp.eq.s32.totalorder %v424, %v439
        %vm622 = vcmp.eq.s32.totalorder %v424, %v442
        %vm623 = vcmp.eq.s32.totalorder %v424, %v445
        %vm624 = vcmp.eq.s32.totalorder %v424, %v448
        %vm625 = vcmp.eq.s32.totalorder %v424, %v451
        %vm626 = vcmp.eq.s32.totalorder %v424, %v454
        %vm627 = vcmp.eq.s32.totalorder %v424, %v457
        %vm628 = vcmp.eq.s32.totalorder %v424, %v460
        %vm629 = vcmp.eq.s32.totalorder %v424, %v463
        %vm630 = vcmp.eq.s32.totalorder %v424, %v466
        %vm631 = vcmp.eq.s32.totalorder %v424, %v469
        %vm632 = vcmp.eq.s32.totalorder %v424, %v472
        %vm633 = vcmp.eq.s32.totalorder %v424, %v475
        %vm634 = vcmp.eq.s32.totalorder %v424, %v478
        %vm635 = vcmp.eq.s32.totalorder %v424, %v481
        %vm636 = vcmp.eq.s32.totalorder %v424, %v484
        %vm637 = vcmp.eq.s32.totalorder %v424, %v487
        %vm638 = vcmp.eq.s32.totalorder %v424, %v490
        %vm639 = vcmp.eq.s32.totalorder %v424, %v493
        %vm640 = vcmp.eq.s32.totalorder %v424, %v496
        %vm641 = vcmp.eq.s32.totalorder %v424, %v499
        %vm642 = vcmp.eq.s32.totalorder %v424, %v502
        %vm643 = vcmp.eq.s32.totalorder %v424, %v505
        %vm644 = vcmp.eq.s32.totalorder %v424, %v508
        %vm645 = vcmp.eq.s32.totalorder %v424, %v511
        %vm646 = vcmp.eq.s32.totalorder %v424, %v514
        %vm647 = vcmp.eq.s32.totalorder %v424, %v517
        %vm648 = vcmp.eq.s32.totalorder %v424, %v520
        %vm649 = vcmp.eq.s32.totalorder %v424, %v523
        %vm650 = vcmp.eq.s32.totalorder %v424, %v526
        %vm651 = vcmp.eq.s32.totalorder %v424, %v529
        %vm652 = vcmp.eq.s32.totalorder %v424, %v532
        %vm653 = vcmp.eq.s32.totalorder %v424, %v535
        %vm654 = vcmp.eq.s32.totalorder %v424, %v538
        %vm655 = vcmp.eq.s32.totalorder %v424, %v541
        %vm656 = vcmp.eq.s32.totalorder %v424, %v544
        %vm657 = vcmp.eq.s32.totalorder %v424, %v547
        %vm658 = vcmp.eq.s32.totalorder %v424, %v550
        %vm659 = vcmp.eq.s32.totalorder %v424, %v553
        %vm660 = vcmp.eq.s32.totalorder %v424, %v556
        %vm661 = vcmp.eq.s32.totalorder %v424, %v559
        %vm662 = vcmp.eq.s32.totalorder %v424, %v562
        %vm663 = vcmp.eq.s32.totalorder %v424, %v565
        %vm664 = vcmp.eq.s32.totalorder %v424, %v568
        %vm665 = vcmp.eq.s32.totalorder %v424, %v571
        %vm666 = vcmp.eq.s32.totalorder %v424, %v574
        %vm667 = vcmp.eq.s32.totalorder %v424, %v577
        %vm668 = vcmp.eq.s32.totalorder %v424, %v580
        %vm669 = vcmp.eq.s32.totalorder %v424, %v583
        %vm670 = vcmp.eq.s32.totalorder %v424, %v586
        %vm671 = vcmp.eq.s32.totalorder %v424, %v589
        %vm672 = vcmp.eq.s32.totalorder %v424, %v592
        %vm673 = vcmp.eq.s32.totalorder %v424, %v595
        %vm674 = vcmp.eq.s32.totalorder %v424, %v598
        %vm675 = vcmp.eq.s32.totalorder %v424, %v601
        %vm676 = vcmp.eq.s32.totalorder %v424, %v604
        %vm677 = vcmp.eq.s32.totalorder %v424, %v607
        %vm678 = vcmp.eq.s32.totalorder %v424, %v610
        %vm679 = vcmp.eq.s32.totalorder %v424, %v613
        %vm680 = vcmp.eq.s32.totalorder %v424, %v616
        %v681 = vsel %vm617, 1.0, 0.0
        %v682 = vsel %vm618, 1.0, 0.0
        %v683 = vsel %vm619, 1.0, 0.0
        %v684 = vsel %vm620, 1.0, 0.0
        %v685 = vsel %vm621, 1.0, 0.0
        %v686 = vsel %vm622, 1.0, 0.0
        %v687 = vsel %vm623, 1.0, 0.0
        %v688 = vsel %vm624, 1.0, 0.0
        %v689 = vsel %vm625, 1.0, 0.0
        %v690 = vsel %vm626, 1.0, 0.0
        %v691 = vsel %vm627, 1.0, 0.0
        %v692 = vsel %vm628, 1.0, 0.0
        %v693 = vsel %vm629, 1.0, 0.0
        %v694 = vsel %vm630, 1.0, 0.0
        %v695 = vsel %vm631, 1.0, 0.0
        %v696 = vsel %vm632, 1.0, 0.0
        %v697 = vsel %vm633, 1.0, 0.0
        %v698 = vsel %vm634, 1.0, 0.0
        %v699 = vsel %vm635, 1.0, 0.0
        %v700 = vsel %vm636, 1.0, 0.0
        %v701 = vsel %vm637, 1.0, 0.0
        %v702 = vsel %vm638, 1.0, 0.0
        %v703 = vsel %vm639, 1.0, 0.0
        %v704 = vsel %vm640, 1.0, 0.0
        %v705 = vsel %vm641, 1.0, 0.0
        %v706 = vsel %vm642, 1.0, 0.0
        %v707 = vsel %vm643, 1.0, 0.0
        %v708 = vsel %vm644, 1.0, 0.0
        %v709 = vsel %vm645, 1.0, 0.0
        %v710 = vsel %vm646, 1.0, 0.0
        %v711 = vsel %vm647, 1.0, 0.0
        %v712 = vsel %vm648, 1.0, 0.0
        %v713 = vsel %vm649, 1.0, 0.0
        %v714 = vsel %vm650, 1.0, 0.0
        %v715 = vsel %vm651, 1.0, 0.0
        %v716 = vsel %vm652, 1.0, 0.0
        %v717 = vsel %vm653, 1.0, 0.0
        %v718 = vsel %vm654, 1.0, 0.0
        %v719 = vsel %vm655, 1.0, 0.0
        %v720 = vsel %vm656, 1.0, 0.0
        %v721 = vsel %vm657, 1.0, 0.0
        %v722 = vsel %vm658, 1.0, 0.0
        %v723 = vsel %vm659, 1.0, 0.0
        %v724 = vsel %vm660, 1.0, 0.0
        %v725 = vsel %vm661, 1.0, 0.0
        %v726 = vsel %vm662, 1.0, 0.0
        %v727 = vsel %vm663, 1.0, 0.0
        %v728 = vsel %vm664, 1.0, 0.0
        %v729 = vsel %vm665, 1.0, 0.0
        %v730 = vsel %vm666, 1.0, 0.0
        %v731 = vsel %vm667, 1.0, 0.0
        %v732 = vsel %vm668, 1.0, 0.0
        %v733 = vsel %vm669, 1.0, 0.0
        %v734 = vsel %vm670, 1.0, 0.0
        %v735 = vsel %vm671, 1.0, 0.0
        %v736 = vsel %vm672, 1.0, 0.0
        %v737 = vsel %vm673, 1.0, 0.0
        %v738 = vsel %vm674, 1.0, 0.0
        %v739 = vsel %vm675, 1.0, 0.0
        %v740 = vsel %vm676, 1.0, 0.0
        %v741 = vsel %vm677, 1.0, 0.0
        %v742 = vsel %vm678, 1.0, 0.0
        %v743 = vsel %vm679, 1.0, 0.0
        %v744 = vsel %vm680, 1.0, 0.0
        %v745 = vpack.c.bf16 %v682, %v681
        %v746 = vpack.c.bf16 %v684, %v683
        %v747 = vpack.c.bf16 %v686, %v685
        %v748 = vpack.c.bf16 %v688, %v687
        %v749 = vpack.c.bf16 %v690, %v689
        %v750 = vpack.c.bf16 %v692, %v691
        %v751 = vpack.c.bf16 %v694, %v693
        %v752 = vpack.c.bf16 %v696, %v695
        %v753 = vpack.c.bf16 %v698, %v697
        %v754 = vpack.c.bf16 %v700, %v699
        %v755 = vpack.c.bf16 %v702, %v701
        %v756 = vpack.c.bf16 %v704, %v703
        %v757 = vpack.c.bf16 %v706, %v705
        %v758 = vpack.c.bf16 %v708, %v707
        %v759 = vpack.c.bf16 %v710, %v709
        %v760 = vpack.c.bf16 %v712, %v711
        %v761 = vpack.c.bf16 %v714, %v713
        %v762 = vpack.c.bf16 %v716, %v715
        %v763 = vpack.c.bf16 %v718, %v717
        %v764 = vpack.c.bf16 %v720, %v719
        %v765 = vpack.c.bf16 %v722, %v721
        %v766 = vpack.c.bf16 %v724, %v723
        %v767 = vpack.c.bf16 %v726, %v725
        %v768 = vpack.c.bf16 %v728, %v727
        %v769 = vpack.c.bf16 %v730, %v729
        %v770 = vpack.c.bf16 %v732, %v731
        %v771 = vpack.c.bf16 %v734, %v733
        %v772 = vpack.c.bf16 %v736, %v735
        %v773 = vpack.c.bf16 %v738, %v737
        %v774 = vpack.c.bf16 %v740, %v739
        %v775 = vpack.c.bf16 %v742, %v741
        %v776 = vpack.c.bf16 %v744, %v743
        %777 = vset.pattern.permute.xlu0 0
        %778 = vperm.xlu0 %777, %v359
        %v779 = vpop.permute.xlu0 %778
        %780 = vset.pattern.permute.xlu0 0
        %781 = vperm.xlu0 %780, %v360
        %v782 = vpop.permute.xlu0 %781
        %783 = vset.pattern.permute.xlu0 0
        %784 = vperm.xlu0 %783, %v361
        %v785 = vpop.permute.xlu0 %784
        %786 = vset.pattern.permute.xlu0 0
        %787 = vperm.xlu0 %786, %v362
        %v788 = vpop.permute.xlu0 %787
        %789 = vset.pattern.permute.xlu0 0
        %790 = vperm.xlu0 %789, %v363
        %v791 = vpop.permute.xlu0 %790
        %792 = vset.pattern.permute.xlu0 0
        %793 = vperm.xlu0 %792, %v364
        %v794 = vpop.permute.xlu0 %793
        %795 = vset.pattern.permute.xlu0 0
        %796 = vperm.xlu0 %795, %v365
        %v797 = vpop.permute.xlu0 %796
        %798 = vset.pattern.permute.xlu0 0
        %799 = vperm.xlu0 %798, %v366
        %v800 = vpop.permute.xlu0 %799
        %801 = vset.pattern.permute.xlu0 0
        %802 = vperm.xlu0 %801, %v367
        %v803 = vpop.permute.xlu0 %802
        %804 = vset.pattern.permute.xlu0 0
        %805 = vperm.xlu0 %804, %v368
        %v806 = vpop.permute.xlu0 %805
        %807 = vset.pattern.permute.xlu0 0
        %808 = vperm.xlu0 %807, %v369
        %v809 = vpop.permute.xlu0 %808
        %810 = vset.pattern.permute.xlu0 0
        %811 = vperm.xlu0 %810, %v370
        %v812 = vpop.permute.xlu0 %811
        %813 = vset.pattern.permute.xlu0 0
        %814 = vperm.xlu0 %813, %v371
        %v815 = vpop.permute.xlu0 %814
        %816 = vset.pattern.permute.xlu0 0
        %817 = vperm.xlu0 %816, %v372
        %v818 = vpop.permute.xlu0 %817
        %819 = vset.pattern.permute.xlu0 0
        %820 = vperm.xlu0 %819, %v373
        %v821 = vpop.permute.xlu0 %820
        %822 = vset.pattern.permute.xlu0 0
        %823 = vperm.xlu0 %822, %v374
        %v824 = vpop.permute.xlu0 %823
        %825 = vset.pattern.permute.xlu0 0
        %826 = vperm.xlu0 %825, %v375
        %v827 = vpop.permute.xlu0 %826
        %828 = vset.pattern.permute.xlu0 0
        %829 = vperm.xlu0 %828, %v376
        %v830 = vpop.permute.xlu0 %829
        %831 = vset.pattern.permute.xlu0 0
        %832 = vperm.xlu0 %831, %v377
        %v833 = vpop.permute.xlu0 %832
        %834 = vset.pattern.permute.xlu0 0
        %835 = vperm.xlu0 %834, %v378
        %v836 = vpop.permute.xlu0 %835
        %837 = vset.pattern.permute.xlu0 0
        %838 = vperm.xlu0 %837, %v379
        %v839 = vpop.permute.xlu0 %838
        %840 = vset.pattern.permute.xlu0 0
        %841 = vperm.xlu0 %840, %v380
        %v842 = vpop.permute.xlu0 %841
        %843 = vset.pattern.permute.xlu0 0
        %844 = vperm.xlu0 %843, %v381
        %v845 = vpop.permute.xlu0 %844
        %846 = vset.pattern.permute.xlu0 0
        %847 = vperm.xlu0 %846, %v382
        %v848 = vpop.permute.xlu0 %847
        %849 = vset.pattern.permute.xlu0 0
        %850 = vperm.xlu0 %849, %v383
        %v851 = vpop.permute.xlu0 %850
        %852 = vset.pattern.permute.xlu0 0
        %853 = vperm.xlu0 %852, %v384
        %v854 = vpop.permute.xlu0 %853
        %855 = vset.pattern.permute.xlu0 0
        %856 = vperm.xlu0 %855, %v385
        %v857 = vpop.permute.xlu0 %856
        %858 = vset.pattern.permute.xlu0 0
        %859 = vperm.xlu0 %858, %v386
        %v860 = vpop.permute.xlu0 %859
        %861 = vset.pattern.permute.xlu0 0
        %862 = vperm.xlu0 %861, %v387
        %v863 = vpop.permute.xlu0 %862
        %864 = vset.pattern.permute.xlu0 0
        %865 = vperm.xlu0 %864, %v388
        %v866 = vpop.permute.xlu0 %865
        %867 = vset.pattern.permute.xlu0 0
        %868 = vperm.xlu0 %867, %v389
        %v869 = vpop.permute.xlu0 %868
        %870 = vset.pattern.permute.xlu0 0
        %871 = vperm.xlu0 %870, %v390
        %v872 = vpop.permute.xlu0 %871
        %873 = vset.pattern.permute.xlu0 0
        %874 = vperm.xlu0 %873, %v391
        %v875 = vpop.permute.xlu0 %874
        %876 = vset.pattern.permute.xlu0 0
        %877 = vperm.xlu0 %876, %v392
        %v878 = vpop.permute.xlu0 %877
        %879 = vset.pattern.permute.xlu0 0
        %880 = vperm.xlu0 %879, %v393
        %v881 = vpop.permute.xlu0 %880
        %882 = vset.pattern.permute.xlu0 0
        %883 = vperm.xlu0 %882, %v394
        %v884 = vpop.permute.xlu0 %883
        %885 = vset.pattern.permute.xlu0 0
        %886 = vperm.xlu0 %885, %v395
        %v887 = vpop.permute.xlu0 %886
        %888 = vset.pattern.permute.xlu0 0
        %889 = vperm.xlu0 %888, %v396
        %v890 = vpop.permute.xlu0 %889
        %891 = vset.pattern.permute.xlu0 0
        %892 = vperm.xlu0 %891, %v397
        %v893 = vpop.permute.xlu0 %892
        %894 = vset.pattern.permute.xlu0 0
        %895 = vperm.xlu0 %894, %v398
        %v896 = vpop.permute.xlu0 %895
        %897 = vset.pattern.permute.xlu0 0
        %898 = vperm.xlu0 %897, %v399
        %v899 = vpop.permute.xlu0 %898
        %900 = vset.pattern.permute.xlu0 0
        %901 = vperm.xlu0 %900, %v400
        %v902 = vpop.permute.xlu0 %901
        %903 = vset.pattern.permute.xlu0 0
        %904 = vperm.xlu0 %903, %v401
        %v905 = vpop.permute.xlu0 %904
        %906 = vset.pattern.permute.xlu0 0
        %907 = vperm.xlu0 %906, %v402
        %v908 = vpop.permute.xlu0 %907
        %909 = vset.pattern.permute.xlu0 0
        %910 = vperm.xlu0 %909, %v403
        %v911 = vpop.permute.xlu0 %910
        %912 = vset.pattern.permute.xlu0 0
        %913 = vperm.xlu0 %912, %v404
        %v914 = vpop.permute.xlu0 %913
        %915 = vset.pattern.permute.xlu0 0
        %916 = vperm.xlu0 %915, %v405
        %v917 = vpop.permute.xlu0 %916
        %918 = vset.pattern.permute.xlu0 0
        %919 = vperm.xlu0 %918, %v406
        %v920 = vpop.permute.xlu0 %919
        %921 = vset.pattern.permute.xlu0 0
        %922 = vperm.xlu0 %921, %v407
        %v923 = vpop.permute.xlu0 %922
        %924 = vset.pattern.permute.xlu0 0
        %925 = vperm.xlu0 %924, %v408
        %v926 = vpop.permute.xlu0 %925
        %927 = vset.pattern.permute.xlu0 0
        %928 = vperm.xlu0 %927, %v409
        %v929 = vpop.permute.xlu0 %928
        %930 = vset.pattern.permute.xlu0 0
        %931 = vperm.xlu0 %930, %v410
        %v932 = vpop.permute.xlu0 %931
        %933 = vset.pattern.permute.xlu0 0
        %934 = vperm.xlu0 %933, %v411
        %v935 = vpop.permute.xlu0 %934
        %936 = vset.pattern.permute.xlu0 0
        %937 = vperm.xlu0 %936, %v412
        %v938 = vpop.permute.xlu0 %937
        %939 = vset.pattern.permute.xlu0 0
        %940 = vperm.xlu0 %939, %v413
        %v941 = vpop.permute.xlu0 %940
        %942 = vset.pattern.permute.xlu0 0
        %943 = vperm.xlu0 %942, %v414
        %v944 = vpop.permute.xlu0 %943
        %945 = vset.pattern.permute.xlu0 0
        %946 = vperm.xlu0 %945, %v415
        %v947 = vpop.permute.xlu0 %946
        %948 = vset.pattern.permute.xlu0 0
        %949 = vperm.xlu0 %948, %v416
        %v950 = vpop.permute.xlu0 %949
        %951 = vset.pattern.permute.xlu0 0
        %952 = vperm.xlu0 %951, %v417
        %v953 = vpop.permute.xlu0 %952
        %954 = vset.pattern.permute.xlu0 0
        %955 = vperm.xlu0 %954, %v418
        %v956 = vpop.permute.xlu0 %955
        %957 = vset.pattern.permute.xlu0 0
        %958 = vperm.xlu0 %957, %v419
        %v959 = vpop.permute.xlu0 %958
        %960 = vset.pattern.permute.xlu0 0
        %961 = vperm.xlu0 %960, %v420
        %v962 = vpop.permute.xlu0 %961
        %963 = vset.pattern.permute.xlu0 0
        %964 = vperm.xlu0 %963, %v421
        %v965 = vpop.permute.xlu0 %964
        %966 = vset.pattern.permute.xlu0 0
        %967 = vperm.xlu0 %966, %v422
        %v968 = vpop.permute.xlu0 %967
        %vm969 = vcmp.eq.s32.totalorder %v424, %v779
        %vm970 = vcmp.eq.s32.totalorder %v424, %v782
        %vm971 = vcmp.eq.s32.totalorder %v424, %v785
        %vm972 = vcmp.eq.s32.totalorder %v424, %v788
        %vm973 = vcmp.eq.s32.totalorder %v424, %v791
        %vm974 = vcmp.eq.s32.totalorder %v424, %v794
        %vm975 = vcmp.eq.s32.totalorder %v424, %v797
        %vm976 = vcmp.eq.s32.totalorder %v424, %v800
        %vm977 = vcmp.eq.s32.totalorder %v424, %v803
        %vm978 = vcmp.eq.s32.totalorder %v424, %v806
        %vm979 = vcmp.eq.s32.totalorder %v424, %v809
        %vm980 = vcmp.eq.s32.totalorder %v424, %v812
        %vm981 = vcmp.eq.s32.totalorder %v424, %v815
        %vm982 = vcmp.eq.s32.totalorder %v424, %v818
        %vm983 = vcmp.eq.s32.totalorder %v424, %v821
        %vm984 = vcmp.eq.s32.totalorder %v424, %v824
        %vm985 = vcmp.eq.s32.totalorder %v424, %v827
        %vm986 = vcmp.eq.s32.totalorder %v424, %v830
        %vm987 = vcmp.eq.s32.totalorder %v424, %v833
        %vm988 = vcmp.eq.s32.totalorder %v424, %v836
        %vm989 = vcmp.eq.s32.totalorder %v424, %v839
        %vm990 = vcmp.eq.s32.totalorder %v424, %v842
        %vm991 = vcmp.eq.s32.totalorder %v424, %v845
        %vm992 = vcmp.eq.s32.totalorder %v424, %v848
        %vm993 = vcmp.eq.s32.totalorder %v424, %v851
        %vm994 = vcmp.eq.s32.totalorder %v424, %v854
        %vm995 = vcmp.eq.s32.totalorder %v424, %v857
        %vm996 = vcmp.eq.s32.totalorder %v424, %v860
        %vm997 = vcmp.eq.s32.totalorder %v424, %v863
        %vm998 = vcmp.eq.s32.totalorder %v424, %v866
        %vm999 = vcmp.eq.s32.totalorder %v424, %v869
        %vm1000 = vcmp.eq.s32.totalorder %v424, %v872
        %vm1001 = vcmp.eq.s32.totalorder %v424, %v875
        %vm1002 = vcmp.eq.s32.totalorder %v424, %v878
        %vm1003 = vcmp.eq.s32.totalorder %v424, %v881
        %vm1004 = vcmp.eq.s32.totalorder %v424, %v884
        %vm1005 = vcmp.eq.s32.totalorder %v424, %v887
        %vm1006 = vcmp.eq.s32.totalorder %v424, %v890
        %vm1007 = vcmp.eq.s32.totalorder %v424, %v893
        %vm1008 = vcmp.eq.s32.totalorder %v424, %v896
        %vm1009 = vcmp.eq.s32.totalorder %v424, %v899
        %vm1010 = vcmp.eq.s32.totalorder %v424, %v902
        %vm1011 = vcmp.eq.s32.totalorder %v424, %v905
        %vm1012 = vcmp.eq.s32.totalorder %v424, %v908
        %vm1013 = vcmp.eq.s32.totalorder %v424, %v911
        %vm1014 = vcmp.eq.s32.totalorder %v424, %v914
        %vm1015 = vcmp.eq.s32.totalorder %v424, %v917
        %vm1016 = vcmp.eq.s32.totalorder %v424, %v920
        %vm1017 = vcmp.eq.s32.totalorder %v424, %v923
        %vm1018 = vcmp.eq.s32.totalorder %v424, %v926
        %vm1019 = vcmp.eq.s32.totalorder %v424, %v929
        %vm1020 = vcmp.eq.s32.totalorder %v424, %v932
        %vm1021 = vcmp.eq.s32.totalorder %v424, %v935
        %vm1022 = vcmp.eq.s32.totalorder %v424, %v938
        %vm1023 = vcmp.eq.s32.totalorder %v424, %v941
        %vm1024 = vcmp.eq.s32.totalorder %v424, %v944
        %vm1025 = vcmp.eq.s32.totalorder %v424, %v947
        %vm1026 = vcmp.eq.s32.totalorder %v424, %v950
        %vm1027 = vcmp.eq.s32.totalorder %v424, %v953
        %vm1028 = vcmp.eq.s32.totalorder %v424, %v956
        %vm1029 = vcmp.eq.s32.totalorder %v424, %v959
        %vm1030 = vcmp.eq.s32.totalorder %v424, %v962
        %vm1031 = vcmp.eq.s32.totalorder %v424, %v965
        %vm1032 = vcmp.eq.s32.totalorder %v424, %v968
        %v1033 = vsel %vm969, 1.0, 0.0
        %v1034 = vsel %vm970, 1.0, 0.0
        %v1035 = vsel %vm971, 1.0, 0.0
        %v1036 = vsel %vm972, 1.0, 0.0
        %v1037 = vsel %vm973, 1.0, 0.0
        %v1038 = vsel %vm974, 1.0, 0.0
        %v1039 = vsel %vm975, 1.0, 0.0
        %v1040 = vsel %vm976, 1.0, 0.0
        %v1041 = vsel %vm977, 1.0, 0.0
        %v1042 = vsel %vm978, 1.0, 0.0
        %v1043 = vsel %vm979, 1.0, 0.0
        %v1044 = vsel %vm980, 1.0, 0.0
        %v1045 = vsel %vm981, 1.0, 0.0
        %v1046 = vsel %vm982, 1.0, 0.0
        %v1047 = vsel %vm983, 1.0, 0.0
        %v1048 = vsel %vm984, 1.0, 0.0
        %v1049 = vsel %vm985, 1.0, 0.0
        %v1050 = vsel %vm986, 1.0, 0.0
        %v1051 = vsel %vm987, 1.0, 0.0
        %v1052 = vsel %vm988, 1.0, 0.0
        %v1053 = vsel %vm989, 1.0, 0.0
        %v1054 = vsel %vm990, 1.0, 0.0
        %v1055 = vsel %vm991, 1.0, 0.0
        %v1056 = vsel %vm992, 1.0, 0.0
        %v1057 = vsel %vm993, 1.0, 0.0
        %v1058 = vsel %vm994, 1.0, 0.0
        %v1059 = vsel %vm995, 1.0, 0.0
        %v1060 = vsel %vm996, 1.0, 0.0
        %v1061 = vsel %vm997, 1.0, 0.0
        %v1062 = vsel %vm998, 1.0, 0.0
        %v1063 = vsel %vm999, 1.0, 0.0
        %v1064 = vsel %vm1000, 1.0, 0.0
        %v1065 = vsel %vm1001, 1.0, 0.0
        %v1066 = vsel %vm1002, 1.0, 0.0
        %v1067 = vsel %vm1003, 1.0, 0.0
        %v1068 = vsel %vm1004, 1.0, 0.0
        %v1069 = vsel %vm1005, 1.0, 0.0
        %v1070 = vsel %vm1006, 1.0, 0.0
        %v1071 = vsel %vm1007, 1.0, 0.0
        %v1072 = vsel %vm1008, 1.0, 0.0
        %v1073 = vsel %vm1009, 1.0, 0.0
        %v1074 = vsel %vm1010, 1.0, 0.0
        %v1075 = vsel %vm1011, 1.0, 0.0
        %v1076 = vsel %vm1012, 1.0, 0.0
        %v1077 = vsel %vm1013, 1.0, 0.0
        %v1078 = vsel %vm1014, 1.0, 0.0
        %v1079 = vsel %vm1015, 1.0, 0.0
        %v1080 = vsel %vm1016, 1.0, 0.0
        %v1081 = vsel %vm1017, 1.0, 0.0
        %v1082 = vsel %vm1018, 1.0, 0.0
        %v1083 = vsel %vm1019, 1.0, 0.0
        %v1084 = vsel %vm1020, 1.0, 0.0
        %v1085 = vsel %vm1021, 1.0, 0.0
        %v1086 = vsel %vm1022, 1.0, 0.0
        %v1087 = vsel %vm1023, 1.0, 0.0
        %v1088 = vsel %vm1024, 1.0, 0.0
        %v1089 = vsel %vm1025, 1.0, 0.0
        %v1090 = vsel %vm1026, 1.0, 0.0
        %v1091 = vsel %vm1027, 1.0, 0.0
        %v1092 = vsel %vm1028, 1.0, 0.0
        %v1093 = vsel %vm1029, 1.0, 0.0
        %v1094 = vsel %vm1030, 1.0, 0.0
        %v1095 = vsel %vm1031, 1.0, 0.0
        %v1096 = vsel %vm1032, 1.0, 0.0
        %v1097 = vpack.c.bf16 %v1034, %v1033
        %v1098 = vpack.c.bf16 %v1036, %v1035
        %v1099 = vpack.c.bf16 %v1038, %v1037
        %v1100 = vpack.c.bf16 %v1040, %v1039
        %v1101 = vpack.c.bf16 %v1042, %v1041
        %v1102 = vpack.c.bf16 %v1044, %v1043
        %v1103 = vpack.c.bf16 %v1046, %v1045
        %v1104 = vpack.c.bf16 %v1048, %v1047
        %v1105 = vpack.c.bf16 %v1050, %v1049
        %v1106 = vpack.c.bf16 %v1052, %v1051
        %v1107 = vpack.c.bf16 %v1054, %v1053
        %v1108 = vpack.c.bf16 %v1056, %v1055
        %v1109 = vpack.c.bf16 %v1058, %v1057
        %v1110 = vpack.c.bf16 %v1060, %v1059
        %v1111 = vpack.c.bf16 %v1062, %v1061
        %v1112 = vpack.c.bf16 %v1064, %v1063
        %v1113 = vpack.c.bf16 %v1066, %v1065
        %v1114 = vpack.c.bf16 %v1068, %v1067
        %v1115 = vpack.c.bf16 %v1070, %v1069
        %v1116 = vpack.c.bf16 %v1072, %v1071
        %v1117 = vpack.c.bf16 %v1074, %v1073
        %v1118 = vpack.c.bf16 %v1076, %v1075
        %v1119 = vpack.c.bf16 %v1078, %v1077
        %v1120 = vpack.c.bf16 %v1080, %v1079
        %v1121 = vpack.c.bf16 %v1082, %v1081
        %v1122 = vpack.c.bf16 %v1084, %v1083
        %v1123 = vpack.c.bf16 %v1086, %v1085
        %v1124 = vpack.c.bf16 %v1088, %v1087
        %v1125 = vpack.c.bf16 %v1090, %v1089
        %v1126 = vpack.c.bf16 %v1092, %v1091
        %v1127 = vpack.c.bf16 %v1094, %v1093
        %v1128 = vpack.c.bf16 %v1096, %v1095
        %v1129 = vld [vmem:[%s1] sm:$0xf]
        %v1130 = vld [vmem:[%s1 + $0x4] sm:$0xf]
        %v1131 = vld [vmem:[%s1 + $0x8] sm:$0xf]
        %v1132 = vld [vmem:[%s1 + $0xc] sm:$0xf]
        %v1133 = vld [vmem:[%s1 + $0x10] sm:$0xf]
        %v1134 = vld [vmem:[%s1 + $0x14] sm:$0xf]
        %v1135 = vld [vmem:[%s1 + $0x18] sm:$0xf]
        %v1136 = vld [vmem:[%s1 + $0x1c] sm:$0xf]
        %v1137 = vld [vmem:[%s2] sm:$0xf]
        %v1138 = vld [vmem:[%s2 + $0x4] sm:$0xf]
        %v1139 = vld [vmem:[%s2 + $0x8] sm:$0xf]
        %v1140 = vld [vmem:[%s2 + $0xc] sm:$0xf]
        %v1141 = vld [vmem:[%s2 + $0x10] sm:$0xf]
        %v1142 = vld [vmem:[%s2 + $0x14] sm:$0xf]
        %v1143 = vld [vmem:[%s2 + $0x18] sm:$0xf]
        %v1144 = vld [vmem:[%s2 + $0x1c] sm:$0xf]
        %v1153 = vunpack.c.l.b16 %v1137
        %v1154 = vunpack.c.l.b16 %v1138
        %v1155 = vunpack.c.l.b16 %v1139
        %v1156 = vunpack.c.l.b16 %v1140
        %v1157 = vunpack.c.l.b16 %v1141
        %v1158 = vunpack.c.l.b16 %v1142
        %v1159 = vunpack.c.l.b16 %v1143
        %v1160 = vunpack.c.l.b16 %v1144
        %v1161 = vpack.c.b16 %v1154, %v1153
        %v1162 = vpack.c.b16 %v1156, %v1155
        %v1163 = vpack.c.b16 %v1158, %v1157
        %v1164 = vpack.c.b16 %v1160, %v1159
        %vm1169 = vcmask 523264
        %v1171 = vsel %vm1169, %v1097, 0
        %v1174 = vsel %vm1169, %v1098, 0
        %v1177 = vsel %vm1169, %v1099, 0
        %v1180 = vsel %vm1169, %v1100, 0
        %v1183 = vsel %vm1169, %v1101, 0
        %v1186 = vsel %vm1169, %v1102, 0
        %v1189 = vsel %vm1169, %v1103, 0
        %v1192 = vsel %vm1169, %v1104, 0
        %v1195 = vsel %vm1169, %v1105, 0
        %v1198 = vsel %vm1169, %v1106, 0
        %v1201 = vsel %vm1169, %v1107, 0
        %v1204 = vsel %vm1169, %v1108, 0
        %v1207 = vsel %vm1169, %v1109, 0
        %v1210 = vsel %vm1169, %v1110, 0
        %v1213 = vsel %vm1169, %v1111, 0
        %v1216 = vsel %vm1169, %v1112, 0
        %v1219 = vsel %vm1169, %v1113, 0
        %v1222 = vsel %vm1169, %v1114, 0
        %v1225 = vsel %vm1169, %v1115, 0
        %v1228 = vsel %vm1169, %v1116, 0
        %v1231 = vsel %vm1169, %v1117, 0
        %v1234 = vsel %vm1169, %v1118, 0
        %v1237 = vsel %vm1169, %v1119, 0
        %v1240 = vsel %vm1169, %v1120, 0
        %v1243 = vsel %vm1169, %v1121, 0
        %v1246 = vsel %vm1169, %v1122, 0
        %v1249 = vsel %vm1169, %v1123, 0
        %v1252 = vsel %vm1169, %v1124, 0
        %v1255 = vsel %vm1169, %v1125, 0
        %v1258 = vsel %vm1169, %v1126, 0
        %v1261 = vsel %vm1169, %v1127, 0
        %v1264 = vsel %vm1169, %v1128, 0
        %1266 = vmatprep.subr.bf16.mxu0 0
        %1267 = vmatpush1.bf16.msra.mxu0 0
        %1268 = vmatprep.subr.bf16.mxu0 0
        %1269 = vmatpush1.bf16.msra.mxu0 0
        %1270 = vmatprep.subr.bf16.mxu0 0
        %1271 = vmatpush1.bf16.msra.mxu0 0
        %1272 = vmatprep.subr.bf16.mxu0 0
        %1273 = vmatpush1.bf16.msra.mxu0 0
        %1274 = vmatprep.subr.bf16.mxu0 0
        %1275 = vmatpush1.bf16.msra.mxu0 %v1164
        %1276 = vmatprep.subr.bf16.mxu0 0
        %1277 = vmatpush1.bf16.msra.mxu0 %v1163
        %1278 = vmatprep.subr.bf16.mxu0 0
        %1279 = vmatpush1.bf16.msra.mxu0 %v1162
        %1280 = vmatprep.subr.bf16.mxu0 0
        %1281 = vmatpush1.bf16.msra.mxu0 %v1161
        %1282 = vmatprep.subr.bf16.mxu0 0
        %1283 = vmatpush2.bf16.msra.mxu0 0
        %1284 = vmatprep.subr.bf16.mxu0 0
        %1285 = vmatpush2.bf16.msra.mxu0 0
        %1286 = vmatprep.subr.bf16.mxu0 0
        %1287 = vmatpush2.bf16.msra.mxu0 0
        %1288 = vmatprep.subr.bf16.mxu0 0
        %1289 = vmatpush2.bf16.msra.mxu0 0
        %1290 = vmatprep.subr.bf16.mxu0 0
        %1291 = vmatpush2.bf16.msra.mxu0 0
        %1292 = vmatprep.subr.bf16.mxu0 0
        %1293 = vmatpush2.bf16.msra.mxu0 0
        %1294 = vmatprep.subr.bf16.mxu0 0
        %1295 = vmatpush2.bf16.msra.mxu0 0
        %1296 = vmatprep.subr.bf16.mxu0 0
        %1297 = vmatpush2.bf16.msra.mxu0 0
        %1298 = vmatprep.mubr.bf16.mxu0 0
        %1299 = vmatmul.mubr.bf16.gmra.mxu0 %v1171
        %v1300 = vpop.f32.mrf.mxu0
        %v1301 = vadd.f32 0.0, %v1300
        %v1302 = vpop.f32.mrf.mxu0
        %v1303 = vpop.f32.mrf.mxu0
        %v1304 = vadd.f32 0.0, %v1303
        %v1305 = vpop.f32.mrf.mxu0
        %1306 = vmatprep.mubr.bf16.mxu0 0
        %1307 = vmatmul.mubr.bf16.gmra.mxu0 %v1174
        %v1308 = vpop.f32.mrf.mxu0
        %v1309 = vadd.f32 0.0, %v1308
        %v1310 = vpop.f32.mrf.mxu0
        %v1311 = vpop.f32.mrf.mxu0
        %v1312 = vadd.f32 0.0, %v1311
        %v1313 = vpop.f32.mrf.mxu0
        %1314 = vmatprep.mubr.bf16.mxu0 0
        %1315 = vmatmul.mubr.bf16.gmra.mxu0 %v1177
        %v1316 = vpop.f32.mrf.mxu0
        %v1317 = vadd.f32 0.0, %v1316
        %v1318 = vpop.f32.mrf.mxu0
        %v1319 = vpop.f32.mrf.mxu0
        %v1320 = vadd.f32 0.0, %v1319
        %v1321 = vpop.f32.mrf.mxu0
        %1322 = vmatprep.mubr.bf16.mxu0 0
        %1323 = vmatmul.mubr.bf16.gmra.mxu0 %v1180
        %v1324 = vpop.f32.mrf.mxu0
        %v1325 = vadd.f32 0.0, %v1324
        %v1326 = vpop.f32.mrf.mxu0
        %v1327 = vpop.f32.mrf.mxu0
        %v1328 = vadd.f32 0.0, %v1327
        %v1329 = vpop.f32.mrf.mxu0
        %1330 = vmatprep.mubr.bf16.mxu0 0
        %1331 = vmatmul.mubr.bf16.gmra.mxu0 %v1183
        %v1332 = vpop.f32.mrf.mxu0
        %v1333 = vadd.f32 0.0, %v1332
        %v1334 = vpop.f32.mrf.mxu0
        %v1335 = vpop.f32.mrf.mxu0
        %v1336 = vadd.f32 0.0, %v1335
        %v1337 = vpop.f32.mrf.mxu0
        %1338 = vmatprep.mubr.bf16.mxu0 0
        %1339 = vmatmul.mubr.bf16.gmra.mxu0 %v1186
        %v1340 = vpop.f32.mrf.mxu0
        %v1341 = vadd.f32 0.0, %v1340
        %v1342 = vpop.f32.mrf.mxu0
        %v1343 = vpop.f32.mrf.mxu0
        %v1344 = vadd.f32 0.0, %v1343
        %v1345 = vpop.f32.mrf.mxu0
        %1346 = vmatprep.mubr.bf16.mxu0 0
        %1347 = vmatmul.mubr.bf16.gmra.mxu0 %v1189
        %v1348 = vpop.f32.mrf.mxu0
        %v1349 = vadd.f32 0.0, %v1348
        %v1350 = vpop.f32.mrf.mxu0
        %v1351 = vpop.f32.mrf.mxu0
        %v1352 = vadd.f32 0.0, %v1351
        %v1353 = vpop.f32.mrf.mxu0
        %1354 = vmatprep.mubr.bf16.mxu0 0
        %1355 = vmatmul.mubr.bf16.gmra.mxu0 %v1192
        %v1356 = vpop.f32.mrf.mxu0
        %v1357 = vadd.f32 0.0, %v1356
        %v1358 = vpop.f32.mrf.mxu0
        %v1359 = vpop.f32.mrf.mxu0
        %v1360 = vadd.f32 0.0, %v1359
        %v1361 = vpop.f32.mrf.mxu0
        %1362 = vmatprep.mubr.bf16.mxu0 0
        %1363 = vmatmul.mubr.bf16.gmra.mxu0 %v1195
        %v1364 = vpop.f32.mrf.mxu0
        %v1365 = vadd.f32 0.0, %v1364
        %v1366 = vpop.f32.mrf.mxu0
        %v1367 = vpop.f32.mrf.mxu0
        %v1368 = vadd.f32 0.0, %v1367
        %v1369 = vpop.f32.mrf.mxu0
        %1370 = vmatprep.mubr.bf16.mxu0 0
        %1371 = vmatmul.mubr.bf16.gmra.mxu0 %v1198
        %v1372 = vpop.f32.mrf.mxu0
        %v1373 = vadd.f32 0.0, %v1372
        %v1374 = vpop.f32.mrf.mxu0
        %v1375 = vpop.f32.mrf.mxu0
        %v1376 = vadd.f32 0.0, %v1375
        %v1377 = vpop.f32.mrf.mxu0
        %1378 = vmatprep.mubr.bf16.mxu0 0
        %1379 = vmatmul.mubr.bf16.gmra.mxu0 %v1201
        %v1380 = vpop.f32.mrf.mxu0
        %v1381 = vadd.f32 0.0, %v1380
        %v1382 = vpop.f32.mrf.mxu0
        %v1383 = vpop.f32.mrf.mxu0
        %v1384 = vadd.f32 0.0, %v1383
        %v1385 = vpop.f32.mrf.mxu0
        %1386 = vmatprep.mubr.bf16.mxu0 0
        %1387 = vmatmul.mubr.bf16.gmra.mxu0 %v1204
        %v1388 = vpop.f32.mrf.mxu0
        %v1389 = vadd.f32 0.0, %v1388
        %v1390 = vpop.f32.mrf.mxu0
        %v1391 = vpop.f32.mrf.mxu0
        %v1392 = vadd.f32 0.0, %v1391
        %v1393 = vpop.f32.mrf.mxu0
        %1394 = vmatprep.mubr.bf16.mxu0 0
        %1395 = vmatmul.mubr.bf16.gmra.mxu0 %v1207
        %v1396 = vpop.f32.mrf.mxu0
        %v1397 = vadd.f32 0.0, %v1396
        %v1398 = vpop.f32.mrf.mxu0
        %v1399 = vpop.f32.mrf.mxu0
        %v1400 = vadd.f32 0.0, %v1399
        %v1401 = vpop.f32.mrf.mxu0
        %1402 = vmatprep.mubr.bf16.mxu0 0
        %1403 = vmatmul.mubr.bf16.gmra.mxu0 %v1210
        %v1404 = vpop.f32.mrf.mxu0
        %v1405 = vadd.f32 0.0, %v1404
        %v1406 = vpop.f32.mrf.mxu0
        %v1407 = vpop.f32.mrf.mxu0
        %v1408 = vadd.f32 0.0, %v1407
        %v1409 = vpop.f32.mrf.mxu0
        %1410 = vmatprep.mubr.bf16.mxu0 0
        %1411 = vmatmul.mubr.bf16.gmra.mxu0 %v1213
        %v1412 = vpop.f32.mrf.mxu0
        %v1413 = vadd.f32 0.0, %v1412
        %v1414 = vpop.f32.mrf.mxu0
        %v1415 = vpop.f32.mrf.mxu0
        %v1416 = vadd.f32 0.0, %v1415
        %v1417 = vpop.f32.mrf.mxu0
        %1418 = vmatprep.mubr.bf16.mxu0 0
        %1419 = vmatmul.mubr.bf16.gmra.mxu0 %v1216
        %v1420 = vpop.f32.mrf.mxu0
        %v1421 = vadd.f32 0.0, %v1420
        %v1422 = vpop.f32.mrf.mxu0
        %v1423 = vpop.f32.mrf.mxu0
        %v1424 = vadd.f32 0.0, %v1423
        %v1425 = vpop.f32.mrf.mxu0
        %1426 = vmatprep.mubr.bf16.mxu0 0
        %1427 = vmatmul.mubr.bf16.gmra.mxu0 %v1219
        %v1428 = vpop.f32.mrf.mxu0
        %v1429 = vadd.f32 0.0, %v1428
        %v1430 = vpop.f32.mrf.mxu0
        %v1431 = vpop.f32.mrf.mxu0
        %v1432 = vadd.f32 0.0, %v1431
        %v1433 = vpop.f32.mrf.mxu0
        %1434 = vmatprep.mubr.bf16.mxu0 0
        %1435 = vmatmul.mubr.bf16.gmra.mxu0 %v1222
        %v1436 = vpop.f32.mrf.mxu0
        %v1437 = vadd.f32 0.0, %v1436
        %v1438 = vpop.f32.mrf.mxu0
        %v1439 = vpop.f32.mrf.mxu0
        %v1440 = vadd.f32 0.0, %v1439
        %v1441 = vpop.f32.mrf.mxu0
        %1442 = vmatprep.mubr.bf16.mxu0 0
        %1443 = vmatmul.mubr.bf16.gmra.mxu0 %v1225
        %v1444 = vpop.f32.mrf.mxu0
        %v1445 = vadd.f32 0.0, %v1444
        %v1446 = vpop.f32.mrf.mxu0
        %v1447 = vpop.f32.mrf.mxu0
        %v1448 = vadd.f32 0.0, %v1447
        %v1449 = vpop.f32.mrf.mxu0
        %1450 = vmatprep.mubr.bf16.mxu0 0
        %1451 = vmatmul.mubr.bf16.gmra.mxu0 %v1228
        %v1452 = vpop.f32.mrf.mxu0
        %v1453 = vadd.f32 0.0, %v1452
        %v1454 = vpop.f32.mrf.mxu0
        %v1455 = vpop.f32.mrf.mxu0
        %v1456 = vadd.f32 0.0, %v1455
        %v1457 = vpop.f32.mrf.mxu0
        %1458 = vmatprep.mubr.bf16.mxu0 0
        %1459 = vmatmul.mubr.bf16.gmra.mxu0 %v1231
        %v1460 = vpop.f32.mrf.mxu0
        %v1461 = vadd.f32 0.0, %v1460
        %v1462 = vpop.f32.mrf.mxu0
        %v1463 = vpop.f32.mrf.mxu0
        %v1464 = vadd.f32 0.0, %v1463
        %v1465 = vpop.f32.mrf.mxu0
        %1466 = vmatprep.mubr.bf16.mxu0 0
        %1467 = vmatmul.mubr.bf16.gmra.mxu0 %v1234
        %v1468 = vpop.f32.mrf.mxu0
        %v1469 = vadd.f32 0.0, %v1468
        %v1470 = vpop.f32.mrf.mxu0
        %v1471 = vpop.f32.mrf.mxu0
        %v1472 = vadd.f32 0.0, %v1471
        %v1473 = vpop.f32.mrf.mxu0
        %1474 = vmatprep.mubr.bf16.mxu0 0
        %1475 = vmatmul.mubr.bf16.gmra.mxu0 %v1237
        %v1476 = vpop.f32.mrf.mxu0
        %v1477 = vadd.f32 0.0, %v1476
        %v1478 = vpop.f32.mrf.mxu0
        %v1479 = vpop.f32.mrf.mxu0
        %v1480 = vadd.f32 0.0, %v1479
        %v1481 = vpop.f32.mrf.mxu0
        %1482 = vmatprep.mubr.bf16.mxu0 0
        %1483 = vmatmul.mubr.bf16.gmra.mxu0 %v1240
        %v1484 = vpop.f32.mrf.mxu0
        %v1485 = vadd.f32 0.0, %v1484
        %v1486 = vpop.f32.mrf.mxu0
        %v1487 = vpop.f32.mrf.mxu0
        %v1488 = vadd.f32 0.0, %v1487
        %v1489 = vpop.f32.mrf.mxu0
        %1490 = vmatprep.mubr.bf16.mxu0 0
        %1491 = vmatmul.mubr.bf16.gmra.mxu0 %v1243
        %v1492 = vpop.f32.mrf.mxu0
        %v1493 = vadd.f32 0.0, %v1492
        %v1494 = vpop.f32.mrf.mxu0
        %v1495 = vpop.f32.mrf.mxu0
        %v1496 = vadd.f32 0.0, %v1495
        %v1497 = vpop.f32.mrf.mxu0
        %1498 = vmatprep.mubr.bf16.mxu0 0
        %1499 = vmatmul.mubr.bf16.gmra.mxu0 %v1246
        %v1500 = vpop.f32.mrf.mxu0
        %v1501 = vadd.f32 0.0, %v1500
        %v1502 = vpop.f32.mrf.mxu0
        %v1503 = vpop.f32.mrf.mxu0
        %v1504 = vadd.f32 0.0, %v1503
        %v1505 = vpop.f32.mrf.mxu0
        %1506 = vmatprep.mubr.bf16.mxu0 0
        %1507 = vmatmul.mubr.bf16.gmra.mxu0 %v1249
        %v1508 = vpop.f32.mrf.mxu0
        %v1509 = vadd.f32 0.0, %v1508
        %v1510 = vpop.f32.mrf.mxu0
        %v1511 = vpop.f32.mrf.mxu0
        %v1512 = vadd.f32 0.0, %v1511
        %v1513 = vpop.f32.mrf.mxu0
        %1514 = vmatprep.mubr.bf16.mxu0 0
        %1515 = vmatmul.mubr.bf16.gmra.mxu0 %v1252
        %v1516 = vpop.f32.mrf.mxu0
        %v1517 = vadd.f32 0.0, %v1516
        %v1518 = vpop.f32.mrf.mxu0
        %v1519 = vpop.f32.mrf.mxu0
        %v1520 = vadd.f32 0.0, %v1519
        %v1521 = vpop.f32.mrf.mxu0
        %1522 = vmatprep.mubr.bf16.mxu0 0
        %1523 = vmatmul.mubr.bf16.gmra.mxu0 %v1255
        %v1524 = vpop.f32.mrf.mxu0
        %v1525 = vadd.f32 0.0, %v1524
        %v1526 = vpop.f32.mrf.mxu0
        %v1527 = vpop.f32.mrf.mxu0
        %v1528 = vadd.f32 0.0, %v1527
        %v1529 = vpop.f32.mrf.mxu0
        %1530 = vmatprep.mubr.bf16.mxu0 0
        %1531 = vmatmul.mubr.bf16.gmra.mxu0 %v1258
        %v1532 = vpop.f32.mrf.mxu0
        %v1533 = vadd.f32 0.0, %v1532
        %v1534 = vpop.f32.mrf.mxu0
        %v1535 = vpop.f32.mrf.mxu0
        %v1536 = vadd.f32 0.0, %v1535
        %v1537 = vpop.f32.mrf.mxu0
        %1538 = vmatprep.mubr.bf16.mxu0 0
        %1539 = vmatmul.mubr.bf16.gmra.mxu0 %v1261
        %v1540 = vpop.f32.mrf.mxu0
        %v1541 = vadd.f32 0.0, %v1540
        %v1542 = vpop.f32.mrf.mxu0
        %v1543 = vpop.f32.mrf.mxu0
        %v1544 = vadd.f32 0.0, %v1543
        %v1545 = vpop.f32.mrf.mxu0
        %1546 = vmatprep.mubr.bf16.mxu0 0
        %1547 = vmatmul.mubr.bf16.gmra.mxu0 %v1264
        %v1548 = vpop.f32.mrf.mxu0
        %v1549 = vadd.f32 0.0, %v1548
        %v1550 = vpop.f32.mrf.mxu0
        %v1551 = vpop.f32.mrf.mxu0
        %v1552 = vadd.f32 0.0, %v1551
        %v1553 = vpop.f32.mrf.mxu0
        %1554 = vdwg.mxu0
        %v1563 = vunpack.c.l.b16 %v1129
        %v1564 = vunpack.c.l.b16 %v1130
        %v1565 = vunpack.c.l.b16 %v1131
        %v1566 = vunpack.c.l.b16 %v1132
        %v1567 = vunpack.c.l.b16 %v1133
        %v1568 = vunpack.c.l.b16 %v1134
        %v1569 = vunpack.c.l.b16 %v1135
        %v1570 = vunpack.c.l.b16 %v1136
        %v1571 = vpack.c.b16 %v1564, %v1563
        %v1572 = vpack.c.b16 %v1566, %v1565
        %v1573 = vpack.c.b16 %v1568, %v1567
        %v1574 = vpack.c.b16 %v1570, %v1569
        %v1580 = vsel %vm1169, %v745, 0
        %v1583 = vsel %vm1169, %v746, 0
        %v1586 = vsel %vm1169, %v747, 0
        %v1589 = vsel %vm1169, %v748, 0
        %v1592 = vsel %vm1169, %v749, 0
        %v1595 = vsel %vm1169, %v750, 0
        %v1598 = vsel %vm1169, %v751, 0
        %v1601 = vsel %vm1169, %v752, 0
        %v1604 = vsel %vm1169, %v753, 0
        %v1607 = vsel %vm1169, %v754, 0
        %v1610 = vsel %vm1169, %v755, 0
        %v1613 = vsel %vm1169, %v756, 0
        %v1616 = vsel %vm1169, %v757, 0
        %v1619 = vsel %vm1169, %v758, 0
        %v1622 = vsel %vm1169, %v759, 0
        %v1625 = vsel %vm1169, %v760, 0
        %v1628 = vsel %vm1169, %v761, 0
        %v1631 = vsel %vm1169, %v762, 0
        %v1634 = vsel %vm1169, %v763, 0
        %v1637 = vsel %vm1169, %v764, 0
        %v1640 = vsel %vm1169, %v765, 0
        %v1643 = vsel %vm1169, %v766, 0
        %v1646 = vsel %vm1169, %v767, 0
        %v1649 = vsel %vm1169, %v768, 0
        %v1652 = vsel %vm1169, %v769, 0
        %v1655 = vsel %vm1169, %v770, 0
        %v1658 = vsel %vm1169, %v771, 0
        %v1661 = vsel %vm1169, %v772, 0
        %v1664 = vsel %vm1169, %v773, 0
        %v1667 = vsel %vm1169, %v774, 0
        %v1670 = vsel %vm1169, %v775, 0
        %v1673 = vsel %vm1169, %v776, 0
        %1675 = vmatprep.subr.bf16.mxu0 0
        %1676 = vmatpush1.bf16.msra.mxu0 0
        %1677 = vmatprep.subr.bf16.mxu0 0
        %1678 = vmatpush1.bf16.msra.mxu0 0
        %1679 = vmatprep.subr.bf16.mxu0 0
        %1680 = vmatpush1.bf16.msra.mxu0 0
        %1681 = vmatprep.subr.bf16.mxu0 0
        %1682 = vmatpush1.bf16.msra.mxu0 0
        %1683 = vmatprep.subr.bf16.mxu0 0
        %1684 = vmatpush1.bf16.msra.mxu0 %v1574
        %1685 = vmatprep.subr.bf16.mxu0 0
        %1686 = vmatpush1.bf16.msra.mxu0 %v1573
        %1687 = vmatprep.subr.bf16.mxu0 0
        %1688 = vmatpush1.bf16.msra.mxu0 %v1572
        %1689 = vmatprep.subr.bf16.mxu0 0
        %1690 = vmatpush1.bf16.msra.mxu0 %v1571
        %1691 = vmatprep.subr.bf16.mxu0 0
        %1692 = vmatpush2.bf16.msra.mxu0 0
        %1693 = vmatprep.subr.bf16.mxu0 0
        %1694 = vmatpush2.bf16.msra.mxu0 0
        %1695 = vmatprep.subr.bf16.mxu0 0
        %1696 = vmatpush2.bf16.msra.mxu0 0
        %1697 = vmatprep.subr.bf16.mxu0 0
        %1698 = vmatpush2.bf16.msra.mxu0 0
        %1699 = vmatprep.subr.bf16.mxu0 0
        %1700 = vmatpush2.bf16.msra.mxu0 0
        %1701 = vmatprep.subr.bf16.mxu0 0
        %1702 = vmatpush2.bf16.msra.mxu0 0
        %1703 = vmatprep.subr.bf16.mxu0 0
        %1704 = vmatpush2.bf16.msra.mxu0 0
        %1705 = vmatprep.subr.bf16.mxu0 0
        %1706 = vmatpush2.bf16.msra.mxu0 0
        %1707 = vmatprep.mubr.bf16.mxu0 0
        %1708 = vmatmul.mubr.bf16.gmra.mxu0 %v1580
        %v1709 = vpop.f32.mrf.mxu0
        %v1710 = vadd.f32 %v1301, %v1709
        %v1711 = vpop.f32.mrf.mxu0
        %v1712 = vpop.f32.mrf.mxu0
        %v1713 = vadd.f32 %v1304, %v1712
        %v1714 = vpop.f32.mrf.mxu0
        %1715 = vmatprep.mubr.bf16.mxu0 0
        %1716 = vmatmul.mubr.bf16.gmra.mxu0 %v1583
        %v1717 = vpop.f32.mrf.mxu0
        %v1718 = vadd.f32 %v1309, %v1717
        %v1719 = vpop.f32.mrf.mxu0
        %v1720 = vpop.f32.mrf.mxu0
        %v1721 = vadd.f32 %v1312, %v1720
        %v1722 = vpop.f32.mrf.mxu0
        %1723 = vmatprep.mubr.bf16.mxu0 0
        %1724 = vmatmul.mubr.bf16.gmra.mxu0 %v1586
        %v1725 = vpop.f32.mrf.mxu0
        %v1726 = vadd.f32 %v1317, %v1725
        %v1727 = vpop.f32.mrf.mxu0
        %v1728 = vpop.f32.mrf.mxu0
        %v1729 = vadd.f32 %v1320, %v1728
        %v1730 = vpop.f32.mrf.mxu0
        %1731 = vmatprep.mubr.bf16.mxu0 0
        %1732 = vmatmul.mubr.bf16.gmra.mxu0 %v1589
        %v1733 = vpop.f32.mrf.mxu0
        %v1734 = vadd.f32 %v1325, %v1733
        %v1735 = vpop.f32.mrf.mxu0
        %v1736 = vpop.f32.mrf.mxu0
        %v1737 = vadd.f32 %v1328, %v1736
        %v1738 = vpop.f32.mrf.mxu0
        %1739 = vmatprep.mubr.bf16.mxu0 0
        %1740 = vmatmul.mubr.bf16.gmra.mxu0 %v1592
        %v1741 = vpop.f32.mrf.mxu0
        %v1742 = vadd.f32 %v1333, %v1741
        %v1743 = vpop.f32.mrf.mxu0
        %v1744 = vpop.f32.mrf.mxu0
        %v1745 = vadd.f32 %v1336, %v1744
        %v1746 = vpop.f32.mrf.mxu0
        %1747 = vmatprep.mubr.bf16.mxu0 0
        %1748 = vmatmul.mubr.bf16.gmra.mxu0 %v1595
        %v1749 = vpop.f32.mrf.mxu0
        %v1750 = vadd.f32 %v1341, %v1749
        %v1751 = vpop.f32.mrf.mxu0
        %v1752 = vpop.f32.mrf.mxu0
        %v1753 = vadd.f32 %v1344, %v1752
        %v1754 = vpop.f32.mrf.mxu0
        %1755 = vmatprep.mubr.bf16.mxu0 0
        %1756 = vmatmul.mubr.bf16.gmra.mxu0 %v1598
        %v1757 = vpop.f32.mrf.mxu0
        %v1758 = vadd.f32 %v1349, %v1757
        %v1759 = vpop.f32.mrf.mxu0
        %v1760 = vpop.f32.mrf.mxu0
        %v1761 = vadd.f32 %v1352, %v1760
        %v1762 = vpop.f32.mrf.mxu0
        %1763 = vmatprep.mubr.bf16.mxu0 0
        %1764 = vmatmul.mubr.bf16.gmra.mxu0 %v1601
        %v1765 = vpop.f32.mrf.mxu0
        %v1766 = vadd.f32 %v1357, %v1765
        %v1767 = vpop.f32.mrf.mxu0
        %v1768 = vpop.f32.mrf.mxu0
        %v1769 = vadd.f32 %v1360, %v1768
        %v1770 = vpop.f32.mrf.mxu0
        %1771 = vmatprep.mubr.bf16.mxu0 0
        %1772 = vmatmul.mubr.bf16.gmra.mxu0 %v1604
        %v1773 = vpop.f32.mrf.mxu0
        %v1774 = vadd.f32 %v1365, %v1773
        %v1775 = vpop.f32.mrf.mxu0
        %v1776 = vpop.f32.mrf.mxu0
        %v1777 = vadd.f32 %v1368, %v1776
        %v1778 = vpop.f32.mrf.mxu0
        %1779 = vmatprep.mubr.bf16.mxu0 0
        %1780 = vmatmul.mubr.bf16.gmra.mxu0 %v1607
        %v1781 = vpop.f32.mrf.mxu0
        %v1782 = vadd.f32 %v1373, %v1781
        %v1783 = vpop.f32.mrf.mxu0
        %v1784 = vpop.f32.mrf.mxu0
        %v1785 = vadd.f32 %v1376, %v1784
        %v1786 = vpop.f32.mrf.mxu0
        %1787 = vmatprep.mubr.bf16.mxu0 0
        %1788 = vmatmul.mubr.bf16.gmra.mxu0 %v1610
        %v1789 = vpop.f32.mrf.mxu0
        %v1790 = vadd.f32 %v1381, %v1789
        %v1791 = vpop.f32.mrf.mxu0
        %v1792 = vpop.f32.mrf.mxu0
        %v1793 = vadd.f32 %v1384, %v1792
        %v1794 = vpop.f32.mrf.mxu0
        %1795 = vmatprep.mubr.bf16.mxu0 0
        %1796 = vmatmul.mubr.bf16.gmra.mxu0 %v1613
        %v1797 = vpop.f32.mrf.mxu0
        %v1798 = vadd.f32 %v1389, %v1797
        %v1799 = vpop.f32.mrf.mxu0
        %v1800 = vpop.f32.mrf.mxu0
        %v1801 = vadd.f32 %v1392, %v1800
        %v1802 = vpop.f32.mrf.mxu0
        %1803 = vmatprep.mubr.bf16.mxu0 0
        %1804 = vmatmul.mubr.bf16.gmra.mxu0 %v1616
        %v1805 = vpop.f32.mrf.mxu0
        %v1806 = vadd.f32 %v1397, %v1805
        %v1807 = vpop.f32.mrf.mxu0
        %v1808 = vpop.f32.mrf.mxu0
        %v1809 = vadd.f32 %v1400, %v1808
        %v1810 = vpop.f32.mrf.mxu0
        %1811 = vmatprep.mubr.bf16.mxu0 0
        %1812 = vmatmul.mubr.bf16.gmra.mxu0 %v1619
        %v1813 = vpop.f32.mrf.mxu0
        %v1814 = vadd.f32 %v1405, %v1813
        %v1815 = vpop.f32.mrf.mxu0
        %v1816 = vpop.f32.mrf.mxu0
        %v1817 = vadd.f32 %v1408, %v1816
        %v1818 = vpop.f32.mrf.mxu0
        %1819 = vmatprep.mubr.bf16.mxu0 0
        %1820 = vmatmul.mubr.bf16.gmra.mxu0 %v1622
        %v1821 = vpop.f32.mrf.mxu0
        %v1822 = vadd.f32 %v1413, %v1821
        %v1823 = vpop.f32.mrf.mxu0
        %v1824 = vpop.f32.mrf.mxu0
        %v1825 = vadd.f32 %v1416, %v1824
        %v1826 = vpop.f32.mrf.mxu0
        %1827 = vmatprep.mubr.bf16.mxu0 0
        %1828 = vmatmul.mubr.bf16.gmra.mxu0 %v1625
        %v1829 = vpop.f32.mrf.mxu0
        %v1830 = vadd.f32 %v1421, %v1829
        %v1831 = vpop.f32.mrf.mxu0
        %v1832 = vpop.f32.mrf.mxu0
        %v1833 = vadd.f32 %v1424, %v1832
        %v1834 = vpop.f32.mrf.mxu0
        %1835 = vmatprep.mubr.bf16.mxu0 0
        %1836 = vmatmul.mubr.bf16.gmra.mxu0 %v1628
        %v1837 = vpop.f32.mrf.mxu0
        %v1838 = vadd.f32 %v1429, %v1837
        %v1839 = vpop.f32.mrf.mxu0
        %v1840 = vpop.f32.mrf.mxu0
        %v1841 = vadd.f32 %v1432, %v1840
        %v1842 = vpop.f32.mrf.mxu0
        %1843 = vmatprep.mubr.bf16.mxu0 0
        %1844 = vmatmul.mubr.bf16.gmra.mxu0 %v1631
        %v1845 = vpop.f32.mrf.mxu0
        %v1846 = vadd.f32 %v1437, %v1845
        %v1847 = vpop.f32.mrf.mxu0
        %v1848 = vpop.f32.mrf.mxu0
        %v1849 = vadd.f32 %v1440, %v1848
        %v1850 = vpop.f32.mrf.mxu0
        %1851 = vmatprep.mubr.bf16.mxu0 0
        %1852 = vmatmul.mubr.bf16.gmra.mxu0 %v1634
        %v1853 = vpop.f32.mrf.mxu0
        %v1854 = vadd.f32 %v1445, %v1853
        %v1855 = vpop.f32.mrf.mxu0
        %v1856 = vpop.f32.mrf.mxu0
        %v1857 = vadd.f32 %v1448, %v1856
        %v1858 = vpop.f32.mrf.mxu0
        %1859 = vmatprep.mubr.bf16.mxu0 0
        %1860 = vmatmul.mubr.bf16.gmra.mxu0 %v1637
        %v1861 = vpop.f32.mrf.mxu0
        %v1862 = vadd.f32 %v1453, %v1861
        %v1863 = vpop.f32.mrf.mxu0
        %v1864 = vpop.f32.mrf.mxu0
        %v1865 = vadd.f32 %v1456, %v1864
        %v1866 = vpop.f32.mrf.mxu0
        %1867 = vmatprep.mubr.bf16.mxu0 0
        %1868 = vmatmul.mubr.bf16.gmra.mxu0 %v1640
        %v1869 = vpop.f32.mrf.mxu0
        %v1870 = vadd.f32 %v1461, %v1869
        %v1871 = vpop.f32.mrf.mxu0
        %v1872 = vpop.f32.mrf.mxu0
        %v1873 = vadd.f32 %v1464, %v1872
        %v1874 = vpop.f32.mrf.mxu0
        %1875 = vmatprep.mubr.bf16.mxu0 0
        %1876 = vmatmul.mubr.bf16.gmra.mxu0 %v1643
        %v1877 = vpop.f32.mrf.mxu0
        %v1878 = vadd.f32 %v1469, %v1877
        %v1879 = vpop.f32.mrf.mxu0
        %v1880 = vpop.f32.mrf.mxu0
        %v1881 = vadd.f32 %v1472, %v1880
        %v1882 = vpop.f32.mrf.mxu0
        %1883 = vmatprep.mubr.bf16.mxu0 0
        %1884 = vmatmul.mubr.bf16.gmra.mxu0 %v1646
        %v1885 = vpop.f32.mrf.mxu0
        %v1886 = vadd.f32 %v1477, %v1885
        %v1887 = vpop.f32.mrf.mxu0
        %v1888 = vpop.f32.mrf.mxu0
        %v1889 = vadd.f32 %v1480, %v1888
        %v1890 = vpop.f32.mrf.mxu0
        %1891 = vmatprep.mubr.bf16.mxu0 0
        %1892 = vmatmul.mubr.bf16.gmra.mxu0 %v1649
        %v1893 = vpop.f32.mrf.mxu0
        %v1894 = vadd.f32 %v1485, %v1893
        %v1895 = vpop.f32.mrf.mxu0
        %v1896 = vpop.f32.mrf.mxu0
        %v1897 = vadd.f32 %v1488, %v1896
        %v1898 = vpop.f32.mrf.mxu0
        %1899 = vmatprep.mubr.bf16.mxu0 0
        %1900 = vmatmul.mubr.bf16.gmra.mxu0 %v1652
        %v1901 = vpop.f32.mrf.mxu0
        %v1902 = vadd.f32 %v1493, %v1901
        %v1903 = vpop.f32.mrf.mxu0
        %v1904 = vpop.f32.mrf.mxu0
        %v1905 = vadd.f32 %v1496, %v1904
        %v1906 = vpop.f32.mrf.mxu0
        %1907 = vmatprep.mubr.bf16.mxu0 0
        %1908 = vmatmul.mubr.bf16.gmra.mxu0 %v1655
        %v1909 = vpop.f32.mrf.mxu0
        %v1910 = vadd.f32 %v1501, %v1909
        %v1911 = vpop.f32.mrf.mxu0
        %v1912 = vpop.f32.mrf.mxu0
        %v1913 = vadd.f32 %v1504, %v1912
        %v1914 = vpop.f32.mrf.mxu0
        %1915 = vmatprep.mubr.bf16.mxu0 0
        %1916 = vmatmul.mubr.bf16.gmra.mxu0 %v1658
        %v1917 = vpop.f32.mrf.mxu0
        %v1918 = vadd.f32 %v1509, %v1917
        %v1919 = vpop.f32.mrf.mxu0
        %v1920 = vpop.f32.mrf.mxu0
        %v1921 = vadd.f32 %v1512, %v1920
        %v1922 = vpop.f32.mrf.mxu0
        %1923 = vmatprep.mubr.bf16.mxu0 0
        %1924 = vmatmul.mubr.bf16.gmra.mxu0 %v1661
        %v1925 = vpop.f32.mrf.mxu0
        %v1926 = vadd.f32 %v1517, %v1925
        %v1927 = vpop.f32.mrf.mxu0
        %v1928 = vpop.f32.mrf.mxu0
        %v1929 = vadd.f32 %v1520, %v1928
        %v1930 = vpop.f32.mrf.mxu0
        %1931 = vmatprep.mubr.bf16.mxu0 0
        %1932 = vmatmul.mubr.bf16.gmra.mxu0 %v1664
        %v1933 = vpop.f32.mrf.mxu0
        %v1934 = vadd.f32 %v1525, %v1933
        %v1935 = vpop.f32.mrf.mxu0
        %v1936 = vpop.f32.mrf.mxu0
        %v1937 = vadd.f32 %v1528, %v1936
        %v1938 = vpop.f32.mrf.mxu0
        %1939 = vmatprep.mubr.bf16.mxu0 0
        %1940 = vmatmul.mubr.bf16.gmra.mxu0 %v1667
        %v1941 = vpop.f32.mrf.mxu0
        %v1942 = vadd.f32 %v1533, %v1941
        %v1943 = vpop.f32.mrf.mxu0
        %v1944 = vpop.f32.mrf.mxu0
        %v1945 = vadd.f32 %v1536, %v1944
        %v1946 = vpop.f32.mrf.mxu0
        %1947 = vmatprep.mubr.bf16.mxu0 0
        %1948 = vmatmul.mubr.bf16.gmra.mxu0 %v1670
        %v1949 = vpop.f32.mrf.mxu0
        %v1950 = vadd.f32 %v1541, %v1949
        %v1951 = vpop.f32.mrf.mxu0
        %v1952 = vpop.f32.mrf.mxu0
        %v1953 = vadd.f32 %v1544, %v1952
        %v1954 = vpop.f32.mrf.mxu0
        %1955 = vmatprep.mubr.bf16.mxu0 0
        %1956 = vmatmul.mubr.bf16.gmra.mxu0 %v1673
        %v1957 = vpop.f32.mrf.mxu0
        %v1958 = vadd.f32 %v1549, %v1957
        %v1959 = vpop.f32.mrf.mxu0
        %v1960 = vpop.f32.mrf.mxu0
        %v1961 = vadd.f32 %v1552, %v1960
        %v1962 = vpop.f32.mrf.mxu0
        %1963 = vdwg.mxu0
        %2028 = vrot.lane.b32.xlu0 %v1710, 127
        %v2029 = vpop.permute.xlu0 %2028
        %2030 = vrot.lane.b32.xlu0 %v1713, 127
        %v2031 = vpop.permute.xlu0 %2030
        %2032 = vrot.lane.b32.xlu0 %v1718, 127
        %v2033 = vpop.permute.xlu0 %2032
        %2034 = vrot.lane.b32.xlu0 %v1721, 127
        %v2035 = vpop.permute.xlu0 %2034
        %2036 = vrot.lane.b32.xlu0 %v1726, 127
        %v2037 = vpop.permute.xlu0 %2036
        %2038 = vrot.lane.b32.xlu0 %v1729, 127
        %v2039 = vpop.permute.xlu0 %2038
        %2040 = vrot.lane.b32.xlu0 %v1734, 127
        %v2041 = vpop.permute.xlu0 %2040
        %2042 = vrot.lane.b32.xlu0 %v1737, 127
        %v2043 = vpop.permute.xlu0 %2042
        %2044 = vrot.lane.b32.xlu0 %v1742, 127
        %v2045 = vpop.permute.xlu0 %2044
        %2046 = vrot.lane.b32.xlu0 %v1745, 127
        %v2047 = vpop.permute.xlu0 %2046
        %2048 = vrot.lane.b32.xlu0 %v1750, 127
        %v2049 = vpop.permute.xlu0 %2048
        %2050 = vrot.lane.b32.xlu0 %v1753, 127
        %v2051 = vpop.permute.xlu0 %2050
        %2052 = vrot.lane.b32.xlu0 %v1758, 127
        %v2053 = vpop.permute.xlu0 %2052
        %2054 = vrot.lane.b32.xlu0 %v1761, 127
        %v2055 = vpop.permute.xlu0 %2054
        %2056 = vrot.lane.b32.xlu0 %v1766, 127
        %v2057 = vpop.permute.xlu0 %2056
        %2058 = vrot.lane.b32.xlu0 %v1769, 127
        %v2059 = vpop.permute.xlu0 %2058
        %2060 = vrot.lane.b32.xlu0 %v1774, 127
        %v2061 = vpop.permute.xlu0 %2060
        %2062 = vrot.lane.b32.xlu0 %v1777, 127
        %v2063 = vpop.permute.xlu0 %2062
        %2064 = vrot.lane.b32.xlu0 %v1782, 127
        %v2065 = vpop.permute.xlu0 %2064
        %2066 = vrot.lane.b32.xlu0 %v1785, 127
        %v2067 = vpop.permute.xlu0 %2066
        %2068 = vrot.lane.b32.xlu0 %v1790, 127
        %v2069 = vpop.permute.xlu0 %2068
        %2070 = vrot.lane.b32.xlu0 %v1793, 127
        %v2071 = vpop.permute.xlu0 %2070
        %2072 = vrot.lane.b32.xlu0 %v1798, 127
        %v2073 = vpop.permute.xlu0 %2072
        %2074 = vrot.lane.b32.xlu0 %v1801, 127
        %v2075 = vpop.permute.xlu0 %2074
        %2076 = vrot.lane.b32.xlu0 %v1806, 127
        %v2077 = vpop.permute.xlu0 %2076
        %2078 = vrot.lane.b32.xlu0 %v1809, 127
        %v2079 = vpop.permute.xlu0 %2078
        %2080 = vrot.lane.b32.xlu0 %v1814, 127
        %v2081 = vpop.permute.xlu0 %2080
        %2082 = vrot.lane.b32.xlu0 %v1817, 127
        %v2083 = vpop.permute.xlu0 %2082
        %2084 = vrot.lane.b32.xlu0 %v1822, 127
        %v2085 = vpop.permute.xlu0 %2084
        %2086 = vrot.lane.b32.xlu0 %v1825, 127
        %v2087 = vpop.permute.xlu0 %2086
        %2088 = vrot.lane.b32.xlu0 %v1830, 127
        %v2089 = vpop.permute.xlu0 %2088
        %2090 = vrot.lane.b32.xlu0 %v1833, 127
        %v2091 = vpop.permute.xlu0 %2090
        %2092 = vrot.lane.b32.xlu0 %v1838, 127
        %v2093 = vpop.permute.xlu0 %2092
        %2094 = vrot.lane.b32.xlu0 %v1841, 127
        %v2095 = vpop.permute.xlu0 %2094
        %2096 = vrot.lane.b32.xlu0 %v1846, 127
        %v2097 = vpop.permute.xlu0 %2096
        %2098 = vrot.lane.b32.xlu0 %v1849, 127
        %v2099 = vpop.permute.xlu0 %2098
        %2100 = vrot.lane.b32.xlu0 %v1854, 127
        %v2101 = vpop.permute.xlu0 %2100
        %2102 = vrot.lane.b32.xlu0 %v1857, 127
        %v2103 = vpop.permute.xlu0 %2102
        %2104 = vrot.lane.b32.xlu0 %v1862, 127
        %v2105 = vpop.permute.xlu0 %2104
        %2106 = vrot.lane.b32.xlu0 %v1865, 127
        %v2107 = vpop.permute.xlu0 %2106
        %2108 = vrot.lane.b32.xlu0 %v1870, 127
        %v2109 = vpop.permute.xlu0 %2108
        %2110 = vrot.lane.b32.xlu0 %v1873, 127
        %v2111 = vpop.permute.xlu0 %2110
        %2112 = vrot.lane.b32.xlu0 %v1878, 127
        %v2113 = vpop.permute.xlu0 %2112
        %2114 = vrot.lane.b32.xlu0 %v1881, 127
        %v2115 = vpop.permute.xlu0 %2114
        %2116 = vrot.lane.b32.xlu0 %v1886, 127
        %v2117 = vpop.permute.xlu0 %2116
        %2118 = vrot.lane.b32.xlu0 %v1889, 127
        %v2119 = vpop.permute.xlu0 %2118
        %2120 = vrot.lane.b32.xlu0 %v1894, 127
        %v2121 = vpop.permute.xlu0 %2120
        %2122 = vrot.lane.b32.xlu0 %v1897, 127
        %v2123 = vpop.permute.xlu0 %2122
        %2124 = vrot.lane.b32.xlu0 %v1902, 127
        %v2125 = vpop.permute.xlu0 %2124
        %2126 = vrot.lane.b32.xlu0 %v1905, 127
        %v2127 = vpop.permute.xlu0 %2126
        %2128 = vrot.lane.b32.xlu0 %v1910, 127
        %v2129 = vpop.permute.xlu0 %2128
        %2130 = vrot.lane.b32.xlu0 %v1913, 127
        %v2131 = vpop.permute.xlu0 %2130
        %2132 = vrot.lane.b32.xlu0 %v1918, 127
        %v2133 = vpop.permute.xlu0 %2132
        %2134 = vrot.lane.b32.xlu0 %v1921, 127
        %v2135 = vpop.permute.xlu0 %2134
        %2136 = vrot.lane.b32.xlu0 %v1926, 127
        %v2137 = vpop.permute.xlu0 %2136
        %2138 = vrot.lane.b32.xlu0 %v1929, 127
        %v2139 = vpop.permute.xlu0 %2138
        %2140 = vrot.lane.b32.xlu0 %v1934, 127
        %v2141 = vpop.permute.xlu0 %2140
        %2142 = vrot.lane.b32.xlu0 %v1937, 127
        %v2143 = vpop.permute.xlu0 %2142
        %2144 = vrot.lane.b32.xlu0 %v1942, 127
        %v2145 = vpop.permute.xlu0 %2144
        %2146 = vrot.lane.b32.xlu0 %v1945, 127
        %v2147 = vpop.permute.xlu0 %2146
        %2148 = vrot.lane.b32.xlu0 %v1950, 127
        %v2149 = vpop.permute.xlu0 %2148
        %2150 = vrot.lane.b32.xlu0 %v1953, 127
        %v2151 = vpop.permute.xlu0 %2150
        %2152 = vrot.lane.b32.xlu0 %v1958, 127
        %v2153 = vpop.permute.xlu0 %2152
        %2154 = vrot.lane.b32.xlu0 %v1961, 127
        %v2155 = vpop.permute.xlu0 %2154
        %v2220 = vadd.f32 %v1710, %v2029
        %v2221 = vadd.f32 %v1713, %v2031
        %v2222 = vadd.f32 %v1718, %v2033
        %v2223 = vadd.f32 %v1721, %v2035
        %v2224 = vadd.f32 %v1726, %v2037
        %v2225 = vadd.f32 %v1729, %v2039
        %v2226 = vadd.f32 %v1734, %v2041
        %v2227 = vadd.f32 %v1737, %v2043
        %v2228 = vadd.f32 %v1742, %v2045
        %v2229 = vadd.f32 %v1745, %v2047
        %v2230 = vadd.f32 %v1750, %v2049
        %v2231 = vadd.f32 %v1753, %v2051
        %v2232 = vadd.f32 %v1758, %v2053
        %v2233 = vadd.f32 %v1761, %v2055
        %v2234 = vadd.f32 %v1766, %v2057
        %v2235 = vadd.f32 %v1769, %v2059
        %v2236 = vadd.f32 %v1774, %v2061
        %v2237 = vadd.f32 %v1777, %v2063
        %v2238 = vadd.f32 %v1782, %v2065
        %v2239 = vadd.f32 %v1785, %v2067
        %v2240 = vadd.f32 %v1790, %v2069
        %v2241 = vadd.f32 %v1793, %v2071
        %v2242 = vadd.f32 %v1798, %v2073
        %v2243 = vadd.f32 %v1801, %v2075
        %v2244 = vadd.f32 %v1806, %v2077
        %v2245 = vadd.f32 %v1809, %v2079
        %v2246 = vadd.f32 %v1814, %v2081
        %v2247 = vadd.f32 %v1817, %v2083
        %v2248 = vadd.f32 %v1822, %v2085
        %v2249 = vadd.f32 %v1825, %v2087
        %v2250 = vadd.f32 %v1830, %v2089
        %v2251 = vadd.f32 %v1833, %v2091
        %v2252 = vadd.f32 %v1838, %v2093
        %v2253 = vadd.f32 %v1841, %v2095
        %v2254 = vadd.f32 %v1846, %v2097
        %v2255 = vadd.f32 %v1849, %v2099
        %v2256 = vadd.f32 %v1854, %v2101
        %v2257 = vadd.f32 %v1857, %v2103
        %v2258 = vadd.f32 %v1862, %v2105
        %v2259 = vadd.f32 %v1865, %v2107
        %v2260 = vadd.f32 %v1870, %v2109
        %v2261 = vadd.f32 %v1873, %v2111
        %v2262 = vadd.f32 %v1878, %v2113
        %v2263 = vadd.f32 %v1881, %v2115
        %v2264 = vadd.f32 %v1886, %v2117
        %v2265 = vadd.f32 %v1889, %v2119
        %v2266 = vadd.f32 %v1894, %v2121
        %v2267 = vadd.f32 %v1897, %v2123
        %v2268 = vadd.f32 %v1902, %v2125
        %v2269 = vadd.f32 %v1905, %v2127
        %v2270 = vadd.f32 %v1910, %v2129
        %v2271 = vadd.f32 %v1913, %v2131
        %v2272 = vadd.f32 %v1918, %v2133
        %v2273 = vadd.f32 %v1921, %v2135
        %v2274 = vadd.f32 %v1926, %v2137
        %v2275 = vadd.f32 %v1929, %v2139
        %v2276 = vadd.f32 %v1934, %v2141
        %v2277 = vadd.f32 %v1937, %v2143
        %v2278 = vadd.f32 %v1942, %v2145
        %v2279 = vadd.f32 %v1945, %v2147
        %v2280 = vadd.f32 %v1950, %v2149
        %v2281 = vadd.f32 %v1953, %v2151
        %v2282 = vadd.f32 %v1958, %v2153
        %v2283 = vadd.f32 %v1961, %v2155
        %vm2284 = vcmp.gt.f32.partialorder %v2220, 0.0
        %vm2285 = vcmp.gt.f32.partialorder %v2221, 0.0
        %vm2286 = vcmp.gt.f32.partialorder %v2222, 0.0
        %vm2287 = vcmp.gt.f32.partialorder %v2223, 0.0
        %vm2288 = vcmp.gt.f32.partialorder %v2224, 0.0
        %vm2289 = vcmp.gt.f32.partialorder %v2225, 0.0
        %vm2290 = vcmp.gt.f32.partialorder %v2226, 0.0
        %vm2291 = vcmp.gt.f32.partialorder %v2227, 0.0
        %vm2292 = vcmp.gt.f32.partialorder %v2228, 0.0
        %vm2293 = vcmp.gt.f32.partialorder %v2229, 0.0
        %vm2294 = vcmp.gt.f32.partialorder %v2230, 0.0
        %vm2295 = vcmp.gt.f32.partialorder %v2231, 0.0
        %vm2296 = vcmp.gt.f32.partialorder %v2232, 0.0
        %vm2297 = vcmp.gt.f32.partialorder %v2233, 0.0
        %vm2298 = vcmp.gt.f32.partialorder %v2234, 0.0
        %vm2299 = vcmp.gt.f32.partialorder %v2235, 0.0
        %vm2300 = vcmp.gt.f32.partialorder %v2236, 0.0
        %vm2301 = vcmp.gt.f32.partialorder %v2237, 0.0
        %vm2302 = vcmp.gt.f32.partialorder %v2238, 0.0
        %vm2303 = vcmp.gt.f32.partialorder %v2239, 0.0
        %vm2304 = vcmp.gt.f32.partialorder %v2240, 0.0
        %vm2305 = vcmp.gt.f32.partialorder %v2241, 0.0
        %vm2306 = vcmp.gt.f32.partialorder %v2242, 0.0
        %vm2307 = vcmp.gt.f32.partialorder %v2243, 0.0
        %vm2308 = vcmp.gt.f32.partialorder %v2244, 0.0
        %vm2309 = vcmp.gt.f32.partialorder %v2245, 0.0
        %vm2310 = vcmp.gt.f32.partialorder %v2246, 0.0
        %vm2311 = vcmp.gt.f32.partialorder %v2247, 0.0
        %vm2312 = vcmp.gt.f32.partialorder %v2248, 0.0
        %vm2313 = vcmp.gt.f32.partialorder %v2249, 0.0
        %vm2314 = vcmp.gt.f32.partialorder %v2250, 0.0
        %vm2315 = vcmp.gt.f32.partialorder %v2251, 0.0
        %vm2316 = vcmp.gt.f32.partialorder %v2252, 0.0
        %vm2317 = vcmp.gt.f32.partialorder %v2253, 0.0
        %vm2318 = vcmp.gt.f32.partialorder %v2254, 0.0
        %vm2319 = vcmp.gt.f32.partialorder %v2255, 0.0
        %vm2320 = vcmp.gt.f32.partialorder %v2256, 0.0
        %vm2321 = vcmp.gt.f32.partialorder %v2257, 0.0
        %vm2322 = vcmp.gt.f32.partialorder %v2258, 0.0
        %vm2323 = vcmp.gt.f32.partialorder %v2259, 0.0
        %vm2324 = vcmp.gt.f32.partialorder %v2260, 0.0
        %vm2325 = vcmp.gt.f32.partialorder %v2261, 0.0
        %vm2326 = vcmp.gt.f32.partialorder %v2262, 0.0
        %vm2327 = vcmp.gt.f32.partialorder %v2263, 0.0
        %vm2328 = vcmp.gt.f32.partialorder %v2264, 0.0
        %vm2329 = vcmp.gt.f32.partialorder %v2265, 0.0
        %vm2330 = vcmp.gt.f32.partialorder %v2266, 0.0
        %vm2331 = vcmp.gt.f32.partialorder %v2267, 0.0
        %vm2332 = vcmp.gt.f32.partialorder %v2268, 0.0
        %vm2333 = vcmp.gt.f32.partialorder %v2269, 0.0
        %vm2334 = vcmp.gt.f32.partialorder %v2270, 0.0
        %vm2335 = vcmp.gt.f32.partialorder %v2271, 0.0
        %vm2336 = vcmp.gt.f32.partialorder %v2272, 0.0
        %vm2337 = vcmp.gt.f32.partialorder %v2273, 0.0
        %vm2338 = vcmp.gt.f32.partialorder %v2274, 0.0
        %vm2339 = vcmp.gt.f32.partialorder %v2275, 0.0
        %vm2340 = vcmp.gt.f32.partialorder %v2276, 0.0
        %vm2341 = vcmp.gt.f32.partialorder %v2277, 0.0
        %vm2342 = vcmp.gt.f32.partialorder %v2278, 0.0
        %vm2343 = vcmp.gt.f32.partialorder %v2279, 0.0
        %vm2344 = vcmp.gt.f32.partialorder %v2280, 0.0
        %vm2345 = vcmp.gt.f32.partialorder %v2281, 0.0
        %vm2346 = vcmp.gt.f32.partialorder %v2282, 0.0
        %vm2347 = vcmp.gt.f32.partialorder %v2283, 0.0
        %v2348 = vmul.f32 %v2220, 0.2
        %v2349 = vmul.f32 %v2221, 0.2
        %v2350 = vmul.f32 %v2222, 0.2
        %v2351 = vmul.f32 %v2223, 0.2
        %v2352 = vmul.f32 %v2224, 0.2
        %v2353 = vmul.f32 %v2225, 0.2
        %v2354 = vmul.f32 %v2226, 0.2
        %v2355 = vmul.f32 %v2227, 0.2
        %v2356 = vmul.f32 %v2228, 0.2
        %v2357 = vmul.f32 %v2229, 0.2
        %v2358 = vmul.f32 %v2230, 0.2
        %v2359 = vmul.f32 %v2231, 0.2
        %v2360 = vmul.f32 %v2232, 0.2
        %v2361 = vmul.f32 %v2233, 0.2
        %v2362 = vmul.f32 %v2234, 0.2
        %v2363 = vmul.f32 %v2235, 0.2
        %v2364 = vmul.f32 %v2236, 0.2
        %v2365 = vmul.f32 %v2237, 0.2
        %v2366 = vmul.f32 %v2238, 0.2
        %v2367 = vmul.f32 %v2239, 0.2
        %v2368 = vmul.f32 %v2240, 0.2
        %v2369 = vmul.f32 %v2241, 0.2
        %v2370 = vmul.f32 %v2242, 0.2
        %v2371 = vmul.f32 %v2243, 0.2
        %v2372 = vmul.f32 %v2244, 0.2
        %v2373 = vmul.f32 %v2245, 0.2
        %v2374 = vmul.f32 %v2246, 0.2
        %v2375 = vmul.f32 %v2247, 0.2
        %v2376 = vmul.f32 %v2248, 0.2
        %v2377 = vmul.f32 %v2249, 0.2
        %v2378 = vmul.f32 %v2250, 0.2
        %v2379 = vmul.f32 %v2251, 0.2
        %v2380 = vmul.f32 %v2252, 0.2
        %v2381 = vmul.f32 %v2253, 0.2
        %v2382 = vmul.f32 %v2254, 0.2
        %v2383 = vmul.f32 %v2255, 0.2
        %v2384 = vmul.f32 %v2256, 0.2
        %v2385 = vmul.f32 %v2257, 0.2
        %v2386 = vmul.f32 %v2258, 0.2
        %v2387 = vmul.f32 %v2259, 0.2
        %v2388 = vmul.f32 %v2260, 0.2
        %v2389 = vmul.f32 %v2261, 0.2
        %v2390 = vmul.f32 %v2262, 0.2
        %v2391 = vmul.f32 %v2263, 0.2
        %v2392 = vmul.f32 %v2264, 0.2
        %v2393 = vmul.f32 %v2265, 0.2
        %v2394 = vmul.f32 %v2266, 0.2
        %v2395 = vmul.f32 %v2267, 0.2
        %v2396 = vmul.f32 %v2268, 0.2
        %v2397 = vmul.f32 %v2269, 0.2
        %v2398 = vmul.f32 %v2270, 0.2
        %v2399 = vmul.f32 %v2271, 0.2
        %v2400 = vmul.f32 %v2272, 0.2
        %v2401 = vmul.f32 %v2273, 0.2
        %v2402 = vmul.f32 %v2274, 0.2
        %v2403 = vmul.f32 %v2275, 0.2
        %v2404 = vmul.f32 %v2276, 0.2
        %v2405 = vmul.f32 %v2277, 0.2
        %v2406 = vmul.f32 %v2278, 0.2
        %v2407 = vmul.f32 %v2279, 0.2
        %v2408 = vmul.f32 %v2280, 0.2
        %v2409 = vmul.f32 %v2281, 0.2
        %v2410 = vmul.f32 %v2282, 0.2
        %v2411 = vmul.f32 %v2283, 0.2
        %v2412 = vsel %vm2284, %v2220, %v2348
        %v2413 = vsel %vm2285, %v2221, %v2349
        %v2414 = vsel %vm2286, %v2222, %v2350
        %v2415 = vsel %vm2287, %v2223, %v2351
        %v2416 = vsel %vm2288, %v2224, %v2352
        %v2417 = vsel %vm2289, %v2225, %v2353
        %v2418 = vsel %vm2290, %v2226, %v2354
        %v2419 = vsel %vm2291, %v2227, %v2355
        %v2420 = vsel %vm2292, %v2228, %v2356
        %v2421 = vsel %vm2293, %v2229, %v2357
        %v2422 = vsel %vm2294, %v2230, %v2358
        %v2423 = vsel %vm2295, %v2231, %v2359
        %v2424 = vsel %vm2296, %v2232, %v2360
        %v2425 = vsel %vm2297, %v2233, %v2361
        %v2426 = vsel %vm2298, %v2234, %v2362
        %v2427 = vsel %vm2299, %v2235, %v2363
        %v2428 = vsel %vm2300, %v2236, %v2364
        %v2429 = vsel %vm2301, %v2237, %v2365
        %v2430 = vsel %vm2302, %v2238, %v2366
        %v2431 = vsel %vm2303, %v2239, %v2367
        %v2432 = vsel %vm2304, %v2240, %v2368
        %v2433 = vsel %vm2305, %v2241, %v2369
        %v2434 = vsel %vm2306, %v2242, %v2370
        %v2435 = vsel %vm2307, %v2243, %v2371
        %v2436 = vsel %vm2308, %v2244, %v2372
        %v2437 = vsel %vm2309, %v2245, %v2373
        %v2438 = vsel %vm2310, %v2246, %v2374
        %v2439 = vsel %vm2311, %v2247, %v2375
        %v2440 = vsel %vm2312, %v2248, %v2376
        %v2441 = vsel %vm2313, %v2249, %v2377
        %v2442 = vsel %vm2314, %v2250, %v2378
        %v2443 = vsel %vm2315, %v2251, %v2379
        %v2444 = vsel %vm2316, %v2252, %v2380
        %v2445 = vsel %vm2317, %v2253, %v2381
        %v2446 = vsel %vm2318, %v2254, %v2382
        %v2447 = vsel %vm2319, %v2255, %v2383
        %v2448 = vsel %vm2320, %v2256, %v2384
        %v2449 = vsel %vm2321, %v2257, %v2385
        %v2450 = vsel %vm2322, %v2258, %v2386
        %v2451 = vsel %vm2323, %v2259, %v2387
        %v2452 = vsel %vm2324, %v2260, %v2388
        %v2453 = vsel %vm2325, %v2261, %v2389
        %v2454 = vsel %vm2326, %v2262, %v2390
        %v2455 = vsel %vm2327, %v2263, %v2391
        %v2456 = vsel %vm2328, %v2264, %v2392
        %v2457 = vsel %vm2329, %v2265, %v2393
        %v2458 = vsel %vm2330, %v2266, %v2394
        %v2459 = vsel %vm2331, %v2267, %v2395
        %v2460 = vsel %vm2332, %v2268, %v2396
        %v2461 = vsel %vm2333, %v2269, %v2397
        %v2462 = vsel %vm2334, %v2270, %v2398
        %v2463 = vsel %vm2335, %v2271, %v2399
        %v2464 = vsel %vm2336, %v2272, %v2400
        %v2465 = vsel %vm2337, %v2273, %v2401
        %v2466 = vsel %vm2338, %v2274, %v2402
        %v2467 = vsel %vm2339, %v2275, %v2403
        %v2468 = vsel %vm2340, %v2276, %v2404
        %v2469 = vsel %vm2341, %v2277, %v2405
        %v2470 = vsel %vm2342, %v2278, %v2406
        %v2471 = vsel %vm2343, %v2279, %v2407
        %v2472 = vsel %vm2344, %v2280, %v2408
        %v2473 = vsel %vm2345, %v2281, %v2409
        %v2474 = vsel %vm2346, %v2282, %v2410
        %v2475 = vsel %vm2347, %v2283, %v2411
        %s2476 = sld [smem:[#allocation3]]
        %v2477 = vstv %s2476
        %v2478 = vsub.f32 %v2412, %v2477
        %v2479 = vsub.f32 %v2413, %v2477
        %v2480 = vsub.f32 %v2414, %v2477
        %v2481 = vsub.f32 %v2415, %v2477
        %v2482 = vsub.f32 %v2416, %v2477
        %v2483 = vsub.f32 %v2417, %v2477
        %v2484 = vsub.f32 %v2418, %v2477
        %v2485 = vsub.f32 %v2419, %v2477
        %v2486 = vsub.f32 %v2420, %v2477
        %v2487 = vsub.f32 %v2421, %v2477
        %v2488 = vsub.f32 %v2422, %v2477
        %v2489 = vsub.f32 %v2423, %v2477
        %v2490 = vsub.f32 %v2424, %v2477
        %v2491 = vsub.f32 %v2425, %v2477
        %v2492 = vsub.f32 %v2426, %v2477
        %v2493 = vsub.f32 %v2427, %v2477
        %v2494 = vsub.f32 %v2428, %v2477
        %v2495 = vsub.f32 %v2429, %v2477
        %v2496 = vsub.f32 %v2430, %v2477
        %v2497 = vsub.f32 %v2431, %v2477
        %v2498 = vsub.f32 %v2432, %v2477
        %v2499 = vsub.f32 %v2433, %v2477
        %v2500 = vsub.f32 %v2434, %v2477
        %v2501 = vsub.f32 %v2435, %v2477
        %v2502 = vsub.f32 %v2436, %v2477
        %v2503 = vsub.f32 %v2437, %v2477
        %v2504 = vsub.f32 %v2438, %v2477
        %v2505 = vsub.f32 %v2439, %v2477
        %v2506 = vsub.f32 %v2440, %v2477
        %v2507 = vsub.f32 %v2441, %v2477
        %v2508 = vsub.f32 %v2442, %v2477
        %v2509 = vsub.f32 %v2443, %v2477
        %v2510 = vsub.f32 %v2444, %v2477
        %v2511 = vsub.f32 %v2445, %v2477
        %v2512 = vsub.f32 %v2446, %v2477
        %v2513 = vsub.f32 %v2447, %v2477
        %v2514 = vsub.f32 %v2448, %v2477
        %v2515 = vsub.f32 %v2449, %v2477
        %v2516 = vsub.f32 %v2450, %v2477
        %v2517 = vsub.f32 %v2451, %v2477
        %v2518 = vsub.f32 %v2452, %v2477
        %v2519 = vsub.f32 %v2453, %v2477
        %v2520 = vsub.f32 %v2454, %v2477
        %v2521 = vsub.f32 %v2455, %v2477
        %v2522 = vsub.f32 %v2456, %v2477
        %v2523 = vsub.f32 %v2457, %v2477
        %v2524 = vsub.f32 %v2458, %v2477
        %v2525 = vsub.f32 %v2459, %v2477
        %v2526 = vsub.f32 %v2460, %v2477
        %v2527 = vsub.f32 %v2461, %v2477
        %v2528 = vsub.f32 %v2462, %v2477
        %v2529 = vsub.f32 %v2463, %v2477
        %v2530 = vsub.f32 %v2464, %v2477
        %v2531 = vsub.f32 %v2465, %v2477
        %v2532 = vsub.f32 %v2466, %v2477
        %v2533 = vsub.f32 %v2467, %v2477
        %v2534 = vsub.f32 %v2468, %v2477
        %v2535 = vsub.f32 %v2469, %v2477
        %v2536 = vsub.f32 %v2470, %v2477
        %v2537 = vsub.f32 %v2471, %v2477
        %v2538 = vsub.f32 %v2472, %v2477
        %v2539 = vsub.f32 %v2473, %v2477
        %v2540 = vsub.f32 %v2474, %v2477
        %v2541 = vsub.f32 %v2475, %v2477
        %v2542 = vmin.f32 %v2478, 0.0
        %v2543 = vmin.f32 %v2479, 0.0
        %v2544 = vmin.f32 %v2480, 0.0
        %v2545 = vmin.f32 %v2481, 0.0
        %v2546 = vmin.f32 %v2482, 0.0
        %v2547 = vmin.f32 %v2483, 0.0
        %v2548 = vmin.f32 %v2484, 0.0
        %v2549 = vmin.f32 %v2485, 0.0
        %v2550 = vmin.f32 %v2486, 0.0
        %v2551 = vmin.f32 %v2487, 0.0
        %v2552 = vmin.f32 %v2488, 0.0
        %v2553 = vmin.f32 %v2489, 0.0
        %v2554 = vmin.f32 %v2490, 0.0
        %v2555 = vmin.f32 %v2491, 0.0
        %v2556 = vmin.f32 %v2492, 0.0
        %v2557 = vmin.f32 %v2493, 0.0
        %v2558 = vmin.f32 %v2494, 0.0
        %v2559 = vmin.f32 %v2495, 0.0
        %v2560 = vmin.f32 %v2496, 0.0
        %v2561 = vmin.f32 %v2497, 0.0
        %v2562 = vmin.f32 %v2498, 0.0
        %v2563 = vmin.f32 %v2499, 0.0
        %v2564 = vmin.f32 %v2500, 0.0
        %v2565 = vmin.f32 %v2501, 0.0
        %v2566 = vmin.f32 %v2502, 0.0
        %v2567 = vmin.f32 %v2503, 0.0
        %v2568 = vmin.f32 %v2504, 0.0
        %v2569 = vmin.f32 %v2505, 0.0
        %v2570 = vmin.f32 %v2506, 0.0
        %v2571 = vmin.f32 %v2507, 0.0
        %v2572 = vmin.f32 %v2508, 0.0
        %v2573 = vmin.f32 %v2509, 0.0
        %v2574 = vmin.f32 %v2510, 0.0
        %v2575 = vmin.f32 %v2511, 0.0
        %v2576 = vmin.f32 %v2512, 0.0
        %v2577 = vmin.f32 %v2513, 0.0
        %v2578 = vmin.f32 %v2514, 0.0
        %v2579 = vmin.f32 %v2515, 0.0
        %v2580 = vmin.f32 %v2516, 0.0
        %v2581 = vmin.f32 %v2517, 0.0
        %v2582 = vmin.f32 %v2518, 0.0
        %v2583 = vmin.f32 %v2519, 0.0
        %v2584 = vmin.f32 %v2520, 0.0
        %v2585 = vmin.f32 %v2521, 0.0
        %v2586 = vmin.f32 %v2522, 0.0
        %v2587 = vmin.f32 %v2523, 0.0
        %v2588 = vmin.f32 %v2524, 0.0
        %v2589 = vmin.f32 %v2525, 0.0
        %v2590 = vmin.f32 %v2526, 0.0
        %v2591 = vmin.f32 %v2527, 0.0
        %v2592 = vmin.f32 %v2528, 0.0
        %v2593 = vmin.f32 %v2529, 0.0
        %v2594 = vmin.f32 %v2530, 0.0
        %v2595 = vmin.f32 %v2531, 0.0
        %v2596 = vmin.f32 %v2532, 0.0
        %v2597 = vmin.f32 %v2533, 0.0
        %v2598 = vmin.f32 %v2534, 0.0
        %v2599 = vmin.f32 %v2535, 0.0
        %v2600 = vmin.f32 %v2536, 0.0
        %v2601 = vmin.f32 %v2537, 0.0
        %v2602 = vmin.f32 %v2538, 0.0
        %v2603 = vmin.f32 %v2539, 0.0
        %v2604 = vmin.f32 %v2540, 0.0
        %v2605 = vmin.f32 %v2541, 0.0
        %v2606 = vmul.f32 %v2542, 1.442695
        %v2607 = vpow.pop %v2606
        %v2608 = vmul.f32 %v2543, 1.442695
        %v2609 = vpow.pop %v2608
        %v2610 = vmul.f32 %v2544, 1.442695
        %v2611 = vpow.pop %v2610
        %v2612 = vmul.f32 %v2545, 1.442695
        %v2613 = vpow.pop %v2612
        %v2614 = vmul.f32 %v2546, 1.442695
        %v2615 = vpow.pop %v2614
        %v2616 = vmul.f32 %v2547, 1.442695
        %v2617 = vpow.pop %v2616
        %v2618 = vmul.f32 %v2548, 1.442695
        %v2619 = vpow.pop %v2618
        %v2620 = vmul.f32 %v2549, 1.442695
        %v2621 = vpow.pop %v2620
        %v2622 = vmul.f32 %v2550, 1.442695
        %v2623 = vpow.pop %v2622
        %v2624 = vmul.f32 %v2551, 1.442695
        %v2625 = vpow.pop %v2624
        %v2626 = vmul.f32 %v2552, 1.442695
        %v2627 = vpow.pop %v2626
        %v2628 = vmul.f32 %v2553, 1.442695
        %v2629 = vpow.pop %v2628
        %v2630 = vmul.f32 %v2554, 1.442695
        %v2631 = vpow.pop %v2630
        %v2632 = vmul.f32 %v2555, 1.442695
        %v2633 = vpow.pop %v2632
        %v2634 = vmul.f32 %v2556, 1.442695
        %v2635 = vpow.pop %v2634
        %v2636 = vmul.f32 %v2557, 1.442695
        %v2637 = vpow.pop %v2636
        %v2638 = vmul.f32 %v2558, 1.442695
        %v2639 = vpow.pop %v2638
        %v2640 = vmul.f32 %v2559, 1.442695
        %v2641 = vpow.pop %v2640
        %v2642 = vmul.f32 %v2560, 1.442695
        %v2643 = vpow.pop %v2642
        %v2644 = vmul.f32 %v2561, 1.442695
        %v2645 = vpow.pop %v2644
        %v2646 = vmul.f32 %v2562, 1.442695
        %v2647 = vpow.pop %v2646
        %v2648 = vmul.f32 %v2563, 1.442695
        %v2649 = vpow.pop %v2648
        %v2650 = vmul.f32 %v2564, 1.442695
        %v2651 = vpow.pop %v2650
        %v2652 = vmul.f32 %v2565, 1.442695
        %v2653 = vpow.pop %v2652
        %v2654 = vmul.f32 %v2566, 1.442695
        %v2655 = vpow.pop %v2654
        %v2656 = vmul.f32 %v2567, 1.442695
        %v2657 = vpow.pop %v2656
        %v2658 = vmul.f32 %v2568, 1.442695
        %v2659 = vpow.pop %v2658
        %v2660 = vmul.f32 %v2569, 1.442695
        %v2661 = vpow.pop %v2660
        %v2662 = vmul.f32 %v2570, 1.442695
        %v2663 = vpow.pop %v2662
        %v2664 = vmul.f32 %v2571, 1.442695
        %v2665 = vpow.pop %v2664
        %v2666 = vmul.f32 %v2572, 1.442695
        %v2667 = vpow.pop %v2666
        %v2668 = vmul.f32 %v2573, 1.442695
        %v2669 = vpow.pop %v2668
        %v2670 = vmul.f32 %v2574, 1.442695
        %v2671 = vpow.pop %v2670
        %v2672 = vmul.f32 %v2575, 1.442695
        %v2673 = vpow.pop %v2672
        %v2674 = vmul.f32 %v2576, 1.442695
        %v2675 = vpow.pop %v2674
        %v2676 = vmul.f32 %v2577, 1.442695
        %v2677 = vpow.pop %v2676
        %v2678 = vmul.f32 %v2578, 1.442695
        %v2679 = vpow.pop %v2678
        %v2680 = vmul.f32 %v2579, 1.442695
        %v2681 = vpow.pop %v2680
        %v2682 = vmul.f32 %v2580, 1.442695
        %v2683 = vpow.pop %v2682
        %v2684 = vmul.f32 %v2581, 1.442695
        %v2685 = vpow.pop %v2684
        %v2686 = vmul.f32 %v2582, 1.442695
        %v2687 = vpow.pop %v2686
        %v2688 = vmul.f32 %v2583, 1.442695
        %v2689 = vpow.pop %v2688
        %v2690 = vmul.f32 %v2584, 1.442695
        %v2691 = vpow.pop %v2690
        %v2692 = vmul.f32 %v2585, 1.442695
        %v2693 = vpow.pop %v2692
        %v2694 = vmul.f32 %v2586, 1.442695
        %v2695 = vpow.pop %v2694
        %v2696 = vmul.f32 %v2587, 1.442695
        %v2697 = vpow.pop %v2696
        %v2698 = vmul.f32 %v2588, 1.442695
        %v2699 = vpow.pop %v2698
        %v2700 = vmul.f32 %v2589, 1.442695
        %v2701 = vpow.pop %v2700
        %v2702 = vmul.f32 %v2590, 1.442695
        %v2703 = vpow.pop %v2702
        %v2704 = vmul.f32 %v2591, 1.442695
        %v2705 = vpow.pop %v2704
        %v2706 = vmul.f32 %v2592, 1.442695
        %v2707 = vpow.pop %v2706
        %v2708 = vmul.f32 %v2593, 1.442695
        %v2709 = vpow.pop %v2708
        %v2710 = vmul.f32 %v2594, 1.442695
        %v2711 = vpow.pop %v2710
        %v2712 = vmul.f32 %v2595, 1.442695
        %v2713 = vpow.pop %v2712
        %v2714 = vmul.f32 %v2596, 1.442695
        %v2715 = vpow.pop %v2714
        %v2716 = vmul.f32 %v2597, 1.442695
        %v2717 = vpow.pop %v2716
        %v2718 = vmul.f32 %v2598, 1.442695
        %v2719 = vpow.pop %v2718
        %v2720 = vmul.f32 %v2599, 1.442695
        %v2721 = vpow.pop %v2720
        %v2722 = vmul.f32 %v2600, 1.442695
        %v2723 = vpow.pop %v2722
        %v2724 = vmul.f32 %v2601, 1.442695
        %v2725 = vpow.pop %v2724
        %v2726 = vmul.f32 %v2602, 1.442695
        %v2727 = vpow.pop %v2726
        %v2728 = vmul.f32 %v2603, 1.442695
        %v2729 = vpow.pop %v2728
        %v2730 = vmul.f32 %v2604, 1.442695
        %v2731 = vpow.pop %v2730
        %v2732 = vmul.f32 %v2605, 1.442695
        %v2733 = vpow.pop %v2732
        %2735 = vset.pattern.permute.xlu0 33
        %2736 = vperm.xlu0 %2735, %v2607
        %v2737 = vpop.permute.xlu0 %2736
        %2740 = vset.pattern.permute.xlu0 33
        %2741 = vperm.xlu0 %2740, %v2609
        %v2742 = vpop.permute.xlu0 %2741
        %2745 = vset.pattern.permute.xlu0 33
        %2746 = vperm.xlu0 %2745, %v2611
        %v2747 = vpop.permute.xlu0 %2746
        %2750 = vset.pattern.permute.xlu0 33
        %2751 = vperm.xlu0 %2750, %v2613
        %v2752 = vpop.permute.xlu0 %2751
        %2755 = vset.pattern.permute.xlu0 33
        %2756 = vperm.xlu0 %2755, %v2615
        %v2757 = vpop.permute.xlu0 %2756
        %2760 = vset.pattern.permute.xlu0 33
        %2761 = vperm.xlu0 %2760, %v2617
        %v2762 = vpop.permute.xlu0 %2761
        %2765 = vset.pattern.permute.xlu0 33
        %2766 = vperm.xlu0 %2765, %v2619
        %v2767 = vpop.permute.xlu0 %2766
        %2770 = vset.pattern.permute.xlu0 33
        %2771 = vperm.xlu0 %2770, %v2621
        %v2772 = vpop.permute.xlu0 %2771
        %2775 = vset.pattern.permute.xlu0 33
        %2776 = vperm.xlu0 %2775, %v2623
        %v2777 = vpop.permute.xlu0 %2776
        %2780 = vset.pattern.permute.xlu0 33
        %2781 = vperm.xlu0 %2780, %v2625
        %v2782 = vpop.permute.xlu0 %2781
        %2785 = vset.pattern.permute.xlu0 33
        %2786 = vperm.xlu0 %2785, %v2627
        %v2787 = vpop.permute.xlu0 %2786
        %2790 = vset.pattern.permute.xlu0 33
        %2791 = vperm.xlu0 %2790, %v2629
        %v2792 = vpop.permute.xlu0 %2791
        %2795 = vset.pattern.permute.xlu0 33
        %2796 = vperm.xlu0 %2795, %v2631
        %v2797 = vpop.permute.xlu0 %2796
        %2800 = vset.pattern.permute.xlu0 33
        %2801 = vperm.xlu0 %2800, %v2633
        %v2802 = vpop.permute.xlu0 %2801
        %2805 = vset.pattern.permute.xlu0 33
        %2806 = vperm.xlu0 %2805, %v2635
        %v2807 = vpop.permute.xlu0 %2806
        %2810 = vset.pattern.permute.xlu0 33
        %2811 = vperm.xlu0 %2810, %v2637
        %v2812 = vpop.permute.xlu0 %2811
        %2815 = vset.pattern.permute.xlu0 33
        %2816 = vperm.xlu0 %2815, %v2639
        %v2817 = vpop.permute.xlu0 %2816
        %2820 = vset.pattern.permute.xlu0 33
        %2821 = vperm.xlu0 %2820, %v2641
        %v2822 = vpop.permute.xlu0 %2821
        %2825 = vset.pattern.permute.xlu0 33
        %2826 = vperm.xlu0 %2825, %v2643
        %v2827 = vpop.permute.xlu0 %2826
        %2830 = vset.pattern.permute.xlu0 33
        %2831 = vperm.xlu0 %2830, %v2645
        %v2832 = vpop.permute.xlu0 %2831
        %2835 = vset.pattern.permute.xlu0 33
        %2836 = vperm.xlu0 %2835, %v2647
        %v2837 = vpop.permute.xlu0 %2836
        %2840 = vset.pattern.permute.xlu0 33
        %2841 = vperm.xlu0 %2840, %v2649
        %v2842 = vpop.permute.xlu0 %2841
        %2845 = vset.pattern.permute.xlu0 33
        %2846 = vperm.xlu0 %2845, %v2651
        %v2847 = vpop.permute.xlu0 %2846
        %2850 = vset.pattern.permute.xlu0 33
        %2851 = vperm.xlu0 %2850, %v2653
        %v2852 = vpop.permute.xlu0 %2851
        %2855 = vset.pattern.permute.xlu0 33
        %2856 = vperm.xlu0 %2855, %v2655
        %v2857 = vpop.permute.xlu0 %2856
        %2860 = vset.pattern.permute.xlu0 33
        %2861 = vperm.xlu0 %2860, %v2657
        %v2862 = vpop.permute.xlu0 %2861
        %2865 = vset.pattern.permute.xlu0 33
        %2866 = vperm.xlu0 %2865, %v2659
        %v2867 = vpop.permute.xlu0 %2866
        %2870 = vset.pattern.permute.xlu0 33
        %2871 = vperm.xlu0 %2870, %v2661
        %v2872 = vpop.permute.xlu0 %2871
        %2875 = vset.pattern.permute.xlu0 33
        %2876 = vperm.xlu0 %2875, %v2663
        %v2877 = vpop.permute.xlu0 %2876
        %2880 = vset.pattern.permute.xlu0 33
        %2881 = vperm.xlu0 %2880, %v2665
        %v2882 = vpop.permute.xlu0 %2881
        %2885 = vset.pattern.permute.xlu0 33
        %2886 = vperm.xlu0 %2885, %v2667
        %v2887 = vpop.permute.xlu0 %2886
        %2890 = vset.pattern.permute.xlu0 33
        %2891 = vperm.xlu0 %2890, %v2669
        %v2892 = vpop.permute.xlu0 %2891
        %2895 = vset.pattern.permute.xlu0 33
        %2896 = vperm.xlu0 %2895, %v2671
        %v2897 = vpop.permute.xlu0 %2896
        %2900 = vset.pattern.permute.xlu0 33
        %2901 = vperm.xlu0 %2900, %v2673
        %v2902 = vpop.permute.xlu0 %2901
        %2905 = vset.pattern.permute.xlu0 33
        %2906 = vperm.xlu0 %2905, %v2675
        %v2907 = vpop.permute.xlu0 %2906
        %2910 = vset.pattern.permute.xlu0 33
        %2911 = vperm.xlu0 %2910, %v2677
        %v2912 = vpop.permute.xlu0 %2911
        %2915 = vset.pattern.permute.xlu0 33
        %2916 = vperm.xlu0 %2915, %v2679
        %v2917 = vpop.permute.xlu0 %2916
        %2920 = vset.pattern.permute.xlu0 33
        %2921 = vperm.xlu0 %2920, %v2681
        %v2922 = vpop.permute.xlu0 %2921
        %2925 = vset.pattern.permute.xlu0 33
        %2926 = vperm.xlu0 %2925, %v2683
        %v2927 = vpop.permute.xlu0 %2926
        %2930 = vset.pattern.permute.xlu0 33
        %2931 = vperm.xlu0 %2930, %v2685
        %v2932 = vpop.permute.xlu0 %2931
        %2935 = vset.pattern.permute.xlu0 33
        %2936 = vperm.xlu0 %2935, %v2687
        %v2937 = vpop.permute.xlu0 %2936
        %2940 = vset.pattern.permute.xlu0 33
        %2941 = vperm.xlu0 %2940, %v2689
        %v2942 = vpop.permute.xlu0 %2941
        %2945 = vset.pattern.permute.xlu0 33
        %2946 = vperm.xlu0 %2945, %v2691
        %v2947 = vpop.permute.xlu0 %2946
        %2950 = vset.pattern.permute.xlu0 33
        %2951 = vperm.xlu0 %2950, %v2693
        %v2952 = vpop.permute.xlu0 %2951
        %2955 = vset.pattern.permute.xlu0 33
        %2956 = vperm.xlu0 %2955, %v2695
        %v2957 = vpop.permute.xlu0 %2956
        %2960 = vset.pattern.permute.xlu0 33
        %2961 = vperm.xlu0 %2960, %v2697
        %v2962 = vpop.permute.xlu0 %2961
        %2965 = vset.pattern.permute.xlu0 33
        %2966 = vperm.xlu0 %2965, %v2699
        %v2967 = vpop.permute.xlu0 %2966
        %2970 = vset.pattern.permute.xlu0 33
        %2971 = vperm.xlu0 %2970, %v2701
        %v2972 = vpop.permute.xlu0 %2971
        %2975 = vset.pattern.permute.xlu0 33
        %2976 = vperm.xlu0 %2975, %v2703
        %v2977 = vpop.permute.xlu0 %2976
        %2980 = vset.pattern.permute.xlu0 33
        %2981 = vperm.xlu0 %2980, %v2705
        %v2982 = vpop.permute.xlu0 %2981
        %2985 = vset.pattern.permute.xlu0 33
        %2986 = vperm.xlu0 %2985, %v2707
        %v2987 = vpop.permute.xlu0 %2986
        %2990 = vset.pattern.permute.xlu0 33
        %2991 = vperm.xlu0 %2990, %v2709
        %v2992 = vpop.permute.xlu0 %2991
        %2995 = vset.pattern.permute.xlu0 33
        %2996 = vperm.xlu0 %2995, %v2711
        %v2997 = vpop.permute.xlu0 %2996
        %3000 = vset.pattern.permute.xlu0 33
        %3001 = vperm.xlu0 %3000, %v2713
        %v3002 = vpop.permute.xlu0 %3001
        %3005 = vset.pattern.permute.xlu0 33
        %3006 = vperm.xlu0 %3005, %v2715
        %v3007 = vpop.permute.xlu0 %3006
        %3010 = vset.pattern.permute.xlu0 33
        %3011 = vperm.xlu0 %3010, %v2717
        %v3012 = vpop.permute.xlu0 %3011
        %3015 = vset.pattern.permute.xlu0 33
        %3016 = vperm.xlu0 %3015, %v2719
        %v3017 = vpop.permute.xlu0 %3016
        %3020 = vset.pattern.permute.xlu0 33
        %3021 = vperm.xlu0 %3020, %v2721
        %v3022 = vpop.permute.xlu0 %3021
        %3025 = vset.pattern.permute.xlu0 33
        %3026 = vperm.xlu0 %3025, %v2723
        %v3027 = vpop.permute.xlu0 %3026
        %3030 = vset.pattern.permute.xlu0 33
        %3031 = vperm.xlu0 %3030, %v2725
        %v3032 = vpop.permute.xlu0 %3031
        %3035 = vset.pattern.permute.xlu0 33
        %3036 = vperm.xlu0 %3035, %v2727
        %v3037 = vpop.permute.xlu0 %3036
        %3040 = vset.pattern.permute.xlu0 33
        %3041 = vperm.xlu0 %3040, %v2729
        %v3042 = vpop.permute.xlu0 %3041
        %3045 = vset.pattern.permute.xlu0 33
        %3046 = vperm.xlu0 %3045, %v2731
        %v3047 = vpop.permute.xlu0 %3046
        %3050 = vset.pattern.permute.xlu0 33
        %3051 = vperm.xlu0 %3050, %v2733
        %v3052 = vpop.permute.xlu0 %3051
        %v3054 = vmul.f32 %v1710, %v2737
        %v3055 = vmul.f32 %v1713, %v2742
        %v3056 = vmul.f32 %v1718, %v2747
        %v3057 = vmul.f32 %v1721, %v2752
        %v3058 = vmul.f32 %v1726, %v2757
        %v3059 = vmul.f32 %v1729, %v2762
        %v3060 = vmul.f32 %v1734, %v2767
        %v3061 = vmul.f32 %v1737, %v2772
        %v3062 = vmul.f32 %v1742, %v2777
        %v3063 = vmul.f32 %v1745, %v2782
        %v3064 = vmul.f32 %v1750, %v2787
        %v3065 = vmul.f32 %v1753, %v2792
        %v3066 = vmul.f32 %v1758, %v2797
        %v3067 = vmul.f32 %v1761, %v2802
        %v3068 = vmul.f32 %v1766, %v2807
        %v3069 = vmul.f32 %v1769, %v2812
        %v3070 = vmul.f32 %v1774, %v2817
        %v3071 = vmul.f32 %v1777, %v2822
        %v3072 = vmul.f32 %v1782, %v2827
        %v3073 = vmul.f32 %v1785, %v2832
        %v3074 = vmul.f32 %v1790, %v2837
        %v3075 = vmul.f32 %v1793, %v2842
        %v3076 = vmul.f32 %v1798, %v2847
        %v3077 = vmul.f32 %v1801, %v2852
        %v3078 = vmul.f32 %v1806, %v2857
        %v3079 = vmul.f32 %v1809, %v2862
        %v3080 = vmul.f32 %v1814, %v2867
        %v3081 = vmul.f32 %v1817, %v2872
        %v3082 = vmul.f32 %v1822, %v2877
        %v3083 = vmul.f32 %v1825, %v2882
        %v3084 = vmul.f32 %v1830, %v2887
        %v3085 = vmul.f32 %v1833, %v2892
        %v3086 = vmul.f32 %v1838, %v2897
        %v3087 = vmul.f32 %v1841, %v2902
        %v3088 = vmul.f32 %v1846, %v2907
        %v3089 = vmul.f32 %v1849, %v2912
        %v3090 = vmul.f32 %v1854, %v2917
        %v3091 = vmul.f32 %v1857, %v2922
        %v3092 = vmul.f32 %v1862, %v2927
        %v3093 = vmul.f32 %v1865, %v2932
        %v3094 = vmul.f32 %v1870, %v2937
        %v3095 = vmul.f32 %v1873, %v2942
        %v3096 = vmul.f32 %v1878, %v2947
        %v3097 = vmul.f32 %v1881, %v2952
        %v3098 = vmul.f32 %v1886, %v2957
        %v3099 = vmul.f32 %v1889, %v2962
        %v3100 = vmul.f32 %v1894, %v2967
        %v3101 = vmul.f32 %v1897, %v2972
        %v3102 = vmul.f32 %v1902, %v2977
        %v3103 = vmul.f32 %v1905, %v2982
        %v3104 = vmul.f32 %v1910, %v2987
        %v3105 = vmul.f32 %v1913, %v2992
        %v3106 = vmul.f32 %v1918, %v2997
        %v3107 = vmul.f32 %v1921, %v3002
        %v3108 = vmul.f32 %v1926, %v3007
        %v3109 = vmul.f32 %v1929, %v3012
        %v3110 = vmul.f32 %v1934, %v3017
        %v3111 = vmul.f32 %v1937, %v3022
        %v3112 = vmul.f32 %v1942, %v3027
        %v3113 = vmul.f32 %v1945, %v3032
        %v3114 = vmul.f32 %v1950, %v3037
        %v3115 = vmul.f32 %v1953, %v3042
        %v3116 = vmul.f32 %v1958, %v3047
        %v3117 = vmul.f32 %v1961, %v3052
        %v3118 = vld [vmem:[%s280] sm:$0xf]
        %v3119 = vlaneseq
        %v3120 = vshrl.u32 %v3119, 7
        %v3121 = vadd.s32 %v3120, 8
        %v3122 = vadd.s32 %v3120, 16
        %v3123 = vadd.s32 %v3120, 24
        %v3124 = vadd.s32 %v3120, 32
        %v3125 = vadd.s32 %v3120, 40
        %v3126 = vadd.s32 %v3120, 48
        %v3127 = vadd.s32 %v3120, 56
        %v3128 = vlaneseq
        %v3129 = vshrl.u32 %v3128, 7
        %v3130 = vsub.s32 0, %v3129
        %v3131 = vrot.slane %v3118, %v3130
        %v3132 = vlaneseq
        %v3133 = vshrl.u32 %v3132, 7
        %v3134 = vsub.s32 1, %v3133
        %v3135 = vrot.slane %v3118, %v3134
        %v3136 = vlaneseq
        %v3137 = vshrl.u32 %v3136, 7
        %v3138 = vsub.s32 2, %v3137
        %v3139 = vrot.slane %v3118, %v3138
        %v3140 = vlaneseq
        %v3141 = vshrl.u32 %v3140, 7
        %v3142 = vsub.s32 3, %v3141
        %v3143 = vrot.slane %v3118, %v3142
        %vm3144 = vcmp.eq.s32.totalorder %v3120, %v3131
        %vm3145 = vcmp.eq.s32.totalorder %v3120, %v3135
        %vm3146 = vcmp.eq.s32.totalorder %v3120, %v3139
        %vm3147 = vcmp.eq.s32.totalorder %v3120, %v3143
        %vm3148 = vcmp.eq.s32.totalorder %v3121, %v3131
        %vm3149 = vcmp.eq.s32.totalorder %v3121, %v3135
        %vm3150 = vcmp.eq.s32.totalorder %v3121, %v3139
        %vm3151 = vcmp.eq.s32.totalorder %v3121, %v3143
        %vm3152 = vcmp.eq.s32.totalorder %v3122, %v3131
        %vm3153 = vcmp.eq.s32.totalorder %v3122, %v3135
        %vm3154 = vcmp.eq.s32.totalorder %v3122, %v3139
        %vm3155 = vcmp.eq.s32.totalorder %v3122, %v3143
        %vm3156 = vcmp.eq.s32.totalorder %v3123, %v3131
        %vm3157 = vcmp.eq.s32.totalorder %v3123, %v3135
        %vm3158 = vcmp.eq.s32.totalorder %v3123, %v3139
        %vm3159 = vcmp.eq.s32.totalorder %v3123, %v3143
        %vm3160 = vcmp.eq.s32.totalorder %v3124, %v3131
        %vm3161 = vcmp.eq.s32.totalorder %v3124, %v3135
        %vm3162 = vcmp.eq.s32.totalorder %v3124, %v3139
        %vm3163 = vcmp.eq.s32.totalorder %v3124, %v3143
        %vm3164 = vcmp.eq.s32.totalorder %v3125, %v3131
        %vm3165 = vcmp.eq.s32.totalorder %v3125, %v3135
        %vm3166 = vcmp.eq.s32.totalorder %v3125, %v3139
        %vm3167 = vcmp.eq.s32.totalorder %v3125, %v3143
        %vm3168 = vcmp.eq.s32.totalorder %v3126, %v3131
        %vm3169 = vcmp.eq.s32.totalorder %v3126, %v3135
        %vm3170 = vcmp.eq.s32.totalorder %v3126, %v3139
        %vm3171 = vcmp.eq.s32.totalorder %v3126, %v3143
        %vm3172 = vcmp.eq.s32.totalorder %v3127, %v3131
        %vm3173 = vcmp.eq.s32.totalorder %v3127, %v3135
        %vm3174 = vcmp.eq.s32.totalorder %v3127, %v3139
        %vm3175 = vcmp.eq.s32.totalorder %v3127, %v3143
        %v3176 = vsel %vm3144, 1.0, 0.0
        %v3177 = vsel %vm3145, 1.0, 0.0
        %v3178 = vsel %vm3146, 1.0, 0.0
        %v3179 = vsel %vm3147, 1.0, 0.0
        %v3180 = vsel %vm3148, 1.0, 0.0
        %v3181 = vsel %vm3149, 1.0, 0.0
        %v3182 = vsel %vm3150, 1.0, 0.0
        %v3183 = vsel %vm3151, 1.0, 0.0
        %v3184 = vsel %vm3152, 1.0, 0.0
        %v3185 = vsel %vm3153, 1.0, 0.0
        %v3186 = vsel %vm3154, 1.0, 0.0
        %v3187 = vsel %vm3155, 1.0, 0.0
        %v3188 = vsel %vm3156, 1.0, 0.0
        %v3189 = vsel %vm3157, 1.0, 0.0
        %v3190 = vsel %vm3158, 1.0, 0.0
        %v3191 = vsel %vm3159, 1.0, 0.0
        %v3192 = vsel %vm3160, 1.0, 0.0
        %v3193 = vsel %vm3161, 1.0, 0.0
        %v3194 = vsel %vm3162, 1.0, 0.0
        %v3195 = vsel %vm3163, 1.0, 0.0
        %v3196 = vsel %vm3164, 1.0, 0.0
        %v3197 = vsel %vm3165, 1.0, 0.0
        %v3198 = vsel %vm3166, 1.0, 0.0
        %v3199 = vsel %vm3167, 1.0, 0.0
        %v3200 = vsel %vm3168, 1.0, 0.0
        %v3201 = vsel %vm3169, 1.0, 0.0
        %v3202 = vsel %vm3170, 1.0, 0.0
        %v3203 = vsel %vm3171, 1.0, 0.0
        %v3204 = vsel %vm3172, 1.0, 0.0
        %v3205 = vsel %vm3173, 1.0, 0.0
        %v3206 = vsel %vm3174, 1.0, 0.0
        %v3207 = vsel %vm3175, 1.0, 0.0
        %v3208 = vpack.c.bf16 %v3180, %v3176
        %v3209 = vpack.c.bf16 %v3181, %v3177
        %v3210 = vpack.c.bf16 %v3182, %v3178
        %v3211 = vpack.c.bf16 %v3183, %v3179
        %v3212 = vpack.c.bf16 %v3188, %v3184
        %v3213 = vpack.c.bf16 %v3189, %v3185
        %v3214 = vpack.c.bf16 %v3190, %v3186
        %v3215 = vpack.c.bf16 %v3191, %v3187
        %v3216 = vpack.c.bf16 %v3196, %v3192
        %v3217 = vpack.c.bf16 %v3197, %v3193
        %v3218 = vpack.c.bf16 %v3198, %v3194
        %v3219 = vpack.c.bf16 %v3199, %v3195
        %v3220 = vpack.c.bf16 %v3204, %v3200
        %v3221 = vpack.c.bf16 %v3205, %v3201
        %v3222 = vpack.c.bf16 %v3206, %v3202
        %v3223 = vpack.c.bf16 %v3207, %v3203
        %v3224 = vld [vmem:[#allocation2] sm:$0xff]
        %v3225 = vld [vmem:[#allocation2 + $0x8] sm:$0xff]
        %v3226 = vld [vmem:[#allocation2 + $0x10] sm:$0xff]
        %v3227 = vld [vmem:[#allocation2 + $0x18] sm:$0xff]
        %v3228 = vld [vmem:[#allocation2 + $0x20] sm:$0xff]
        %v3229 = vld [vmem:[#allocation2 + $0x28] sm:$0xff]
        %v3230 = vld [vmem:[#allocation2 + $0x30] sm:$0xff]
        %v3231 = vld [vmem:[#allocation2 + $0x38] sm:$0xff]
        %v3232 = vpack.c.bf16 %v3055, %v3054
        %v3233 = vpack.c.bf16 %v3057, %v3056
        %v3234 = vpack.c.bf16 %v3059, %v3058
        %v3235 = vpack.c.bf16 %v3061, %v3060
        %v3236 = vpack.c.bf16 %v3063, %v3062
        %v3237 = vpack.c.bf16 %v3065, %v3064
        %v3238 = vpack.c.bf16 %v3067, %v3066
        %v3239 = vpack.c.bf16 %v3069, %v3068
        %v3240 = vpack.c.bf16 %v3071, %v3070
        %v3241 = vpack.c.bf16 %v3073, %v3072
        %v3242 = vpack.c.bf16 %v3075, %v3074
        %v3243 = vpack.c.bf16 %v3077, %v3076
        %v3244 = vpack.c.bf16 %v3079, %v3078
        %v3245 = vpack.c.bf16 %v3081, %v3080
        %v3246 = vpack.c.bf16 %v3083, %v3082
        %v3247 = vpack.c.bf16 %v3085, %v3084
        %v3248 = vpack.c.bf16 %v3087, %v3086
        %v3249 = vpack.c.bf16 %v3089, %v3088
        %v3250 = vpack.c.bf16 %v3091, %v3090
        %v3251 = vpack.c.bf16 %v3093, %v3092
        %v3252 = vpack.c.bf16 %v3095, %v3094
        %v3253 = vpack.c.bf16 %v3097, %v3096
        %v3254 = vpack.c.bf16 %v3099, %v3098
        %v3255 = vpack.c.bf16 %v3101, %v3100
        %v3256 = vpack.c.bf16 %v3103, %v3102
        %v3257 = vpack.c.bf16 %v3105, %v3104
        %v3258 = vpack.c.bf16 %v3107, %v3106
        %v3259 = vpack.c.bf16 %v3109, %v3108
        %v3260 = vpack.c.bf16 %v3111, %v3110
        %v3261 = vpack.c.bf16 %v3113, %v3112
        %v3262 = vpack.c.bf16 %v3115, %v3114
        %v3263 = vpack.c.bf16 %v3117, %v3116
        %3264 = vmatprep.subr.bf16.mxu0 0
        %3265 = vmatpush1.bf16.msra.mxu0 %v3239
        %3266 = vmatprep.subr.bf16.mxu0 0
        %3267 = vmatpush1.bf16.msra.mxu0 %v3238
        %3268 = vmatprep.subr.bf16.mxu0 0
        %3269 = vmatpush1.bf16.msra.mxu0 %v3237
        %3270 = vmatprep.subr.bf16.mxu0 0
        %3271 = vmatpush1.bf16.msra.mxu0 %v3236
        %3272 = vmatprep.subr.bf16.mxu0 0
        %3273 = vmatpush1.bf16.msra.mxu0 %v3235
        %3274 = vmatprep.subr.bf16.mxu0 0
        %3275 = vmatpush1.bf16.msra.mxu0 %v3234
        %3276 = vmatprep.subr.bf16.mxu0 0
        %3277 = vmatpush1.bf16.msra.mxu0 %v3233
        %3278 = vmatprep.subr.bf16.mxu0 0
        %3279 = vmatpush1.bf16.msra.mxu0 %v3232
        %3280 = vmatprep.subr.bf16.mxu0 0
        %3281 = vmatpush2.bf16.msra.mxu0 %v3247
        %3282 = vmatprep.subr.bf16.mxu0 0
        %3283 = vmatpush2.bf16.msra.mxu0 %v3246
        %3284 = vmatprep.subr.bf16.mxu0 0
        %3285 = vmatpush2.bf16.msra.mxu0 %v3245
        %3286 = vmatprep.subr.bf16.mxu0 0
        %3287 = vmatpush2.bf16.msra.mxu0 %v3244
        %3288 = vmatprep.subr.bf16.mxu0 0
        %3289 = vmatpush2.bf16.msra.mxu0 %v3243
        %3290 = vmatprep.subr.bf16.mxu0 0
        %3291 = vmatpush2.bf16.msra.mxu0 %v3242
        %3292 = vmatprep.subr.bf16.mxu0 0
        %3293 = vmatpush2.bf16.msra.mxu0 %v3241
        %3294 = vmatprep.subr.bf16.mxu0 0
        %3295 = vmatpush2.bf16.msra.mxu0 %v3240
        %3296 = vmatprep.mubr.bf16.mxu0 %v3209
        %3297 = vmatmul.mubr.bf16.gmra.mxu0 %v3208
        %v3298 = vpop.f32.mrf.mxu0
        %v3299 = vadd.f32 0.0, %v3298
        %v3300 = vpop.f32.mrf.mxu0
        %v3301 = vpop.f32.mrf.mxu0
        %v3302 = vadd.f32 0.0, %v3301
        %v3303 = vpop.f32.mrf.mxu0
        %3304 = vmatprep.mubr.bf16.mxu0 %v3213
        %3305 = vmatmul.mubr.bf16.gmra.mxu0 %v3212
        %v3306 = vpop.f32.mrf.mxu0
        %v3307 = vadd.f32 0.0, %v3306
        %v3308 = vpop.f32.mrf.mxu0
        %v3309 = vpop.f32.mrf.mxu0
        %v3310 = vadd.f32 0.0, %v3309
        %v3311 = vpop.f32.mrf.mxu0
        %3312 = vmatprep.mubr.bf16.mxu0 %v3217
        %3313 = vmatmul.mubr.bf16.gmra.mxu0 %v3216
        %v3314 = vpop.f32.mrf.mxu0
        %v3315 = vadd.f32 0.0, %v3314
        %v3316 = vpop.f32.mrf.mxu0
        %v3317 = vpop.f32.mrf.mxu0
        %v3318 = vadd.f32 0.0, %v3317
        %v3319 = vpop.f32.mrf.mxu0
        %3320 = vmatprep.mubr.bf16.mxu0 %v3221
        %3321 = vmatmul.mubr.bf16.gmra.mxu0 %v3220
        %v3322 = vpop.f32.mrf.mxu0
        %v3323 = vadd.f32 0.0, %v3322
        %v3324 = vpop.f32.mrf.mxu0
        %v3325 = vpop.f32.mrf.mxu0
        %v3326 = vadd.f32 0.0, %v3325
        %v3327 = vpop.f32.mrf.mxu0
        %3328 = vdwg.mxu0
        %3329 = vmatprep.subr.bf16.mxu0 0
        %3330 = vmatpush1.bf16.msra.mxu0 %v3255
        %3331 = vmatprep.subr.bf16.mxu0 0
        %3332 = vmatpush1.bf16.msra.mxu0 %v3254
        %3333 = vmatprep.subr.bf16.mxu0 0
        %3334 = vmatpush1.bf16.msra.mxu0 %v3253
        %3335 = vmatprep.subr.bf16.mxu0 0
        %3336 = vmatpush1.bf16.msra.mxu0 %v3252
        %3337 = vmatprep.subr.bf16.mxu0 0
        %3338 = vmatpush1.bf16.msra.mxu0 %v3251
        %3339 = vmatprep.subr.bf16.mxu0 0
        %3340 = vmatpush1.bf16.msra.mxu0 %v3250
        %3341 = vmatprep.subr.bf16.mxu0 0
        %3342 = vmatpush1.bf16.msra.mxu0 %v3249
        %3343 = vmatprep.subr.bf16.mxu0 0
        %3344 = vmatpush1.bf16.msra.mxu0 %v3248
        %3345 = vmatprep.subr.bf16.mxu0 0
        %3346 = vmatpush2.bf16.msra.mxu0 %v3263
        %3347 = vmatprep.subr.bf16.mxu0 0
        %3348 = vmatpush2.bf16.msra.mxu0 %v3262
        %3349 = vmatprep.subr.bf16.mxu0 0
        %3350 = vmatpush2.bf16.msra.mxu0 %v3261
        %3351 = vmatprep.subr.bf16.mxu0 0
        %3352 = vmatpush2.bf16.msra.mxu0 %v3260
        %3353 = vmatprep.subr.bf16.mxu0 0
        %3354 = vmatpush2.bf16.msra.mxu0 %v3259
        %3355 = vmatprep.subr.bf16.mxu0 0
        %3356 = vmatpush2.bf16.msra.mxu0 %v3258
        %3357 = vmatprep.subr.bf16.mxu0 0
        %3358 = vmatpush2.bf16.msra.mxu0 %v3257
        %3359 = vmatprep.subr.bf16.mxu0 0
        %3360 = vmatpush2.bf16.msra.mxu0 %v3256
        %3361 = vmatprep.mubr.bf16.mxu0 %v3211
        %3362 = vmatmul.mubr.bf16.gmra.mxu0 %v3210
        %v3363 = vpop.f32.mrf.mxu0
        %v3364 = vadd.f32 %v3299, %v3363
        %v3365 = vpop.f32.mrf.mxu0
        %v3366 = vpop.f32.mrf.mxu0
        %v3367 = vadd.f32 %v3302, %v3366
        %v3368 = vpop.f32.mrf.mxu0
        %3369 = vmatprep.mubr.bf16.mxu0 %v3215
        %3370 = vmatmul.mubr.bf16.gmra.mxu0 %v3214
        %v3371 = vpop.f32.mrf.mxu0
        %v3372 = vadd.f32 %v3307, %v3371
        %v3373 = vpop.f32.mrf.mxu0
        %v3374 = vpop.f32.mrf.mxu0
        %v3375 = vadd.f32 %v3310, %v3374
        %v3376 = vpop.f32.mrf.mxu0
        %3377 = vmatprep.mubr.bf16.mxu0 %v3219
        %3378 = vmatmul.mubr.bf16.gmra.mxu0 %v3218
        %v3379 = vpop.f32.mrf.mxu0
        %v3380 = vadd.f32 %v3315, %v3379
        %v3381 = vpop.f32.mrf.mxu0
        %v3382 = vpop.f32.mrf.mxu0
        %v3383 = vadd.f32 %v3318, %v3382
        %v3384 = vpop.f32.mrf.mxu0
        %3385 = vmatprep.mubr.bf16.mxu0 %v3223
        %3386 = vmatmul.mubr.bf16.gmra.mxu0 %v3222
        %v3387 = vpop.f32.mrf.mxu0
        %v3388 = vadd.f32 %v3323, %v3387
        %v3389 = vpop.f32.mrf.mxu0
        %v3390 = vpop.f32.mrf.mxu0
        %v3391 = vadd.f32 %v3326, %v3390
        %v3392 = vpop.f32.mrf.mxu0
        %3393 = vdwg.mxu0
        %v3394 = vadd.f32 %v3224, %v3364
        %v3395 = vadd.f32 %v3225, %v3367
        %v3396 = vadd.f32 %v3226, %v3372
        %v3397 = vadd.f32 %v3227, %v3375
        %v3398 = vadd.f32 %v3228, %v3380
        %v3399 = vadd.f32 %v3229, %v3383
        %v3400 = vadd.f32 %v3230, %v3388
        %v3401 = vadd.f32 %v3231, %v3391
        %3402 = vst [vmem:[#allocation2] sm:$0xff] %v3394
        %3403 = vst [vmem:[#allocation2 + $0x8] sm:$0xff] %v3395
        %3404 = vst [vmem:[#allocation2 + $0x10] sm:$0xff] %v3396
        %3405 = vst [vmem:[#allocation2 + $0x18] sm:$0xff] %v3397
        %3406 = vst [vmem:[#allocation2 + $0x20] sm:$0xff] %v3398
        %3407 = vst [vmem:[#allocation2 + $0x28] sm:$0xff] %v3399
        %3408 = vst [vmem:[#allocation2 + $0x30] sm:$0xff] %v3400
        %3409 = vst [vmem:[#allocation2 + $0x38] sm:$0xff] %v3401
        %p3410 = scmp.eq.s32.totalorder %s19, 2
        // Predicated region
        $region49: #{tpu_custom_call.1} parent=43 // pred_check
          %p3411 = pneg %p3410
        $region50: #{tpu_custom_call.1} parent=43 // pred_check_branch
          %3413 = sbr.rel (%p3411) target = $region52
        $region51: #{tpu_custom_call.1} parent=43 // pred_region
          %v3414 = vld [vmem:[#allocation2] sm:$0xff]
          %v3415 = vld [vmem:[#allocation2 + $0x8] sm:$0xff]
          %v3416 = vld [vmem:[#allocation2 + $0x10] sm:$0xff]
          %v3417 = vld [vmem:[#allocation2 + $0x18] sm:$0xff]
          %v3418 = vld [vmem:[#allocation2 + $0x20] sm:$0xff]
          %v3419 = vld [vmem:[#allocation2 + $0x28] sm:$0xff]
          %v3420 = vld [vmem:[#allocation2 + $0x30] sm:$0xff]
          %v3421 = vld [vmem:[#allocation2 + $0x38] sm:$0xff]
          %v3422 = vadd.f32 %v3414, 1e-16
          %v3423 = vadd.f32 %v3415, 1e-16
          %v3424 = vadd.f32 %v3416, 1e-16
          %v3425 = vadd.f32 %v3417, 1e-16
          %v3426 = vadd.f32 %v3418, 1e-16
          %v3427 = vadd.f32 %v3419, 1e-16
          %v3428 = vadd.f32 %v3420, 1e-16
          %v3429 = vadd.f32 %v3421, 1e-16
          %v3430 = vrcp.pop %v3422
          %v3431 = vrcp.pop %v3423
          %v3432 = vrcp.pop %v3424
          %v3433 = vrcp.pop %v3425
          %v3434 = vrcp.pop %v3426
          %v3435 = vrcp.pop %v3427
          %v3436 = vrcp.pop %v3428
          %v3437 = vrcp.pop %v3429
          %3439 = vset.pattern.permute.xlu0 32
          %3440 = vperm.xlu0 %3439, %v3430
          %v3441 = vpop.permute.xlu0 %3440
          %3444 = vset.pattern.permute.xlu0 32
          %3445 = vperm.xlu0 %3444, %v3431
          %v3446 = vpop.permute.xlu0 %3445
          %3449 = vset.pattern.permute.xlu0 32
          %3450 = vperm.xlu0 %3449, %v3432
          %v3451 = vpop.permute.xlu0 %3450
          %3454 = vset.pattern.permute.xlu0 32
          %3455 = vperm.xlu0 %3454, %v3433
          %v3456 = vpop.permute.xlu0 %3455
          %3459 = vset.pattern.permute.xlu0 32
          %3460 = vperm.xlu0 %3459, %v3434
          %v3461 = vpop.permute.xlu0 %3460
          %3464 = vset.pattern.permute.xlu0 32
          %3465 = vperm.xlu0 %3464, %v3435
          %v3466 = vpop.permute.xlu0 %3465
          %3469 = vset.pattern.permute.xlu0 32
          %3470 = vperm.xlu0 %3469, %v3436
          %v3471 = vpop.permute.xlu0 %3470
          %3474 = vset.pattern.permute.xlu0 32
          %3475 = vperm.xlu0 %3474, %v3437
          %v3476 = vpop.permute.xlu0 %3475
          %v3478 = vmul.f32 %v3414, %v3441
          %v3479 = vmul.f32 %v3415, %v3446
          %v3480 = vmul.f32 %v3416, %v3451
          %v3481 = vmul.f32 %v3417, %v3456
          %v3482 = vmul.f32 %v3418, %v3461
          %v3483 = vmul.f32 %v3419, %v3466
          %v3484 = vmul.f32 %v3420, %v3471
          %v3485 = vmul.f32 %v3421, %v3476
          %vm3486 = vcmp.lt.s32.totalorder %v424, 32
          %v3487 = vsel %vm3486, %v3478, 0.0
          %v3488 = vsel %vm3486, %v3479, 0.0
          %v3489 = vsel %vm3486, %v3480, 0.0
          %v3490 = vsel %vm3486, %v3481, 0.0
          %v3491 = vsel %vm3486, %v3482, 0.0
          %v3492 = vsel %vm3486, %v3483, 0.0
          %v3493 = vsel %vm3486, %v3484, 0.0
          %v3494 = vsel %vm3486, %v3485, 0.0
          %vm3495 = vcmp.gt.f32.partialorder %v3487, 0.0
          %vm3496 = vcmp.gt.f32.partialorder %v3488, 0.0
          %vm3497 = vcmp.gt.f32.partialorder %v3489, 0.0
          %vm3498 = vcmp.gt.f32.partialorder %v3490, 0.0
          %vm3499 = vcmp.gt.f32.partialorder %v3491, 0.0
          %vm3500 = vcmp.gt.f32.partialorder %v3492, 0.0
          %vm3501 = vcmp.gt.f32.partialorder %v3493, 0.0
          %vm3502 = vcmp.gt.f32.partialorder %v3494, 0.0
          %v3503 = vmul.f32 %v3487, 1.442695
          %v3504 = vpow.pop %v3503
          %v3505 = vmul.f32 %v3488, 1.442695
          %v3506 = vpow.pop %v3505
          %v3507 = vmul.f32 %v3489, 1.442695
          %v3508 = vpow.pop %v3507
          %v3509 = vmul.f32 %v3490, 1.442695
          %v3510 = vpow.pop %v3509
          %v3511 = vmul.f32 %v3491, 1.442695
          %v3512 = vpow.pop %v3511
          %v3513 = vmul.f32 %v3492, 1.442695
          %v3514 = vpow.pop %v3513
          %v3515 = vmul.f32 %v3493, 1.442695
          %v3516 = vpow.pop %v3515
          %v3517 = vmul.f32 %v3494, 1.442695
          %v3518 = vpow.pop %v3517
          %v3519 = vsub.f32 %v3504, 1.0
          %v3520 = vsub.f32 %v3506, 1.0
          %v3521 = vsub.f32 %v3508, 1.0
          %v3522 = vsub.f32 %v3510, 1.0
          %v3523 = vsub.f32 %v3512, 1.0
          %v3524 = vsub.f32 %v3514, 1.0
          %v3525 = vsub.f32 %v3516, 1.0
          %v3526 = vsub.f32 %v3518, 1.0
          %v3527 = vsel %vm3495, %v3487, %v3519
          %v3528 = vsel %vm3496, %v3488, %v3520
          %v3529 = vsel %vm3497, %v3489, %v3521
          %v3530 = vsel %vm3498, %v3490, %v3522
          %v3531 = vsel %vm3499, %v3491, %v3523
          %v3532 = vsel %vm3500, %v3492, %v3524
          %v3533 = vsel %vm3501, %v3493, %v3525
          %v3534 = vsel %vm3502, %v3494, %v3526
          %3535 = vst [vmem:[#allocation4] sm:$0xff] %v3527
          %3536 = vst [vmem:[#allocation4 + $0x8] sm:$0xff] %v3528
          %3537 = vst [vmem:[#allocation4 + $0x10] sm:$0xff] %v3529
          %3538 = vst [vmem:[#allocation4 + $0x18] sm:$0xff] %v3530
          %3539 = vst [vmem:[#allocation4 + $0x20] sm:$0xff] %v3531
          %3540 = vst [vmem:[#allocation4 + $0x28] sm:$0xff] %v3532
          %3541 = vst [vmem:[#allocation4 + $0x30] sm:$0xff] %v3533
          %3542 = vst [vmem:[#allocation4 + $0x38] sm:$0xff] %v3534
        $region52: #{tpu_custom_call.1} parent=43 // pred_fallthru
          _
        // Predicated region
        $region53: #{tpu_custom_call.1} parent=43 // pred_check
          %p3543 = pneg %p173
        $region54: #{tpu_custom_call.1} parent=43 // pred_check_branch
          %3545 = sbr.rel (%p3543) target = $region56
        $region55: #{tpu_custom_call.1} parent=43 // pred_region
          %s3547 = ssub.s32 1024, 1024
          %3548 = vsyncadd [#allocation5], %s3547
          %s3549 = sshll.u32 [#allocation4], 4
          %s3550 = int_to_ptr.vmem [resolvable:$true] %s3549
          %3555 = dma.vmem_to_hbm [thread:$0]  %s3550, 1024, %s6, [#allocation5], 128, 128, 8
        $region56: #{tpu_custom_call.1} parent=43 // pred_fallthru
          _
        // Predicated region
        $region57: #{tpu_custom_call.1} parent=43 // pred_check
          %p3556 = pneg %p173
        $region58: #{tpu_custom_call.1} parent=43 // pred_check_branch
          %3558 = sbr.rel (%p3556) target = $region60
        $region59: #{tpu_custom_call.1} parent=43 // pred_region
          %3559 = dma.done [#allocation5], 1024
        $region60: #{tpu_custom_call.1} parent=43 // pred_fallthru
          _
      $region44: #{tpu_custom_call.1} parent=5 // pred_fallthru
        _
      %p3560 = scmp.le.s32.totalorder 2, %s14
      // Predicated region
      $region61: #{tpu_custom_call.1} parent=5 // pred_check
        %p3561 = pneg %p3560
      $region62: #{tpu_custom_call.1} parent=5 // pred_check_branch
        %3563 = sbr.rel (%p3561) target = $region64
      $region63: #{tpu_custom_call.1} parent=5 // pred_region
        %s3564 = ssub.s32 %s14, 2
      $region64: #{tpu_custom_call.1} parent=5 // pred_fallthru
        _
    $region6: #{tpu_custom_call.1} parent=1 // loop_footer
      %s18 = sadd.s32 1, %s14
    $region7: #{tpu_custom_call.1} parent=1 // loop_footer_branch
      %13 = sbr.rel target = $region3
    $region8: #{tpu_custom_call.1} parent=1 // loop_exit
      _
    %3565 = vsyncpa [#allocation5], 1
    %s3566 = scalar_lea.sflag [#allocation5], 1
    %3567 = vsyncpa %s3566, 1

</llo_original>
